<compile_context>
chip_gen: v7x
topology: tpu7x:2x2x1
jax: 0.10.0
libtpu: 0.0.40
codegen_flags: <defaults>
</compile_context>

<pallas_src>
import functools
import math

import jax
import jax.numpy as jnp
from jax import lax
from jax.experimental import pallas as pl
from jax.experimental.pallas import tpu as pltpu

# ----------------------------- configuration (small, deterministic) ---------
VOCAB_SIZE = 20
PAD_IDX = 0
SEQ_LEN = 8          # config['data']['seq_len']
HIDDEN = 32          # config['molecule_decoder']['hidden_size']
NUM_HEADS = 4        # nn.TransformerEncoderLayer(nhead=4)
NUM_LAYERS = 3       # nn.TransformerEncoder(num_layers=3)
D_FF = 2048          # PyTorch TransformerEncoderLayer default dim_feedforward
BOTTLE_MID = 512     # bottle: Linear(seq_len*hidden, 512)
TEMPERATURE = 2.0    # config['train']['temperature'] (synthetic)
BATCH = 2
LN_EPS = 1e-5
LEAKY_SLOPE = 0.01   # PyTorch nn.LeakyReLU default


# ============================ fused Pallas kernel ============================
def _layer_norm(v, w, b):
    mu = jnp.mean(v, axis=-1, keepdims=True)
    var = jnp.mean((v - mu) ** 2, axis=-1, keepdims=True)
    return (v - mu) * lax.rsqrt(var + LN_EPS) * w + b


def clip_mol_kernel(tok_ref, emb_ref, pe_ref,
                    wqkv_ref, bqkv_ref, wo_ref, bo_ref,
                    ln1w_ref, ln1b_ref, w1_ref, b1_ref, w2_ref, b2_ref,
                    ln2w_ref, ln2b_ref,
                    bw1_ref, bb1_ref, bw2_ref, bb2_ref,
                    o_ref, x_sc, *, num_heads, num_layers):
    """embed -> +PE -> 3x TransformerEncoderLayer -> bottle -> L2 normalise.

    Weights are pre-transposed to (in_features, out_features), stacked along a
    leading layer axis, and (matmul weights) stored in bf16.  Whole batch is
    processed in one grid-less invocation; tokens arrive via SMEM.
    """
    B, S = tok_ref.shape
    H = emb_ref.shape[1]
    BS = B * S
    hd = H // num_heads
    scale = 1.0 / math.sqrt(hd)

    # ---- embedding gather (tokens in SMEM) + positional encoding (eval) ------
    for r in range(BS):                               # static unroll (16 rows)
        tok = tok_ref[r // S, r % S]
        x_sc[pl.ds(r, 1), :] = emb_ref[pl.ds(tok, 1), :]
    x = x_sc[...] + pe_ref[...]                       # (BS, H) f32; dropout=id

    for li in range(num_layers):                      # static unroll (3)
        # ---- multi-head self attention: ONE chain for all heads -------------
        qkv = jnp.dot(x.astype(jnp.bfloat16), wqkv_ref[li],
                      preferred_element_type=jnp.float32) + bqkv_ref[li]  # (BS,3H)
        # per-head lane slices, stacked along the leading (untiled) axis
        qs, ks, vs = [], [], []
        for h in range(num_heads):                    # lane slices only
            qs.append(qkv[:, h * hd:(h + 1) * hd].reshape(B, S, hd))
            ks.append(qkv[:, H + h * hd:H + (h + 1) * hd].reshape(B, S, hd))
            vs.append(qkv[:, 2 * H + h * hd:2 * H + (h + 1) * hd].reshape(B, S, hd))
        qn = jnp.concatenate(qs, axis=0)              # (num_heads*B, S, hd)
        kn = jnp.concatenate(ks, axis=0)
        vn = jnp.concatenate(vs, axis=0)

        sc = jnp.einsum('nqd,nkd->nqk', qn, kn,
                        preferred_element_type=jnp.float32) * scale
        sc = sc - jnp.max(sc, axis=-1, keepdims=True)
        p = jnp.exp(sc)
        p = p * pl.reciprocal(jnp.sum(p, axis=-1, keepdims=True), approx=True)
        on = jnp.einsum('nqk,nkd->nqd', p, vn,
                        preferred_element_type=jnp.float32)  # (num_heads*B, S, hd)

        attn = jnp.concatenate([on[h * B:(h + 1) * B] for h in range(num_heads)],
                               axis=-1).reshape(BS, H)
        attn = jnp.dot(attn.astype(jnp.bfloat16), wo_ref[li],
                       preferred_element_type=jnp.float32) + bo_ref[li]

        # ---- residual + LayerNorm 1 (dropout = identity, eval mode) ---------
        y = _layer_norm(x + attn, ln1w_ref[li], ln1b_ref[li])

        # ---- feed-forward (ReLU); bf16 weights, f32 accumulation ------------
        h1 = jnp.dot(y.astype(jnp.bfloat16), w1_ref[li],
                     preferred_element_type=jnp.float32) + b1_ref[li]
        h1 = jnp.maximum(h1, 0.0)
        ff = jnp.dot(h1.astype(jnp.bfloat16), w2_ref[li],
                     preferred_element_type=jnp.float32) + b2_ref[li]

        # ---- residual + LayerNorm 2 ------------------------------------------
        x = _layer_norm(y + ff, ln2w_ref[li], ln2b_ref[li])

    # ---- bottle MLP: single (B, S*H) @ (S*H, 512) matmul ----------------------
    # torch: inp.view(-1, S*H) flattens s-major (index s*H + h); build that
    # layout with a lane concat (layout-safe, no minor-dim-splitting reshape).
    x3 = x.reshape(B, S, H)                            # leading-only reshape
    flat = jnp.concatenate([x3[:, s, :] for s in range(S)], axis=-1)  # (B, S*H)
    hmid = jnp.dot(flat.astype(jnp.bfloat16), bw1_ref[...],
                   preferred_element_type=jnp.float32) + bb1_ref[...]
    hmid = jnp.where(hmid >= 0.0, hmid, LEAKY_SLOPE * hmid)   # LeakyReLU(0.01)
    e = jnp.dot(hmid.astype(jnp.bfloat16), bw2_ref[...],
                preferred_element_type=jnp.float32) + bb2_ref[...]
    # torch: x / x.norm(dim=1, keepdim=True)  (no eps, matching semantics)
    o_ref[...] = e * lax.rsqrt(jnp.sum(e * e, axis=1, keepdims=True))


# ============================ wrapper ========================================
def clip_mol_encoder(tokens, params):
    """tokens: (B, S) int32 -> L2-normalised molecule features (B, H)."""
    B, S = tokens.shape
    layers, bot = params["layers"], params["bottle"]
    pe_full = jnp.tile(params["pe"][0], (B, 1))        # (B*S, H) f32

    kernel = functools.partial(clip_mol_kernel,
                               num_heads=NUM_HEADS, num_layers=NUM_LAYERS)
    args = (tokens, params["embed"], pe_full,
            layers["wqkv"], layers["bqkv"], layers["wo"], layers["bo"],
            layers["ln1w"], layers["ln1b"], layers["w1"], layers["b1"],
            layers["w2"], layers["b2"], layers["ln2w"], layers["ln2b"],
            bot["w1"], bot["b1"], bot["w2"], bot["b2"])

    smem = pl.BlockSpec(memory_space=pltpu.MemorySpace.SMEM)
    vmem = pl.BlockSpec(memory_space=pltpu.MemorySpace.VMEM)
    return pl.pallas_call(
        kernel,
        out_shape=jax.ShapeDtypeStruct((B, HIDDEN), jnp.float32),
        in_specs=[smem] + [vmem] * (len(args) - 1),
        out_specs=pl.BlockSpec(memory_space=pltpu.MemorySpace.VMEM),
        scratch_shapes=[pltpu.VMEM((B * S, HIDDEN), jnp.float32)],
        compiler_params=pltpu.CompilerParams(
            vmem_limit_bytes=32 * 1024 * 1024),   # resident footprint < 1.5 MiB
    )(*args)


# ============================ parameter construction =========================
def make_positional_encodings(seq_len, d_model):
    tok = jnp.arange(seq_len, dtype=jnp.float32).reshape(-1, 1)
    dim = jnp.arange(d_model, dtype=jnp.float32).reshape(1, -1)
    angles = tok / jnp.power(10000.0, 2.0 * dim / d_model)
    even = (jnp.arange(d_model) % 2 == 0).reshape(1, -1)
    # Matches the provided PyTorch module: cos on even dims, sin on odd dims.
    pe = jnp.where(even, jnp.cos(angles), jnp.sin(angles))     # (S, H)
    return pe[None]                                            # (1, S, H)


def init_params(key):
    """Weights are stored pre-transposed as (in_features, out_features),
    stacked along a leading NUM_LAYERS axis; matmul weights in bf16."""
    def nrm(k, shape, scale=0.02):
        return scale * jax.random.normal(k, shape, dtype=jnp.float32)

    k_emb, k_layers, k_bottle = jax.random.split(key, 3)
    params = {}

    # nn.Embedding(len(vocab), hidden, padding_idx=pad)
    emb = jax.random.normal(k_emb, (VOCAB_SIZE, HIDDEN), dtype=jnp.float32)
    emb = emb.at[PAD_IDX].set(0.0)
    params["embed"] = emb
    params["pe"] = make_positional_encodings(SEQ_LEN, HIDDEN)

    # 3x TransformerEncoderLayer, stacked
    lk = jax.random.split(k_layers, 4 * NUM_LAYERS)
    wqkv, wo, w1, w2 = [], [], [], []
    for li in range(NUM_LAYERS):
        wqkv.append(nrm(lk[4 * li + 0], (HIDDEN, 3 * HIDDEN)))
        wo.append(nrm(lk[4 * li + 1], (HIDDEN, HIDDEN)))
        w1.append(nrm(lk[4 * li + 2], (HIDDEN, D_FF)))
        w2.append(nrm(lk[4 * li + 3], (D_FF, HIDDEN)))
    L = NUM_LAYERS
    params["layers"] = {
        "wqkv": jnp.stack(wqkv).astype(jnp.bfloat16),             # (L, H, 3H)
        "bqkv": jnp.zeros((L, 1, 3 * HIDDEN), jnp.float32),
        "wo":   jnp.stack(wo).astype(jnp.bfloat16),               # (L, H, H)
        "bo":   jnp.zeros((L, 1, HIDDEN), jnp.float32),
        "ln1w": jnp.ones((L, 1, HIDDEN), jnp.float32),
        "ln1b": jnp.zeros((L, 1, HIDDEN), jnp.float32),
        "w1":   jnp.stack(w1).astype(jnp.bfloat16),               # (L, H, Dff)
        "b1":   jnp.zeros((L, 1, D_FF), jnp.float32),
        "w2":   jnp.stack(w2).astype(jnp.bfloat16),               # (L, Dff, H)
        "b2":   jnp.zeros((L, 1, HIDDEN), jnp.float32),
        "ln2w": jnp.ones((L, 1, HIDDEN), jnp.float32),
        "ln2b": jnp.zeros((L, 1, HIDDEN), jnp.float32),
    }

    # bottle: Linear(S*H, 512) -> LeakyReLU -> Linear(512, H)
    bk = jax.random.split(k_bottle, 2)
    params["bottle"] = {
        "w1": nrm(bk[0], (SEQ_LEN * HIDDEN, BOTTLE_MID)).astype(jnp.bfloat16),
        "b1": jnp.zeros((1, BOTTLE_MID), jnp.float32),
        "w2": nrm(bk[1], (BOTTLE_MID, HIDDEN)).astype(jnp.bfloat16),
        "b2": jnp.zeros((1, HIDDEN), jnp.float32),
    }

    # logit_scale = nn.Parameter(ones([]) * temperature)
    params["logit_scale"] = jnp.array(TEMPERATURE, jnp.float32)
    return params


# ============================ CLIP forward (molecule branch) =================
def clip_forward(params, data):
    # forward_mol (embedding gather + PE + encoder + bottle all fused in-kernel)
    mol_latents = clip_mol_encoder(data["decoder_inp"], params)

    logits_scale = jnp.exp(params["logit_scale"])

    # TODO(synk): ViT Spectra_Encoder / LatentToMol decoder definitions not
    # provided -> spec_latents and smile_preds cannot be reproduced faithfully.
    spec_latents = None
    smile_preds = None
    return mol_latents, spec_latents, smile_preds, logits_scale, data["index"]


# ============================ main ===========================================
if __name__ == "__main__":
    key = jax.random.PRNGKey(0)
    pkey, dkey = jax.random.split(key)

    params = init_params(pkey)
    data = {
        "decoder_inp": jax.random.randint(dkey, (BATCH, SEQ_LEN), 0, VOCAB_SIZE,
                                          dtype=jnp.int32),
        "index": jnp.arange(BATCH, dtype=jnp.int32),
    }

    mol_latents, spec_latents, smile_preds, logits_scale, idx = clip_forward(params, data)
    jax.block_until_ready(mol_latents)
    jax.block_until_ready(logits_scale)

    assert mol_latents.shape == (BATCH, HIDDEN)
    # rows are L2-normalised
    norms = jnp.linalg.norm(mol_latents, axis=1)
    assert bool(jnp.all(jnp.abs(norms - 1.0) < 1e-4))
    print("KERNEL_OK")
</pallas_src>

<mosaic_0001>
module attributes {stable_mosaic.version = 11 : i64} {
  func.func @clip_mol_kernel(%arg0: memref<2x8xi32, #tpu.memory_space<smem>>, %arg1: memref<20x32xf32, #tpu.memory_space<vmem>>, %arg2: memref<16x32xf32, #tpu.memory_space<vmem>>, %arg3: memref<3x32x96xbf16, #tpu.memory_space<vmem>>, %arg4: memref<3x1x96xf32, #tpu.memory_space<vmem>>, %arg5: memref<3x32x32xbf16, #tpu.memory_space<vmem>>, %arg6: memref<3x1x32xf32, #tpu.memory_space<vmem>>, %arg7: memref<3x1x32xf32, #tpu.memory_space<vmem>>, %arg8: memref<3x1x32xf32, #tpu.memory_space<vmem>>, %arg9: memref<3x32x2048xbf16, #tpu.memory_space<vmem>>, %arg10: memref<3x1x2048xf32, #tpu.memory_space<vmem>>, %arg11: memref<3x2048x32xbf16, #tpu.memory_space<vmem>>, %arg12: memref<3x1x32xf32, #tpu.memory_space<vmem>>, %arg13: memref<3x1x32xf32, #tpu.memory_space<vmem>>, %arg14: memref<3x1x32xf32, #tpu.memory_space<vmem>>, %arg15: memref<256x512xbf16, #tpu.memory_space<vmem>>, %arg16: memref<1x512xf32, #tpu.memory_space<vmem>>, %arg17: memref<512x32xbf16, #tpu.memory_space<vmem>>, %arg18: memref<1x32xf32, #tpu.memory_space<vmem>>, %arg19: memref<2x32xf32, #tpu.memory_space<vmem>>, %arg20: memref<16x32xf32, #tpu.memory_space<vmem>>) attributes {dimension_semantics = [], scalar_prefetch = 0 : i64, scratch_operands = 1 : i64, tpu.core_type = #tpu.core_type<tc>} {
    %c0 = arith.constant 0 : index
    %c0_0 = arith.constant 0 : index
    %0 = memref.load %arg0[%c0, %c0_0] : memref<2x8xi32, #tpu.memory_space<smem>>
    %1 = arith.index_cast %0 : i32 to index
    %c0_1 = arith.constant 0 : index
    %2 = vector.load %arg1[%1, %c0_1] : memref<20x32xf32, #tpu.memory_space<vmem>>, vector<1x32xf32>
    %c0_2 = arith.constant 0 : index
    %c0_3 = arith.constant 0 : index
    %3 = vector.load %arg20[%c0_2, %c0_3] : memref<16x32xf32, #tpu.memory_space<vmem>>, vector<1x32xf32>
    tpu.vector_store %arg20[%c0_2, %c0_3], %2 {strides = array<i32>} : memref<16x32xf32, #tpu.memory_space<vmem>>, vector<1x32xf32>,
    %c0_4 = arith.constant 0 : index
    %c1 = arith.constant 1 : index
    %4 = memref.load %arg0[%c0_4, %c1] : memref<2x8xi32, #tpu.memory_space<smem>>
    %5 = arith.index_cast %4 : i32 to index
    %c0_5 = arith.constant 0 : index
    %6 = vector.load %arg1[%5, %c0_5] : memref<20x32xf32, #tpu.memory_space<vmem>>, vector<1x32xf32>
    %c1_6 = arith.constant 1 : index
    %c0_7 = arith.constant 0 : index
    %7 = vector.load %arg20[%c1_6, %c0_7] : memref<16x32xf32, #tpu.memory_space<vmem>>, vector<1x32xf32>
    tpu.vector_store %arg20[%c1_6, %c0_7], %6 {strides = array<i32>} : memref<16x32xf32, #tpu.memory_space<vmem>>, vector<1x32xf32>,
    %c0_8 = arith.constant 0 : index
    %c2 = arith.constant 2 : index
    %8 = memref.load %arg0[%c0_8, %c2] : memref<2x8xi32, #tpu.memory_space<smem>>
    %9 = arith.index_cast %8 : i32 to index
    %c0_9 = arith.constant 0 : index
    %10 = vector.load %arg1[%9, %c0_9] : memref<20x32xf32, #tpu.memory_space<vmem>>, vector<1x32xf32>
    %c2_10 = arith.constant 2 : index
    %c0_11 = arith.constant 0 : index
    %11 = vector.load %arg20[%c2_10, %c0_11] : memref<16x32xf32, #tpu.memory_space<vmem>>, vector<1x32xf32>
    tpu.vector_store %arg20[%c2_10, %c0_11], %10 {strides = array<i32>} : memref<16x32xf32, #tpu.memory_space<vmem>>, vector<1x32xf32>,
    %c0_12 = arith.constant 0 : index
    %c3 = arith.constant 3 : index
    %12 = memref.load %arg0[%c0_12, %c3] : memref<2x8xi32, #tpu.memory_space<smem>>
    %13 = arith.index_cast %12 : i32 to index
    %c0_13 = arith.constant 0 : index
    %14 = vector.load %arg1[%13, %c0_13] : memref<20x32xf32, #tpu.memory_space<vmem>>, vector<1x32xf32>
    %c3_14 = arith.constant 3 : index
    %c0_15 = arith.constant 0 : index
    %15 = vector.load %arg20[%c3_14, %c0_15] : memref<16x32xf32, #tpu.memory_space<vmem>>, vector<1x32xf32>
    tpu.vector_store %arg20[%c3_14, %c0_15], %14 {strides = array<i32>} : memref<16x32xf32, #tpu.memory_space<vmem>>, vector<1x32xf32>,
    %c0_16 = arith.constant 0 : index
    %c4 = arith.constant 4 : index
    %16 = memref.load %arg0[%c0_16, %c4] : memref<2x8xi32, #tpu.memory_space<smem>>
    %17 = arith.index_cast %16 : i32 to index
    %c0_17 = arith.constant 0 : index
    %18 = vector.load %arg1[%17, %c0_17] : memref<20x32xf32, #tpu.memory_space<vmem>>, vector<1x32xf32>
    %c4_18 = arith.constant 4 : index
    %c0_19 = arith.constant 0 : index
    %19 = vector.load %arg20[%c4_18, %c0_19] : memref<16x32xf32, #tpu.memory_space<vmem>>, vector<1x32xf32>
    tpu.vector_store %arg20[%c4_18, %c0_19], %18 {strides = array<i32>} : memref<16x32xf32, #tpu.memory_space<vmem>>, vector<1x32xf32>,
    %c0_20 = arith.constant 0 : index
    %c5 = arith.constant 5 : index
    %20 = memref.load %arg0[%c0_20, %c5] : memref<2x8xi32, #tpu.memory_space<smem>>
    %21 = arith.index_cast %20 : i32 to index
    %c0_21 = arith.constant 0 : index
    %22 = vector.load %arg1[%21, %c0_21] : memref<20x32xf32, #tpu.memory_space<vmem>>, vector<1x32xf32>
    %c5_22 = arith.constant 5 : index
    %c0_23 = arith.constant 0 : index
    %23 = vector.load %arg20[%c5_22, %c0_23] : memref<16x32xf32, #tpu.memory_space<vmem>>, vector<1x32xf32>
    tpu.vector_store %arg20[%c5_22, %c0_23], %22 {strides = array<i32>} : memref<16x32xf32, #tpu.memory_space<vmem>>, vector<1x32xf32>,
    %c0_24 = arith.constant 0 : index
    %c6 = arith.constant 6 : index
    %24 = memref.load %arg0[%c0_24, %c6] : memref<2x8xi32, #tpu.memory_space<smem>>
    %25 = arith.index_cast %24 : i32 to index
    %c0_25 = arith.constant 0 : index
    %26 = vector.load %arg1[%25, %c0_25] : memref<20x32xf32, #tpu.memory_space<vmem>>, vector<1x32xf32>
    %c6_26 = arith.constant 6 : index
    %c0_27 = arith.constant 0 : index
    %27 = vector.load %arg20[%c6_26, %c0_27] : memref<16x32xf32, #tpu.memory_space<vmem>>, vector<1x32xf32>
    tpu.vector_store %arg20[%c6_26, %c0_27], %26 {strides = array<i32>} : memref<16x32xf32, #tpu.memory_space<vmem>>, vector<1x32xf32>,
    %c0_28 = arith.constant 0 : index
    %c7 = arith.constant 7 : index
    %28 = memref.load %arg0[%c0_28, %c7] : memref<2x8xi32, #tpu.memory_space<smem>>
    %29 = arith.index_cast %28 : i32 to index
    %c0_29 = arith.constant 0 : index
    %30 = vector.load %arg1[%29, %c0_29] : memref<20x32xf32, #tpu.memory_space<vmem>>, vector<1x32xf32>
    %c7_30 = arith.constant 7 : index
    %c0_31 = arith.constant 0 : index
    %31 = vector.load %arg20[%c7_30, %c0_31] : memref<16x32xf32, #tpu.memory_space<vmem>>, vector<1x32xf32>
    tpu.vector_store %arg20[%c7_30, %c0_31], %30 {strides = array<i32>} : memref<16x32xf32, #tpu.memory_space<vmem>>, vector<1x32xf32>,
    %c1_32 = arith.constant 1 : index
    %c0_33 = arith.constant 0 : index
    %32 = memref.load %arg0[%c1_32, %c0_33] : memref<2x8xi32, #tpu.memory_space<smem>>
    %33 = arith.index_cast %32 : i32 to index
    %c0_34 = arith.constant 0 : index
    %34 = vector.load %arg1[%33, %c0_34] : memref<20x32xf32, #tpu.memory_space<vmem>>, vector<1x32xf32>
    %c8 = arith.constant 8 : index
    %c0_35 = arith.constant 0 : index
    %35 = vector.load %arg20[%c8, %c0_35] : memref<16x32xf32, #tpu.memory_space<vmem>>, vector<1x32xf32>
    tpu.vector_store %arg20[%c8, %c0_35], %34 {strides = array<i32>} : memref<16x32xf32, #tpu.memory_space<vmem>>, vector<1x32xf32>,
    %c1_36 = arith.constant 1 : index
    %c1_37 = arith.constant 1 : index
    %36 = memref.load %arg0[%c1_36, %c1_37] : memref<2x8xi32, #tpu.memory_space<smem>>
    %37 = arith.index_cast %36 : i32 to index
    %c0_38 = arith.constant 0 : index
    %38 = vector.load %arg1[%37, %c0_38] : memref<20x32xf32, #tpu.memory_space<vmem>>, vector<1x32xf32>
    %c9 = arith.constant 9 : index
    %c0_39 = arith.constant 0 : index
    %39 = vector.load %arg20[%c9, %c0_39] : memref<16x32xf32, #tpu.memory_space<vmem>>, vector<1x32xf32>
    tpu.vector_store %arg20[%c9, %c0_39], %38 {strides = array<i32>} : memref<16x32xf32, #tpu.memory_space<vmem>>, vector<1x32xf32>,
    %c1_40 = arith.constant 1 : index
    %c2_41 = arith.constant 2 : index
    %40 = memref.load %arg0[%c1_40, %c2_41] : memref<2x8xi32, #tpu.memory_space<smem>>
    %41 = arith.index_cast %40 : i32 to index
    %c0_42 = arith.constant 0 : index
    %42 = vector.load %arg1[%41, %c0_42] : memref<20x32xf32, #tpu.memory_space<vmem>>, vector<1x32xf32>
    %c10 = arith.constant 10 : index
    %c0_43 = arith.constant 0 : index
    %43 = vector.load %arg20[%c10, %c0_43] : memref<16x32xf32, #tpu.memory_space<vmem>>, vector<1x32xf32>
    tpu.vector_store %arg20[%c10, %c0_43], %42 {strides = array<i32>} : memref<16x32xf32, #tpu.memory_space<vmem>>, vector<1x32xf32>,
    %c1_44 = arith.constant 1 : index
    %c3_45 = arith.constant 3 : index
    %44 = memref.load %arg0[%c1_44, %c3_45] : memref<2x8xi32, #tpu.memory_space<smem>>
    %45 = arith.index_cast %44 : i32 to index
    %c0_46 = arith.constant 0 : index
    %46 = vector.load %arg1[%45, %c0_46] : memref<20x32xf32, #tpu.memory_space<vmem>>, vector<1x32xf32>
    %c11 = arith.constant 11 : index
    %c0_47 = arith.constant 0 : index
    %47 = vector.load %arg20[%c11, %c0_47] : memref<16x32xf32, #tpu.memory_space<vmem>>, vector<1x32xf32>
    tpu.vector_store %arg20[%c11, %c0_47], %46 {strides = array<i32>} : memref<16x32xf32, #tpu.memory_space<vmem>>, vector<1x32xf32>,
    %c1_48 = arith.constant 1 : index
    %c4_49 = arith.constant 4 : index
    %48 = memref.load %arg0[%c1_48, %c4_49] : memref<2x8xi32, #tpu.memory_space<smem>>
    %49 = arith.index_cast %48 : i32 to index
    %c0_50 = arith.constant 0 : index
    %50 = vector.load %arg1[%49, %c0_50] : memref<20x32xf32, #tpu.memory_space<vmem>>, vector<1x32xf32>
    %c12 = arith.constant 12 : index
    %c0_51 = arith.constant 0 : index
    %51 = vector.load %arg20[%c12, %c0_51] : memref<16x32xf32, #tpu.memory_space<vmem>>, vector<1x32xf32>
    tpu.vector_store %arg20[%c12, %c0_51], %50 {strides = array<i32>} : memref<16x32xf32, #tpu.memory_space<vmem>>, vector<1x32xf32>,
    %c1_52 = arith.constant 1 : index
    %c5_53 = arith.constant 5 : index
    %52 = memref.load %arg0[%c1_52, %c5_53] : memref<2x8xi32, #tpu.memory_space<smem>>
    %53 = arith.index_cast %52 : i32 to index
    %c0_54 = arith.constant 0 : index
    %54 = vector.load %arg1[%53, %c0_54] : memref<20x32xf32, #tpu.memory_space<vmem>>, vector<1x32xf32>
    %c13 = arith.constant 13 : index
    %c0_55 = arith.constant 0 : index
    %55 = vector.load %arg20[%c13, %c0_55] : memref<16x32xf32, #tpu.memory_space<vmem>>, vector<1x32xf32>
    tpu.vector_store %arg20[%c13, %c0_55], %54 {strides = array<i32>} : memref<16x32xf32, #tpu.memory_space<vmem>>, vector<1x32xf32>,
    %c1_56 = arith.constant 1 : index
    %c6_57 = arith.constant 6 : index
    %56 = memref.load %arg0[%c1_56, %c6_57] : memref<2x8xi32, #tpu.memory_space<smem>>
    %57 = arith.index_cast %56 : i32 to index
    %c0_58 = arith.constant 0 : index
    %58 = vector.load %arg1[%57, %c0_58] : memref<20x32xf32, #tpu.memory_space<vmem>>, vector<1x32xf32>
    %c14 = arith.constant 14 : index
    %c0_59 = arith.constant 0 : index
    %59 = vector.load %arg20[%c14, %c0_59] : memref<16x32xf32, #tpu.memory_space<vmem>>, vector<1x32xf32>
    tpu.vector_store %arg20[%c14, %c0_59], %58 {strides = array<i32>} : memref<16x32xf32, #tpu.memory_space<vmem>>, vector<1x32xf32>,
    %c1_60 = arith.constant 1 : index
    %c7_61 = arith.constant 7 : index
    %60 = memref.load %arg0[%c1_60, %c7_61] : memref<2x8xi32, #tpu.memory_space<smem>>
    %61 = arith.index_cast %60 : i32 to index
    %c0_62 = arith.constant 0 : index
    %62 = vector.load %arg1[%61, %c0_62] : memref<20x32xf32, #tpu.memory_space<vmem>>, vector<1x32xf32>
    %c15 = arith.constant 15 : index
    %c0_63 = arith.constant 0 : index
    %63 = vector.load %arg20[%c15, %c0_63] : memref<16x32xf32, #tpu.memory_space<vmem>>, vector<1x32xf32>
    tpu.vector_store %arg20[%c15, %c0_63], %62 {strides = array<i32>} : memref<16x32xf32, #tpu.memory_space<vmem>>, vector<1x32xf32>,
    %c0_64 = arith.constant 0 : index
    %c0_65 = arith.constant 0 : index
    %64 = vector.load %arg20[%c0_64, %c0_65] : memref<16x32xf32, #tpu.memory_space<vmem>>, vector<16x32xf32>
    %c0_66 = arith.constant 0 : index
    %c0_67 = arith.constant 0 : index
    %65 = vector.load %arg2[%c0_66, %c0_67] : memref<16x32xf32, #tpu.memory_space<vmem>>, vector<16x32xf32>
    %66 = arith.addf %64, %65 : vector<16x32xf32>
    %67 = arith.truncf %66 : vector<16x32xf32> to vector<16x32xbf16>
    %c0_68 = arith.constant 0 : index
    %c0_69 = arith.constant 0 : index
    %c0_70 = arith.constant 0 : index
    %68 = vector.load %arg3[%c0_68, %c0_69, %c0_70] : memref<3x32x96xbf16, #tpu.memory_space<vmem>>, vector<1x32x96xbf16>
    %69 = vector.shape_cast %68 : vector<1x32x96xbf16> to vector<32x96xbf16>
    %cst = arith.constant dense<0.000000e+00> : vector<16x96xf32>
    %70 = tpu.matmul %67, %69, %cst {dimension_numbers = #tpu.dot_dimension_numbers<[1], [0], [0], [1], [0, 0, 1, 1], [], []>} : vector<16x32xbf16>, vector<32x96xbf16>, vector<16x96xf32> -> vector<16x96xf32>
    %c0_71 = arith.constant 0 : index
    %c0_72 = arith.constant 0 : index
    %c0_73 = arith.constant 0 : index
    %71 = vector.load %arg4[%c0_71, %c0_72, %c0_73] : memref<3x1x96xf32, #tpu.memory_space<vmem>>, vector<1x1x96xf32>
    %72 = vector.shape_cast %71 : vector<1x1x96xf32> to vector<1x96xf32>
    %73 = vector.broadcast %72 : vector<1x96xf32> to vector<16x96xf32>
    %74 = arith.addf %70, %73 : vector<16x96xf32>
    %75 = vector.extract_strided_slice %74 {offsets = [0, 0], sizes = [16, 8], strides = [1, 1]} : vector<16x96xf32> to vector<16x8xf32>
    %76 = vector.shape_cast %75 : vector<16x8xf32> to vector<2x8x8xf32>
    %77 = vector.extract_strided_slice %74 {offsets = [0, 32], sizes = [16, 8], strides = [1, 1]} : vector<16x96xf32> to vector<16x8xf32>
    %78 = vector.shape_cast %77 : vector<16x8xf32> to vector<2x8x8xf32>
    %79 = vector.extract_strided_slice %74 {offsets = [0, 64], sizes = [16, 8], strides = [1, 1]} : vector<16x96xf32> to vector<16x8xf32>
    %80 = vector.shape_cast %79 : vector<16x8xf32> to vector<2x8x8xf32>
    %81 = vector.extract_strided_slice %74 {offsets = [0, 8], sizes = [16, 8], strides = [1, 1]} : vector<16x96xf32> to vector<16x8xf32>
    %82 = vector.shape_cast %81 : vector<16x8xf32> to vector<2x8x8xf32>
    %83 = vector.extract_strided_slice %74 {offsets = [0, 40], sizes = [16, 8], strides = [1, 1]} : vector<16x96xf32> to vector<16x8xf32>
    %84 = vector.shape_cast %83 : vector<16x8xf32> to vector<2x8x8xf32>
    %85 = vector.extract_strided_slice %74 {offsets = [0, 72], sizes = [16, 8], strides = [1, 1]} : vector<16x96xf32> to vector<16x8xf32>
    %86 = vector.shape_cast %85 : vector<16x8xf32> to vector<2x8x8xf32>
    %87 = vector.extract_strided_slice %74 {offsets = [0, 16], sizes = [16, 8], strides = [1, 1]} : vector<16x96xf32> to vector<16x8xf32>
    %88 = vector.shape_cast %87 : vector<16x8xf32> to vector<2x8x8xf32>
    %89 = vector.extract_strided_slice %74 {offsets = [0, 48], sizes = [16, 8], strides = [1, 1]} : vector<16x96xf32> to vector<16x8xf32>
    %90 = vector.shape_cast %89 : vector<16x8xf32> to vector<2x8x8xf32>
    %91 = vector.extract_strided_slice %74 {offsets = [0, 80], sizes = [16, 8], strides = [1, 1]} : vector<16x96xf32> to vector<16x8xf32>
    %92 = vector.shape_cast %91 : vector<16x8xf32> to vector<2x8x8xf32>
    %93 = vector.extract_strided_slice %74 {offsets = [0, 24], sizes = [16, 8], strides = [1, 1]} : vector<16x96xf32> to vector<16x8xf32>
    %94 = vector.shape_cast %93 : vector<16x8xf32> to vector<2x8x8xf32>
    %95 = vector.extract_strided_slice %74 {offsets = [0, 56], sizes = [16, 8], strides = [1, 1]} : vector<16x96xf32> to vector<16x8xf32>
    %96 = vector.shape_cast %95 : vector<16x8xf32> to vector<2x8x8xf32>
    %97 = vector.extract_strided_slice %74 {offsets = [0, 88], sizes = [16, 8], strides = [1, 1]} : vector<16x96xf32> to vector<16x8xf32>
    %98 = vector.shape_cast %97 : vector<16x8xf32> to vector<2x8x8xf32>
    %99 = tpu.concatenate %76, %82, %88, %94 in 0 : vector<2x8x8xf32>, vector<2x8x8xf32>, vector<2x8x8xf32>, vector<2x8x8xf32> -> vector<8x8x8xf32>
    %100 = tpu.concatenate %78, %84, %90, %96 in 0 : vector<2x8x8xf32>, vector<2x8x8xf32>, vector<2x8x8xf32>, vector<2x8x8xf32> -> vector<8x8x8xf32>
    %101 = tpu.concatenate %80, %86, %92, %98 in 0 : vector<2x8x8xf32>, vector<2x8x8xf32>, vector<2x8x8xf32>, vector<2x8x8xf32> -> vector<8x8x8xf32>
    "tpu.trace_start"() <{level = 10 : i32, message = "nqd,nkd->nqk"}> : () -> ()
    %cst_74 = arith.constant dense<0.000000e+00> : vector<8x8x8xf32>
    %102 = tpu.matmul %99, %100, %cst_74 {dimension_numbers = #tpu.dot_dimension_numbers<[2], [2], [1], [1], [0, 0, 0, 1, 1, 1], [0], [0]>} : vector<8x8x8xf32>, vector<8x8x8xf32>, vector<8x8x8xf32> -> vector<8x8x8xf32>
    "tpu.trace_stop"() : () -> ()
    %cst_75 = arith.constant 0.353553385 : f32
    %103 = vector.broadcast %cst_75 : f32 to vector<8x8x8xf32>
    %104 = arith.mulf %102, %103 : vector<8x8x8xf32>
    %cst_76 = arith.constant dense<0xFF800000> : vector<8x8xf32>
    %105 = vector.multi_reduction <maximumf>, %104, %cst_76 [2] : vector<8x8x8xf32> to vector<8x8xf32>
    %106 = vector.shape_cast %105 : vector<8x8xf32> to vector<8x8x1xf32>
    %107 = vector.broadcast %106 : vector<8x8x1xf32> to vector<8x8x8xf32>
    %108 = arith.subf %104, %107 : vector<8x8x8xf32>
    %109 = math.exp %108 : vector<8x8x8xf32>
    %cst_77 = arith.constant dense<0.000000e+00> : vector<8x8xf32>
    %110 = vector.multi_reduction <add>, %109, %cst_77 [2] : vector<8x8x8xf32> to vector<8x8xf32>
    %111 = vector.shape_cast %110 : vector<8x8xf32> to vector<8x8x1xf32>
    %112 = tpu.reciprocal %111 {approx = true} : vector<8x8x1xf32> -> vector<8x8x1xf32>
    %113 = vector.broadcast %112 : vector<8x8x1xf32> to vector<8x8x8xf32>
    %114 = arith.mulf %109, %113 : vector<8x8x8xf32>
    "tpu.trace_start"() <{level = 10 : i32, message = "nqk,nkd->nqd"}> : () -> ()
    %cst_78 = arith.constant dense<0.000000e+00> : vector<8x8x8xf32>
    %115 = tpu.matmul %114, %101, %cst_78 {dimension_numbers = #tpu.dot_dimension_numbers<[2], [1], [1], [2], [0, 0, 0, 1, 1, 2], [0], [0]>} : vector<8x8x8xf32>, vector<8x8x8xf32>, vector<8x8x8xf32> -> vector<8x8x8xf32>
    "tpu.trace_stop"() : () -> ()
    %116 = vector.extract_strided_slice %115 {offsets = [0, 0, 0], sizes = [2, 8, 8], strides = [1, 1, 1]} : vector<8x8x8xf32> to vector<2x8x8xf32>
    %117 = vector.extract_strided_slice %115 {offsets = [2, 0, 0], sizes = [2, 8, 8], strides = [1, 1, 1]} : vector<8x8x8xf32> to vector<2x8x8xf32>
    %118 = vector.extract_strided_slice %115 {offsets = [4, 0, 0], sizes = [2, 8, 8], strides = [1, 1, 1]} : vector<8x8x8xf32> to vector<2x8x8xf32>
    %119 = vector.extract_strided_slice %115 {offsets = [6, 0, 0], sizes = [2, 8, 8], strides = [1, 1, 1]} : vector<8x8x8xf32> to vector<2x8x8xf32>
    %120 = tpu.concatenate %116, %117, %118, %119 in 2 : vector<2x8x8xf32>, vector<2x8x8xf32>, vector<2x8x8xf32>, vector<2x8x8xf32> -> vector<2x8x32xf32>
    %121 = vector.shape_cast %120 : vector<2x8x32xf32> to vector<16x32xf32>
    %122 = arith.truncf %121 : vector<16x32xf32> to vector<16x32xbf16>
    %c0_79 = arith.constant 0 : index
    %c0_80 = arith.constant 0 : index
    %c0_81 = arith.constant 0 : index
    %123 = vector.load %arg5[%c0_79, %c0_80, %c0_81] : memref<3x32x32xbf16, #tpu.memory_space<vmem>>, vector<1x32x32xbf16>
    %124 = vector.shape_cast %123 : vector<1x32x32xbf16> to vector<32x32xbf16>
    %cst_82 = arith.constant dense<0.000000e+00> : vector<16x32xf32>
    %125 = tpu.matmul %122, %124, %cst_82 {dimension_numbers = #tpu.dot_dimension_numbers<[1], [0], [0], [1], [0, 0, 1, 1], [], []>} : vector<16x32xbf16>, vector<32x32xbf16>, vector<16x32xf32> -> vector<16x32xf32>
    %c0_83 = arith.constant 0 : index
    %c0_84 = arith.constant 0 : index
    %c0_85 = arith.constant 0 : index
    %126 = vector.load %arg6[%c0_83, %c0_84, %c0_85] : memref<3x1x32xf32, #tpu.memory_space<vmem>>, vector<1x1x32xf32>
    %127 = vector.shape_cast %126 : vector<1x1x32xf32> to vector<1x32xf32>
    %128 = vector.broadcast %127 : vector<1x32xf32> to vector<16x32xf32>
    %129 = arith.addf %125, %128 : vector<16x32xf32>
    %130 = arith.addf %66, %129 : vector<16x32xf32>
    %c0_86 = arith.constant 0 : index
    %c0_87 = arith.constant 0 : index
    %c0_88 = arith.constant 0 : index
    %131 = vector.load %arg7[%c0_86, %c0_87, %c0_88] : memref<3x1x32xf32, #tpu.memory_space<vmem>>, vector<1x1x32xf32>
    %132 = vector.shape_cast %131 : vector<1x1x32xf32> to vector<1x32xf32>
    %c0_89 = arith.constant 0 : index
    %c0_90 = arith.constant 0 : index
    %c0_91 = arith.constant 0 : index
    %133 = vector.load %arg8[%c0_89, %c0_90, %c0_91] : memref<3x1x32xf32, #tpu.memory_space<vmem>>, vector<1x1x32xf32>
    %134 = vector.shape_cast %133 : vector<1x1x32xf32> to vector<1x32xf32>
    %cst_92 = arith.constant dense<0.000000e+00> : vector<16xf32>
    %135 = vector.multi_reduction <add>, %130, %cst_92 [1] : vector<16x32xf32> to vector<16xf32>
    %136 = vector.shape_cast %135 : vector<16xf32> to vector<16x1xf32>
    %cst_93 = arith.constant 3.200000e+01 : f32
    %137 = vector.broadcast %cst_93 : f32 to vector<16x1xf32>
    %138 = arith.divf %136, %137 : vector<16x1xf32>
    %139 = vector.broadcast %138 : vector<16x1xf32> to vector<16x32xf32>
    %140 = arith.subf %130, %139 : vector<16x32xf32>
    %141 = arith.mulf %140, %140 : vector<16x32xf32>
    %cst_94 = arith.constant dense<0.000000e+00> : vector<16xf32>
    %142 = vector.multi_reduction <add>, %141, %cst_94 [1] : vector<16x32xf32> to vector<16xf32>
    %143 = vector.shape_cast %142 : vector<16xf32> to vector<16x1xf32>
    %cst_95 = arith.constant 3.200000e+01 : f32
    %144 = vector.broadcast %cst_95 : f32 to vector<16x1xf32>
    %145 = arith.divf %143, %144 : vector<16x1xf32>
    %146 = vector.broadcast %138 : vector<16x1xf32> to vector<16x32xf32>
    %147 = arith.subf %130, %146 : vector<16x32xf32>
    %cst_96 = arith.constant 9.99999974E-6 : f32
    %148 = vector.broadcast %cst_96 : f32 to vector<16x1xf32>
    %149 = arith.addf %145, %148 : vector<16x1xf32>
    %150 = math.rsqrt %149 : vector<16x1xf32>
    %151 = vector.broadcast %150 : vector<16x1xf32> to vector<16x32xf32>
    %152 = arith.mulf %147, %151 : vector<16x32xf32>
    %153 = vector.broadcast %132 : vector<1x32xf32> to vector<16x32xf32>
    %154 = arith.mulf %152, %153 : vector<16x32xf32>
    %155 = vector.broadcast %134 : vector<1x32xf32> to vector<16x32xf32>
    %156 = arith.addf %154, %155 : vector<16x32xf32>
    %157 = arith.truncf %156 : vector<16x32xf32> to vector<16x32xbf16>
    %c0_97 = arith.constant 0 : index
    %c0_98 = arith.constant 0 : index
    %c0_99 = arith.constant 0 : index
    %158 = vector.load %arg9[%c0_97, %c0_98, %c0_99] : memref<3x32x2048xbf16, #tpu.memory_space<vmem>>, vector<1x32x2048xbf16>
    %159 = vector.shape_cast %158 : vector<1x32x2048xbf16> to vector<32x2048xbf16>
    %cst_100 = arith.constant dense<0.000000e+00> : vector<16x2048xf32>
    %160 = tpu.matmul %157, %159, %cst_100 {dimension_numbers = #tpu.dot_dimension_numbers<[1], [0], [0], [1], [0, 0, 1, 1], [], []>} : vector<16x32xbf16>, vector<32x2048xbf16>, vector<16x2048xf32> -> vector<16x2048xf32>
    %c0_101 = arith.constant 0 : index
    %c0_102 = arith.constant 0 : index
    %c0_103 = arith.constant 0 : index
    %161 = vector.load %arg10[%c0_101, %c0_102, %c0_103] : memref<3x1x2048xf32, #tpu.memory_space<vmem>>, vector<1x1x2048xf32>
    %162 = vector.shape_cast %161 : vector<1x1x2048xf32> to vector<1x2048xf32>
    %163 = vector.broadcast %162 : vector<1x2048xf32> to vector<16x2048xf32>
    %164 = arith.addf %160, %163 : vector<16x2048xf32>
    %cst_104 = arith.constant 0.000000e+00 : f32
    %165 = vector.broadcast %cst_104 : f32 to vector<16x2048xf32>
    %166 = arith.maximumf %164, %165 : vector<16x2048xf32>
    %167 = arith.truncf %166 : vector<16x2048xf32> to vector<16x2048xbf16>
    %c0_105 = arith.constant 0 : index
    %c0_106 = arith.constant 0 : index
    %c0_107 = arith.constant 0 : index
    %168 = vector.load %arg11[%c0_105, %c0_106, %c0_107] : memref<3x2048x32xbf16, #tpu.memory_space<vmem>>, vector<1x2048x32xbf16>
    %169 = vector.shape_cast %168 : vector<1x2048x32xbf16> to vector<2048x32xbf16>
    %cst_108 = arith.constant dense<0.000000e+00> : vector<16x32xf32>
    %170 = tpu.matmul %167, %169, %cst_108 {dimension_numbers = #tpu.dot_dimension_numbers<[1], [0], [0], [1], [0, 0, 1, 1], [], []>} : vector<16x2048xbf16>, vector<2048x32xbf16>, vector<16x32xf32> -> vector<16x32xf32>
    %c0_109 = arith.constant 0 : index
    %c0_110 = arith.constant 0 : index
    %c0_111 = arith.constant 0 : index
    %171 = vector.load %arg12[%c0_109, %c0_110, %c0_111] : memref<3x1x32xf32, #tpu.memory_space<vmem>>, vector<1x1x32xf32>
    %172 = vector.shape_cast %171 : vector<1x1x32xf32> to vector<1x32xf32>
    %173 = vector.broadcast %172 : vector<1x32xf32> to vector<16x32xf32>
    %174 = arith.addf %170, %173 : vector<16x32xf32>
    %175 = arith.addf %156, %174 : vector<16x32xf32>
    %c0_112 = arith.constant 0 : index
    %c0_113 = arith.constant 0 : index
    %c0_114 = arith.constant 0 : index
    %176 = vector.load %arg13[%c0_112, %c0_113, %c0_114] : memref<3x1x32xf32, #tpu.memory_space<vmem>>, vector<1x1x32xf32>
    %177 = vector.shape_cast %176 : vector<1x1x32xf32> to vector<1x32xf32>
    %c0_115 = arith.constant 0 : index
    %c0_116 = arith.constant 0 : index
    %c0_117 = arith.constant 0 : index
    %178 = vector.load %arg14[%c0_115, %c0_116, %c0_117] : memref<3x1x32xf32, #tpu.memory_space<vmem>>, vector<1x1x32xf32>
    %179 = vector.shape_cast %178 : vector<1x1x32xf32> to vector<1x32xf32>
    %cst_118 = arith.constant dense<0.000000e+00> : vector<16xf32>
    %180 = vector.multi_reduction <add>, %175, %cst_118 [1] : vector<16x32xf32> to vector<16xf32>
    %181 = vector.shape_cast %180 : vector<16xf32> to vector<16x1xf32>
    %cst_119 = arith.constant 3.200000e+01 : f32
    %182 = vector.broadcast %cst_119 : f32 to vector<16x1xf32>
    %183 = arith.divf %181, %182 : vector<16x1xf32>
    %184 = vector.broadcast %183 : vector<16x1xf32> to vector<16x32xf32>
    %185 = arith.subf %175, %184 : vector<16x32xf32>
    %186 = arith.mulf %185, %185 : vector<16x32xf32>
    %cst_120 = arith.constant dense<0.000000e+00> : vector<16xf32>
    %187 = vector.multi_reduction <add>, %186, %cst_120 [1] : vector<16x32xf32> to vector<16xf32>
    %188 = vector.shape_cast %187 : vector<16xf32> to vector<16x1xf32>
    %cst_121 = arith.constant 3.200000e+01 : f32
    %189 = vector.broadcast %cst_121 : f32 to vector<16x1xf32>
    %190 = arith.divf %188, %189 : vector<16x1xf32>
    %191 = vector.broadcast %183 : vector<16x1xf32> to vector<16x32xf32>
    %192 = arith.subf %175, %191 : vector<16x32xf32>
    %cst_122 = arith.constant 9.99999974E-6 : f32
    %193 = vector.broadcast %cst_122 : f32 to vector<16x1xf32>
    %194 = arith.addf %190, %193 : vector<16x1xf32>
    %195 = math.rsqrt %194 : vector<16x1xf32>
    %196 = vector.broadcast %195 : vector<16x1xf32> to vector<16x32xf32>
    %197 = arith.mulf %192, %196 : vector<16x32xf32>
    %198 = vector.broadcast %177 : vector<1x32xf32> to vector<16x32xf32>
    %199 = arith.mulf %197, %198 : vector<16x32xf32>
    %200 = vector.broadcast %179 : vector<1x32xf32> to vector<16x32xf32>
    %201 = arith.addf %199, %200 : vector<16x32xf32>
    %202 = arith.truncf %201 : vector<16x32xf32> to vector<16x32xbf16>
    %c1_123 = arith.constant 1 : index
    %c0_124 = arith.constant 0 : index
    %c0_125 = arith.constant 0 : index
    %203 = vector.load %arg3[%c1_123, %c0_124, %c0_125] : memref<3x32x96xbf16, #tpu.memory_space<vmem>>, vector<1x32x96xbf16>
    %204 = vector.shape_cast %203 : vector<1x32x96xbf16> to vector<32x96xbf16>
    %cst_126 = arith.constant dense<0.000000e+00> : vector<16x96xf32>
    %205 = tpu.matmul %202, %204, %cst_126 {dimension_numbers = #tpu.dot_dimension_numbers<[1], [0], [0], [1], [0, 0, 1, 1], [], []>} : vector<16x32xbf16>, vector<32x96xbf16>, vector<16x96xf32> -> vector<16x96xf32>
    %c1_127 = arith.constant 1 : index
    %c0_128 = arith.constant 0 : index
    %c0_129 = arith.constant 0 : index
    %206 = vector.load %arg4[%c1_127, %c0_128, %c0_129] : memref<3x1x96xf32, #tpu.memory_space<vmem>>, vector<1x1x96xf32>
    %207 = vector.shape_cast %206 : vector<1x1x96xf32> to vector<1x96xf32>
    %208 = vector.broadcast %207 : vector<1x96xf32> to vector<16x96xf32>
    %209 = arith.addf %205, %208 : vector<16x96xf32>
    %210 = vector.extract_strided_slice %209 {offsets = [0, 0], sizes = [16, 8], strides = [1, 1]} : vector<16x96xf32> to vector<16x8xf32>
    %211 = vector.shape_cast %210 : vector<16x8xf32> to vector<2x8x8xf32>
    %212 = vector.extract_strided_slice %209 {offsets = [0, 32], sizes = [16, 8], strides = [1, 1]} : vector<16x96xf32> to vector<16x8xf32>
    %213 = vector.shape_cast %212 : vector<16x8xf32> to vector<2x8x8xf32>
    %214 = vector.extract_strided_slice %209 {offsets = [0, 64], sizes = [16, 8], strides = [1, 1]} : vector<16x96xf32> to vector<16x8xf32>
    %215 = vector.shape_cast %214 : vector<16x8xf32> to vector<2x8x8xf32>
    %216 = vector.extract_strided_slice %209 {offsets = [0, 8], sizes = [16, 8], strides = [1, 1]} : vector<16x96xf32> to vector<16x8xf32>
    %217 = vector.shape_cast %216 : vector<16x8xf32> to vector<2x8x8xf32>
    %218 = vector.extract_strided_slice %209 {offsets = [0, 40], sizes = [16, 8], strides = [1, 1]} : vector<16x96xf32> to vector<16x8xf32>
    %219 = vector.shape_cast %218 : vector<16x8xf32> to vector<2x8x8xf32>
    %220 = vector.extract_strided_slice %209 {offsets = [0, 72], sizes = [16, 8], strides = [1, 1]} : vector<16x96xf32> to vector<16x8xf32>
    %221 = vector.shape_cast %220 : vector<16x8xf32> to vector<2x8x8xf32>
    %222 = vector.extract_strided_slice %209 {offsets = [0, 16], sizes = [16, 8], strides = [1, 1]} : vector<16x96xf32> to vector<16x8xf32>
    %223 = vector.shape_cast %222 : vector<16x8xf32> to vector<2x8x8xf32>
    %224 = vector.extract_strided_slice %209 {offsets = [0, 48], sizes = [16, 8], strides = [1, 1]} : vector<16x96xf32> to vector<16x8xf32>
    %225 = vector.shape_cast %224 : vector<16x8xf32> to vector<2x8x8xf32>
    %226 = vector.extract_strided_slice %209 {offsets = [0, 80], sizes = [16, 8], strides = [1, 1]} : vector<16x96xf32> to vector<16x8xf32>
    %227 = vector.shape_cast %226 : vector<16x8xf32> to vector<2x8x8xf32>
    %228 = vector.extract_strided_slice %209 {offsets = [0, 24], sizes = [16, 8], strides = [1, 1]} : vector<16x96xf32> to vector<16x8xf32>
    %229 = vector.shape_cast %228 : vector<16x8xf32> to vector<2x8x8xf32>
    %230 = vector.extract_strided_slice %209 {offsets = [0, 56], sizes = [16, 8], strides = [1, 1]} : vector<16x96xf32> to vector<16x8xf32>
    %231 = vector.shape_cast %230 : vector<16x8xf32> to vector<2x8x8xf32>
    %232 = vector.extract_strided_slice %209 {offsets = [0, 88], sizes = [16, 8], strides = [1, 1]} : vector<16x96xf32> to vector<16x8xf32>
    %233 = vector.shape_cast %232 : vector<16x8xf32> to vector<2x8x8xf32>
    %234 = tpu.concatenate %211, %217, %223, %229 in 0 : vector<2x8x8xf32>, vector<2x8x8xf32>, vector<2x8x8xf32>, vector<2x8x8xf32> -> vector<8x8x8xf32>
    %235 = tpu.concatenate %213, %219, %225, %231 in 0 : vector<2x8x8xf32>, vector<2x8x8xf32>, vector<2x8x8xf32>, vector<2x8x8xf32> -> vector<8x8x8xf32>
    %236 = tpu.concatenate %215, %221, %227, %233 in 0 : vector<2x8x8xf32>, vector<2x8x8xf32>, vector<2x8x8xf32>, vector<2x8x8xf32> -> vector<8x8x8xf32>
    "tpu.trace_start"() <{level = 10 : i32, message = "nqd,nkd->nqk"}> : () -> ()
    %cst_130 = arith.constant dense<0.000000e+00> : vector<8x8x8xf32>
    %237 = tpu.matmul %234, %235, %cst_130 {dimension_numbers = #tpu.dot_dimension_numbers<[2], [2], [1], [1], [0, 0, 0, 1, 1, 1], [0], [0]>} : vector<8x8x8xf32>, vector<8x8x8xf32>, vector<8x8x8xf32> -> vector<8x8x8xf32>
    "tpu.trace_stop"() : () -> ()
    %cst_131 = arith.constant 0.353553385 : f32
    %238 = vector.broadcast %cst_131 : f32 to vector<8x8x8xf32>
    %239 = arith.mulf %237, %238 : vector<8x8x8xf32>
    %cst_132 = arith.constant dense<0xFF800000> : vector<8x8xf32>
    %240 = vector.multi_reduction <maximumf>, %239, %cst_132 [2] : vector<8x8x8xf32> to vector<8x8xf32>
    %241 = vector.shape_cast %240 : vector<8x8xf32> to vector<8x8x1xf32>
    %242 = vector.broadcast %241 : vector<8x8x1xf32> to vector<8x8x8xf32>
    %243 = arith.subf %239, %242 : vector<8x8x8xf32>
    %244 = math.exp %243 : vector<8x8x8xf32>
    %cst_133 = arith.constant dense<0.000000e+00> : vector<8x8xf32>
    %245 = vector.multi_reduction <add>, %244, %cst_133 [2] : vector<8x8x8xf32> to vector<8x8xf32>
    %246 = vector.shape_cast %245 : vector<8x8xf32> to vector<8x8x1xf32>
    %247 = tpu.reciprocal %246 {approx = true} : vector<8x8x1xf32> -> vector<8x8x1xf32>
    %248 = vector.broadcast %247 : vector<8x8x1xf32> to vector<8x8x8xf32>
    %249 = arith.mulf %244, %248 : vector<8x8x8xf32>
    "tpu.trace_start"() <{level = 10 : i32, message = "nqk,nkd->nqd"}> : () -> ()
    %cst_134 = arith.constant dense<0.000000e+00> : vector<8x8x8xf32>
    %250 = tpu.matmul %249, %236, %cst_134 {dimension_numbers = #tpu.dot_dimension_numbers<[2], [1], [1], [2], [0, 0, 0, 1, 1, 2], [0], [0]>} : vector<8x8x8xf32>, vector<8x8x8xf32>, vector<8x8x8xf32> -> vector<8x8x8xf32>
    "tpu.trace_stop"() : () -> ()
    %251 = vector.extract_strided_slice %250 {offsets = [0, 0, 0], sizes = [2, 8, 8], strides = [1, 1, 1]} : vector<8x8x8xf32> to vector<2x8x8xf32>
    %252 = vector.extract_strided_slice %250 {offsets = [2, 0, 0], sizes = [2, 8, 8], strides = [1, 1, 1]} : vector<8x8x8xf32> to vector<2x8x8xf32>
    %253 = vector.extract_strided_slice %250 {offsets = [4, 0, 0], sizes = [2, 8, 8], strides = [1, 1, 1]} : vector<8x8x8xf32> to vector<2x8x8xf32>
    %254 = vector.extract_strided_slice %250 {offsets = [6, 0, 0], sizes = [2, 8, 8], strides = [1, 1, 1]} : vector<8x8x8xf32> to vector<2x8x8xf32>
    %255 = tpu.concatenate %251, %252, %253, %254 in 2 : vector<2x8x8xf32>, vector<2x8x8xf32>, vector<2x8x8xf32>, vector<2x8x8xf32> -> vector<2x8x32xf32>
    %256 = vector.shape_cast %255 : vector<2x8x32xf32> to vector<16x32xf32>
    %257 = arith.truncf %256 : vector<16x32xf32> to vector<16x32xbf16>
    %c1_135 = arith.constant 1 : index
    %c0_136 = arith.constant 0 : index
    %c0_137 = arith.constant 0 : index
    %258 = vector.load %arg5[%c1_135, %c0_136, %c0_137] : memref<3x32x32xbf16, #tpu.memory_space<vmem>>, vector<1x32x32xbf16>
    %259 = vector.shape_cast %258 : vector<1x32x32xbf16> to vector<32x32xbf16>
    %cst_138 = arith.constant dense<0.000000e+00> : vector<16x32xf32>
    %260 = tpu.matmul %257, %259, %cst_138 {dimension_numbers = #tpu.dot_dimension_numbers<[1], [0], [0], [1], [0, 0, 1, 1], [], []>} : vector<16x32xbf16>, vector<32x32xbf16>, vector<16x32xf32> -> vector<16x32xf32>
    %c1_139 = arith.constant 1 : index
    %c0_140 = arith.constant 0 : index
    %c0_141 = arith.constant 0 : index
    %261 = vector.load %arg6[%c1_139, %c0_140, %c0_141] : memref<3x1x32xf32, #tpu.memory_space<vmem>>, vector<1x1x32xf32>
    %262 = vector.shape_cast %261 : vector<1x1x32xf32> to vector<1x32xf32>
    %263 = vector.broadcast %262 : vector<1x32xf32> to vector<16x32xf32>
    %264 = arith.addf %260, %263 : vector<16x32xf32>
    %265 = arith.addf %201, %264 : vector<16x32xf32>
    %c1_142 = arith.constant 1 : index
    %c0_143 = arith.constant 0 : index
    %c0_144 = arith.constant 0 : index
    %266 = vector.load %arg7[%c1_142, %c0_143, %c0_144] : memref<3x1x32xf32, #tpu.memory_space<vmem>>, vector<1x1x32xf32>
    %267 = vector.shape_cast %266 : vector<1x1x32xf32> to vector<1x32xf32>
    %c1_145 = arith.constant 1 : index
    %c0_146 = arith.constant 0 : index
    %c0_147 = arith.constant 0 : index
    %268 = vector.load %arg8[%c1_145, %c0_146, %c0_147] : memref<3x1x32xf32, #tpu.memory_space<vmem>>, vector<1x1x32xf32>
    %269 = vector.shape_cast %268 : vector<1x1x32xf32> to vector<1x32xf32>
    %cst_148 = arith.constant dense<0.000000e+00> : vector<16xf32>
    %270 = vector.multi_reduction <add>, %265, %cst_148 [1] : vector<16x32xf32> to vector<16xf32>
    %271 = vector.shape_cast %270 : vector<16xf32> to vector<16x1xf32>
    %cst_149 = arith.constant 3.200000e+01 : f32
    %272 = vector.broadcast %cst_149 : f32 to vector<16x1xf32>
    %273 = arith.divf %271, %272 : vector<16x1xf32>
    %274 = vector.broadcast %273 : vector<16x1xf32> to vector<16x32xf32>
    %275 = arith.subf %265, %274 : vector<16x32xf32>
    %276 = arith.mulf %275, %275 : vector<16x32xf32>
    %cst_150 = arith.constant dense<0.000000e+00> : vector<16xf32>
    %277 = vector.multi_reduction <add>, %276, %cst_150 [1] : vector<16x32xf32> to vector<16xf32>
    %278 = vector.shape_cast %277 : vector<16xf32> to vector<16x1xf32>
    %cst_151 = arith.constant 3.200000e+01 : f32
    %279 = vector.broadcast %cst_151 : f32 to vector<16x1xf32>
    %280 = arith.divf %278, %279 : vector<16x1xf32>
    %281 = vector.broadcast %273 : vector<16x1xf32> to vector<16x32xf32>
    %282 = arith.subf %265, %281 : vector<16x32xf32>
    %cst_152 = arith.constant 9.99999974E-6 : f32
    %283 = vector.broadcast %cst_152 : f32 to vector<16x1xf32>
    %284 = arith.addf %280, %283 : vector<16x1xf32>
    %285 = math.rsqrt %284 : vector<16x1xf32>
    %286 = vector.broadcast %285 : vector<16x1xf32> to vector<16x32xf32>
    %287 = arith.mulf %282, %286 : vector<16x32xf32>
    %288 = vector.broadcast %267 : vector<1x32xf32> to vector<16x32xf32>
    %289 = arith.mulf %287, %288 : vector<16x32xf32>
    %290 = vector.broadcast %269 : vector<1x32xf32> to vector<16x32xf32>
    %291 = arith.addf %289, %290 : vector<16x32xf32>
    %292 = arith.truncf %291 : vector<16x32xf32> to vector<16x32xbf16>
    %c1_153 = arith.constant 1 : index
    %c0_154 = arith.constant 0 : index
    %c0_155 = arith.constant 0 : index
    %293 = vector.load %arg9[%c1_153, %c0_154, %c0_155] : memref<3x32x2048xbf16, #tpu.memory_space<vmem>>, vector<1x32x2048xbf16>
    %294 = vector.shape_cast %293 : vector<1x32x2048xbf16> to vector<32x2048xbf16>
    %cst_156 = arith.constant dense<0.000000e+00> : vector<16x2048xf32>
    %295 = tpu.matmul %292, %294, %cst_156 {dimension_numbers = #tpu.dot_dimension_numbers<[1], [0], [0], [1], [0, 0, 1, 1], [], []>} : vector<16x32xbf16>, vector<32x2048xbf16>, vector<16x2048xf32> -> vector<16x2048xf32>
    %c1_157 = arith.constant 1 : index
    %c0_158 = arith.constant 0 : index
    %c0_159 = arith.constant 0 : index
    %296 = vector.load %arg10[%c1_157, %c0_158, %c0_159] : memref<3x1x2048xf32, #tpu.memory_space<vmem>>, vector<1x1x2048xf32>
    %297 = vector.shape_cast %296 : vector<1x1x2048xf32> to vector<1x2048xf32>
    %298 = vector.broadcast %297 : vector<1x2048xf32> to vector<16x2048xf32>
    %299 = arith.addf %295, %298 : vector<16x2048xf32>
    %cst_160 = arith.constant 0.000000e+00 : f32
    %300 = vector.broadcast %cst_160 : f32 to vector<16x2048xf32>
    %301 = arith.maximumf %299, %300 : vector<16x2048xf32>
    %302 = arith.truncf %301 : vector<16x2048xf32> to vector<16x2048xbf16>
    %c1_161 = arith.constant 1 : index
    %c0_162 = arith.constant 0 : index
    %c0_163 = arith.constant 0 : index
    %303 = vector.load %arg11[%c1_161, %c0_162, %c0_163] : memref<3x2048x32xbf16, #tpu.memory_space<vmem>>, vector<1x2048x32xbf16>
    %304 = vector.shape_cast %303 : vector<1x2048x32xbf16> to vector<2048x32xbf16>
    %cst_164 = arith.constant dense<0.000000e+00> : vector<16x32xf32>
    %305 = tpu.matmul %302, %304, %cst_164 {dimension_numbers = #tpu.dot_dimension_numbers<[1], [0], [0], [1], [0, 0, 1, 1], [], []>} : vector<16x2048xbf16>, vector<2048x32xbf16>, vector<16x32xf32> -> vector<16x32xf32>
    %c1_165 = arith.constant 1 : index
    %c0_166 = arith.constant 0 : index
    %c0_167 = arith.constant 0 : index
    %306 = vector.load %arg12[%c1_165, %c0_166, %c0_167] : memref<3x1x32xf32, #tpu.memory_space<vmem>>, vector<1x1x32xf32>
    %307 = vector.shape_cast %306 : vector<1x1x32xf32> to vector<1x32xf32>
    %308 = vector.broadcast %307 : vector<1x32xf32> to vector<16x32xf32>
    %309 = arith.addf %305, %308 : vector<16x32xf32>
    %310 = arith.addf %291, %309 : vector<16x32xf32>
    %c1_168 = arith.constant 1 : index
    %c0_169 = arith.constant 0 : index
    %c0_170 = arith.constant 0 : index
    %311 = vector.load %arg13[%c1_168, %c0_169, %c0_170] : memref<3x1x32xf32, #tpu.memory_space<vmem>>, vector<1x1x32xf32>
    %312 = vector.shape_cast %311 : vector<1x1x32xf32> to vector<1x32xf32>
    %c1_171 = arith.constant 1 : index
    %c0_172 = arith.constant 0 : index
    %c0_173 = arith.constant 0 : index
    %313 = vector.load %arg14[%c1_171, %c0_172, %c0_173] : memref<3x1x32xf32, #tpu.memory_space<vmem>>, vector<1x1x32xf32>
    %314 = vector.shape_cast %313 : vector<1x1x32xf32> to vector<1x32xf32>
    %cst_174 = arith.constant dense<0.000000e+00> : vector<16xf32>
    %315 = vector.multi_reduction <add>, %310, %cst_174 [1] : vector<16x32xf32> to vector<16xf32>
    %316 = vector.shape_cast %315 : vector<16xf32> to vector<16x1xf32>
    %cst_175 = arith.constant 3.200000e+01 : f32
    %317 = vector.broadcast %cst_175 : f32 to vector<16x1xf32>
    %318 = arith.divf %316, %317 : vector<16x1xf32>
    %319 = vector.broadcast %318 : vector<16x1xf32> to vector<16x32xf32>
    %320 = arith.subf %310, %319 : vector<16x32xf32>
    %321 = arith.mulf %320, %320 : vector<16x32xf32>
    %cst_176 = arith.constant dense<0.000000e+00> : vector<16xf32>
    %322 = vector.multi_reduction <add>, %321, %cst_176 [1] : vector<16x32xf32> to vector<16xf32>
    %323 = vector.shape_cast %322 : vector<16xf32> to vector<16x1xf32>
    %cst_177 = arith.constant 3.200000e+01 : f32
    %324 = vector.broadcast %cst_177 : f32 to vector<16x1xf32>
    %325 = arith.divf %323, %324 : vector<16x1xf32>
    %326 = vector.broadcast %318 : vector<16x1xf32> to vector<16x32xf32>
    %327 = arith.subf %310, %326 : vector<16x32xf32>
    %cst_178 = arith.constant 9.99999974E-6 : f32
    %328 = vector.broadcast %cst_178 : f32 to vector<16x1xf32>
    %329 = arith.addf %325, %328 : vector<16x1xf32>
    %330 = math.rsqrt %329 : vector<16x1xf32>
    %331 = vector.broadcast %330 : vector<16x1xf32> to vector<16x32xf32>
    %332 = arith.mulf %327, %331 : vector<16x32xf32>
    %333 = vector.broadcast %312 : vector<1x32xf32> to vector<16x32xf32>
    %334 = arith.mulf %332, %333 : vector<16x32xf32>
    %335 = vector.broadcast %314 : vector<1x32xf32> to vector<16x32xf32>
    %336 = arith.addf %334, %335 : vector<16x32xf32>
    %337 = arith.truncf %336 : vector<16x32xf32> to vector<16x32xbf16>
    %c2_179 = arith.constant 2 : index
    %c0_180 = arith.constant 0 : index
    %c0_181 = arith.constant 0 : index
    %338 = vector.load %arg3[%c2_179, %c0_180, %c0_181] : memref<3x32x96xbf16, #tpu.memory_space<vmem>>, vector<1x32x96xbf16>
    %339 = vector.shape_cast %338 : vector<1x32x96xbf16> to vector<32x96xbf16>
    %cst_182 = arith.constant dense<0.000000e+00> : vector<16x96xf32>
    %340 = tpu.matmul %337, %339, %cst_182 {dimension_numbers = #tpu.dot_dimension_numbers<[1], [0], [0], [1], [0, 0, 1, 1], [], []>} : vector<16x32xbf16>, vector<32x96xbf16>, vector<16x96xf32> -> vector<16x96xf32>
    %c2_183 = arith.constant 2 : index
    %c0_184 = arith.constant 0 : index
    %c0_185 = arith.constant 0 : index
    %341 = vector.load %arg4[%c2_183, %c0_184, %c0_185] : memref<3x1x96xf32, #tpu.memory_space<vmem>>, vector<1x1x96xf32>
    %342 = vector.shape_cast %341 : vector<1x1x96xf32> to vector<1x96xf32>
    %343 = vector.broadcast %342 : vector<1x96xf32> to vector<16x96xf32>
    %344 = arith.addf %340, %343 : vector<16x96xf32>
    %345 = vector.extract_strided_slice %344 {offsets = [0, 0], sizes = [16, 8], strides = [1, 1]} : vector<16x96xf32> to vector<16x8xf32>
    %346 = vector.shape_cast %345 : vector<16x8xf32> to vector<2x8x8xf32>
    %347 = vector.extract_strided_slice %344 {offsets = [0, 32], sizes = [16, 8], strides = [1, 1]} : vector<16x96xf32> to vector<16x8xf32>
    %348 = vector.shape_cast %347 : vector<16x8xf32> to vector<2x8x8xf32>
    %349 = vector.extract_strided_slice %344 {offsets = [0, 64], sizes = [16, 8], strides = [1, 1]} : vector<16x96xf32> to vector<16x8xf32>
    %350 = vector.shape_cast %349 : vector<16x8xf32> to vector<2x8x8xf32>
    %351 = vector.extract_strided_slice %344 {offsets = [0, 8], sizes = [16, 8], strides = [1, 1]} : vector<16x96xf32> to vector<16x8xf32>
    %352 = vector.shape_cast %351 : vector<16x8xf32> to vector<2x8x8xf32>
    %353 = vector.extract_strided_slice %344 {offsets = [0, 40], sizes = [16, 8], strides = [1, 1]} : vector<16x96xf32> to vector<16x8xf32>
    %354 = vector.shape_cast %353 : vector<16x8xf32> to vector<2x8x8xf32>
    %355 = vector.extract_strided_slice %344 {offsets = [0, 72], sizes = [16, 8], strides = [1, 1]} : vector<16x96xf32> to vector<16x8xf32>
    %356 = vector.shape_cast %355 : vector<16x8xf32> to vector<2x8x8xf32>
    %357 = vector.extract_strided_slice %344 {offsets = [0, 16], sizes = [16, 8], strides = [1, 1]} : vector<16x96xf32> to vector<16x8xf32>
    %358 = vector.shape_cast %357 : vector<16x8xf32> to vector<2x8x8xf32>
    %359 = vector.extract_strided_slice %344 {offsets = [0, 48], sizes = [16, 8], strides = [1, 1]} : vector<16x96xf32> to vector<16x8xf32>
    %360 = vector.shape_cast %359 : vector<16x8xf32> to vector<2x8x8xf32>
    %361 = vector.extract_strided_slice %344 {offsets = [0, 80], sizes = [16, 8], strides = [1, 1]} : vector<16x96xf32> to vector<16x8xf32>
    %362 = vector.shape_cast %361 : vector<16x8xf32> to vector<2x8x8xf32>
    %363 = vector.extract_strided_slice %344 {offsets = [0, 24], sizes = [16, 8], strides = [1, 1]} : vector<16x96xf32> to vector<16x8xf32>
    %364 = vector.shape_cast %363 : vector<16x8xf32> to vector<2x8x8xf32>
    %365 = vector.extract_strided_slice %344 {offsets = [0, 56], sizes = [16, 8], strides = [1, 1]} : vector<16x96xf32> to vector<16x8xf32>
    %366 = vector.shape_cast %365 : vector<16x8xf32> to vector<2x8x8xf32>
    %367 = vector.extract_strided_slice %344 {offsets = [0, 88], sizes = [16, 8], strides = [1, 1]} : vector<16x96xf32> to vector<16x8xf32>
    %368 = vector.shape_cast %367 : vector<16x8xf32> to vector<2x8x8xf32>
    %369 = tpu.concatenate %346, %352, %358, %364 in 0 : vector<2x8x8xf32>, vector<2x8x8xf32>, vector<2x8x8xf32>, vector<2x8x8xf32> -> vector<8x8x8xf32>
    %370 = tpu.concatenate %348, %354, %360, %366 in 0 : vector<2x8x8xf32>, vector<2x8x8xf32>, vector<2x8x8xf32>, vector<2x8x8xf32> -> vector<8x8x8xf32>
    %371 = tpu.concatenate %350, %356, %362, %368 in 0 : vector<2x8x8xf32>, vector<2x8x8xf32>, vector<2x8x8xf32>, vector<2x8x8xf32> -> vector<8x8x8xf32>
    "tpu.trace_start"() <{level = 10 : i32, message = "nqd,nkd->nqk"}> : () -> ()
    %cst_186 = arith.constant dense<0.000000e+00> : vector<8x8x8xf32>
    %372 = tpu.matmul %369, %370, %cst_186 {dimension_numbers = #tpu.dot_dimension_numbers<[2], [2], [1], [1], [0, 0, 0, 1, 1, 1], [0], [0]>} : vector<8x8x8xf32>, vector<8x8x8xf32>, vector<8x8x8xf32> -> vector<8x8x8xf32>
    "tpu.trace_stop"() : () -> ()
    %cst_187 = arith.constant 0.353553385 : f32
    %373 = vector.broadcast %cst_187 : f32 to vector<8x8x8xf32>
    %374 = arith.mulf %372, %373 : vector<8x8x8xf32>
    %cst_188 = arith.constant dense<0xFF800000> : vector<8x8xf32>
    %375 = vector.multi_reduction <maximumf>, %374, %cst_188 [2] : vector<8x8x8xf32> to vector<8x8xf32>
    %376 = vector.shape_cast %375 : vector<8x8xf32> to vector<8x8x1xf32>
    %377 = vector.broadcast %376 : vector<8x8x1xf32> to vector<8x8x8xf32>
    %378 = arith.subf %374, %377 : vector<8x8x8xf32>
    %379 = math.exp %378 : vector<8x8x8xf32>
    %cst_189 = arith.constant dense<0.000000e+00> : vector<8x8xf32>
    %380 = vector.multi_reduction <add>, %379, %cst_189 [2] : vector<8x8x8xf32> to vector<8x8xf32>
    %381 = vector.shape_cast %380 : vector<8x8xf32> to vector<8x8x1xf32>
    %382 = tpu.reciprocal %381 {approx = true} : vector<8x8x1xf32> -> vector<8x8x1xf32>
    %383 = vector.broadcast %382 : vector<8x8x1xf32> to vector<8x8x8xf32>
    %384 = arith.mulf %379, %383 : vector<8x8x8xf32>
    "tpu.trace_start"() <{level = 10 : i32, message = "nqk,nkd->nqd"}> : () -> ()
    %cst_190 = arith.constant dense<0.000000e+00> : vector<8x8x8xf32>
    %385 = tpu.matmul %384, %371, %cst_190 {dimension_numbers = #tpu.dot_dimension_numbers<[2], [1], [1], [2], [0, 0, 0, 1, 1, 2], [0], [0]>} : vector<8x8x8xf32>, vector<8x8x8xf32>, vector<8x8x8xf32> -> vector<8x8x8xf32>
    "tpu.trace_stop"() : () -> ()
    %386 = vector.extract_strided_slice %385 {offsets = [0, 0, 0], sizes = [2, 8, 8], strides = [1, 1, 1]} : vector<8x8x8xf32> to vector<2x8x8xf32>
    %387 = vector.extract_strided_slice %385 {offsets = [2, 0, 0], sizes = [2, 8, 8], strides = [1, 1, 1]} : vector<8x8x8xf32> to vector<2x8x8xf32>
    %388 = vector.extract_strided_slice %385 {offsets = [4, 0, 0], sizes = [2, 8, 8], strides = [1, 1, 1]} : vector<8x8x8xf32> to vector<2x8x8xf32>
    %389 = vector.extract_strided_slice %385 {offsets = [6, 0, 0], sizes = [2, 8, 8], strides = [1, 1, 1]} : vector<8x8x8xf32> to vector<2x8x8xf32>
    %390 = tpu.concatenate %386, %387, %388, %389 in 2 : vector<2x8x8xf32>, vector<2x8x8xf32>, vector<2x8x8xf32>, vector<2x8x8xf32> -> vector<2x8x32xf32>
    %391 = vector.shape_cast %390 : vector<2x8x32xf32> to vector<16x32xf32>
    %392 = arith.truncf %391 : vector<16x32xf32> to vector<16x32xbf16>
    %c2_191 = arith.constant 2 : index
    %c0_192 = arith.constant 0 : index
    %c0_193 = arith.constant 0 : index
    %393 = vector.load %arg5[%c2_191, %c0_192, %c0_193] : memref<3x32x32xbf16, #tpu.memory_space<vmem>>, vector<1x32x32xbf16>
    %394 = vector.shape_cast %393 : vector<1x32x32xbf16> to vector<32x32xbf16>
    %cst_194 = arith.constant dense<0.000000e+00> : vector<16x32xf32>
    %395 = tpu.matmul %392, %394, %cst_194 {dimension_numbers = #tpu.dot_dimension_numbers<[1], [0], [0], [1], [0, 0, 1, 1], [], []>} : vector<16x32xbf16>, vector<32x32xbf16>, vector<16x32xf32> -> vector<16x32xf32>
    %c2_195 = arith.constant 2 : index
    %c0_196 = arith.constant 0 : index
    %c0_197 = arith.constant 0 : index
    %396 = vector.load %arg6[%c2_195, %c0_196, %c0_197] : memref<3x1x32xf32, #tpu.memory_space<vmem>>, vector<1x1x32xf32>
    %397 = vector.shape_cast %396 : vector<1x1x32xf32> to vector<1x32xf32>
    %398 = vector.broadcast %397 : vector<1x32xf32> to vector<16x32xf32>
    %399 = arith.addf %395, %398 : vector<16x32xf32>
    %400 = arith.addf %336, %399 : vector<16x32xf32>
    %c2_198 = arith.constant 2 : index
    %c0_199 = arith.constant 0 : index
    %c0_200 = arith.constant 0 : index
    %401 = vector.load %arg7[%c2_198, %c0_199, %c0_200] : memref<3x1x32xf32, #tpu.memory_space<vmem>>, vector<1x1x32xf32>
    %402 = vector.shape_cast %401 : vector<1x1x32xf32> to vector<1x32xf32>
    %c2_201 = arith.constant 2 : index
    %c0_202 = arith.constant 0 : index
    %c0_203 = arith.constant 0 : index
    %403 = vector.load %arg8[%c2_201, %c0_202, %c0_203] : memref<3x1x32xf32, #tpu.memory_space<vmem>>, vector<1x1x32xf32>
    %404 = vector.shape_cast %403 : vector<1x1x32xf32> to vector<1x32xf32>
    %cst_204 = arith.constant dense<0.000000e+00> : vector<16xf32>
    %405 = vector.multi_reduction <add>, %400, %cst_204 [1] : vector<16x32xf32> to vector<16xf32>
    %406 = vector.shape_cast %405 : vector<16xf32> to vector<16x1xf32>
    %cst_205 = arith.constant 3.200000e+01 : f32
    %407 = vector.broadcast %cst_205 : f32 to vector<16x1xf32>
    %408 = arith.divf %406, %407 : vector<16x1xf32>
    %409 = vector.broadcast %408 : vector<16x1xf32> to vector<16x32xf32>
    %410 = arith.subf %400, %409 : vector<16x32xf32>
    %411 = arith.mulf %410, %410 : vector<16x32xf32>
    %cst_206 = arith.constant dense<0.000000e+00> : vector<16xf32>
    %412 = vector.multi_reduction <add>, %411, %cst_206 [1] : vector<16x32xf32> to vector<16xf32>
    %413 = vector.shape_cast %412 : vector<16xf32> to vector<16x1xf32>
    %cst_207 = arith.constant 3.200000e+01 : f32
    %414 = vector.broadcast %cst_207 : f32 to vector<16x1xf32>
    %415 = arith.divf %413, %414 : vector<16x1xf32>
    %416 = vector.broadcast %408 : vector<16x1xf32> to vector<16x32xf32>
    %417 = arith.subf %400, %416 : vector<16x32xf32>
    %cst_208 = arith.constant 9.99999974E-6 : f32
    %418 = vector.broadcast %cst_208 : f32 to vector<16x1xf32>
    %419 = arith.addf %415, %418 : vector<16x1xf32>
    %420 = math.rsqrt %419 : vector<16x1xf32>
    %421 = vector.broadcast %420 : vector<16x1xf32> to vector<16x32xf32>
    %422 = arith.mulf %417, %421 : vector<16x32xf32>
    %423 = vector.broadcast %402 : vector<1x32xf32> to vector<16x32xf32>
    %424 = arith.mulf %422, %423 : vector<16x32xf32>
    %425 = vector.broadcast %404 : vector<1x32xf32> to vector<16x32xf32>
    %426 = arith.addf %424, %425 : vector<16x32xf32>
    %427 = arith.truncf %426 : vector<16x32xf32> to vector<16x32xbf16>
    %c2_209 = arith.constant 2 : index
    %c0_210 = arith.constant 0 : index
    %c0_211 = arith.constant 0 : index
    %428 = vector.load %arg9[%c2_209, %c0_210, %c0_211] : memref<3x32x2048xbf16, #tpu.memory_space<vmem>>, vector<1x32x2048xbf16>
    %429 = vector.shape_cast %428 : vector<1x32x2048xbf16> to vector<32x2048xbf16>
    %cst_212 = arith.constant dense<0.000000e+00> : vector<16x2048xf32>
    %430 = tpu.matmul %427, %429, %cst_212 {dimension_numbers = #tpu.dot_dimension_numbers<[1], [0], [0], [1], [0, 0, 1, 1], [], []>} : vector<16x32xbf16>, vector<32x2048xbf16>, vector<16x2048xf32> -> vector<16x2048xf32>
    %c2_213 = arith.constant 2 : index
    %c0_214 = arith.constant 0 : index
    %c0_215 = arith.constant 0 : index
    %431 = vector.load %arg10[%c2_213, %c0_214, %c0_215] : memref<3x1x2048xf32, #tpu.memory_space<vmem>>, vector<1x1x2048xf32>
    %432 = vector.shape_cast %431 : vector<1x1x2048xf32> to vector<1x2048xf32>
    %433 = vector.broadcast %432 : vector<1x2048xf32> to vector<16x2048xf32>
    %434 = arith.addf %430, %433 : vector<16x2048xf32>
    %cst_216 = arith.constant 0.000000e+00 : f32
    %435 = vector.broadcast %cst_216 : f32 to vector<16x2048xf32>
    %436 = arith.maximumf %434, %435 : vector<16x2048xf32>
    %437 = arith.truncf %436 : vector<16x2048xf32> to vector<16x2048xbf16>
    %c2_217 = arith.constant 2 : index
    %c0_218 = arith.constant 0 : index
    %c0_219 = arith.constant 0 : index
    %438 = vector.load %arg11[%c2_217, %c0_218, %c0_219] : memref<3x2048x32xbf16, #tpu.memory_space<vmem>>, vector<1x2048x32xbf16>
    %439 = vector.shape_cast %438 : vector<1x2048x32xbf16> to vector<2048x32xbf16>
    %cst_220 = arith.constant dense<0.000000e+00> : vector<16x32xf32>
    %440 = tpu.matmul %437, %439, %cst_220 {dimension_numbers = #tpu.dot_dimension_numbers<[1], [0], [0], [1], [0, 0, 1, 1], [], []>} : vector<16x2048xbf16>, vector<2048x32xbf16>, vector<16x32xf32> -> vector<16x32xf32>
    %c2_221 = arith.constant 2 : index
    %c0_222 = arith.constant 0 : index
    %c0_223 = arith.constant 0 : index
    %441 = vector.load %arg12[%c2_221, %c0_222, %c0_223] : memref<3x1x32xf32, #tpu.memory_space<vmem>>, vector<1x1x32xf32>
    %442 = vector.shape_cast %441 : vector<1x1x32xf32> to vector<1x32xf32>
    %443 = vector.broadcast %442 : vector<1x32xf32> to vector<16x32xf32>
    %444 = arith.addf %440, %443 : vector<16x32xf32>
    %445 = arith.addf %426, %444 : vector<16x32xf32>
    %c2_224 = arith.constant 2 : index
    %c0_225 = arith.constant 0 : index
    %c0_226 = arith.constant 0 : index
    %446 = vector.load %arg13[%c2_224, %c0_225, %c0_226] : memref<3x1x32xf32, #tpu.memory_space<vmem>>, vector<1x1x32xf32>
    %447 = vector.shape_cast %446 : vector<1x1x32xf32> to vector<1x32xf32>
    %c2_227 = arith.constant 2 : index
    %c0_228 = arith.constant 0 : index
    %c0_229 = arith.constant 0 : index
    %448 = vector.load %arg14[%c2_227, %c0_228, %c0_229] : memref<3x1x32xf32, #tpu.memory_space<vmem>>, vector<1x1x32xf32>
    %449 = vector.shape_cast %448 : vector<1x1x32xf32> to vector<1x32xf32>
    %cst_230 = arith.constant dense<0.000000e+00> : vector<16xf32>
    %450 = vector.multi_reduction <add>, %445, %cst_230 [1] : vector<16x32xf32> to vector<16xf32>
    %451 = vector.shape_cast %450 : vector<16xf32> to vector<16x1xf32>
    %cst_231 = arith.constant 3.200000e+01 : f32
    %452 = vector.broadcast %cst_231 : f32 to vector<16x1xf32>
    %453 = arith.divf %451, %452 : vector<16x1xf32>
    %454 = vector.broadcast %453 : vector<16x1xf32> to vector<16x32xf32>
    %455 = arith.subf %445, %454 : vector<16x32xf32>
    %456 = arith.mulf %455, %455 : vector<16x32xf32>
    %cst_232 = arith.constant dense<0.000000e+00> : vector<16xf32>
    %457 = vector.multi_reduction <add>, %456, %cst_232 [1] : vector<16x32xf32> to vector<16xf32>
    %458 = vector.shape_cast %457 : vector<16xf32> to vector<16x1xf32>
    %cst_233 = arith.constant 3.200000e+01 : f32
    %459 = vector.broadcast %cst_233 : f32 to vector<16x1xf32>
    %460 = arith.divf %458, %459 : vector<16x1xf32>
    %461 = vector.broadcast %453 : vector<16x1xf32> to vector<16x32xf32>
    %462 = arith.subf %445, %461 : vector<16x32xf32>
    %cst_234 = arith.constant 9.99999974E-6 : f32
    %463 = vector.broadcast %cst_234 : f32 to vector<16x1xf32>
    %464 = arith.addf %460, %463 : vector<16x1xf32>
    %465 = math.rsqrt %464 : vector<16x1xf32>
    %466 = vector.broadcast %465 : vector<16x1xf32> to vector<16x32xf32>
    %467 = arith.mulf %462, %466 : vector<16x32xf32>
    %468 = vector.broadcast %447 : vector<1x32xf32> to vector<16x32xf32>
    %469 = arith.mulf %467, %468 : vector<16x32xf32>
    %470 = vector.broadcast %449 : vector<1x32xf32> to vector<16x32xf32>
    %471 = arith.addf %469, %470 : vector<16x32xf32>
    %472 = vector.shape_cast %471 : vector<16x32xf32> to vector<2x8x32xf32>
    %473 = vector.extract_strided_slice %472 {offsets = [0, 0, 0], sizes = [2, 1, 32], strides = [1, 1, 1]} : vector<2x8x32xf32> to vector<2x1x32xf32>
    %474 = vector.shape_cast %473 : vector<2x1x32xf32> to vector<2x32xf32>
    %475 = vector.extract_strided_slice %472 {offsets = [0, 1, 0], sizes = [2, 1, 32], strides = [1, 1, 1]} : vector<2x8x32xf32> to vector<2x1x32xf32>
    %476 = vector.shape_cast %475 : vector<2x1x32xf32> to vector<2x32xf32>
    %477 = vector.extract_strided_slice %472 {offsets = [0, 2, 0], sizes = [2, 1, 32], strides = [1, 1, 1]} : vector<2x8x32xf32> to vector<2x1x32xf32>
    %478 = vector.shape_cast %477 : vector<2x1x32xf32> to vector<2x32xf32>
    %479 = vector.extract_strided_slice %472 {offsets = [0, 3, 0], sizes = [2, 1, 32], strides = [1, 1, 1]} : vector<2x8x32xf32> to vector<2x1x32xf32>
    %480 = vector.shape_cast %479 : vector<2x1x32xf32> to vector<2x32xf32>
    %481 = vector.extract_strided_slice %472 {offsets = [0, 4, 0], sizes = [2, 1, 32], strides = [1, 1, 1]} : vector<2x8x32xf32> to vector<2x1x32xf32>
    %482 = vector.shape_cast %481 : vector<2x1x32xf32> to vector<2x32xf32>
    %483 = vector.extract_strided_slice %472 {offsets = [0, 5, 0], sizes = [2, 1, 32], strides = [1, 1, 1]} : vector<2x8x32xf32> to vector<2x1x32xf32>
    %484 = vector.shape_cast %483 : vector<2x1x32xf32> to vector<2x32xf32>
    %485 = vector.extract_strided_slice %472 {offsets = [0, 6, 0], sizes = [2, 1, 32], strides = [1, 1, 1]} : vector<2x8x32xf32> to vector<2x1x32xf32>
    %486 = vector.shape_cast %485 : vector<2x1x32xf32> to vector<2x32xf32>
    %487 = vector.extract_strided_slice %472 {offsets = [0, 7, 0], sizes = [2, 1, 32], strides = [1, 1, 1]} : vector<2x8x32xf32> to vector<2x1x32xf32>
    %488 = vector.shape_cast %487 : vector<2x1x32xf32> to vector<2x32xf32>
    %489 = tpu.concatenate %474, %476, %478, %480, %482, %484, %486, %488 in 1 : vector<2x32xf32>, vector<2x32xf32>, vector<2x32xf32>, vector<2x32xf32>, vector<2x32xf32>, vector<2x32xf32>, vector<2x32xf32>, vector<2x32xf32> -> vector<2x256xf32>
    %490 = arith.truncf %489 : vector<2x256xf32> to vector<2x256xbf16>
    %c0_235 = arith.constant 0 : index
    %c0_236 = arith.constant 0 : index
    %491 = vector.load %arg15[%c0_235, %c0_236] : memref<256x512xbf16, #tpu.memory_space<vmem>>, vector<256x512xbf16>
    %cst_237 = arith.constant dense<0.000000e+00> : vector<2x512xf32>
    %492 = tpu.matmul %490, %491, %cst_237 {dimension_numbers = #tpu.dot_dimension_numbers<[1], [0], [0], [1], [0, 0, 1, 1], [], []>} : vector<2x256xbf16>, vector<256x512xbf16>, vector<2x512xf32> -> vector<2x512xf32>
    %c0_238 = arith.constant 0 : index
    %c0_239 = arith.constant 0 : index
    %493 = vector.load %arg16[%c0_238, %c0_239] : memref<1x512xf32, #tpu.memory_space<vmem>>, vector<1x512xf32>
    %494 = vector.broadcast %493 : vector<1x512xf32> to vector<2x512xf32>
    %495 = arith.addf %492, %494 : vector<2x512xf32>
    %cst_240 = arith.constant 0.000000e+00 : f32
    %496 = vector.broadcast %cst_240 : f32 to vector<2x512xf32>
    %497 = arith.cmpf oge, %495, %496 : vector<2x512xf32>
    %cst_241 = arith.constant 0.00999999977 : f32
    %498 = vector.broadcast %cst_241 : f32 to vector<2x512xf32>
    %499 = arith.mulf %498, %495 : vector<2x512xf32>
    %500 = arith.select %497, %495, %499 : vector<2x512xi1>, vector<2x512xf32>
    %501 = arith.truncf %500 : vector<2x512xf32> to vector<2x512xbf16>
    %c0_242 = arith.constant 0 : index
    %c0_243 = arith.constant 0 : index
    %502 = vector.load %arg17[%c0_242, %c0_243] : memref<512x32xbf16, #tpu.memory_space<vmem>>, vector<512x32xbf16>
    %cst_244 = arith.constant dense<0.000000e+00> : vector<2x32xf32>
    %503 = tpu.matmul %501, %502, %cst_244 {dimension_numbers = #tpu.dot_dimension_numbers<[1], [0], [0], [1], [0, 0, 1, 1], [], []>} : vector<2x512xbf16>, vector<512x32xbf16>, vector<2x32xf32> -> vector<2x32xf32>
    %c0_245 = arith.constant 0 : index
    %c0_246 = arith.constant 0 : index
    %504 = vector.load %arg18[%c0_245, %c0_246] : memref<1x32xf32, #tpu.memory_space<vmem>>, vector<1x32xf32>
    %505 = vector.broadcast %504 : vector<1x32xf32> to vector<2x32xf32>
    %506 = arith.addf %503, %505 : vector<2x32xf32>
    %507 = arith.mulf %506, %506 : vector<2x32xf32>
    %cst_247 = arith.constant dense<0.000000e+00> : vector<2xf32>
    %508 = vector.multi_reduction <add>, %507, %cst_247 [1] : vector<2x32xf32> to vector<2xf32>
    %509 = vector.shape_cast %508 : vector<2xf32> to vector<2x1xf32>
    %510 = math.rsqrt %509 : vector<2x1xf32>
    %511 = vector.broadcast %510 : vector<2x1xf32> to vector<2x32xf32>
    %512 = arith.mulf %506, %511 : vector<2x32xf32>
    %c0_248 = arith.constant 0 : index
    %c0_249 = arith.constant 0 : index
    %513 = vector.load %arg19[%c0_248, %c0_249] : memref<2x32xf32, #tpu.memory_space<vmem>>, vector<2x32xf32>
    tpu.vector_store %arg19[%c0_248, %c0_249], %512 {strides = array<i32>} : memref<2x32xf32, #tpu.memory_space<vmem>>, vector<2x32xf32>,
    return
  }
}

</mosaic_0001>

<llo_original>
// kernel: tpu_custom_call.1
$region0: #{tpu_custom_call.1}
  #allocation0 [shape = 'u32[]', space=smem, size = 0x4, offset = 0x4, fixed_abs, tag = 'smem constant byte address 0x4 - core index']
  #allocation1 [shape = 'u32[144,128]{1,0:T(1,128)}', space=vmem, size = 0x12000, scoped, tag = 'internal scratch']
  #allocation2 [shape = 'f32[16,32]{1,0:T(8,128)}', space=vmem, size = 0x2000, scoped, tag = 'scratch operand']
  %s0 = inlined_call_operand.vmem [shape: s32[2,8], index: 0, kind: input, shape index: {}]
  %s1 = inlined_call_operand.vmem [shape: f32[20,32], index: 1, kind: input, shape index: {}]
  %s2 = inlined_call_operand.vmem [shape: f32[16,32], index: 2, kind: input, shape index: {}]
  %s3 = inlined_call_operand.vmem [shape: bf16[3,32,96], index: 3, kind: input, shape index: {}]
  %s4 = inlined_call_operand.vmem [shape: f32[3,1,96], index: 4, kind: input, shape index: {}]
  %s5 = inlined_call_operand.vmem [shape: bf16[3,32,32], index: 5, kind: input, shape index: {}]
  %s6 = inlined_call_operand.vmem [shape: f32[3,1,32], index: 6, kind: input, shape index: {}]
  %s7 = inlined_call_operand.vmem [shape: f32[3,1,32], index: 7, kind: input, shape index: {}]
  %s8 = inlined_call_operand.vmem [shape: f32[3,1,32], index: 8, kind: input, shape index: {}]
  %s9 = inlined_call_operand.vmem [shape: bf16[3,32,2048], index: 9, kind: input, shape index: {}]
  %s10 = inlined_call_operand.vmem [shape: f32[3,1,2048], index: 10, kind: input, shape index: {}]
  %s11 = inlined_call_operand.vmem [shape: bf16[3,2048,32], index: 11, kind: input, shape index: {}]
  %s12 = inlined_call_operand.vmem [shape: f32[3,1,32], index: 12, kind: input, shape index: {}]
  %s13 = inlined_call_operand.vmem [shape: f32[3,1,32], index: 13, kind: input, shape index: {}]
  %s14 = inlined_call_operand.vmem [shape: f32[3,1,32], index: 14, kind: input, shape index: {}]
  %s15 = inlined_call_operand.vmem [shape: bf16[256,512], index: 15, kind: input, shape index: {}]
  %s16 = inlined_call_operand.vmem [shape: f32[1,512], index: 16, kind: input, shape index: {}]
  %s17 = inlined_call_operand.vmem [shape: bf16[512,32], index: 17, kind: input, shape index: {}]
  %s18 = inlined_call_operand.vmem [shape: f32[1,32], index: 18, kind: input, shape index: {}]
  %s19 = inlined_call_operand.hbm [shape: f32[2,32], index: 19, kind: output, shape index: {}]
  %s20 = sld [smem:[#allocation0]]
  $region90: #{tpu_custom_call.1} parent=0
    _
  %s22 = ssub.s32 1, %s20
  %s23 = scalar_select 0, %s22, %s20
  $region1: #{tpu_custom_call.1} parent=0
    #allocation3 [shape = 'u8[1024]{0}', space=smem, size = 0x400, scoped, tag = 'input window, operand 0, single buffered']
    #allocation4 [shape = 's32[1]{0}', space=sflag, size = 0x4, scoped, tag = 'scoped memory for tpu_custom_call.1']
    #allocation5 [shape = 's32[1]{0}', space=sflag, size = 0x4, scoped, tag = 'scoped memory for tpu_custom_call.1']
    #allocation6 [shape = 'u8[1024]{0}', space=vmem, size = 0x400, scoped, tag = 'output window, operand 0, single buffered']
    %24 = vsyncpa [#allocation5], 0
    %25 = vsyncpa [#allocation4], 0
    // Predicated region
    $region2: #{tpu_custom_call.1} parent=1 // pred_check
      _
    $region3: #{tpu_custom_call.1} parent=1 // pred_check_branch
      %27 = sbr.rel (0) target = $region5
    $region4: #{tpu_custom_call.1} parent=1 // pred_region
      %s29 = ssub.s32 32, 32
      %30 = vsyncadd [#allocation5], %s29
      %s32 = sshll.u32 %s0, 4
      %s33 = int_to_ptr.vmem [resolvable:$true] %s32
      %35 = dma.vmem_to_smem %s33, 32, [#allocation3], [#allocation5]
    $region5: #{tpu_custom_call.1} parent=1 // pred_fallthru
      _
    // Predicated region
    $region6: #{tpu_custom_call.1} parent=1 // pred_check
      _
    $region7: #{tpu_custom_call.1} parent=1 // pred_check_branch
      %37 = sbr.rel (0) target = $region9
    $region8: #{tpu_custom_call.1} parent=1 // pred_region
      _
    $region9: #{tpu_custom_call.1} parent=1 // pred_fallthru
      _
    // Predicated region
    $region10: #{tpu_custom_call.1} parent=1 // pred_check
      _
    $region11: #{tpu_custom_call.1} parent=1 // pred_check_branch
      %39 = sbr.rel (0) target = $region13
    $region12: #{tpu_custom_call.1} parent=1 // pred_region
      _
    $region13: #{tpu_custom_call.1} parent=1 // pred_fallthru
      _
    // Predicated region
    $region14: #{tpu_custom_call.1} parent=1 // pred_check
      _
    $region15: #{tpu_custom_call.1} parent=1 // pred_check_branch
      %41 = sbr.rel (0) target = $region17
    $region16: #{tpu_custom_call.1} parent=1 // pred_region
      _
    $region17: #{tpu_custom_call.1} parent=1 // pred_fallthru
      _
    // Predicated region
    $region18: #{tpu_custom_call.1} parent=1 // pred_check
      _
    $region19: #{tpu_custom_call.1} parent=1 // pred_check_branch
      %43 = sbr.rel (0) target = $region21
    $region20: #{tpu_custom_call.1} parent=1 // pred_region
      _
    $region21: #{tpu_custom_call.1} parent=1 // pred_fallthru
      _
    // Predicated region
    $region22: #{tpu_custom_call.1} parent=1 // pred_check
      _
    $region23: #{tpu_custom_call.1} parent=1 // pred_check_branch
      %45 = sbr.rel (0) target = $region25
    $region24: #{tpu_custom_call.1} parent=1 // pred_region
      _
    $region25: #{tpu_custom_call.1} parent=1 // pred_fallthru
      _
    // Predicated region
    $region26: #{tpu_custom_call.1} parent=1 // pred_check
      _
    $region27: #{tpu_custom_call.1} parent=1 // pred_check_branch
      %47 = sbr.rel (0) target = $region29
    $region28: #{tpu_custom_call.1} parent=1 // pred_region
      _
    $region29: #{tpu_custom_call.1} parent=1 // pred_fallthru
      _
    // Predicated region
    $region30: #{tpu_custom_call.1} parent=1 // pred_check
      _
    $region31: #{tpu_custom_call.1} parent=1 // pred_check_branch
      %49 = sbr.rel (0) target = $region33
    $region32: #{tpu_custom_call.1} parent=1 // pred_region
      _
    $region33: #{tpu_custom_call.1} parent=1 // pred_fallthru
      _
    // Predicated region
    $region34: #{tpu_custom_call.1} parent=1 // pred_check
      _
    $region35: #{tpu_custom_call.1} parent=1 // pred_check_branch
      %51 = sbr.rel (0) target = $region37
    $region36: #{tpu_custom_call.1} parent=1 // pred_region
      _
    $region37: #{tpu_custom_call.1} parent=1 // pred_fallthru
      _
    // Predicated region
    $region38: #{tpu_custom_call.1} parent=1 // pred_check
      _
    $region39: #{tpu_custom_call.1} parent=1 // pred_check_branch
      %53 = sbr.rel (0) target = $region41
    $region40: #{tpu_custom_call.1} parent=1 // pred_region
      _
    $region41: #{tpu_custom_call.1} parent=1 // pred_fallthru
      _
    // Predicated region
    $region42: #{tpu_custom_call.1} parent=1 // pred_check
      _
    $region43: #{tpu_custom_call.1} parent=1 // pred_check_branch
      %55 = sbr.rel (0) target = $region45
    $region44: #{tpu_custom_call.1} parent=1 // pred_region
      _
    $region45: #{tpu_custom_call.1} parent=1 // pred_fallthru
      _
    // Predicated region
    $region46: #{tpu_custom_call.1} parent=1 // pred_check
      _
    $region47: #{tpu_custom_call.1} parent=1 // pred_check_branch
      %57 = sbr.rel (0) target = $region49
    $region48: #{tpu_custom_call.1} parent=1 // pred_region
      _
    $region49: #{tpu_custom_call.1} parent=1 // pred_fallthru
      _
    // Predicated region
    $region50: #{tpu_custom_call.1} parent=1 // pred_check
      _
    $region51: #{tpu_custom_call.1} parent=1 // pred_check_branch
      %59 = sbr.rel (0) target = $region53
    $region52: #{tpu_custom_call.1} parent=1 // pred_region
      _
    $region53: #{tpu_custom_call.1} parent=1 // pred_fallthru
      _
    // Predicated region
    $region54: #{tpu_custom_call.1} parent=1 // pred_check
      _
    $region55: #{tpu_custom_call.1} parent=1 // pred_check_branch
      %61 = sbr.rel (0) target = $region57
    $region56: #{tpu_custom_call.1} parent=1 // pred_region
      _
    $region57: #{tpu_custom_call.1} parent=1 // pred_fallthru
      _
    // Predicated region
    $region58: #{tpu_custom_call.1} parent=1 // pred_check
      _
    $region59: #{tpu_custom_call.1} parent=1 // pred_check_branch
      %63 = sbr.rel (0) target = $region61
    $region60: #{tpu_custom_call.1} parent=1 // pred_region
      _
    $region61: #{tpu_custom_call.1} parent=1 // pred_fallthru
      _
    // Predicated region
    $region62: #{tpu_custom_call.1} parent=1 // pred_check
      _
    $region63: #{tpu_custom_call.1} parent=1 // pred_check_branch
      %65 = sbr.rel (0) target = $region65
    $region64: #{tpu_custom_call.1} parent=1 // pred_region
      _
    $region65: #{tpu_custom_call.1} parent=1 // pred_fallthru
      _
    // Predicated region
    $region66: #{tpu_custom_call.1} parent=1 // pred_check
      _
    $region67: #{tpu_custom_call.1} parent=1 // pred_check_branch
      %67 = sbr.rel (0) target = $region69
    $region68: #{tpu_custom_call.1} parent=1 // pred_region
      _
    $region69: #{tpu_custom_call.1} parent=1 // pred_fallthru
      _
    // Predicated region
    $region70: #{tpu_custom_call.1} parent=1 // pred_check
      _
    $region71: #{tpu_custom_call.1} parent=1 // pred_check_branch
      %69 = sbr.rel (0) target = $region73
    $region72: #{tpu_custom_call.1} parent=1 // pred_region
      _
    $region73: #{tpu_custom_call.1} parent=1 // pred_fallthru
      _
    // Predicated region
    $region74: #{tpu_custom_call.1} parent=1 // pred_check
      _
    $region75: #{tpu_custom_call.1} parent=1 // pred_check_branch
      %71 = sbr.rel (0) target = $region77
    $region76: #{tpu_custom_call.1} parent=1 // pred_region
      _
    $region77: #{tpu_custom_call.1} parent=1 // pred_fallthru
      _
    // Predicated region
    $region78: #{tpu_custom_call.1} parent=1 // pred_check
      _
    $region79: #{tpu_custom_call.1} parent=1 // pred_check_branch
      %73 = sbr.rel (0) target = $region81
    $region80: #{tpu_custom_call.1} parent=1 // pred_region
      %74 = dma.done [#allocation5], 32
    $region81: #{tpu_custom_call.1} parent=1 // pred_fallthru
      _
    %75 = sfence
    %s77 = sld [smem:[#allocation3]]
    %s78 = scalar_lea.vmem %s1, %s77
    %v79 = vld [vmem:[%s78] sm:$0x1]
    %vm80 = vcmask 253952
    %81 = vst.msk [vmem:[#allocation2] sm:$0x1] %vm80, %v79
    %s82 = sld [smem:[#allocation3 + $0x1]]
    %s83 = scalar_lea.vmem %s1, %s82
    %v84 = vld [vmem:[%s83] sm:$0x1]
    %85 = vst.msk [vmem:[#allocation2 + $0x1] sm:$0x1] %vm80, %v84
    %s86 = sld [smem:[#allocation3 + $0x2]]
    %s87 = scalar_lea.vmem %s1, %s86
    %v88 = vld [vmem:[%s87] sm:$0x1]
    %89 = vst.msk [vmem:[#allocation2 + $0x2] sm:$0x1] %vm80, %v88
    %s90 = sld [smem:[#allocation3 + $0x3]]
    %s91 = scalar_lea.vmem %s1, %s90
    %v92 = vld [vmem:[%s91] sm:$0x1]
    %93 = vst.msk [vmem:[#allocation2 + $0x3] sm:$0x1] %vm80, %v92
    %s94 = sld [smem:[#allocation3 + $0x4]]
    %s95 = scalar_lea.vmem %s1, %s94
    %v96 = vld [vmem:[%s95] sm:$0x1]
    %97 = vst.msk [vmem:[#allocation2 + $0x4] sm:$0x1] %vm80, %v96
    %s98 = sld [smem:[#allocation3 + $0x5]]
    %s99 = scalar_lea.vmem %s1, %s98
    %v100 = vld [vmem:[%s99] sm:$0x1]
    %101 = vst.msk [vmem:[#allocation2 + $0x5] sm:$0x1] %vm80, %v100
    %s102 = sld [smem:[#allocation3 + $0x6]]
    %s103 = scalar_lea.vmem %s1, %s102
    %v104 = vld [vmem:[%s103] sm:$0x1]
    %105 = vst.msk [vmem:[#allocation2 + $0x6] sm:$0x1] %vm80, %v104
    %s106 = sld [smem:[#allocation3 + $0x7]]
    %s107 = scalar_lea.vmem %s1, %s106
    %v108 = vld [vmem:[%s107] sm:$0x1]
    %109 = vst.msk [vmem:[#allocation2 + $0x7] sm:$0x1] %vm80, %v108
    %s110 = sld [smem:[#allocation3 + $0x80]]
    %s111 = scalar_lea.vmem %s1, %s110
    %v112 = vld [vmem:[%s111] sm:$0x1]
    %113 = vst.msk [vmem:[#allocation2 + $0x8] sm:$0x1] %vm80, %v112
    %s114 = sld [smem:[#allocation3 + $0x81]]
    %s115 = scalar_lea.vmem %s1, %s114
    %v116 = vld [vmem:[%s115] sm:$0x1]
    %117 = vst.msk [vmem:[#allocation2 + $0x9] sm:$0x1] %vm80, %v116
    %s118 = sld [smem:[#allocation3 + $0x82]]
    %s119 = scalar_lea.vmem %s1, %s118
    %v120 = vld [vmem:[%s119] sm:$0x1]
    %121 = vst.msk [vmem:[#allocation2 + $0xa] sm:$0x1] %vm80, %v120
    %s122 = sld [smem:[#allocation3 + $0x83]]
    %s123 = scalar_lea.vmem %s1, %s122
    %v124 = vld [vmem:[%s123] sm:$0x1]
    %125 = vst.msk [vmem:[#allocation2 + $0xb] sm:$0x1] %vm80, %v124
    %s126 = sld [smem:[#allocation3 + $0x84]]
    %s127 = scalar_lea.vmem %s1, %s126
    %v128 = vld [vmem:[%s127] sm:$0x1]
    %129 = vst.msk [vmem:[#allocation2 + $0xc] sm:$0x1] %vm80, %v128
    %s130 = sld [smem:[#allocation3 + $0x85]]
    %s131 = scalar_lea.vmem %s1, %s130
    %v132 = vld [vmem:[%s131] sm:$0x1]
    %133 = vst.msk [vmem:[#allocation2 + $0xd] sm:$0x1] %vm80, %v132
    %s134 = sld [smem:[#allocation3 + $0x86]]
    %s135 = scalar_lea.vmem %s1, %s134
    %v136 = vld [vmem:[%s135] sm:$0x1]
    %137 = vst.msk [vmem:[#allocation2 + $0xe] sm:$0x1] %vm80, %v136
    %s138 = sld [smem:[#allocation3 + $0x87]]
    %s139 = scalar_lea.vmem %s1, %s138
    %v140 = vld [vmem:[%s139] sm:$0x1]
    %141 = vst.msk [vmem:[#allocation2 + $0xf] sm:$0x1] %vm80, %v140
    %v142 = vld [vmem:[#allocation2] sm:$0xff]
    %v143 = vld [vmem:[#allocation2 + $0x8] sm:$0xff]
    %v144 = vld [vmem:[%s2] sm:$0xff]
    %v145 = vld [vmem:[%s2 + $0x8] sm:$0xff]
    %v146 = vadd.f32 %v142, %v144
    %v147 = vadd.f32 %v143, %v145
    %v148 = vpack.c.bf16 %v147, %v146
    %v149 = vld [vmem:[%s3] sm:$0xf]
    %v150 = vld [vmem:[%s3 + $0x4] sm:$0xf]
    %v151 = vld [vmem:[%s3 + $0x8] sm:$0xf]
    %v152 = vld [vmem:[%s3 + $0xc] sm:$0xf]
    %v153 = vld [vmem:[%s4] sm:$0x1]
    %v155 = vlaneseq
    %v156 = vshrl.u32 %v155, 7
    %v157 = vsub.s32 0, %v156
    %v158 = vrot.slane %v153, %v157
    %v164 = vunpack.c.l.b16 %v149
    %v165 = vunpack.c.l.b16 %v150
    %v166 = vunpack.c.l.b16 %v151
    %v167 = vunpack.c.l.b16 %v152
    %v168 = vpack.c.b16 %v165, %v164
    %v169 = vpack.c.b16 %v167, %v166
    %vm172 = vcmask 261120
    %v174 = vsel %vm172, %v148, 0
    %176 = vmatprep.subr.bf16.mxu0 0
    %177 = vmatpush1.bf16.msra.mxu0 %v168
    %178 = vmatprep.subr.bf16.mxu0 0
    %179 = vmatpush1.bf16.msra.mxu0 %v169
    %180 = vmatprep.subr.bf16.mxu0 0
    %181 = vmatpush1.bf16.msra.mxu0 0
    %182 = vmatprep.subr.bf16.mxu0 0
    %183 = vmatpush1.bf16.msra.mxu0 0
    %184 = vmatprep.subr.bf16.mxu0 0
    %185 = vmatpush1.bf16.msra.mxu0 0
    %186 = vmatprep.subr.bf16.mxu0 0
    %187 = vmatpush1.bf16.msra.mxu0 0
    %188 = vmatprep.subr.bf16.mxu0 0
    %189 = vmatpush1.bf16.msra.mxu0 0
    %190 = vmatprep.subr.bf16.mxu0 0
    %191 = vmatpush1.bf16.msra.mxu0 0
    %192 = vmatprep.subr.bf16.mxu0 0
    %193 = vmatpush1.bf16.msra.mxu0 0
    %194 = vmatprep.subr.bf16.mxu0 0
    %195 = vmatpush1.bf16.msra.mxu0 0
    %196 = vmatprep.subr.bf16.mxu0 0
    %197 = vmatpush1.bf16.msra.mxu0 0
    %198 = vmatprep.subr.bf16.mxu0 0
    %199 = vmatpush1.bf16.msra.mxu0 0
    %200 = vmatprep.subr.bf16.mxu0 0
    %201 = vmatpush1.bf16.msra.mxu0 0
    %202 = vmatprep.subr.bf16.mxu0 0
    %203 = vmatpush1.bf16.msra.mxu0 0
    %204 = vmatprep.subr.bf16.mxu0 0
    %205 = vmatpush1.bf16.msra.mxu0 0
    %206 = vmatprep.subr.bf16.mxu0 0
    %207 = vmatpush1.bf16.msra.mxu0 0
    %208 = vmatprep.mubr.bf16.mxu0 0
    %209 = vmatmul.mubr.bf16.gmra.mrb[0].mxu0 %v174
    %v210 = vpop.f32.mrb[0].mxu0
    %v211 = vadd.f32 %v158, %v210
    %v212 = vpop.f32.mrb[0].mxu0
    %v213 = vpop.f32.mrb[0].mxu0
    %v214 = vadd.f32 %v158, %v213
    %v215 = vpop.f32.mrb[0].mxu0
    %216 = vdwg.mxu0
    %219 = vrot.lane.b32.xlu0 %v211, 120
    %v220 = vpop.permute.xlu0 %219
    %221 = vrot.lane.b32.xlu0 %v214, 120
    %v222 = vpop.permute.xlu0 %221
    %223 = vrot.lane.b32.xlu0 %v211, 112
    %v224 = vpop.permute.xlu0 %223
    %225 = vrot.lane.b32.xlu0 %v214, 112
    %v226 = vpop.permute.xlu0 %225
    %227 = vrot.lane.b32.xlu0 %v211, 104
    %v228 = vpop.permute.xlu0 %227
    %229 = vrot.lane.b32.xlu0 %v214, 104
    %v230 = vpop.permute.xlu0 %229
    %231 = vrot.lane.b32.xlu0 %v211, 96
    %v232 = vpop.permute.xlu0 %231
    %vm233 = vcmask 64512
    %v234 = vsel %vm233, %v211, 0
    %v236 = vsel %vm233, %v232, 0
    %238 = vmatprep.subr.mxu0 0.0
    %239 = vmatpush1.xpose.msra.mxu0 %v236
    %240 = vmatprep.subr.mxu0 0.0
    %241 = vmatpush1.xpose.msra.mxu0 0.0
    %242 = vmatprep.subr.mxu0 0.0
    %243 = vmatpush1.xpose.msra.mxu0 0.0
    %244 = vmatprep.subr.mxu0 0.0
    %245 = vmatpush1.xpose.msra.mxu0 0.0
    %246 = vmatprep.subr.mxu0 0.0
    %247 = vmatpush1.xpose.msra.mxu0 0.0
    %248 = vmatprep.subr.mxu0 0.0
    %249 = vmatpush1.xpose.msra.mxu0 0.0
    %250 = vmatprep.subr.mxu0 0.0
    %251 = vmatpush1.xpose.msra.mxu0 0.0
    %252 = vmatprep.subr.mxu0 0.0
    %253 = vmatpush1.xpose.msra.mxu0 0.0
    %254 = vmatprep.subr.mxu0 0.0
    %255 = vmatpush1.xpose.msra.mxu0 0.0
    %256 = vmatprep.subr.mxu0 0.0
    %257 = vmatpush1.xpose.msra.mxu0 0.0
    %258 = vmatprep.subr.mxu0 0.0
    %259 = vmatpush1.xpose.msra.mxu0 0.0
    %260 = vmatprep.subr.mxu0 0.0
    %261 = vmatpush1.xpose.msra.mxu0 0.0
    %262 = vmatprep.subr.mxu0 0.0
    %263 = vmatpush1.xpose.msra.mxu0 0.0
    %264 = vmatprep.subr.mxu0 0.0
    %265 = vmatpush1.xpose.msra.mxu0 0.0
    %266 = vmatprep.subr.mxu0 0.0
    %267 = vmatpush1.xpose.msra.mxu0 0.0
    %268 = vmatprep.subr.mxu0 0.0
    %269 = vmatpush1.xpose.msra.mxu0 0.0
    %270 = vmatprep.subr.mxu0 0.0
    %271 = vmatpush1.xpose.msra.mxu0 0.0
    %272 = vmatprep.subr.mxu0 0.0
    %273 = vmatpush1.xpose.msra.mxu0 0.0
    %274 = vmatprep.subr.mxu0 0.0
    %275 = vmatpush1.xpose.msra.mxu0 0.0
    %276 = vmatprep.subr.mxu0 0.0
    %277 = vmatpush1.xpose.msra.mxu0 0.0
    %278 = vmatprep.subr.mxu0 0.0
    %279 = vmatpush1.xpose.msra.mxu0 0.0
    %280 = vmatprep.subr.mxu0 0.0
    %281 = vmatpush1.xpose.msra.mxu0 0.0
    %282 = vmatprep.subr.mxu0 0.0
    %283 = vmatpush1.xpose.msra.mxu0 0.0
    %284 = vmatprep.subr.mxu0 0.0
    %285 = vmatpush1.xpose.msra.mxu0 0.0
    %286 = vmatprep.subr.mxu0 0.0
    %287 = vmatpush1.xpose.msra.mxu0 0.0
    %288 = vmatprep.subr.mxu0 0.0
    %289 = vmatpush1.xpose.msra.mxu0 0.0
    %290 = vmatprep.subr.mxu0 0.0
    %291 = vmatpush1.xpose.msra.mxu0 0.0
    %292 = vmatprep.subr.mxu0 0.0
    %293 = vmatpush1.xpose.msra.mxu0 0.0
    %294 = vmatprep.subr.mxu0 0.0
    %295 = vmatpush1.xpose.msra.mxu0 0.0
    %296 = vmatprep.subr.mxu0 0.0
    %297 = vmatpush1.xpose.msra.mxu0 0.0
    %298 = vmatprep.subr.mxu0 0.0
    %299 = vmatpush1.xpose.msra.mxu0 0.0
    %300 = vmatprep.subr.mxu0 0.0
    %301 = vmatpush1.xpose.msra.mxu0 0.0
    %302 = vmatprep.mubr.f32.mxu0 0.0
    %303 = vmatmul.mubr.f32.gmra.mrb[0].mxu0 %v234
    %v304 = vpop.f32.mrb[0].mxu0
    %v305 = vadd.f32 0.0, %v304
    %v306 = vpop.f32.mrb[0].mxu0
    %307 = vdwg.mxu0
    %308 = vrot.lane.b32.xlu0 %v214, 96
    %v309 = vpop.permute.xlu0 %308
    %v310 = vsel %vm233, %v214, 0
    %v312 = vsel %vm233, %v309, 0
    %314 = vmatprep.subr.mxu0 0.0
    %315 = vmatpush1.xpose.msra.mxu0 %v312
    %316 = vmatprep.subr.mxu0 0.0
    %317 = vmatpush1.xpose.msra.mxu0 0.0
    %318 = vmatprep.subr.mxu0 0.0
    %319 = vmatpush1.xpose.msra.mxu0 0.0
    %320 = vmatprep.subr.mxu0 0.0
    %321 = vmatpush1.xpose.msra.mxu0 0.0
    %322 = vmatprep.subr.mxu0 0.0
    %323 = vmatpush1.xpose.msra.mxu0 0.0
    %324 = vmatprep.subr.mxu0 0.0
    %325 = vmatpush1.xpose.msra.mxu0 0.0
    %326 = vmatprep.subr.mxu0 0.0
    %327 = vmatpush1.xpose.msra.mxu0 0.0
    %328 = vmatprep.subr.mxu0 0.0
    %329 = vmatpush1.xpose.msra.mxu0 0.0
    %330 = vmatprep.subr.mxu0 0.0
    %331 = vmatpush1.xpose.msra.mxu0 0.0
    %332 = vmatprep.subr.mxu0 0.0
    %333 = vmatpush1.xpose.msra.mxu0 0.0
    %334 = vmatprep.subr.mxu0 0.0
    %335 = vmatpush1.xpose.msra.mxu0 0.0
    %336 = vmatprep.subr.mxu0 0.0
    %337 = vmatpush1.xpose.msra.mxu0 0.0
    %338 = vmatprep.subr.mxu0 0.0
    %339 = vmatpush1.xpose.msra.mxu0 0.0
    %340 = vmatprep.subr.mxu0 0.0
    %341 = vmatpush1.xpose.msra.mxu0 0.0
    %342 = vmatprep.subr.mxu0 0.0
    %343 = vmatpush1.xpose.msra.mxu0 0.0
    %344 = vmatprep.subr.mxu0 0.0
    %345 = vmatpush1.xpose.msra.mxu0 0.0
    %346 = vmatprep.subr.mxu0 0.0
    %347 = vmatpush1.xpose.msra.mxu0 0.0
    %348 = vmatprep.subr.mxu0 0.0
    %349 = vmatpush1.xpose.msra.mxu0 0.0
    %350 = vmatprep.subr.mxu0 0.0
    %351 = vmatpush1.xpose.msra.mxu0 0.0
    %352 = vmatprep.subr.mxu0 0.0
    %353 = vmatpush1.xpose.msra.mxu0 0.0
    %354 = vmatprep.subr.mxu0 0.0
    %355 = vmatpush1.xpose.msra.mxu0 0.0
    %356 = vmatprep.subr.mxu0 0.0
    %357 = vmatpush1.xpose.msra.mxu0 0.0
    %358 = vmatprep.subr.mxu0 0.0
    %359 = vmatpush1.xpose.msra.mxu0 0.0
    %360 = vmatprep.subr.mxu0 0.0
    %361 = vmatpush1.xpose.msra.mxu0 0.0
    %362 = vmatprep.subr.mxu0 0.0
    %363 = vmatpush1.xpose.msra.mxu0 0.0
    %364 = vmatprep.subr.mxu0 0.0
    %365 = vmatpush1.xpose.msra.mxu0 0.0
    %366 = vmatprep.subr.mxu0 0.0
    %367 = vmatpush1.xpose.msra.mxu0 0.0
    %368 = vmatprep.subr.mxu0 0.0
    %369 = vmatpush1.xpose.msra.mxu0 0.0
    %370 = vmatprep.subr.mxu0 0.0
    %371 = vmatpush1.xpose.msra.mxu0 0.0
    %372 = vmatprep.subr.mxu0 0.0
    %373 = vmatpush1.xpose.msra.mxu0 0.0
    %374 = vmatprep.subr.mxu0 0.0
    %375 = vmatpush1.xpose.msra.mxu0 0.0
    %376 = vmatprep.subr.mxu0 0.0
    %377 = vmatpush1.xpose.msra.mxu0 0.0
    %378 = vmatprep.mubr.f32.mxu0 0.0
    %379 = vmatmul.mubr.f32.gmra.mrb[0].mxu0 %v310
    %v380 = vpop.f32.mrb[0].mxu0
    %v381 = vadd.f32 0.0, %v380
    %v382 = vpop.f32.mrb[0].mxu0
    %383 = vdwg.mxu0
    %384 = vrot.lane.b32.xlu0 %v220, 96
    %v385 = vpop.permute.xlu0 %384
    %v386 = vsel %vm233, %v220, 0
    %v388 = vsel %vm233, %v385, 0
    %390 = vmatprep.subr.mxu0 0.0
    %391 = vmatpush1.xpose.msra.mxu0 %v388
    %392 = vmatprep.subr.mxu0 0.0
    %393 = vmatpush1.xpose.msra.mxu0 0.0
    %394 = vmatprep.subr.mxu0 0.0
    %395 = vmatpush1.xpose.msra.mxu0 0.0
    %396 = vmatprep.subr.mxu0 0.0
    %397 = vmatpush1.xpose.msra.mxu0 0.0
    %398 = vmatprep.subr.mxu0 0.0
    %399 = vmatpush1.xpose.msra.mxu0 0.0
    %400 = vmatprep.subr.mxu0 0.0
    %401 = vmatpush1.xpose.msra.mxu0 0.0
    %402 = vmatprep.subr.mxu0 0.0
    %403 = vmatpush1.xpose.msra.mxu0 0.0
    %404 = vmatprep.subr.mxu0 0.0
    %405 = vmatpush1.xpose.msra.mxu0 0.0
    %406 = vmatprep.subr.mxu0 0.0
    %407 = vmatpush1.xpose.msra.mxu0 0.0
    %408 = vmatprep.subr.mxu0 0.0
    %409 = vmatpush1.xpose.msra.mxu0 0.0
    %410 = vmatprep.subr.mxu0 0.0
    %411 = vmatpush1.xpose.msra.mxu0 0.0
    %412 = vmatprep.subr.mxu0 0.0
    %413 = vmatpush1.xpose.msra.mxu0 0.0
    %414 = vmatprep.subr.mxu0 0.0
    %415 = vmatpush1.xpose.msra.mxu0 0.0
    %416 = vmatprep.subr.mxu0 0.0
    %417 = vmatpush1.xpose.msra.mxu0 0.0
    %418 = vmatprep.subr.mxu0 0.0
    %419 = vmatpush1.xpose.msra.mxu0 0.0
    %420 = vmatprep.subr.mxu0 0.0
    %421 = vmatpush1.xpose.msra.mxu0 0.0
    %422 = vmatprep.subr.mxu0 0.0
    %423 = vmatpush1.xpose.msra.mxu0 0.0
    %424 = vmatprep.subr.mxu0 0.0
    %425 = vmatpush1.xpose.msra.mxu0 0.0
    %426 = vmatprep.subr.mxu0 0.0
    %427 = vmatpush1.xpose.msra.mxu0 0.0
    %428 = vmatprep.subr.mxu0 0.0
    %429 = vmatpush1.xpose.msra.mxu0 0.0
    %430 = vmatprep.subr.mxu0 0.0
    %431 = vmatpush1.xpose.msra.mxu0 0.0
    %432 = vmatprep.subr.mxu0 0.0
    %433 = vmatpush1.xpose.msra.mxu0 0.0
    %434 = vmatprep.subr.mxu0 0.0
    %435 = vmatpush1.xpose.msra.mxu0 0.0
    %436 = vmatprep.subr.mxu0 0.0
    %437 = vmatpush1.xpose.msra.mxu0 0.0
    %438 = vmatprep.subr.mxu0 0.0
    %439 = vmatpush1.xpose.msra.mxu0 0.0
    %440 = vmatprep.subr.mxu0 0.0
    %441 = vmatpush1.xpose.msra.mxu0 0.0
    %442 = vmatprep.subr.mxu0 0.0
    %443 = vmatpush1.xpose.msra.mxu0 0.0
    %444 = vmatprep.subr.mxu0 0.0
    %445 = vmatpush1.xpose.msra.mxu0 0.0
    %446 = vmatprep.subr.mxu0 0.0
    %447 = vmatpush1.xpose.msra.mxu0 0.0
    %448 = vmatprep.subr.mxu0 0.0
    %449 = vmatpush1.xpose.msra.mxu0 0.0
    %450 = vmatprep.subr.mxu0 0.0
    %451 = vmatpush1.xpose.msra.mxu0 0.0
    %452 = vmatprep.subr.mxu0 0.0
    %453 = vmatpush1.xpose.msra.mxu0 0.0
    %454 = vmatprep.mubr.f32.mxu0 0.0
    %455 = vmatmul.mubr.f32.gmra.mrb[0].mxu0 %v386
    %v456 = vpop.f32.mrb[0].mxu0
    %v457 = vadd.f32 0.0, %v456
    %v458 = vpop.f32.mrb[0].mxu0
    %459 = vdwg.mxu0
    %460 = vrot.lane.b32.xlu0 %v222, 96
    %v461 = vpop.permute.xlu0 %460
    %v462 = vsel %vm233, %v222, 0
    %v464 = vsel %vm233, %v461, 0
    %466 = vmatprep.subr.mxu0 0.0
    %467 = vmatpush1.xpose.msra.mxu0 %v464
    %468 = vmatprep.subr.mxu0 0.0
    %469 = vmatpush1.xpose.msra.mxu0 0.0
    %470 = vmatprep.subr.mxu0 0.0
    %471 = vmatpush1.xpose.msra.mxu0 0.0
    %472 = vmatprep.subr.mxu0 0.0
    %473 = vmatpush1.xpose.msra.mxu0 0.0
    %474 = vmatprep.subr.mxu0 0.0
    %475 = vmatpush1.xpose.msra.mxu0 0.0
    %476 = vmatprep.subr.mxu0 0.0
    %477 = vmatpush1.xpose.msra.mxu0 0.0
    %478 = vmatprep.subr.mxu0 0.0
    %479 = vmatpush1.xpose.msra.mxu0 0.0
    %480 = vmatprep.subr.mxu0 0.0
    %481 = vmatpush1.xpose.msra.mxu0 0.0
    %482 = vmatprep.subr.mxu0 0.0
    %483 = vmatpush1.xpose.msra.mxu0 0.0
    %484 = vmatprep.subr.mxu0 0.0
    %485 = vmatpush1.xpose.msra.mxu0 0.0
    %486 = vmatprep.subr.mxu0 0.0
    %487 = vmatpush1.xpose.msra.mxu0 0.0
    %488 = vmatprep.subr.mxu0 0.0
    %489 = vmatpush1.xpose.msra.mxu0 0.0
    %490 = vmatprep.subr.mxu0 0.0
    %491 = vmatpush1.xpose.msra.mxu0 0.0
    %492 = vmatprep.subr.mxu0 0.0
    %493 = vmatpush1.xpose.msra.mxu0 0.0
    %494 = vmatprep.subr.mxu0 0.0
    %495 = vmatpush1.xpose.msra.mxu0 0.0
    %496 = vmatprep.subr.mxu0 0.0
    %497 = vmatpush1.xpose.msra.mxu0 0.0
    %498 = vmatprep.subr.mxu0 0.0
    %499 = vmatpush1.xpose.msra.mxu0 0.0
    %500 = vmatprep.subr.mxu0 0.0
    %501 = vmatpush1.xpose.msra.mxu0 0.0
    %502 = vmatprep.subr.mxu0 0.0
    %503 = vmatpush1.xpose.msra.mxu0 0.0
    %504 = vmatprep.subr.mxu0 0.0
    %505 = vmatpush1.xpose.msra.mxu0 0.0
    %506 = vmatprep.subr.mxu0 0.0
    %507 = vmatpush1.xpose.msra.mxu0 0.0
    %508 = vmatprep.subr.mxu0 0.0
    %509 = vmatpush1.xpose.msra.mxu0 0.0
    %510 = vmatprep.subr.mxu0 0.0
    %511 = vmatpush1.xpose.msra.mxu0 0.0
    %512 = vmatprep.subr.mxu0 0.0
    %513 = vmatpush1.xpose.msra.mxu0 0.0
    %514 = vmatprep.subr.mxu0 0.0
    %515 = vmatpush1.xpose.msra.mxu0 0.0
    %516 = vmatprep.subr.mxu0 0.0
    %517 = vmatpush1.xpose.msra.mxu0 0.0
    %518 = vmatprep.subr.mxu0 0.0
    %519 = vmatpush1.xpose.msra.mxu0 0.0
    %520 = vmatprep.subr.mxu0 0.0
    %521 = vmatpush1.xpose.msra.mxu0 0.0
    %522 = vmatprep.subr.mxu0 0.0
    %523 = vmatpush1.xpose.msra.mxu0 0.0
    %524 = vmatprep.subr.mxu0 0.0
    %525 = vmatpush1.xpose.msra.mxu0 0.0
    %526 = vmatprep.subr.mxu0 0.0
    %527 = vmatpush1.xpose.msra.mxu0 0.0
    %528 = vmatprep.subr.mxu0 0.0
    %529 = vmatpush1.xpose.msra.mxu0 0.0
    %530 = vmatprep.mubr.f32.mxu0 0.0
    %531 = vmatmul.mubr.f32.gmra.mrb[0].mxu0 %v462
    %v532 = vpop.f32.mrb[0].mxu0
    %v533 = vadd.f32 0.0, %v532
    %v534 = vpop.f32.mrb[0].mxu0
    %535 = vdwg.mxu0
    %536 = vrot.lane.b32.xlu0 %v224, 96
    %v537 = vpop.permute.xlu0 %536
    %v538 = vsel %vm233, %v224, 0
    %v540 = vsel %vm233, %v537, 0
    %542 = vmatprep.subr.mxu0 0.0
    %543 = vmatpush1.xpose.msra.mxu0 %v540
    %544 = vmatprep.subr.mxu0 0.0
    %545 = vmatpush1.xpose.msra.mxu0 0.0
    %546 = vmatprep.subr.mxu0 0.0
    %547 = vmatpush1.xpose.msra.mxu0 0.0
    %548 = vmatprep.subr.mxu0 0.0
    %549 = vmatpush1.xpose.msra.mxu0 0.0
    %550 = vmatprep.subr.mxu0 0.0
    %551 = vmatpush1.xpose.msra.mxu0 0.0
    %552 = vmatprep.subr.mxu0 0.0
    %553 = vmatpush1.xpose.msra.mxu0 0.0
    %554 = vmatprep.subr.mxu0 0.0
    %555 = vmatpush1.xpose.msra.mxu0 0.0
    %556 = vmatprep.subr.mxu0 0.0
    %557 = vmatpush1.xpose.msra.mxu0 0.0
    %558 = vmatprep.subr.mxu0 0.0
    %559 = vmatpush1.xpose.msra.mxu0 0.0
    %560 = vmatprep.subr.mxu0 0.0
    %561 = vmatpush1.xpose.msra.mxu0 0.0
    %562 = vmatprep.subr.mxu0 0.0
    %563 = vmatpush1.xpose.msra.mxu0 0.0
    %564 = vmatprep.subr.mxu0 0.0
    %565 = vmatpush1.xpose.msra.mxu0 0.0
    %566 = vmatprep.subr.mxu0 0.0
    %567 = vmatpush1.xpose.msra.mxu0 0.0
    %568 = vmatprep.subr.mxu0 0.0
    %569 = vmatpush1.xpose.msra.mxu0 0.0
    %570 = vmatprep.subr.mxu0 0.0
    %571 = vmatpush1.xpose.msra.mxu0 0.0
    %572 = vmatprep.subr.mxu0 0.0
    %573 = vmatpush1.xpose.msra.mxu0 0.0
    %574 = vmatprep.subr.mxu0 0.0
    %575 = vmatpush1.xpose.msra.mxu0 0.0
    %576 = vmatprep.subr.mxu0 0.0
    %577 = vmatpush1.xpose.msra.mxu0 0.0
    %578 = vmatprep.subr.mxu0 0.0
    %579 = vmatpush1.xpose.msra.mxu0 0.0
    %580 = vmatprep.subr.mxu0 0.0
    %581 = vmatpush1.xpose.msra.mxu0 0.0
    %582 = vmatprep.subr.mxu0 0.0
    %583 = vmatpush1.xpose.msra.mxu0 0.0
    %584 = vmatprep.subr.mxu0 0.0
    %585 = vmatpush1.xpose.msra.mxu0 0.0
    %586 = vmatprep.subr.mxu0 0.0
    %587 = vmatpush1.xpose.msra.mxu0 0.0
    %588 = vmatprep.subr.mxu0 0.0
    %589 = vmatpush1.xpose.msra.mxu0 0.0
    %590 = vmatprep.subr.mxu0 0.0
    %591 = vmatpush1.xpose.msra.mxu0 0.0
    %592 = vmatprep.subr.mxu0 0.0
    %593 = vmatpush1.xpose.msra.mxu0 0.0
    %594 = vmatprep.subr.mxu0 0.0
    %595 = vmatpush1.xpose.msra.mxu0 0.0
    %596 = vmatprep.subr.mxu0 0.0
    %597 = vmatpush1.xpose.msra.mxu0 0.0
    %598 = vmatprep.subr.mxu0 0.0
    %599 = vmatpush1.xpose.msra.mxu0 0.0
    %600 = vmatprep.subr.mxu0 0.0
    %601 = vmatpush1.xpose.msra.mxu0 0.0
    %602 = vmatprep.subr.mxu0 0.0
    %603 = vmatpush1.xpose.msra.mxu0 0.0
    %604 = vmatprep.subr.mxu0 0.0
    %605 = vmatpush1.xpose.msra.mxu0 0.0
    %606 = vmatprep.mubr.f32.mxu0 0.0
    %607 = vmatmul.mubr.f32.gmra.mrb[0].mxu0 %v538
    %v608 = vpop.f32.mrb[0].mxu0
    %v609 = vadd.f32 0.0, %v608
    %v610 = vpop.f32.mrb[0].mxu0
    %611 = vdwg.mxu0
    %612 = vrot.lane.b32.xlu0 %v226, 96
    %v613 = vpop.permute.xlu0 %612
    %v614 = vsel %vm233, %v226, 0
    %v616 = vsel %vm233, %v613, 0
    %618 = vmatprep.subr.mxu0 0.0
    %619 = vmatpush1.xpose.msra.mxu0 %v616
    %620 = vmatprep.subr.mxu0 0.0
    %621 = vmatpush1.xpose.msra.mxu0 0.0
    %622 = vmatprep.subr.mxu0 0.0
    %623 = vmatpush1.xpose.msra.mxu0 0.0
    %624 = vmatprep.subr.mxu0 0.0
    %625 = vmatpush1.xpose.msra.mxu0 0.0
    %626 = vmatprep.subr.mxu0 0.0
    %627 = vmatpush1.xpose.msra.mxu0 0.0
    %628 = vmatprep.subr.mxu0 0.0
    %629 = vmatpush1.xpose.msra.mxu0 0.0
    %630 = vmatprep.subr.mxu0 0.0
    %631 = vmatpush1.xpose.msra.mxu0 0.0
    %632 = vmatprep.subr.mxu0 0.0
    %633 = vmatpush1.xpose.msra.mxu0 0.0
    %634 = vmatprep.subr.mxu0 0.0
    %635 = vmatpush1.xpose.msra.mxu0 0.0
    %636 = vmatprep.subr.mxu0 0.0
    %637 = vmatpush1.xpose.msra.mxu0 0.0
    %638 = vmatprep.subr.mxu0 0.0
    %639 = vmatpush1.xpose.msra.mxu0 0.0
    %640 = vmatprep.subr.mxu0 0.0
    %641 = vmatpush1.xpose.msra.mxu0 0.0
    %642 = vmatprep.subr.mxu0 0.0
    %643 = vmatpush1.xpose.msra.mxu0 0.0
    %644 = vmatprep.subr.mxu0 0.0
    %645 = vmatpush1.xpose.msra.mxu0 0.0
    %646 = vmatprep.subr.mxu0 0.0
    %647 = vmatpush1.xpose.msra.mxu0 0.0
    %648 = vmatprep.subr.mxu0 0.0
    %649 = vmatpush1.xpose.msra.mxu0 0.0
    %650 = vmatprep.subr.mxu0 0.0
    %651 = vmatpush1.xpose.msra.mxu0 0.0
    %652 = vmatprep.subr.mxu0 0.0
    %653 = vmatpush1.xpose.msra.mxu0 0.0
    %654 = vmatprep.subr.mxu0 0.0
    %655 = vmatpush1.xpose.msra.mxu0 0.0
    %656 = vmatprep.subr.mxu0 0.0
    %657 = vmatpush1.xpose.msra.mxu0 0.0
    %658 = vmatprep.subr.mxu0 0.0
    %659 = vmatpush1.xpose.msra.mxu0 0.0
    %660 = vmatprep.subr.mxu0 0.0
    %661 = vmatpush1.xpose.msra.mxu0 0.0
    %662 = vmatprep.subr.mxu0 0.0
    %663 = vmatpush1.xpose.msra.mxu0 0.0
    %664 = vmatprep.subr.mxu0 0.0
    %665 = vmatpush1.xpose.msra.mxu0 0.0
    %666 = vmatprep.subr.mxu0 0.0
    %667 = vmatpush1.xpose.msra.mxu0 0.0
    %668 = vmatprep.subr.mxu0 0.0
    %669 = vmatpush1.xpose.msra.mxu0 0.0
    %670 = vmatprep.subr.mxu0 0.0
    %671 = vmatpush1.xpose.msra.mxu0 0.0
    %672 = vmatprep.subr.mxu0 0.0
    %673 = vmatpush1.xpose.msra.mxu0 0.0
    %674 = vmatprep.subr.mxu0 0.0
    %675 = vmatpush1.xpose.msra.mxu0 0.0
    %676 = vmatprep.subr.mxu0 0.0
    %677 = vmatpush1.xpose.msra.mxu0 0.0
    %678 = vmatprep.subr.mxu0 0.0
    %679 = vmatpush1.xpose.msra.mxu0 0.0
    %680 = vmatprep.subr.mxu0 0.0
    %681 = vmatpush1.xpose.msra.mxu0 0.0
    %682 = vmatprep.mubr.f32.mxu0 0.0
    %683 = vmatmul.mubr.f32.gmra.mrb[0].mxu0 %v614
    %v684 = vpop.f32.mrb[0].mxu0
    %v685 = vadd.f32 0.0, %v684
    %v686 = vpop.f32.mrb[0].mxu0
    %687 = vdwg.mxu0
    %688 = vrot.lane.b32.xlu0 %v228, 96
    %v689 = vpop.permute.xlu0 %688
    %v690 = vsel %vm233, %v228, 0
    %v692 = vsel %vm233, %v689, 0
    %694 = vmatprep.subr.mxu0 0.0
    %695 = vmatpush1.xpose.msra.mxu0 %v692
    %696 = vmatprep.subr.mxu0 0.0
    %697 = vmatpush1.xpose.msra.mxu0 0.0
    %698 = vmatprep.subr.mxu0 0.0
    %699 = vmatpush1.xpose.msra.mxu0 0.0
    %700 = vmatprep.subr.mxu0 0.0
    %701 = vmatpush1.xpose.msra.mxu0 0.0
    %702 = vmatprep.subr.mxu0 0.0
    %703 = vmatpush1.xpose.msra.mxu0 0.0
    %704 = vmatprep.subr.mxu0 0.0
    %705 = vmatpush1.xpose.msra.mxu0 0.0
    %706 = vmatprep.subr.mxu0 0.0
    %707 = vmatpush1.xpose.msra.mxu0 0.0
    %708 = vmatprep.subr.mxu0 0.0
    %709 = vmatpush1.xpose.msra.mxu0 0.0
    %710 = vmatprep.subr.mxu0 0.0
    %711 = vmatpush1.xpose.msra.mxu0 0.0
    %712 = vmatprep.subr.mxu0 0.0
    %713 = vmatpush1.xpose.msra.mxu0 0.0
    %714 = vmatprep.subr.mxu0 0.0
    %715 = vmatpush1.xpose.msra.mxu0 0.0
    %716 = vmatprep.subr.mxu0 0.0
    %717 = vmatpush1.xpose.msra.mxu0 0.0
    %718 = vmatprep.subr.mxu0 0.0
    %719 = vmatpush1.xpose.msra.mxu0 0.0
    %720 = vmatprep.subr.mxu0 0.0
    %721 = vmatpush1.xpose.msra.mxu0 0.0
    %722 = vmatprep.subr.mxu0 0.0
    %723 = vmatpush1.xpose.msra.mxu0 0.0
    %724 = vmatprep.subr.mxu0 0.0
    %725 = vmatpush1.xpose.msra.mxu0 0.0
    %726 = vmatprep.subr.mxu0 0.0
    %727 = vmatpush1.xpose.msra.mxu0 0.0
    %728 = vmatprep.subr.mxu0 0.0
    %729 = vmatpush1.xpose.msra.mxu0 0.0
    %730 = vmatprep.subr.mxu0 0.0
    %731 = vmatpush1.xpose.msra.mxu0 0.0
    %732 = vmatprep.subr.mxu0 0.0
    %733 = vmatpush1.xpose.msra.mxu0 0.0
    %734 = vmatprep.subr.mxu0 0.0
    %735 = vmatpush1.xpose.msra.mxu0 0.0
    %736 = vmatprep.subr.mxu0 0.0
    %737 = vmatpush1.xpose.msra.mxu0 0.0
    %738 = vmatprep.subr.mxu0 0.0
    %739 = vmatpush1.xpose.msra.mxu0 0.0
    %740 = vmatprep.subr.mxu0 0.0
    %741 = vmatpush1.xpose.msra.mxu0 0.0
    %742 = vmatprep.subr.mxu0 0.0
    %743 = vmatpush1.xpose.msra.mxu0 0.0
    %744 = vmatprep.subr.mxu0 0.0
    %745 = vmatpush1.xpose.msra.mxu0 0.0
    %746 = vmatprep.subr.mxu0 0.0
    %747 = vmatpush1.xpose.msra.mxu0 0.0
    %748 = vmatprep.subr.mxu0 0.0
    %749 = vmatpush1.xpose.msra.mxu0 0.0
    %750 = vmatprep.subr.mxu0 0.0
    %751 = vmatpush1.xpose.msra.mxu0 0.0
    %752 = vmatprep.subr.mxu0 0.0
    %753 = vmatpush1.xpose.msra.mxu0 0.0
    %754 = vmatprep.subr.mxu0 0.0
    %755 = vmatpush1.xpose.msra.mxu0 0.0
    %756 = vmatprep.subr.mxu0 0.0
    %757 = vmatpush1.xpose.msra.mxu0 0.0
    %758 = vmatprep.mubr.f32.mxu0 0.0
    %759 = vmatmul.mubr.f32.gmra.mrb[0].mxu0 %v690
    %v760 = vpop.f32.mrb[0].mxu0
    %v761 = vadd.f32 0.0, %v760
    %v762 = vpop.f32.mrb[0].mxu0
    %763 = vdwg.mxu0
    %764 = vrot.lane.b32.xlu0 %v230, 96
    %v765 = vpop.permute.xlu0 %764
    %v766 = vsel %vm233, %v230, 0
    %v768 = vsel %vm233, %v765, 0
    %770 = vmatprep.subr.mxu0 0.0
    %771 = vmatpush1.xpose.msra.mxu0 %v768
    %772 = vmatprep.subr.mxu0 0.0
    %773 = vmatpush1.xpose.msra.mxu0 0.0
    %774 = vmatprep.subr.mxu0 0.0
    %775 = vmatpush1.xpose.msra.mxu0 0.0
    %776 = vmatprep.subr.mxu0 0.0
    %777 = vmatpush1.xpose.msra.mxu0 0.0
    %778 = vmatprep.subr.mxu0 0.0
    %779 = vmatpush1.xpose.msra.mxu0 0.0
    %780 = vmatprep.subr.mxu0 0.0
    %781 = vmatpush1.xpose.msra.mxu0 0.0
    %782 = vmatprep.subr.mxu0 0.0
    %783 = vmatpush1.xpose.msra.mxu0 0.0
    %784 = vmatprep.subr.mxu0 0.0
    %785 = vmatpush1.xpose.msra.mxu0 0.0
    %786 = vmatprep.subr.mxu0 0.0
    %787 = vmatpush1.xpose.msra.mxu0 0.0
    %788 = vmatprep.subr.mxu0 0.0
    %789 = vmatpush1.xpose.msra.mxu0 0.0
    %790 = vmatprep.subr.mxu0 0.0
    %791 = vmatpush1.xpose.msra.mxu0 0.0
    %792 = vmatprep.subr.mxu0 0.0
    %793 = vmatpush1.xpose.msra.mxu0 0.0
    %794 = vmatprep.subr.mxu0 0.0
    %795 = vmatpush1.xpose.msra.mxu0 0.0
    %796 = vmatprep.subr.mxu0 0.0
    %797 = vmatpush1.xpose.msra.mxu0 0.0
    %798 = vmatprep.subr.mxu0 0.0
    %799 = vmatpush1.xpose.msra.mxu0 0.0
    %800 = vmatprep.subr.mxu0 0.0
    %801 = vmatpush1.xpose.msra.mxu0 0.0
    %802 = vmatprep.subr.mxu0 0.0
    %803 = vmatpush1.xpose.msra.mxu0 0.0
    %804 = vmatprep.subr.mxu0 0.0
    %805 = vmatpush1.xpose.msra.mxu0 0.0
    %806 = vmatprep.subr.mxu0 0.0
    %807 = vmatpush1.xpose.msra.mxu0 0.0
    %808 = vmatprep.subr.mxu0 0.0
    %809 = vmatpush1.xpose.msra.mxu0 0.0
    %810 = vmatprep.subr.mxu0 0.0
    %811 = vmatpush1.xpose.msra.mxu0 0.0
    %812 = vmatprep.subr.mxu0 0.0
    %813 = vmatpush1.xpose.msra.mxu0 0.0
    %814 = vmatprep.subr.mxu0 0.0
    %815 = vmatpush1.xpose.msra.mxu0 0.0
    %816 = vmatprep.subr.mxu0 0.0
    %817 = vmatpush1.xpose.msra.mxu0 0.0
    %818 = vmatprep.subr.mxu0 0.0
    %819 = vmatpush1.xpose.msra.mxu0 0.0
    %820 = vmatprep.subr.mxu0 0.0
    %821 = vmatpush1.xpose.msra.mxu0 0.0
    %822 = vmatprep.subr.mxu0 0.0
    %823 = vmatpush1.xpose.msra.mxu0 0.0
    %824 = vmatprep.subr.mxu0 0.0
    %825 = vmatpush1.xpose.msra.mxu0 0.0
    %826 = vmatprep.subr.mxu0 0.0
    %827 = vmatpush1.xpose.msra.mxu0 0.0
    %828 = vmatprep.subr.mxu0 0.0
    %829 = vmatpush1.xpose.msra.mxu0 0.0
    %830 = vmatprep.subr.mxu0 0.0
    %831 = vmatpush1.xpose.msra.mxu0 0.0
    %832 = vmatprep.subr.mxu0 0.0
    %833 = vmatpush1.xpose.msra.mxu0 0.0
    %834 = vmatprep.mubr.f32.mxu0 0.0
    %835 = vmatmul.mubr.f32.gmra.mrb[0].mxu0 %v766
    %v836 = vpop.f32.mrb[0].mxu0
    %v837 = vadd.f32 0.0, %v836
    %v838 = vpop.f32.mrb[0].mxu0
    %839 = vdwg.mxu0
    %v840 = vmul.f32 %v305, 0.35355338
    %v841 = vmul.f32 %v381, 0.35355338
    %v842 = vmul.f32 %v457, 0.35355338
    %v843 = vmul.f32 %v533, 0.35355338
    %v844 = vmul.f32 %v609, 0.35355338
    %v845 = vmul.f32 %v685, 0.35355338
    %v846 = vmul.f32 %v761, 0.35355338
    %v847 = vmul.f32 %v837, 0.35355338
    %v848 = vsel %vm233, %v840, -inf
    %849 = vmax.xlane.f32.xlu0 %v848
    %v850 = vpop.xlane.xlu0 %849
    %v851 = vsel %vm233, %v841, -inf
    %852 = vmax.xlane.f32.xlu0 %v851
    %v853 = vpop.xlane.xlu0 %852
    %v854 = vsel %vm233, %v842, -inf
    %855 = vmax.xlane.f32.xlu0 %v854
    %v856 = vpop.xlane.xlu0 %855
    %v857 = vsel %vm233, %v843, -inf
    %858 = vmax.xlane.f32.xlu0 %v857
    %v859 = vpop.xlane.xlu0 %858
    %v860 = vsel %vm233, %v844, -inf
    %861 = vmax.xlane.f32.xlu0 %v860
    %v862 = vpop.xlane.xlu0 %861
    %v863 = vsel %vm233, %v845, -inf
    %864 = vmax.xlane.f32.xlu0 %v863
    %v865 = vpop.xlane.xlu0 %864
    %v866 = vsel %vm233, %v846, -inf
    %867 = vmax.xlane.f32.xlu0 %v866
    %v868 = vpop.xlane.xlu0 %867
    %v869 = vsel %vm233, %v847, -inf
    %870 = vmax.xlane.f32.xlu0 %v869
    %v871 = vpop.xlane.xlu0 %870
    %v872 = vsub.f32 %v840, %v850
    %v873 = vsub.f32 %v841, %v853
    %v874 = vsub.f32 %v842, %v856
    %v875 = vsub.f32 %v843, %v859
    %v876 = vsub.f32 %v844, %v862
    %v877 = vsub.f32 %v845, %v865
    %v878 = vsub.f32 %v846, %v868
    %v879 = vsub.f32 %v847, %v871
    %v880 = vmul.f32 %v872, 1.442695
    %v881 = vpow.pop %v880
    %v882 = vmul.f32 %v873, 1.442695
    %v883 = vpow.pop %v882
    %v884 = vmul.f32 %v874, 1.442695
    %v885 = vpow.pop %v884
    %v886 = vmul.f32 %v875, 1.442695
    %v887 = vpow.pop %v886
    %v888 = vmul.f32 %v876, 1.442695
    %v889 = vpow.pop %v888
    %v890 = vmul.f32 %v877, 1.442695
    %v891 = vpow.pop %v890
    %v892 = vmul.f32 %v878, 1.442695
    %v893 = vpow.pop %v892
    %v894 = vmul.f32 %v879, 1.442695
    %v895 = vpow.pop %v894
    %v896 = vsel %vm233, %v881, 0.0
    %897 = vadd.xlane.f32.xlu0 %v896
    %v898 = vpop.xlane.xlu0 %897
    %v899 = vsel %vm233, %v883, 0.0
    %900 = vadd.xlane.f32.xlu0 %v899
    %v901 = vpop.xlane.xlu0 %900
    %v902 = vsel %vm233, %v885, 0.0
    %903 = vadd.xlane.f32.xlu0 %v902
    %v904 = vpop.xlane.xlu0 %903
    %v905 = vsel %vm233, %v887, 0.0
    %906 = vadd.xlane.f32.xlu0 %v905
    %v907 = vpop.xlane.xlu0 %906
    %v908 = vsel %vm233, %v889, 0.0
    %909 = vadd.xlane.f32.xlu0 %v908
    %v910 = vpop.xlane.xlu0 %909
    %v911 = vsel %vm233, %v891, 0.0
    %912 = vadd.xlane.f32.xlu0 %v911
    %v913 = vpop.xlane.xlu0 %912
    %v914 = vsel %vm233, %v893, 0.0
    %915 = vadd.xlane.f32.xlu0 %v914
    %v916 = vpop.xlane.xlu0 %915
    %v917 = vsel %vm233, %v895, 0.0
    %918 = vadd.xlane.f32.xlu0 %v917
    %v919 = vpop.xlane.xlu0 %918
    %v920 = vrcp.pop %v898
    %v921 = vrcp.pop %v901
    %v922 = vrcp.pop %v904
    %v923 = vrcp.pop %v907
    %v924 = vrcp.pop %v910
    %v925 = vrcp.pop %v913
    %v926 = vrcp.pop %v916
    %v927 = vrcp.pop %v919
    %v928 = vmul.f32 %v881, %v920
    %v929 = vmul.f32 %v883, %v921
    %v930 = vmul.f32 %v885, %v922
    %v931 = vmul.f32 %v887, %v923
    %v932 = vmul.f32 %v889, %v924
    %v933 = vmul.f32 %v891, %v925
    %v934 = vmul.f32 %v893, %v926
    %v935 = vmul.f32 %v895, %v927
    %936 = vrot.lane.b32.xlu0 %v211, 64
    %v937 = vpop.permute.xlu0 %936
    %v940 = vsel %vm233, %v928, 0
    %942 = vmatprep.subr.mxu0 0.0
    %943 = vmatpush1.msra.mxu0 %v937
    %944 = vmatprep.subr.mxu0 0.0
    %945 = vmatpush1.msra.mxu0 0.0
    %946 = vmatprep.subr.mxu0 0.0
    %947 = vmatpush1.msra.mxu0 0.0
    %948 = vmatprep.subr.mxu0 0.0
    %949 = vmatpush1.msra.mxu0 0.0
    %950 = vmatprep.subr.mxu0 0.0
    %951 = vmatpush1.msra.mxu0 0.0
    %952 = vmatprep.subr.mxu0 0.0
    %953 = vmatpush1.msra.mxu0 0.0
    %954 = vmatprep.subr.mxu0 0.0
    %955 = vmatpush1.msra.mxu0 0.0
    %956 = vmatprep.subr.mxu0 0.0
    %957 = vmatpush1.msra.mxu0 0.0
    %958 = vmatprep.subr.mxu0 0.0
    %959 = vmatpush1.msra.mxu0 0.0
    %960 = vmatprep.subr.mxu0 0.0
    %961 = vmatpush1.msra.mxu0 0.0
    %962 = vmatprep.subr.mxu0 0.0
    %963 = vmatpush1.msra.mxu0 0.0
    %964 = vmatprep.subr.mxu0 0.0
    %965 = vmatpush1.msra.mxu0 0.0
    %966 = vmatprep.subr.mxu0 0.0
    %967 = vmatpush1.msra.mxu0 0.0
    %968 = vmatprep.subr.mxu0 0.0
    %969 = vmatpush1.msra.mxu0 0.0
    %970 = vmatprep.subr.mxu0 0.0
    %971 = vmatpush1.msra.mxu0 0.0
    %972 = vmatprep.subr.mxu0 0.0
    %973 = vmatpush1.msra.mxu0 0.0
    %974 = vmatprep.subr.mxu0 0.0
    %975 = vmatpush1.msra.mxu0 0.0
    %976 = vmatprep.subr.mxu0 0.0
    %977 = vmatpush1.msra.mxu0 0.0
    %978 = vmatprep.subr.mxu0 0.0
    %979 = vmatpush1.msra.mxu0 0.0
    %980 = vmatprep.subr.mxu0 0.0
    %981 = vmatpush1.msra.mxu0 0.0
    %982 = vmatprep.subr.mxu0 0.0
    %983 = vmatpush1.msra.mxu0 0.0
    %984 = vmatprep.subr.mxu0 0.0
    %985 = vmatpush1.msra.mxu0 0.0
    %986 = vmatprep.subr.mxu0 0.0
    %987 = vmatpush1.msra.mxu0 0.0
    %988 = vmatprep.subr.mxu0 0.0
    %989 = vmatpush1.msra.mxu0 0.0
    %990 = vmatprep.subr.mxu0 0.0
    %991 = vmatpush1.msra.mxu0 0.0
    %992 = vmatprep.subr.mxu0 0.0
    %993 = vmatpush1.msra.mxu0 0.0
    %994 = vmatprep.subr.mxu0 0.0
    %995 = vmatpush1.msra.mxu0 0.0
    %996 = vmatprep.subr.mxu0 0.0
    %997 = vmatpush1.msra.mxu0 0.0
    %998 = vmatprep.subr.mxu0 0.0
    %999 = vmatpush1.msra.mxu0 0.0
    %1000 = vmatprep.subr.mxu0 0.0
    %1001 = vmatpush1.msra.mxu0 0.0
    %1002 = vmatprep.subr.mxu0 0.0
    %1003 = vmatpush1.msra.mxu0 0.0
    %1004 = vmatprep.subr.mxu0 0.0
    %1005 = vmatpush1.msra.mxu0 0.0
    %1006 = vmatprep.mubr.f32.mxu0 0.0
    %1007 = vmatmul.mubr.f32.gmra.mrb[0].mxu0 %v940
    %v1008 = vpop.f32.mrb[0].mxu0
    %v1009 = vadd.f32 0.0, %v1008
    %v1010 = vpop.f32.mrb[0].mxu0
    %1011 = vdwg.mxu0
    %1012 = vrot.lane.b32.xlu0 %v214, 64
    %v1013 = vpop.permute.xlu0 %1012
    %v1016 = vsel %vm233, %v929, 0
    %1018 = vmatprep.subr.mxu0 0.0
    %1019 = vmatpush1.msra.mxu0 %v1013
    %1020 = vmatprep.subr.mxu0 0.0
    %1021 = vmatpush1.msra.mxu0 0.0
    %1022 = vmatprep.subr.mxu0 0.0
    %1023 = vmatpush1.msra.mxu0 0.0
    %1024 = vmatprep.subr.mxu0 0.0
    %1025 = vmatpush1.msra.mxu0 0.0
    %1026 = vmatprep.subr.mxu0 0.0
    %1027 = vmatpush1.msra.mxu0 0.0
    %1028 = vmatprep.subr.mxu0 0.0
    %1029 = vmatpush1.msra.mxu0 0.0
    %1030 = vmatprep.subr.mxu0 0.0
    %1031 = vmatpush1.msra.mxu0 0.0
    %1032 = vmatprep.subr.mxu0 0.0
    %1033 = vmatpush1.msra.mxu0 0.0
    %1034 = vmatprep.subr.mxu0 0.0
    %1035 = vmatpush1.msra.mxu0 0.0
    %1036 = vmatprep.subr.mxu0 0.0
    %1037 = vmatpush1.msra.mxu0 0.0
    %1038 = vmatprep.subr.mxu0 0.0
    %1039 = vmatpush1.msra.mxu0 0.0
    %1040 = vmatprep.subr.mxu0 0.0
    %1041 = vmatpush1.msra.mxu0 0.0
    %1042 = vmatprep.subr.mxu0 0.0
    %1043 = vmatpush1.msra.mxu0 0.0
    %1044 = vmatprep.subr.mxu0 0.0
    %1045 = vmatpush1.msra.mxu0 0.0
    %1046 = vmatprep.subr.mxu0 0.0
    %1047 = vmatpush1.msra.mxu0 0.0
    %1048 = vmatprep.subr.mxu0 0.0
    %1049 = vmatpush1.msra.mxu0 0.0
    %1050 = vmatprep.subr.mxu0 0.0
    %1051 = vmatpush1.msra.mxu0 0.0
    %1052 = vmatprep.subr.mxu0 0.0
    %1053 = vmatpush1.msra.mxu0 0.0
    %1054 = vmatprep.subr.mxu0 0.0
    %1055 = vmatpush1.msra.mxu0 0.0
    %1056 = vmatprep.subr.mxu0 0.0
    %1057 = vmatpush1.msra.mxu0 0.0
    %1058 = vmatprep.subr.mxu0 0.0
    %1059 = vmatpush1.msra.mxu0 0.0
    %1060 = vmatprep.subr.mxu0 0.0
    %1061 = vmatpush1.msra.mxu0 0.0
    %1062 = vmatprep.subr.mxu0 0.0
    %1063 = vmatpush1.msra.mxu0 0.0
    %1064 = vmatprep.subr.mxu0 0.0
    %1065 = vmatpush1.msra.mxu0 0.0
    %1066 = vmatprep.subr.mxu0 0.0
    %1067 = vmatpush1.msra.mxu0 0.0
    %1068 = vmatprep.subr.mxu0 0.0
    %1069 = vmatpush1.msra.mxu0 0.0
    %1070 = vmatprep.subr.mxu0 0.0
    %1071 = vmatpush1.msra.mxu0 0.0
    %1072 = vmatprep.subr.mxu0 0.0
    %1073 = vmatpush1.msra.mxu0 0.0
    %1074 = vmatprep.subr.mxu0 0.0
    %1075 = vmatpush1.msra.mxu0 0.0
    %1076 = vmatprep.subr.mxu0 0.0
    %1077 = vmatpush1.msra.mxu0 0.0
    %1078 = vmatprep.subr.mxu0 0.0
    %1079 = vmatpush1.msra.mxu0 0.0
    %1080 = vmatprep.subr.mxu0 0.0
    %1081 = vmatpush1.msra.mxu0 0.0
    %1082 = vmatprep.mubr.f32.mxu0 0.0
    %1083 = vmatmul.mubr.f32.gmra.mrb[0].mxu0 %v1016
    %v1084 = vpop.f32.mrb[0].mxu0
    %v1085 = vadd.f32 0.0, %v1084
    %v1086 = vpop.f32.mrb[0].mxu0
    %1087 = vdwg.mxu0
    %1088 = vrot.lane.b32.xlu0 %v220, 64
    %v1089 = vpop.permute.xlu0 %1088
    %v1092 = vsel %vm233, %v930, 0
    %1094 = vmatprep.subr.mxu0 0.0
    %1095 = vmatpush1.msra.mxu0 %v1089
    %1096 = vmatprep.subr.mxu0 0.0
    %1097 = vmatpush1.msra.mxu0 0.0
    %1098 = vmatprep.subr.mxu0 0.0
    %1099 = vmatpush1.msra.mxu0 0.0
    %1100 = vmatprep.subr.mxu0 0.0
    %1101 = vmatpush1.msra.mxu0 0.0
    %1102 = vmatprep.subr.mxu0 0.0
    %1103 = vmatpush1.msra.mxu0 0.0
    %1104 = vmatprep.subr.mxu0 0.0
    %1105 = vmatpush1.msra.mxu0 0.0
    %1106 = vmatprep.subr.mxu0 0.0
    %1107 = vmatpush1.msra.mxu0 0.0
    %1108 = vmatprep.subr.mxu0 0.0
    %1109 = vmatpush1.msra.mxu0 0.0
    %1110 = vmatprep.subr.mxu0 0.0
    %1111 = vmatpush1.msra.mxu0 0.0
    %1112 = vmatprep.subr.mxu0 0.0
    %1113 = vmatpush1.msra.mxu0 0.0
    %1114 = vmatprep.subr.mxu0 0.0
    %1115 = vmatpush1.msra.mxu0 0.0
    %1116 = vmatprep.subr.mxu0 0.0
    %1117 = vmatpush1.msra.mxu0 0.0
    %1118 = vmatprep.subr.mxu0 0.0
    %1119 = vmatpush1.msra.mxu0 0.0
    %1120 = vmatprep.subr.mxu0 0.0
    %1121 = vmatpush1.msra.mxu0 0.0
    %1122 = vmatprep.subr.mxu0 0.0
    %1123 = vmatpush1.msra.mxu0 0.0
    %1124 = vmatprep.subr.mxu0 0.0
    %1125 = vmatpush1.msra.mxu0 0.0
    %1126 = vmatprep.subr.mxu0 0.0
    %1127 = vmatpush1.msra.mxu0 0.0
    %1128 = vmatprep.subr.mxu0 0.0
    %1129 = vmatpush1.msra.mxu0 0.0
    %1130 = vmatprep.subr.mxu0 0.0
    %1131 = vmatpush1.msra.mxu0 0.0
    %1132 = vmatprep.subr.mxu0 0.0
    %1133 = vmatpush1.msra.mxu0 0.0
    %1134 = vmatprep.subr.mxu0 0.0
    %1135 = vmatpush1.msra.mxu0 0.0
    %1136 = vmatprep.subr.mxu0 0.0
    %1137 = vmatpush1.msra.mxu0 0.0
    %1138 = vmatprep.subr.mxu0 0.0
    %1139 = vmatpush1.msra.mxu0 0.0
    %1140 = vmatprep.subr.mxu0 0.0
    %1141 = vmatpush1.msra.mxu0 0.0
    %1142 = vmatprep.subr.mxu0 0.0
    %1143 = vmatpush1.msra.mxu0 0.0
    %1144 = vmatprep.subr.mxu0 0.0
    %1145 = vmatpush1.msra.mxu0 0.0
    %1146 = vmatprep.subr.mxu0 0.0
    %1147 = vmatpush1.msra.mxu0 0.0
    %1148 = vmatprep.subr.mxu0 0.0
    %1149 = vmatpush1.msra.mxu0 0.0
    %1150 = vmatprep.subr.mxu0 0.0
    %1151 = vmatpush1.msra.mxu0 0.0
    %1152 = vmatprep.subr.mxu0 0.0
    %1153 = vmatpush1.msra.mxu0 0.0
    %1154 = vmatprep.subr.mxu0 0.0
    %1155 = vmatpush1.msra.mxu0 0.0
    %1156 = vmatprep.subr.mxu0 0.0
    %1157 = vmatpush1.msra.mxu0 0.0
    %1158 = vmatprep.mubr.f32.mxu0 0.0
    %1159 = vmatmul.mubr.f32.gmra.mrb[0].mxu0 %v1092
    %v1160 = vpop.f32.mrb[0].mxu0
    %v1161 = vadd.f32 0.0, %v1160
    %v1162 = vpop.f32.mrb[0].mxu0
    %1163 = vdwg.mxu0
    %1164 = vrot.lane.b32.xlu0 %v222, 64
    %v1165 = vpop.permute.xlu0 %1164
    %v1168 = vsel %vm233, %v931, 0
    %1170 = vmatprep.subr.mxu0 0.0
    %1171 = vmatpush1.msra.mxu0 %v1165
    %1172 = vmatprep.subr.mxu0 0.0
    %1173 = vmatpush1.msra.mxu0 0.0
    %1174 = vmatprep.subr.mxu0 0.0
    %1175 = vmatpush1.msra.mxu0 0.0
    %1176 = vmatprep.subr.mxu0 0.0
    %1177 = vmatpush1.msra.mxu0 0.0
    %1178 = vmatprep.subr.mxu0 0.0
    %1179 = vmatpush1.msra.mxu0 0.0
    %1180 = vmatprep.subr.mxu0 0.0
    %1181 = vmatpush1.msra.mxu0 0.0
    %1182 = vmatprep.subr.mxu0 0.0
    %1183 = vmatpush1.msra.mxu0 0.0
    %1184 = vmatprep.subr.mxu0 0.0
    %1185 = vmatpush1.msra.mxu0 0.0
    %1186 = vmatprep.subr.mxu0 0.0
    %1187 = vmatpush1.msra.mxu0 0.0
    %1188 = vmatprep.subr.mxu0 0.0
    %1189 = vmatpush1.msra.mxu0 0.0
    %1190 = vmatprep.subr.mxu0 0.0
    %1191 = vmatpush1.msra.mxu0 0.0
    %1192 = vmatprep.subr.mxu0 0.0
    %1193 = vmatpush1.msra.mxu0 0.0
    %1194 = vmatprep.subr.mxu0 0.0
    %1195 = vmatpush1.msra.mxu0 0.0
    %1196 = vmatprep.subr.mxu0 0.0
    %1197 = vmatpush1.msra.mxu0 0.0
    %1198 = vmatprep.subr.mxu0 0.0
    %1199 = vmatpush1.msra.mxu0 0.0
    %1200 = vmatprep.subr.mxu0 0.0
    %1201 = vmatpush1.msra.mxu0 0.0
    %1202 = vmatprep.subr.mxu0 0.0
    %1203 = vmatpush1.msra.mxu0 0.0
    %1204 = vmatprep.subr.mxu0 0.0
    %1205 = vmatpush1.msra.mxu0 0.0
    %1206 = vmatprep.subr.mxu0 0.0
    %1207 = vmatpush1.msra.mxu0 0.0
    %1208 = vmatprep.subr.mxu0 0.0
    %1209 = vmatpush1.msra.mxu0 0.0
    %1210 = vmatprep.subr.mxu0 0.0
    %1211 = vmatpush1.msra.mxu0 0.0
    %1212 = vmatprep.subr.mxu0 0.0
    %1213 = vmatpush1.msra.mxu0 0.0
    %1214 = vmatprep.subr.mxu0 0.0
    %1215 = vmatpush1.msra.mxu0 0.0
    %1216 = vmatprep.subr.mxu0 0.0
    %1217 = vmatpush1.msra.mxu0 0.0
    %1218 = vmatprep.subr.mxu0 0.0
    %1219 = vmatpush1.msra.mxu0 0.0
    %1220 = vmatprep.subr.mxu0 0.0
    %1221 = vmatpush1.msra.mxu0 0.0
    %1222 = vmatprep.subr.mxu0 0.0
    %1223 = vmatpush1.msra.mxu0 0.0
    %1224 = vmatprep.subr.mxu0 0.0
    %1225 = vmatpush1.msra.mxu0 0.0
    %1226 = vmatprep.subr.mxu0 0.0
    %1227 = vmatpush1.msra.mxu0 0.0
    %1228 = vmatprep.subr.mxu0 0.0
    %1229 = vmatpush1.msra.mxu0 0.0
    %1230 = vmatprep.subr.mxu0 0.0
    %1231 = vmatpush1.msra.mxu0 0.0
    %1232 = vmatprep.subr.mxu0 0.0
    %1233 = vmatpush1.msra.mxu0 0.0
    %1234 = vmatprep.mubr.f32.mxu0 0.0
    %1235 = vmatmul.mubr.f32.gmra.mrb[0].mxu0 %v1168
    %v1236 = vpop.f32.mrb[0].mxu0
    %v1237 = vadd.f32 0.0, %v1236
    %v1238 = vpop.f32.mrb[0].mxu0
    %1239 = vdwg.mxu0
    %1240 = vrot.lane.b32.xlu0 %v224, 64
    %v1241 = vpop.permute.xlu0 %1240
    %v1244 = vsel %vm233, %v932, 0
    %1246 = vmatprep.subr.mxu0 0.0
    %1247 = vmatpush1.msra.mxu0 %v1241
    %1248 = vmatprep.subr.mxu0 0.0
    %1249 = vmatpush1.msra.mxu0 0.0
    %1250 = vmatprep.subr.mxu0 0.0
    %1251 = vmatpush1.msra.mxu0 0.0
    %1252 = vmatprep.subr.mxu0 0.0
    %1253 = vmatpush1.msra.mxu0 0.0
    %1254 = vmatprep.subr.mxu0 0.0
    %1255 = vmatpush1.msra.mxu0 0.0
    %1256 = vmatprep.subr.mxu0 0.0
    %1257 = vmatpush1.msra.mxu0 0.0
    %1258 = vmatprep.subr.mxu0 0.0
    %1259 = vmatpush1.msra.mxu0 0.0
    %1260 = vmatprep.subr.mxu0 0.0
    %1261 = vmatpush1.msra.mxu0 0.0
    %1262 = vmatprep.subr.mxu0 0.0
    %1263 = vmatpush1.msra.mxu0 0.0
    %1264 = vmatprep.subr.mxu0 0.0
    %1265 = vmatpush1.msra.mxu0 0.0
    %1266 = vmatprep.subr.mxu0 0.0
    %1267 = vmatpush1.msra.mxu0 0.0
    %1268 = vmatprep.subr.mxu0 0.0
    %1269 = vmatpush1.msra.mxu0 0.0
    %1270 = vmatprep.subr.mxu0 0.0
    %1271 = vmatpush1.msra.mxu0 0.0
    %1272 = vmatprep.subr.mxu0 0.0
    %1273 = vmatpush1.msra.mxu0 0.0
    %1274 = vmatprep.subr.mxu0 0.0
    %1275 = vmatpush1.msra.mxu0 0.0
    %1276 = vmatprep.subr.mxu0 0.0
    %1277 = vmatpush1.msra.mxu0 0.0
    %1278 = vmatprep.subr.mxu0 0.0
    %1279 = vmatpush1.msra.mxu0 0.0
    %1280 = vmatprep.subr.mxu0 0.0
    %1281 = vmatpush1.msra.mxu0 0.0
    %1282 = vmatprep.subr.mxu0 0.0
    %1283 = vmatpush1.msra.mxu0 0.0
    %1284 = vmatprep.subr.mxu0 0.0
    %1285 = vmatpush1.msra.mxu0 0.0
    %1286 = vmatprep.subr.mxu0 0.0
    %1287 = vmatpush1.msra.mxu0 0.0
    %1288 = vmatprep.subr.mxu0 0.0
    %1289 = vmatpush1.msra.mxu0 0.0
    %1290 = vmatprep.subr.mxu0 0.0
    %1291 = vmatpush1.msra.mxu0 0.0
    %1292 = vmatprep.subr.mxu0 0.0
    %1293 = vmatpush1.msra.mxu0 0.0
    %1294 = vmatprep.subr.mxu0 0.0
    %1295 = vmatpush1.msra.mxu0 0.0
    %1296 = vmatprep.subr.mxu0 0.0
    %1297 = vmatpush1.msra.mxu0 0.0
    %1298 = vmatprep.subr.mxu0 0.0
    %1299 = vmatpush1.msra.mxu0 0.0
    %1300 = vmatprep.subr.mxu0 0.0
    %1301 = vmatpush1.msra.mxu0 0.0
    %1302 = vmatprep.subr.mxu0 0.0
    %1303 = vmatpush1.msra.mxu0 0.0
    %1304 = vmatprep.subr.mxu0 0.0
    %1305 = vmatpush1.msra.mxu0 0.0
    %1306 = vmatprep.subr.mxu0 0.0
    %1307 = vmatpush1.msra.mxu0 0.0
    %1308 = vmatprep.subr.mxu0 0.0
    %1309 = vmatpush1.msra.mxu0 0.0
    %1310 = vmatprep.mubr.f32.mxu0 0.0
    %1311 = vmatmul.mubr.f32.gmra.mrb[0].mxu0 %v1244
    %v1312 = vpop.f32.mrb[0].mxu0
    %v1313 = vadd.f32 0.0, %v1312
    %v1314 = vpop.f32.mrb[0].mxu0
    %1315 = vdwg.mxu0
    %1316 = vrot.lane.b32.xlu0 %v226, 64
    %v1317 = vpop.permute.xlu0 %1316
    %v1320 = vsel %vm233, %v933, 0
    %1322 = vmatprep.subr.mxu0 0.0
    %1323 = vmatpush1.msra.mxu0 %v1317
    %1324 = vmatprep.subr.mxu0 0.0
    %1325 = vmatpush1.msra.mxu0 0.0
    %1326 = vmatprep.subr.mxu0 0.0
    %1327 = vmatpush1.msra.mxu0 0.0
    %1328 = vmatprep.subr.mxu0 0.0
    %1329 = vmatpush1.msra.mxu0 0.0
    %1330 = vmatprep.subr.mxu0 0.0
    %1331 = vmatpush1.msra.mxu0 0.0
    %1332 = vmatprep.subr.mxu0 0.0
    %1333 = vmatpush1.msra.mxu0 0.0
    %1334 = vmatprep.subr.mxu0 0.0
    %1335 = vmatpush1.msra.mxu0 0.0
    %1336 = vmatprep.subr.mxu0 0.0
    %1337 = vmatpush1.msra.mxu0 0.0
    %1338 = vmatprep.subr.mxu0 0.0
    %1339 = vmatpush1.msra.mxu0 0.0
    %1340 = vmatprep.subr.mxu0 0.0
    %1341 = vmatpush1.msra.mxu0 0.0
    %1342 = vmatprep.subr.mxu0 0.0
    %1343 = vmatpush1.msra.mxu0 0.0
    %1344 = vmatprep.subr.mxu0 0.0
    %1345 = vmatpush1.msra.mxu0 0.0
    %1346 = vmatprep.subr.mxu0 0.0
    %1347 = vmatpush1.msra.mxu0 0.0
    %1348 = vmatprep.subr.mxu0 0.0
    %1349 = vmatpush1.msra.mxu0 0.0
    %1350 = vmatprep.subr.mxu0 0.0
    %1351 = vmatpush1.msra.mxu0 0.0
    %1352 = vmatprep.subr.mxu0 0.0
    %1353 = vmatpush1.msra.mxu0 0.0
    %1354 = vmatprep.subr.mxu0 0.0
    %1355 = vmatpush1.msra.mxu0 0.0
    %1356 = vmatprep.subr.mxu0 0.0
    %1357 = vmatpush1.msra.mxu0 0.0
    %1358 = vmatprep.subr.mxu0 0.0
    %1359 = vmatpush1.msra.mxu0 0.0
    %1360 = vmatprep.subr.mxu0 0.0
    %1361 = vmatpush1.msra.mxu0 0.0
    %1362 = vmatprep.subr.mxu0 0.0
    %1363 = vmatpush1.msra.mxu0 0.0
    %1364 = vmatprep.subr.mxu0 0.0
    %1365 = vmatpush1.msra.mxu0 0.0
    %1366 = vmatprep.subr.mxu0 0.0
    %1367 = vmatpush1.msra.mxu0 0.0
    %1368 = vmatprep.subr.mxu0 0.0
    %1369 = vmatpush1.msra.mxu0 0.0
    %1370 = vmatprep.subr.mxu0 0.0
    %1371 = vmatpush1.msra.mxu0 0.0
    %1372 = vmatprep.subr.mxu0 0.0
    %1373 = vmatpush1.msra.mxu0 0.0
    %1374 = vmatprep.subr.mxu0 0.0
    %1375 = vmatpush1.msra.mxu0 0.0
    %1376 = vmatprep.subr.mxu0 0.0
    %1377 = vmatpush1.msra.mxu0 0.0
    %1378 = vmatprep.subr.mxu0 0.0
    %1379 = vmatpush1.msra.mxu0 0.0
    %1380 = vmatprep.subr.mxu0 0.0
    %1381 = vmatpush1.msra.mxu0 0.0
    %1382 = vmatprep.subr.mxu0 0.0
    %1383 = vmatpush1.msra.mxu0 0.0
    %1384 = vmatprep.subr.mxu0 0.0
    %1385 = vmatpush1.msra.mxu0 0.0
    %1386 = vmatprep.mubr.f32.mxu0 0.0
    %1387 = vmatmul.mubr.f32.gmra.mrb[0].mxu0 %v1320
    %v1388 = vpop.f32.mrb[0].mxu0
    %v1389 = vadd.f32 0.0, %v1388
    %v1390 = vpop.f32.mrb[0].mxu0
    %1391 = vdwg.mxu0
    %1392 = vrot.lane.b32.xlu0 %v228, 64
    %v1393 = vpop.permute.xlu0 %1392
    %v1396 = vsel %vm233, %v934, 0
    %1398 = vmatprep.subr.mxu0 0.0
    %1399 = vmatpush1.msra.mxu0 %v1393
    %1400 = vmatprep.subr.mxu0 0.0
    %1401 = vmatpush1.msra.mxu0 0.0
    %1402 = vmatprep.subr.mxu0 0.0
    %1403 = vmatpush1.msra.mxu0 0.0
    %1404 = vmatprep.subr.mxu0 0.0
    %1405 = vmatpush1.msra.mxu0 0.0
    %1406 = vmatprep.subr.mxu0 0.0
    %1407 = vmatpush1.msra.mxu0 0.0
    %1408 = vmatprep.subr.mxu0 0.0
    %1409 = vmatpush1.msra.mxu0 0.0
    %1410 = vmatprep.subr.mxu0 0.0
    %1411 = vmatpush1.msra.mxu0 0.0
    %1412 = vmatprep.subr.mxu0 0.0
    %1413 = vmatpush1.msra.mxu0 0.0
    %1414 = vmatprep.subr.mxu0 0.0
    %1415 = vmatpush1.msra.mxu0 0.0
    %1416 = vmatprep.subr.mxu0 0.0
    %1417 = vmatpush1.msra.mxu0 0.0
    %1418 = vmatprep.subr.mxu0 0.0
    %1419 = vmatpush1.msra.mxu0 0.0
    %1420 = vmatprep.subr.mxu0 0.0
    %1421 = vmatpush1.msra.mxu0 0.0
    %1422 = vmatprep.subr.mxu0 0.0
    %1423 = vmatpush1.msra.mxu0 0.0
    %1424 = vmatprep.subr.mxu0 0.0
    %1425 = vmatpush1.msra.mxu0 0.0
    %1426 = vmatprep.subr.mxu0 0.0
    %1427 = vmatpush1.msra.mxu0 0.0
    %1428 = vmatprep.subr.mxu0 0.0
    %1429 = vmatpush1.msra.mxu0 0.0
    %1430 = vmatprep.subr.mxu0 0.0
    %1431 = vmatpush1.msra.mxu0 0.0
    %1432 = vmatprep.subr.mxu0 0.0
    %1433 = vmatpush1.msra.mxu0 0.0
    %1434 = vmatprep.subr.mxu0 0.0
    %1435 = vmatpush1.msra.mxu0 0.0
    %1436 = vmatprep.subr.mxu0 0.0
    %1437 = vmatpush1.msra.mxu0 0.0
    %1438 = vmatprep.subr.mxu0 0.0
    %1439 = vmatpush1.msra.mxu0 0.0
    %1440 = vmatprep.subr.mxu0 0.0
    %1441 = vmatpush1.msra.mxu0 0.0
    %1442 = vmatprep.subr.mxu0 0.0
    %1443 = vmatpush1.msra.mxu0 0.0
    %1444 = vmatprep.subr.mxu0 0.0
    %1445 = vmatpush1.msra.mxu0 0.0
    %1446 = vmatprep.subr.mxu0 0.0
    %1447 = vmatpush1.msra.mxu0 0.0
    %1448 = vmatprep.subr.mxu0 0.0
    %1449 = vmatpush1.msra.mxu0 0.0
    %1450 = vmatprep.subr.mxu0 0.0
    %1451 = vmatpush1.msra.mxu0 0.0
    %1452 = vmatprep.subr.mxu0 0.0
    %1453 = vmatpush1.msra.mxu0 0.0
    %1454 = vmatprep.subr.mxu0 0.0
    %1455 = vmatpush1.msra.mxu0 0.0
    %1456 = vmatprep.subr.mxu0 0.0
    %1457 = vmatpush1.msra.mxu0 0.0
    %1458 = vmatprep.subr.mxu0 0.0
    %1459 = vmatpush1.msra.mxu0 0.0
    %1460 = vmatprep.subr.mxu0 0.0
    %1461 = vmatpush1.msra.mxu0 0.0
    %1462 = vmatprep.mubr.f32.mxu0 0.0
    %1463 = vmatmul.mubr.f32.gmra.mrb[0].mxu0 %v1396
    %v1464 = vpop.f32.mrb[0].mxu0
    %v1465 = vadd.f32 0.0, %v1464
    %v1466 = vpop.f32.mrb[0].mxu0
    %1467 = vdwg.mxu0
    %1468 = vrot.lane.b32.xlu0 %v230, 64
    %v1469 = vpop.permute.xlu0 %1468
    %v1472 = vsel %vm233, %v935, 0
    %1474 = vmatprep.subr.mxu0 0.0
    %1475 = vmatpush1.msra.mxu0 %v1469
    %1476 = vmatprep.subr.mxu0 0.0
    %1477 = vmatpush1.msra.mxu0 0.0
    %1478 = vmatprep.subr.mxu0 0.0
    %1479 = vmatpush1.msra.mxu0 0.0
    %1480 = vmatprep.subr.mxu0 0.0
    %1481 = vmatpush1.msra.mxu0 0.0
    %1482 = vmatprep.subr.mxu0 0.0
    %1483 = vmatpush1.msra.mxu0 0.0
    %1484 = vmatprep.subr.mxu0 0.0
    %1485 = vmatpush1.msra.mxu0 0.0
    %1486 = vmatprep.subr.mxu0 0.0
    %1487 = vmatpush1.msra.mxu0 0.0
    %1488 = vmatprep.subr.mxu0 0.0
    %1489 = vmatpush1.msra.mxu0 0.0
    %1490 = vmatprep.subr.mxu0 0.0
    %1491 = vmatpush1.msra.mxu0 0.0
    %1492 = vmatprep.subr.mxu0 0.0
    %1493 = vmatpush1.msra.mxu0 0.0
    %1494 = vmatprep.subr.mxu0 0.0
    %1495 = vmatpush1.msra.mxu0 0.0
    %1496 = vmatprep.subr.mxu0 0.0
    %1497 = vmatpush1.msra.mxu0 0.0
    %1498 = vmatprep.subr.mxu0 0.0
    %1499 = vmatpush1.msra.mxu0 0.0
    %1500 = vmatprep.subr.mxu0 0.0
    %1501 = vmatpush1.msra.mxu0 0.0
    %1502 = vmatprep.subr.mxu0 0.0
    %1503 = vmatpush1.msra.mxu0 0.0
    %1504 = vmatprep.subr.mxu0 0.0
    %1505 = vmatpush1.msra.mxu0 0.0
    %1506 = vmatprep.subr.mxu0 0.0
    %1507 = vmatpush1.msra.mxu0 0.0
    %1508 = vmatprep.subr.mxu0 0.0
    %1509 = vmatpush1.msra.mxu0 0.0
    %1510 = vmatprep.subr.mxu0 0.0
    %1511 = vmatpush1.msra.mxu0 0.0
    %1512 = vmatprep.subr.mxu0 0.0
    %1513 = vmatpush1.msra.mxu0 0.0
    %1514 = vmatprep.subr.mxu0 0.0
    %1515 = vmatpush1.msra.mxu0 0.0
    %1516 = vmatprep.subr.mxu0 0.0
    %1517 = vmatpush1.msra.mxu0 0.0
    %1518 = vmatprep.subr.mxu0 0.0
    %1519 = vmatpush1.msra.mxu0 0.0
    %1520 = vmatprep.subr.mxu0 0.0
    %1521 = vmatpush1.msra.mxu0 0.0
    %1522 = vmatprep.subr.mxu0 0.0
    %1523 = vmatpush1.msra.mxu0 0.0
    %1524 = vmatprep.subr.mxu0 0.0
    %1525 = vmatpush1.msra.mxu0 0.0
    %1526 = vmatprep.subr.mxu0 0.0
    %1527 = vmatpush1.msra.mxu0 0.0
    %1528 = vmatprep.subr.mxu0 0.0
    %1529 = vmatpush1.msra.mxu0 0.0
    %1530 = vmatprep.subr.mxu0 0.0
    %1531 = vmatpush1.msra.mxu0 0.0
    %1532 = vmatprep.subr.mxu0 0.0
    %1533 = vmatpush1.msra.mxu0 0.0
    %1534 = vmatprep.subr.mxu0 0.0
    %1535 = vmatpush1.msra.mxu0 0.0
    %1536 = vmatprep.subr.mxu0 0.0
    %1537 = vmatpush1.msra.mxu0 0.0
    %1538 = vmatprep.mubr.f32.mxu0 0.0
    %1539 = vmatmul.mubr.f32.gmra.mrb[0].mxu0 %v1472
    %v1540 = vpop.f32.mrb[0].mxu0
    %v1541 = vadd.f32 0.0, %v1540
    %v1542 = vpop.f32.mrb[0].mxu0
    %1543 = vdwg.mxu0
    %1546 = vrot.lane.b32.xlu0 %v1161, 8
    %v1547 = vpop.permute.xlu0 %1546
    %1548 = vrot.lane.b32.xlu0 %v1237, 8
    %v1549 = vpop.permute.xlu0 %1548
    %1554 = vrot.lane.b32.xlu0 %v1313, 16
    %v1555 = vpop.permute.xlu0 %1554
    %1556 = vrot.lane.b32.xlu0 %v1389, 16
    %v1557 = vpop.permute.xlu0 %1556
    %1562 = vrot.lane.b32.xlu0 %v1465, 24
    %v1563 = vpop.permute.xlu0 %1562
    %1564 = vrot.lane.b32.xlu0 %v1541, 24
    %v1565 = vpop.permute.xlu0 %1564
    %v1568 = vsel %vm233, %v1009, %v1547
    %v1569 = vsel %vm233, %v1085, %v1549
    %vm1570 = vcmask 130048
    %v1571 = vsel %vm1570, %v1568, %v1555
    %v1572 = vsel %vm1570, %v1569, %v1557
    %vm1573 = vcmask 195584
    %v1574 = vsel %vm1573, %v1571, %v1563
    %v1575 = vsel %vm1573, %v1572, %v1565
    %v1576 = vpack.c.bf16 %v1575, %v1574
    %v1577 = vld [vmem:[%s5] sm:$0xf]
    %v1578 = vld [vmem:[%s5 + $0x4] sm:$0xf]
    %v1579 = vld [vmem:[%s5 + $0x8] sm:$0xf]
    %v1580 = vld [vmem:[%s5 + $0xc] sm:$0xf]
    %v1581 = vld [vmem:[%s6] sm:$0x1]
    %v1583 = vlaneseq
    %v1584 = vshrl.u32 %v1583, 7
    %v1585 = vsub.s32 0, %v1584
    %v1586 = vrot.slane %v1581, %v1585
    %v1592 = vunpack.c.l.b16 %v1577
    %v1593 = vunpack.c.l.b16 %v1578
    %v1594 = vunpack.c.l.b16 %v1579
    %v1595 = vunpack.c.l.b16 %v1580
    %v1596 = vpack.c.b16 %v1593, %v1592
    %v1597 = vpack.c.b16 %v1595, %v1594
    %v1601 = vsel %vm172, %v1576, 0
    %1603 = vmatprep.subr.bf16.mxu0 0
    %1604 = vmatpush1.bf16.msra.mxu0 %v1596
    %1605 = vmatprep.subr.bf16.mxu0 0
    %1606 = vmatpush1.bf16.msra.mxu0 %v1597
    %1607 = vmatprep.subr.bf16.mxu0 0
    %1608 = vmatpush1.bf16.msra.mxu0 0
    %1609 = vmatprep.subr.bf16.mxu0 0
    %1610 = vmatpush1.bf16.msra.mxu0 0
    %1611 = vmatprep.subr.bf16.mxu0 0
    %1612 = vmatpush1.bf16.msra.mxu0 0
    %1613 = vmatprep.subr.bf16.mxu0 0
    %1614 = vmatpush1.bf16.msra.mxu0 0
    %1615 = vmatprep.subr.bf16.mxu0 0
    %1616 = vmatpush1.bf16.msra.mxu0 0
    %1617 = vmatprep.subr.bf16.mxu0 0
    %1618 = vmatpush1.bf16.msra.mxu0 0
    %1619 = vmatprep.subr.bf16.mxu0 0
    %1620 = vmatpush1.bf16.msra.mxu0 0
    %1621 = vmatprep.subr.bf16.mxu0 0
    %1622 = vmatpush1.bf16.msra.mxu0 0
    %1623 = vmatprep.subr.bf16.mxu0 0
    %1624 = vmatpush1.bf16.msra.mxu0 0
    %1625 = vmatprep.subr.bf16.mxu0 0
    %1626 = vmatpush1.bf16.msra.mxu0 0
    %1627 = vmatprep.subr.bf16.mxu0 0
    %1628 = vmatpush1.bf16.msra.mxu0 0
    %1629 = vmatprep.subr.bf16.mxu0 0
    %1630 = vmatpush1.bf16.msra.mxu0 0
    %1631 = vmatprep.subr.bf16.mxu0 0
    %1632 = vmatpush1.bf16.msra.mxu0 0
    %1633 = vmatprep.subr.bf16.mxu0 0
    %1634 = vmatpush1.bf16.msra.mxu0 0
    %1635 = vmatprep.mubr.bf16.mxu0 0
    %1636 = vmatmul.mubr.bf16.gmra.mrb[0].mxu0 %v1601
    %v1637 = vpop.f32.mrb[0].mxu0
    %v1638 = vadd.f32 %v1586, %v1637
    %v1639 = vpop.f32.mrb[0].mxu0
    %v1640 = vpop.f32.mrb[0].mxu0
    %v1641 = vadd.f32 %v1586, %v1640
    %v1642 = vpop.f32.mrb[0].mxu0
    %1643 = vdwg.mxu0
    %v1644 = vadd.f32 %v146, %v1638
    %v1645 = vadd.f32 %v147, %v1641
    %v1646 = vld [vmem:[%s7] sm:$0x1]
    %v1647 = vld [vmem:[%s8] sm:$0x1]
    %v1648 = vsel %vm172, %v1644, 0.0
    %1649 = vadd.xlane.f32.xlu0 %v1648
    %v1650 = vpop.xlane.xlu0 %1649
    %v1651 = vsel %vm172, %v1645, 0.0
    %1652 = vadd.xlane.f32.xlu0 %v1651
    %v1653 = vpop.xlane.xlu0 %1652
    %v1654 = vrcp.pop 32.0
    %v1655 = vmul.f32 %v1650, %v1654
    %v1656 = vmul.f32 %v1653, %v1654
    %v1657 = vsub.f32 %v1644, %v1655
    %v1658 = vsub.f32 %v1645, %v1656
    %v1659 = vmul.f32 %v1657, %v1657
    %v1660 = vmul.f32 %v1658, %v1658
    %v1661 = vsel %vm172, %v1659, 0.0
    %1662 = vadd.xlane.f32.xlu0 %v1661
    %v1663 = vpop.xlane.xlu0 %1662
    %v1664 = vsel %vm172, %v1660, 0.0
    %1665 = vadd.xlane.f32.xlu0 %v1664
    %v1666 = vpop.xlane.xlu0 %1665
    %v1667 = vmul.f32 %v1663, %v1654
    %v1668 = vmul.f32 %v1666, %v1654
    %v1669 = vadd.f32 %v1667, 1e-05
    %v1670 = vadd.f32 %v1668, 1e-05
    %v1671 = vrsqrt.pop %v1669
    %v1672 = vrsqrt.pop %v1670
    %v1673 = vmul.f32 %v1657, %v1671
    %v1674 = vmul.f32 %v1658, %v1672
    %v1676 = vlaneseq
    %v1677 = vshrl.u32 %v1676, 7
    %v1678 = vsub.s32 0, %v1677
    %v1679 = vrot.slane %v1646, %v1678
    %v1681 = vmul.f32 %v1673, %v1679
    %v1682 = vmul.f32 %v1674, %v1679
    %v1684 = vlaneseq
    %v1685 = vshrl.u32 %v1684, 7
    %v1686 = vsub.s32 0, %v1685
    %v1687 = vrot.slane %v1647, %v1686
    %v1689 = vadd.f32 %v1681, %v1687
    %v1690 = vadd.f32 %v1682, %v1687
    %v1691 = vpack.c.bf16 %v1690, %v1689
    %v1692 = vld [vmem:[%s9] sm:$0xff]
    %v1693 = vld [vmem:[%s9 + $0x8] sm:$0xff]
    %v1694 = vld [vmem:[%s9 + $0x10] sm:$0xff]
    %v1695 = vld [vmem:[%s9 + $0x18] sm:$0xff]
    %v1696 = vld [vmem:[%s9 + $0x20] sm:$0xff]
    %v1697 = vld [vmem:[%s9 + $0x28] sm:$0xff]
    %v1698 = vld [vmem:[%s9 + $0x30] sm:$0xff]
    %v1699 = vld [vmem:[%s9 + $0x38] sm:$0xff]
    %v1700 = vld [vmem:[%s9 + $0x40] sm:$0xff]
    %v1701 = vld [vmem:[%s9 + $0x48] sm:$0xff]
    %v1702 = vld [vmem:[%s9 + $0x50] sm:$0xff]
    %v1703 = vld [vmem:[%s9 + $0x58] sm:$0xff]
    %v1704 = vld [vmem:[%s9 + $0x60] sm:$0xff]
    %v1705 = vld [vmem:[%s9 + $0x68] sm:$0xff]
    %v1706 = vld [vmem:[%s9 + $0x70] sm:$0xff]
    %v1707 = vld [vmem:[%s9 + $0x78] sm:$0xff]
    %v1708 = vld [vmem:[%s9 + $0x80] sm:$0xff]
    %v1709 = vld [vmem:[%s9 + $0x88] sm:$0xff]
    %v1710 = vld [vmem:[%s9 + $0x90] sm:$0xff]
    %v1711 = vld [vmem:[%s9 + $0x98] sm:$0xff]
    %v1712 = vld [vmem:[%s9 + $0xa0] sm:$0xff]
    %v1713 = vld [vmem:[%s9 + $0xa8] sm:$0xff]
    %v1714 = vld [vmem:[%s9 + $0xb0] sm:$0xff]
    %v1715 = vld [vmem:[%s9 + $0xb8] sm:$0xff]
    %v1716 = vld [vmem:[%s9 + $0xc0] sm:$0xff]
    %v1717 = vld [vmem:[%s9 + $0xc8] sm:$0xff]
    %v1718 = vld [vmem:[%s9 + $0xd0] sm:$0xff]
    %v1719 = vld [vmem:[%s9 + $0xd8] sm:$0xff]
    %v1720 = vld [vmem:[%s9 + $0xe0] sm:$0xff]
    %v1721 = vld [vmem:[%s9 + $0xe8] sm:$0xff]
    %v1722 = vld [vmem:[%s9 + $0xf0] sm:$0xff]
    %v1723 = vld [vmem:[%s9 + $0xf8] sm:$0xff]
    %v1724 = vld [vmem:[%s10] sm:$0xff]
    %v1725 = vld [vmem:[%s10 + $0x8] sm:$0xff]
    %v1728 = vlaneseq
    %v1729 = vshrl.u32 %v1728, 7
    %v1730 = vsub.s32 0, %v1729
    %v1731 = vrot.slane %v1724, %v1730
    %v1732 = vlaneseq
    %v1733 = vshrl.u32 %v1732, 7
    %v1734 = vsub.s32 1, %v1733
    %v1735 = vrot.slane %v1724, %v1734
    %v1736 = vlaneseq
    %v1737 = vshrl.u32 %v1736, 7
    %v1738 = vsub.s32 2, %v1737
    %v1739 = vrot.slane %v1724, %v1738
    %v1740 = vlaneseq
    %v1741 = vshrl.u32 %v1740, 7
    %v1742 = vsub.s32 3, %v1741
    %v1743 = vrot.slane %v1724, %v1742
    %v1744 = vlaneseq
    %v1745 = vshrl.u32 %v1744, 7
    %v1746 = vsub.s32 4, %v1745
    %v1747 = vrot.slane %v1724, %v1746
    %v1748 = vlaneseq
    %v1749 = vshrl.u32 %v1748, 7
    %v1750 = vsub.s32 5, %v1749
    %v1751 = vrot.slane %v1724, %v1750
    %v1752 = vlaneseq
    %v1753 = vshrl.u32 %v1752, 7
    %v1754 = vsub.s32 6, %v1753
    %v1755 = vrot.slane %v1724, %v1754
    %v1756 = vlaneseq
    %v1757 = vshrl.u32 %v1756, 7
    %v1758 = vsub.s32 7, %v1757
    %v1759 = vrot.slane %v1724, %v1758
    %v1760 = vlaneseq
    %v1761 = vshrl.u32 %v1760, 7
    %v1762 = vsub.s32 0, %v1761
    %v1763 = vrot.slane %v1725, %v1762
    %v1764 = vlaneseq
    %v1765 = vshrl.u32 %v1764, 7
    %v1766 = vsub.s32 1, %v1765
    %v1767 = vrot.slane %v1725, %v1766
    %v1768 = vlaneseq
    %v1769 = vshrl.u32 %v1768, 7
    %v1770 = vsub.s32 2, %v1769
    %v1771 = vrot.slane %v1725, %v1770
    %v1772 = vlaneseq
    %v1773 = vshrl.u32 %v1772, 7
    %v1774 = vsub.s32 3, %v1773
    %v1775 = vrot.slane %v1725, %v1774
    %v1776 = vlaneseq
    %v1777 = vshrl.u32 %v1776, 7
    %v1778 = vsub.s32 4, %v1777
    %v1779 = vrot.slane %v1725, %v1778
    %v1780 = vlaneseq
    %v1781 = vshrl.u32 %v1780, 7
    %v1782 = vsub.s32 5, %v1781
    %v1783 = vrot.slane %v1725, %v1782
    %v1784 = vlaneseq
    %v1785 = vshrl.u32 %v1784, 7
    %v1786 = vsub.s32 6, %v1785
    %v1787 = vrot.slane %v1725, %v1786
    %v1788 = vlaneseq
    %v1789 = vshrl.u32 %v1788, 7
    %v1790 = vsub.s32 7, %v1789
    %v1791 = vrot.slane %v1725, %v1790
    %v1840 = vunpack.c.l.b16 %v1692
    %v1841 = vunpack.c.h.b16 %v1692
    %v1842 = vunpack.c.l.b16 %v1693
    %v1843 = vunpack.c.h.b16 %v1693
    %v1844 = vunpack.c.l.b16 %v1694
    %v1845 = vunpack.c.h.b16 %v1694
    %v1846 = vunpack.c.l.b16 %v1695
    %v1847 = vunpack.c.h.b16 %v1695
    %v1848 = vunpack.c.l.b16 %v1696
    %v1849 = vunpack.c.h.b16 %v1696
    %v1850 = vunpack.c.l.b16 %v1697
    %v1851 = vunpack.c.h.b16 %v1697
    %v1852 = vunpack.c.l.b16 %v1698
    %v1853 = vunpack.c.h.b16 %v1698
    %v1854 = vunpack.c.l.b16 %v1699
    %v1855 = vunpack.c.h.b16 %v1699
    %v1856 = vunpack.c.l.b16 %v1700
    %v1857 = vunpack.c.h.b16 %v1700
    %v1858 = vunpack.c.l.b16 %v1701
    %v1859 = vunpack.c.h.b16 %v1701
    %v1860 = vunpack.c.l.b16 %v1702
    %v1861 = vunpack.c.h.b16 %v1702
    %v1862 = vunpack.c.l.b16 %v1703
    %v1863 = vunpack.c.h.b16 %v1703
    %v1864 = vunpack.c.l.b16 %v1704
    %v1865 = vunpack.c.h.b16 %v1704
    %v1866 = vunpack.c.l.b16 %v1705
    %v1867 = vunpack.c.h.b16 %v1705
    %v1868 = vunpack.c.l.b16 %v1706
    %v1869 = vunpack.c.h.b16 %v1706
    %v1870 = vunpack.c.l.b16 %v1707
    %v1871 = vunpack.c.h.b16 %v1707
    %v1872 = vunpack.c.l.b16 %v1708
    %v1873 = vunpack.c.h.b16 %v1708
    %v1874 = vunpack.c.l.b16 %v1709
    %v1875 = vunpack.c.h.b16 %v1709
    %v1876 = vunpack.c.l.b16 %v1710
    %v1877 = vunpack.c.h.b16 %v1710
    %v1878 = vunpack.c.l.b16 %v1711
    %v1879 = vunpack.c.h.b16 %v1711
    %v1880 = vunpack.c.l.b16 %v1712
    %v1881 = vunpack.c.h.b16 %v1712
    %v1882 = vunpack.c.l.b16 %v1713
    %v1883 = vunpack.c.h.b16 %v1713
    %v1884 = vunpack.c.l.b16 %v1714
    %v1885 = vunpack.c.h.b16 %v1714
    %v1886 = vunpack.c.l.b16 %v1715
    %v1887 = vunpack.c.h.b16 %v1715
    %v1888 = vunpack.c.l.b16 %v1716
    %v1889 = vunpack.c.h.b16 %v1716
    %v1890 = vunpack.c.l.b16 %v1717
    %v1891 = vunpack.c.h.b16 %v1717
    %v1892 = vunpack.c.l.b16 %v1718
    %v1893 = vunpack.c.h.b16 %v1718
    %v1894 = vunpack.c.l.b16 %v1719
    %v1895 = vunpack.c.h.b16 %v1719
    %v1896 = vunpack.c.l.b16 %v1720
    %v1897 = vunpack.c.h.b16 %v1720
    %v1898 = vunpack.c.l.b16 %v1721
    %v1899 = vunpack.c.h.b16 %v1721
    %v1900 = vunpack.c.l.b16 %v1722
    %v1901 = vunpack.c.h.b16 %v1722
    %v1902 = vunpack.c.l.b16 %v1723
    %v1903 = vunpack.c.h.b16 %v1723
    %v1904 = vpack.c.b16 %v1856, %v1840
    %v1905 = vpack.c.b16 %v1857, %v1841
    %v1906 = vpack.c.b16 %v1858, %v1842
    %v1907 = vpack.c.b16 %v1859, %v1843
    %v1908 = vpack.c.b16 %v1860, %v1844
    %v1909 = vpack.c.b16 %v1861, %v1845
    %v1910 = vpack.c.b16 %v1862, %v1846
    %v1911 = vpack.c.b16 %v1863, %v1847
    %v1912 = vpack.c.b16 %v1864, %v1848
    %v1913 = vpack.c.b16 %v1865, %v1849
    %v1914 = vpack.c.b16 %v1866, %v1850
    %v1915 = vpack.c.b16 %v1867, %v1851
    %v1916 = vpack.c.b16 %v1868, %v1852
    %v1917 = vpack.c.b16 %v1869, %v1853
    %v1918 = vpack.c.b16 %v1870, %v1854
    %v1919 = vpack.c.b16 %v1871, %v1855
    %v1920 = vpack.c.b16 %v1888, %v1872
    %v1921 = vpack.c.b16 %v1889, %v1873
    %v1922 = vpack.c.b16 %v1890, %v1874
    %v1923 = vpack.c.b16 %v1891, %v1875
    %v1924 = vpack.c.b16 %v1892, %v1876
    %v1925 = vpack.c.b16 %v1893, %v1877
    %v1926 = vpack.c.b16 %v1894, %v1878
    %v1927 = vpack.c.b16 %v1895, %v1879
    %v1928 = vpack.c.b16 %v1896, %v1880
    %v1929 = vpack.c.b16 %v1897, %v1881
    %v1930 = vpack.c.b16 %v1898, %v1882
    %v1931 = vpack.c.b16 %v1899, %v1883
    %v1932 = vpack.c.b16 %v1900, %v1884
    %v1933 = vpack.c.b16 %v1901, %v1885
    %v1934 = vpack.c.b16 %v1902, %v1886
    %v1935 = vpack.c.b16 %v1903, %v1887
    %v1969 = vsel %vm172, %v1691, 0
    %1971 = vmatprep.subr.bf16.mxu0 %v1905
    %1972 = vmatpush1.bf16.msra.mxu0 %v1904
    %1973 = vmatprep.subr.bf16.mxu0 %v1921
    %1974 = vmatpush1.bf16.msra.mxu0 %v1920
    %1975 = vmatprep.subr.bf16.mxu0 0
    %1976 = vmatpush1.bf16.msra.mxu0 0
    %1977 = vmatprep.subr.bf16.mxu0 0
    %1978 = vmatpush1.bf16.msra.mxu0 0
    %1979 = vmatprep.subr.bf16.mxu0 0
    %1980 = vmatpush1.bf16.msra.mxu0 0
    %1981 = vmatprep.subr.bf16.mxu0 0
    %1982 = vmatpush1.bf16.msra.mxu0 0
    %1983 = vmatprep.subr.bf16.mxu0 0
    %1984 = vmatpush1.bf16.msra.mxu0 0
    %1985 = vmatprep.subr.bf16.mxu0 0
    %1986 = vmatpush1.bf16.msra.mxu0 0
    %1987 = vmatprep.subr.bf16.mxu0 0
    %1988 = vmatpush1.bf16.msra.mxu0 0
    %1989 = vmatprep.subr.bf16.mxu0 0
    %1990 = vmatpush1.bf16.msra.mxu0 0
    %1991 = vmatprep.subr.bf16.mxu0 0
    %1992 = vmatpush1.bf16.msra.mxu0 0
    %1993 = vmatprep.subr.bf16.mxu0 0
    %1994 = vmatpush1.bf16.msra.mxu0 0
    %1995 = vmatprep.subr.bf16.mxu0 0
    %1996 = vmatpush1.bf16.msra.mxu0 0
    %1997 = vmatprep.subr.bf16.mxu0 0
    %1998 = vmatpush1.bf16.msra.mxu0 0
    %1999 = vmatprep.subr.bf16.mxu0 0
    %2000 = vmatpush1.bf16.msra.mxu0 0
    %2001 = vmatprep.subr.bf16.mxu0 0
    %2002 = vmatpush1.bf16.msra.mxu0 0
    %2003 = vmatprep.mubr.bf16.mxu0 0
    %2004 = vmatmul.mubr.bf16.gmra.mrb[0].mxu0 %v1969
    %v2005 = vpop.f32.mrb[0].mxu0
    %v2006 = vadd.f32 %v1731, %v2005
    %v2007 = vpop.f32.mrb[0].mxu0
    %v2008 = vadd.f32 %v1735, %v2007
    %v2009 = vpop.f32.mrb[0].mxu0
    %v2010 = vadd.f32 %v1731, %v2009
    %v2011 = vpop.f32.mrb[0].mxu0
    %v2012 = vadd.f32 %v1735, %v2011
    %2013 = vdwg.mxu0
    %2014 = vmatprep.subr.bf16.mxu0 %v1907
    %2015 = vmatpush1.bf16.msra.mxu0 %v1906
    %2016 = vmatprep.subr.bf16.mxu0 %v1923
    %2017 = vmatpush1.bf16.msra.mxu0 %v1922
    %2018 = vmatprep.subr.bf16.mxu0 0
    %2019 = vmatpush1.bf16.msra.mxu0 0
    %2020 = vmatprep.subr.bf16.mxu0 0
    %2021 = vmatpush1.bf16.msra.mxu0 0
    %2022 = vmatprep.subr.bf16.mxu0 0
    %2023 = vmatpush1.bf16.msra.mxu0 0
    %2024 = vmatprep.subr.bf16.mxu0 0
    %2025 = vmatpush1.bf16.msra.mxu0 0
    %2026 = vmatprep.subr.bf16.mxu0 0
    %2027 = vmatpush1.bf16.msra.mxu0 0
    %2028 = vmatprep.subr.bf16.mxu0 0
    %2029 = vmatpush1.bf16.msra.mxu0 0
    %2030 = vmatprep.subr.bf16.mxu0 0
    %2031 = vmatpush1.bf16.msra.mxu0 0
    %2032 = vmatprep.subr.bf16.mxu0 0
    %2033 = vmatpush1.bf16.msra.mxu0 0
    %2034 = vmatprep.subr.bf16.mxu0 0
    %2035 = vmatpush1.bf16.msra.mxu0 0
    %2036 = vmatprep.subr.bf16.mxu0 0
    %2037 = vmatpush1.bf16.msra.mxu0 0
    %2038 = vmatprep.subr.bf16.mxu0 0
    %2039 = vmatpush1.bf16.msra.mxu0 0
    %2040 = vmatprep.subr.bf16.mxu0 0
    %2041 = vmatpush1.bf16.msra.mxu0 0
    %2042 = vmatprep.subr.bf16.mxu0 0
    %2043 = vmatpush1.bf16.msra.mxu0 0
    %2044 = vmatprep.subr.bf16.mxu0 0
    %2045 = vmatpush1.bf16.msra.mxu0 0
    %2046 = vmatprep.mubr.bf16.mxu0 0
    %2047 = vmatmul.mubr.bf16.gmra.mrb[0].mxu0 %v1969
    %v2048 = vpop.f32.mrb[0].mxu0
    %v2049 = vadd.f32 %v1739, %v2048
    %v2050 = vpop.f32.mrb[0].mxu0
    %v2051 = vadd.f32 %v1743, %v2050
    %v2052 = vpop.f32.mrb[0].mxu0
    %v2053 = vadd.f32 %v1739, %v2052
    %v2054 = vpop.f32.mrb[0].mxu0
    %v2055 = vadd.f32 %v1743, %v2054
    %2056 = vdwg.mxu0
    %2057 = vmatprep.subr.bf16.mxu0 %v1909
    %2058 = vmatpush1.bf16.msra.mxu0 %v1908
    %2059 = vmatprep.subr.bf16.mxu0 %v1925
    %2060 = vmatpush1.bf16.msra.mxu0 %v1924
    %2061 = vmatprep.subr.bf16.mxu0 0
    %2062 = vmatpush1.bf16.msra.mxu0 0
    %2063 = vmatprep.subr.bf16.mxu0 0
    %2064 = vmatpush1.bf16.msra.mxu0 0
    %2065 = vmatprep.subr.bf16.mxu0 0
    %2066 = vmatpush1.bf16.msra.mxu0 0
    %2067 = vmatprep.subr.bf16.mxu0 0
    %2068 = vmatpush1.bf16.msra.mxu0 0
    %2069 = vmatprep.subr.bf16.mxu0 0
    %2070 = vmatpush1.bf16.msra.mxu0 0
    %2071 = vmatprep.subr.bf16.mxu0 0
    %2072 = vmatpush1.bf16.msra.mxu0 0
    %2073 = vmatprep.subr.bf16.mxu0 0
    %2074 = vmatpush1.bf16.msra.mxu0 0
    %2075 = vmatprep.subr.bf16.mxu0 0
    %2076 = vmatpush1.bf16.msra.mxu0 0
    %2077 = vmatprep.subr.bf16.mxu0 0
    %2078 = vmatpush1.bf16.msra.mxu0 0
    %2079 = vmatprep.subr.bf16.mxu0 0
    %2080 = vmatpush1.bf16.msra.mxu0 0
    %2081 = vmatprep.subr.bf16.mxu0 0
    %2082 = vmatpush1.bf16.msra.mxu0 0
    %2083 = vmatprep.subr.bf16.mxu0 0
    %2084 = vmatpush1.bf16.msra.mxu0 0
    %2085 = vmatprep.subr.bf16.mxu0 0
    %2086 = vmatpush1.bf16.msra.mxu0 0
    %2087 = vmatprep.subr.bf16.mxu0 0
    %2088 = vmatpush1.bf16.msra.mxu0 0
    %2089 = vmatprep.mubr.bf16.mxu0 0
    %2090 = vmatmul.mubr.bf16.gmra.mrb[0].mxu0 %v1969
    %v2091 = vpop.f32.mrb[0].mxu0
    %v2092 = vadd.f32 %v1747, %v2091
    %v2093 = vpop.f32.mrb[0].mxu0
    %v2094 = vadd.f32 %v1751, %v2093
    %v2095 = vpop.f32.mrb[0].mxu0
    %v2096 = vadd.f32 %v1747, %v2095
    %v2097 = vpop.f32.mrb[0].mxu0
    %v2098 = vadd.f32 %v1751, %v2097
    %2099 = vdwg.mxu0
    %2100 = vmatprep.subr.bf16.mxu0 %v1911
    %2101 = vmatpush1.bf16.msra.mxu0 %v1910
    %2102 = vmatprep.subr.bf16.mxu0 %v1927
    %2103 = vmatpush1.bf16.msra.mxu0 %v1926
    %2104 = vmatprep.subr.bf16.mxu0 0
    %2105 = vmatpush1.bf16.msra.mxu0 0
    %2106 = vmatprep.subr.bf16.mxu0 0
    %2107 = vmatpush1.bf16.msra.mxu0 0
    %2108 = vmatprep.subr.bf16.mxu0 0
    %2109 = vmatpush1.bf16.msra.mxu0 0
    %2110 = vmatprep.subr.bf16.mxu0 0
    %2111 = vmatpush1.bf16.msra.mxu0 0
    %2112 = vmatprep.subr.bf16.mxu0 0
    %2113 = vmatpush1.bf16.msra.mxu0 0
    %2114 = vmatprep.subr.bf16.mxu0 0
    %2115 = vmatpush1.bf16.msra.mxu0 0
    %2116 = vmatprep.subr.bf16.mxu0 0
    %2117 = vmatpush1.bf16.msra.mxu0 0
    %2118 = vmatprep.subr.bf16.mxu0 0
    %2119 = vmatpush1.bf16.msra.mxu0 0
    %2120 = vmatprep.subr.bf16.mxu0 0
    %2121 = vmatpush1.bf16.msra.mxu0 0
    %2122 = vmatprep.subr.bf16.mxu0 0
    %2123 = vmatpush1.bf16.msra.mxu0 0
    %2124 = vmatprep.subr.bf16.mxu0 0
    %2125 = vmatpush1.bf16.msra.mxu0 0
    %2126 = vmatprep.subr.bf16.mxu0 0
    %2127 = vmatpush1.bf16.msra.mxu0 0
    %2128 = vmatprep.subr.bf16.mxu0 0
    %2129 = vmatpush1.bf16.msra.mxu0 0
    %2130 = vmatprep.subr.bf16.mxu0 0
    %2131 = vmatpush1.bf16.msra.mxu0 0
    %2132 = vmatprep.mubr.bf16.mxu0 0
    %2133 = vmatmul.mubr.bf16.gmra.mrb[0].mxu0 %v1969
    %v2134 = vpop.f32.mrb[0].mxu0
    %v2135 = vadd.f32 %v1755, %v2134
    %v2136 = vpop.f32.mrb[0].mxu0
    %v2137 = vadd.f32 %v1759, %v2136
    %v2138 = vpop.f32.mrb[0].mxu0
    %v2139 = vadd.f32 %v1755, %v2138
    %v2140 = vpop.f32.mrb[0].mxu0
    %v2141 = vadd.f32 %v1759, %v2140
    %2142 = vdwg.mxu0
    %2143 = vmatprep.subr.bf16.mxu0 %v1913
    %2144 = vmatpush1.bf16.msra.mxu0 %v1912
    %2145 = vmatprep.subr.bf16.mxu0 %v1929
    %2146 = vmatpush1.bf16.msra.mxu0 %v1928
    %2147 = vmatprep.subr.bf16.mxu0 0
    %2148 = vmatpush1.bf16.msra.mxu0 0
    %2149 = vmatprep.subr.bf16.mxu0 0
    %2150 = vmatpush1.bf16.msra.mxu0 0
    %2151 = vmatprep.subr.bf16.mxu0 0
    %2152 = vmatpush1.bf16.msra.mxu0 0
    %2153 = vmatprep.subr.bf16.mxu0 0
    %2154 = vmatpush1.bf16.msra.mxu0 0
    %2155 = vmatprep.subr.bf16.mxu0 0
    %2156 = vmatpush1.bf16.msra.mxu0 0
    %2157 = vmatprep.subr.bf16.mxu0 0
    %2158 = vmatpush1.bf16.msra.mxu0 0
    %2159 = vmatprep.subr.bf16.mxu0 0
    %2160 = vmatpush1.bf16.msra.mxu0 0
    %2161 = vmatprep.subr.bf16.mxu0 0
    %2162 = vmatpush1.bf16.msra.mxu0 0
    %2163 = vmatprep.subr.bf16.mxu0 0
    %2164 = vmatpush1.bf16.msra.mxu0 0
    %2165 = vmatprep.subr.bf16.mxu0 0
    %2166 = vmatpush1.bf16.msra.mxu0 0
    %2167 = vmatprep.subr.bf16.mxu0 0
    %2168 = vmatpush1.bf16.msra.mxu0 0
    %2169 = vmatprep.subr.bf16.mxu0 0
    %2170 = vmatpush1.bf16.msra.mxu0 0
    %2171 = vmatprep.subr.bf16.mxu0 0
    %2172 = vmatpush1.bf16.msra.mxu0 0
    %2173 = vmatprep.subr.bf16.mxu0 0
    %2174 = vmatpush1.bf16.msra.mxu0 0
    %2175 = vmatprep.mubr.bf16.mxu0 0
    %2176 = vmatmul.mubr.bf16.gmra.mrb[0].mxu0 %v1969
    %v2177 = vpop.f32.mrb[0].mxu0
    %v2178 = vadd.f32 %v1763, %v2177
    %v2179 = vpop.f32.mrb[0].mxu0
    %v2180 = vadd.f32 %v1767, %v2179
    %v2181 = vpop.f32.mrb[0].mxu0
    %v2182 = vadd.f32 %v1763, %v2181
    %v2183 = vpop.f32.mrb[0].mxu0
    %v2184 = vadd.f32 %v1767, %v2183
    %2185 = vdwg.mxu0
    %2186 = vmatprep.subr.bf16.mxu0 %v1915
    %2187 = vmatpush1.bf16.msra.mxu0 %v1914
    %2188 = vmatprep.subr.bf16.mxu0 %v1931
    %2189 = vmatpush1.bf16.msra.mxu0 %v1930
    %2190 = vmatprep.subr.bf16.mxu0 0
    %2191 = vmatpush1.bf16.msra.mxu0 0
    %2192 = vmatprep.subr.bf16.mxu0 0
    %2193 = vmatpush1.bf16.msra.mxu0 0
    %2194 = vmatprep.subr.bf16.mxu0 0
    %2195 = vmatpush1.bf16.msra.mxu0 0
    %2196 = vmatprep.subr.bf16.mxu0 0
    %2197 = vmatpush1.bf16.msra.mxu0 0
    %2198 = vmatprep.subr.bf16.mxu0 0
    %2199 = vmatpush1.bf16.msra.mxu0 0
    %2200 = vmatprep.subr.bf16.mxu0 0
    %2201 = vmatpush1.bf16.msra.mxu0 0
    %2202 = vmatprep.subr.bf16.mxu0 0
    %2203 = vmatpush1.bf16.msra.mxu0 0
    %2204 = vmatprep.subr.bf16.mxu0 0
    %2205 = vmatpush1.bf16.msra.mxu0 0
    %2206 = vmatprep.subr.bf16.mxu0 0
    %2207 = vmatpush1.bf16.msra.mxu0 0
    %2208 = vmatprep.subr.bf16.mxu0 0
    %2209 = vmatpush1.bf16.msra.mxu0 0
    %2210 = vmatprep.subr.bf16.mxu0 0
    %2211 = vmatpush1.bf16.msra.mxu0 0
    %2212 = vmatprep.subr.bf16.mxu0 0
    %2213 = vmatpush1.bf16.msra.mxu0 0
    %2214 = vmatprep.subr.bf16.mxu0 0
    %2215 = vmatpush1.bf16.msra.mxu0 0
    %2216 = vmatprep.subr.bf16.mxu0 0
    %2217 = vmatpush1.bf16.msra.mxu0 0
    %2218 = vmatprep.mubr.bf16.mxu0 0
    %2219 = vmatmul.mubr.bf16.gmra.mrb[0].mxu0 %v1969
    %v2220 = vpop.f32.mrb[0].mxu0
    %v2221 = vadd.f32 %v1771, %v2220
    %v2222 = vpop.f32.mrb[0].mxu0
    %v2223 = vadd.f32 %v1775, %v2222
    %v2224 = vpop.f32.mrb[0].mxu0
    %v2225 = vadd.f32 %v1771, %v2224
    %v2226 = vpop.f32.mrb[0].mxu0
    %v2227 = vadd.f32 %v1775, %v2226
    %2228 = vdwg.mxu0
    %2229 = vmatprep.subr.bf16.mxu0 %v1917
    %2230 = vmatpush1.bf16.msra.mxu0 %v1916
    %2231 = vmatprep.subr.bf16.mxu0 %v1933
    %2232 = vmatpush1.bf16.msra.mxu0 %v1932
    %2233 = vmatprep.subr.bf16.mxu0 0
    %2234 = vmatpush1.bf16.msra.mxu0 0
    %2235 = vmatprep.subr.bf16.mxu0 0
    %2236 = vmatpush1.bf16.msra.mxu0 0
    %2237 = vmatprep.subr.bf16.mxu0 0
    %2238 = vmatpush1.bf16.msra.mxu0 0
    %2239 = vmatprep.subr.bf16.mxu0 0
    %2240 = vmatpush1.bf16.msra.mxu0 0
    %2241 = vmatprep.subr.bf16.mxu0 0
    %2242 = vmatpush1.bf16.msra.mxu0 0
    %2243 = vmatprep.subr.bf16.mxu0 0
    %2244 = vmatpush1.bf16.msra.mxu0 0
    %2245 = vmatprep.subr.bf16.mxu0 0
    %2246 = vmatpush1.bf16.msra.mxu0 0
    %2247 = vmatprep.subr.bf16.mxu0 0
    %2248 = vmatpush1.bf16.msra.mxu0 0
    %2249 = vmatprep.subr.bf16.mxu0 0
    %2250 = vmatpush1.bf16.msra.mxu0 0
    %2251 = vmatprep.subr.bf16.mxu0 0
    %2252 = vmatpush1.bf16.msra.mxu0 0
    %2253 = vmatprep.subr.bf16.mxu0 0
    %2254 = vmatpush1.bf16.msra.mxu0 0
    %2255 = vmatprep.subr.bf16.mxu0 0
    %2256 = vmatpush1.bf16.msra.mxu0 0
    %2257 = vmatprep.subr.bf16.mxu0 0
    %2258 = vmatpush1.bf16.msra.mxu0 0
    %2259 = vmatprep.subr.bf16.mxu0 0
    %2260 = vmatpush1.bf16.msra.mxu0 0
    %2261 = vmatprep.mubr.bf16.mxu0 0
    %2262 = vmatmul.mubr.bf16.gmra.mrb[0].mxu0 %v1969
    %v2263 = vpop.f32.mrb[0].mxu0
    %v2264 = vadd.f32 %v1779, %v2263
    %v2265 = vpop.f32.mrb[0].mxu0
    %v2266 = vadd.f32 %v1783, %v2265
    %v2267 = vpop.f32.mrb[0].mxu0
    %v2268 = vadd.f32 %v1779, %v2267
    %v2269 = vpop.f32.mrb[0].mxu0
    %v2270 = vadd.f32 %v1783, %v2269
    %2271 = vdwg.mxu0
    %2272 = vmatprep.subr.bf16.mxu0 %v1919
    %2273 = vmatpush1.bf16.msra.mxu0 %v1918
    %2274 = vmatprep.subr.bf16.mxu0 %v1935
    %2275 = vmatpush1.bf16.msra.mxu0 %v1934
    %2276 = vmatprep.subr.bf16.mxu0 0
    %2277 = vmatpush1.bf16.msra.mxu0 0
    %2278 = vmatprep.subr.bf16.mxu0 0
    %2279 = vmatpush1.bf16.msra.mxu0 0
    %2280 = vmatprep.subr.bf16.mxu0 0
    %2281 = vmatpush1.bf16.msra.mxu0 0
    %2282 = vmatprep.subr.bf16.mxu0 0
    %2283 = vmatpush1.bf16.msra.mxu0 0
    %2284 = vmatprep.subr.bf16.mxu0 0
    %2285 = vmatpush1.bf16.msra.mxu0 0
    %2286 = vmatprep.subr.bf16.mxu0 0
    %2287 = vmatpush1.bf16.msra.mxu0 0
    %2288 = vmatprep.subr.bf16.mxu0 0
    %2289 = vmatpush1.bf16.msra.mxu0 0
    %2290 = vmatprep.subr.bf16.mxu0 0
    %2291 = vmatpush1.bf16.msra.mxu0 0
    %2292 = vmatprep.subr.bf16.mxu0 0
    %2293 = vmatpush1.bf16.msra.mxu0 0
    %2294 = vmatprep.subr.bf16.mxu0 0
    %2295 = vmatpush1.bf16.msra.mxu0 0
    %2296 = vmatprep.subr.bf16.mxu0 0
    %2297 = vmatpush1.bf16.msra.mxu0 0
    %2298 = vmatprep.subr.bf16.mxu0 0
    %2299 = vmatpush1.bf16.msra.mxu0 0
    %2300 = vmatprep.subr.bf16.mxu0 0
    %2301 = vmatpush1.bf16.msra.mxu0 0
    %2302 = vmatprep.subr.bf16.mxu0 0
    %2303 = vmatpush1.bf16.msra.mxu0 0
    %2304 = vmatprep.mubr.bf16.mxu0 0
    %2305 = vmatmul.mubr.bf16.gmra.mrb[0].mxu0 %v1969
    %v2306 = vpop.f32.mrb[0].mxu0
    %v2307 = vadd.f32 %v1787, %v2306
    %v2308 = vpop.f32.mrb[0].mxu0
    %v2309 = vadd.f32 %v1791, %v2308
    %v2310 = vpop.f32.mrb[0].mxu0
    %v2311 = vadd.f32 %v1787, %v2310
    %v2312 = vpop.f32.mrb[0].mxu0
    %v2313 = vadd.f32 %v1791, %v2312
    %2314 = vdwg.mxu0
    %v2315 = vmax.f32 %v2006, 0.0
    %v2316 = vmax.f32 %v2008, 0.0
    %v2317 = vmax.f32 %v2049, 0.0
    %v2318 = vmax.f32 %v2051, 0.0
    %v2319 = vmax.f32 %v2092, 0.0
    %v2320 = vmax.f32 %v2094, 0.0
    %v2321 = vmax.f32 %v2135, 0.0
    %v2322 = vmax.f32 %v2137, 0.0
    %v2323 = vmax.f32 %v2178, 0.0
    %v2324 = vmax.f32 %v2180, 0.0
    %v2325 = vmax.f32 %v2221, 0.0
    %v2326 = vmax.f32 %v2223, 0.0
    %v2327 = vmax.f32 %v2264, 0.0
    %v2328 = vmax.f32 %v2266, 0.0
    %v2329 = vmax.f32 %v2307, 0.0
    %v2330 = vmax.f32 %v2309, 0.0
    %v2331 = vmax.f32 %v2010, 0.0
    %v2332 = vmax.f32 %v2012, 0.0
    %v2333 = vmax.f32 %v2053, 0.0
    %v2334 = vmax.f32 %v2055, 0.0
    %v2335 = vmax.f32 %v2096, 0.0
    %v2336 = vmax.f32 %v2098, 0.0
    %v2337 = vmax.f32 %v2139, 0.0
    %v2338 = vmax.f32 %v2141, 0.0
    %v2339 = vmax.f32 %v2182, 0.0
    %v2340 = vmax.f32 %v2184, 0.0
    %v2341 = vmax.f32 %v2225, 0.0
    %v2342 = vmax.f32 %v2227, 0.0
    %v2343 = vmax.f32 %v2268, 0.0
    %v2344 = vmax.f32 %v2270, 0.0
    %v2345 = vmax.f32 %v2311, 0.0
    %v2346 = vmax.f32 %v2313, 0.0
    %v2347 = vpack.c.bf16 %v2331, %v2315
    %v2348 = vpack.c.bf16 %v2332, %v2316
    %v2349 = vpack.c.bf16 %v2333, %v2317
    %v2350 = vpack.c.bf16 %v2334, %v2318
    %v2351 = vpack.c.bf16 %v2335, %v2319
    %v2352 = vpack.c.bf16 %v2336, %v2320
    %v2353 = vpack.c.bf16 %v2337, %v2321
    %v2354 = vpack.c.bf16 %v2338, %v2322
    %v2355 = vpack.c.bf16 %v2339, %v2323
    %v2356 = vpack.c.bf16 %v2340, %v2324
    %v2357 = vpack.c.bf16 %v2341, %v2325
    %v2358 = vpack.c.bf16 %v2342, %v2326
    %v2359 = vpack.c.bf16 %v2343, %v2327
    %v2360 = vpack.c.bf16 %v2344, %v2328
    %v2361 = vpack.c.bf16 %v2345, %v2329
    %v2362 = vpack.c.bf16 %v2346, %v2330
    %v2363 = vld [vmem:[%s11] sm:$0xf]
    %v2364 = vld [vmem:[%s11 + $0x4] sm:$0xf]
    %v2365 = vld [vmem:[%s11 + $0x8] sm:$0xf]
    %v2366 = vld [vmem:[%s11 + $0xc] sm:$0xf]
    %v2367 = vld [vmem:[%s11 + $0x10] sm:$0xf]
    %v2368 = vld [vmem:[%s11 + $0x14] sm:$0xf]
    %v2369 = vld [vmem:[%s11 + $0x18] sm:$0xf]
    %v2370 = vld [vmem:[%s11 + $0x1c] sm:$0xf]
    %v2371 = vld [vmem:[%s11 + $0x20] sm:$0xf]
    %v2372 = vld [vmem:[%s11 + $0x24] sm:$0xf]
    %v2373 = vld [vmem:[%s11 + $0x28] sm:$0xf]
    %v2374 = vld [vmem:[%s11 + $0x2c] sm:$0xf]
    %v2375 = vld [vmem:[%s11 + $0x30] sm:$0xf]
    %v2376 = vld [vmem:[%s11 + $0x34] sm:$0xf]
    %v2377 = vld [vmem:[%s11 + $0x38] sm:$0xf]
    %v2378 = vld [vmem:[%s11 + $0x3c] sm:$0xf]
    %v2379 = vld [vmem:[%s11 + $0x40] sm:$0xf]
    %v2380 = vld [vmem:[%s11 + $0x44] sm:$0xf]
    %v2381 = vld [vmem:[%s11 + $0x48] sm:$0xf]
    %v2382 = vld [vmem:[%s11 + $0x4c] sm:$0xf]
    %v2383 = vld [vmem:[%s11 + $0x50] sm:$0xf]
    %v2384 = vld [vmem:[%s11 + $0x54] sm:$0xf]
    %v2385 = vld [vmem:[%s11 + $0x58] sm:$0xf]
    %v2386 = vld [vmem:[%s11 + $0x5c] sm:$0xf]
    %v2387 = vld [vmem:[%s11 + $0x60] sm:$0xf]
    %v2388 = vld [vmem:[%s11 + $0x64] sm:$0xf]
    %v2389 = vld [vmem:[%s11 + $0x68] sm:$0xf]
    %v2390 = vld [vmem:[%s11 + $0x6c] sm:$0xf]
    %v2391 = vld [vmem:[%s11 + $0x70] sm:$0xf]
    %v2392 = vld [vmem:[%s11 + $0x74] sm:$0xf]
    %v2393 = vld [vmem:[%s11 + $0x78] sm:$0xf]
    %v2394 = vld [vmem:[%s11 + $0x7c] sm:$0xf]
    %v2395 = vld [vmem:[%s11 + $0x80] sm:$0xf]
    %v2396 = vld [vmem:[%s11 + $0x84] sm:$0xf]
    %v2397 = vld [vmem:[%s11 + $0x88] sm:$0xf]
    %v2398 = vld [vmem:[%s11 + $0x8c] sm:$0xf]
    %v2399 = vld [vmem:[%s11 + $0x90] sm:$0xf]
    %v2400 = vld [vmem:[%s11 + $0x94] sm:$0xf]
    %v2401 = vld [vmem:[%s11 + $0x98] sm:$0xf]
    %v2402 = vld [vmem:[%s11 + $0x9c] sm:$0xf]
    %v2403 = vld [vmem:[%s11 + $0xa0] sm:$0xf]
    %v2404 = vld [vmem:[%s11 + $0xa4] sm:$0xf]
    %v2405 = vld [vmem:[%s11 + $0xa8] sm:$0xf]
    %v2406 = vld [vmem:[%s11 + $0xac] sm:$0xf]
    %v2407 = vld [vmem:[%s11 + $0xb0] sm:$0xf]
    %v2408 = vld [vmem:[%s11 + $0xb4] sm:$0xf]
    %v2409 = vld [vmem:[%s11 + $0xb8] sm:$0xf]
    %v2410 = vld [vmem:[%s11 + $0xbc] sm:$0xf]
    %v2411 = vld [vmem:[%s11 + $0xc0] sm:$0xf]
    %v2412 = vld [vmem:[%s11 + $0xc4] sm:$0xf]
    %v2413 = vld [vmem:[%s11 + $0xc8] sm:$0xf]
    %v2414 = vld [vmem:[%s11 + $0xcc] sm:$0xf]
    %v2415 = vld [vmem:[%s11 + $0xd0] sm:$0xf]
    %v2416 = vld [vmem:[%s11 + $0xd4] sm:$0xf]
    %v2417 = vld [vmem:[%s11 + $0xd8] sm:$0xf]
    %v2418 = vld [vmem:[%s11 + $0xdc] sm:$0xf]
    %v2419 = vld [vmem:[%s11 + $0xe0] sm:$0xf]
    %v2420 = vld [vmem:[%s11 + $0xe4] sm:$0xf]
    %v2421 = vld [vmem:[%s11 + $0xe8] sm:$0xf]
    %v2422 = vld [vmem:[%s11 + $0xec] sm:$0xf]
    %v2423 = vld [vmem:[%s11 + $0xf0] sm:$0xf]
    %v2424 = vld [vmem:[%s11 + $0xf4] sm:$0xf]
    %v2425 = vld [vmem:[%s11 + $0xf8] sm:$0xf]
    %v2426 = vld [vmem:[%s11 + $0xfc] sm:$0xf]
    %v2427 = vld [vmem:[%s11 + $0x100] sm:$0xf]
    %v2428 = vld [vmem:[%s11 + $0x104] sm:$0xf]
    %v2429 = vld [vmem:[%s11 + $0x108] sm:$0xf]
    %v2430 = vld [vmem:[%s11 + $0x10c] sm:$0xf]
    %v2431 = vld [vmem:[%s11 + $0x110] sm:$0xf]
    %v2432 = vld [vmem:[%s11 + $0x114] sm:$0xf]
    %v2433 = vld [vmem:[%s11 + $0x118] sm:$0xf]
    %v2434 = vld [vmem:[%s11 + $0x11c] sm:$0xf]
    %v2435 = vld [vmem:[%s11 + $0x120] sm:$0xf]
    %v2436 = vld [vmem:[%s11 + $0x124] sm:$0xf]
    %v2437 = vld [vmem:[%s11 + $0x128] sm:$0xf]
    %v2438 = vld [vmem:[%s11 + $0x12c] sm:$0xf]
    %v2439 = vld [vmem:[%s11 + $0x130] sm:$0xf]
    %v2440 = vld [vmem:[%s11 + $0x134] sm:$0xf]
    %v2441 = vld [vmem:[%s11 + $0x138] sm:$0xf]
    %v2442 = vld [vmem:[%s11 + $0x13c] sm:$0xf]
    %v2443 = vld [vmem:[%s11 + $0x140] sm:$0xf]
    %v2444 = vld [vmem:[%s11 + $0x144] sm:$0xf]
    %v2445 = vld [vmem:[%s11 + $0x148] sm:$0xf]
    %v2446 = vld [vmem:[%s11 + $0x14c] sm:$0xf]
    %v2447 = vld [vmem:[%s11 + $0x150] sm:$0xf]
    %v2448 = vld [vmem:[%s11 + $0x154] sm:$0xf]
    %v2449 = vld [vmem:[%s11 + $0x158] sm:$0xf]
    %v2450 = vld [vmem:[%s11 + $0x15c] sm:$0xf]
    %v2451 = vld [vmem:[%s11 + $0x160] sm:$0xf]
    %v2452 = vld [vmem:[%s11 + $0x164] sm:$0xf]
    %v2453 = vld [vmem:[%s11 + $0x168] sm:$0xf]
    %v2454 = vld [vmem:[%s11 + $0x16c] sm:$0xf]
    %v2455 = vld [vmem:[%s11 + $0x170] sm:$0xf]
    %v2456 = vld [vmem:[%s11 + $0x174] sm:$0xf]
    %v2457 = vld [vmem:[%s11 + $0x178] sm:$0xf]
    %v2458 = vld [vmem:[%s11 + $0x17c] sm:$0xf]
    %v2459 = vld [vmem:[%s11 + $0x180] sm:$0xf]
    %v2460 = vld [vmem:[%s11 + $0x184] sm:$0xf]
    %v2461 = vld [vmem:[%s11 + $0x188] sm:$0xf]
    %v2462 = vld [vmem:[%s11 + $0x18c] sm:$0xf]
    %v2463 = vld [vmem:[%s11 + $0x190] sm:$0xf]
    %v2464 = vld [vmem:[%s11 + $0x194] sm:$0xf]
    %v2465 = vld [vmem:[%s11 + $0x198] sm:$0xf]
    %v2466 = vld [vmem:[%s11 + $0x19c] sm:$0xf]
    %v2467 = vld [vmem:[%s11 + $0x1a0] sm:$0xf]
    %v2468 = vld [vmem:[%s11 + $0x1a4] sm:$0xf]
    %v2469 = vld [vmem:[%s11 + $0x1a8] sm:$0xf]
    %v2470 = vld [vmem:[%s11 + $0x1ac] sm:$0xf]
    %v2471 = vld [vmem:[%s11 + $0x1b0] sm:$0xf]
    %v2472 = vld [vmem:[%s11 + $0x1b4] sm:$0xf]
    %v2473 = vld [vmem:[%s11 + $0x1b8] sm:$0xf]
    %v2474 = vld [vmem:[%s11 + $0x1bc] sm:$0xf]
    %v2475 = vld [vmem:[%s11 + $0x1c0] sm:$0xf]
    %v2476 = vld [vmem:[%s11 + $0x1c4] sm:$0xf]
    %v2477 = vld [vmem:[%s11 + $0x1c8] sm:$0xf]
    %v2478 = vld [vmem:[%s11 + $0x1cc] sm:$0xf]
    %v2479 = vld [vmem:[%s11 + $0x1d0] sm:$0xf]
    %v2480 = vld [vmem:[%s11 + $0x1d4] sm:$0xf]
    %v2481 = vld [vmem:[%s11 + $0x1d8] sm:$0xf]
    %v2482 = vld [vmem:[%s11 + $0x1dc] sm:$0xf]
    %v2483 = vld [vmem:[%s11 + $0x1e0] sm:$0xf]
    %v2484 = vld [vmem:[%s11 + $0x1e4] sm:$0xf]
    %v2485 = vld [vmem:[%s11 + $0x1e8] sm:$0xf]
    %v2486 = vld [vmem:[%s11 + $0x1ec] sm:$0xf]
    %v2487 = vld [vmem:[%s11 + $0x1f0] sm:$0xf]
    %v2488 = vld [vmem:[%s11 + $0x1f4] sm:$0xf]
    %v2489 = vld [vmem:[%s11 + $0x1f8] sm:$0xf]
    %v2490 = vld [vmem:[%s11 + $0x1fc] sm:$0xf]
    %v2491 = vld [vmem:[%s11 + $0x200] sm:$0xf]
    %v2492 = vld [vmem:[%s11 + $0x204] sm:$0xf]
    %v2493 = vld [vmem:[%s11 + $0x208] sm:$0xf]
    %v2494 = vld [vmem:[%s11 + $0x20c] sm:$0xf]
    %v2495 = vld [vmem:[%s11 + $0x210] sm:$0xf]
    %v2496 = vld [vmem:[%s11 + $0x214] sm:$0xf]
    %v2497 = vld [vmem:[%s11 + $0x218] sm:$0xf]
    %v2498 = vld [vmem:[%s11 + $0x21c] sm:$0xf]
    %v2499 = vld [vmem:[%s11 + $0x220] sm:$0xf]
    %v2500 = vld [vmem:[%s11 + $0x224] sm:$0xf]
    %v2501 = vld [vmem:[%s11 + $0x228] sm:$0xf]
    %v2502 = vld [vmem:[%s11 + $0x22c] sm:$0xf]
    %v2503 = vld [vmem:[%s11 + $0x230] sm:$0xf]
    %v2504 = vld [vmem:[%s11 + $0x234] sm:$0xf]
    %v2505 = vld [vmem:[%s11 + $0x238] sm:$0xf]
    %v2506 = vld [vmem:[%s11 + $0x23c] sm:$0xf]
    %v2507 = vld [vmem:[%s11 + $0x240] sm:$0xf]
    %v2508 = vld [vmem:[%s11 + $0x244] sm:$0xf]
    %v2509 = vld [vmem:[%s11 + $0x248] sm:$0xf]
    %v2510 = vld [vmem:[%s11 + $0x24c] sm:$0xf]
    %v2511 = vld [vmem:[%s11 + $0x250] sm:$0xf]
    %v2512 = vld [vmem:[%s11 + $0x254] sm:$0xf]
    %v2513 = vld [vmem:[%s11 + $0x258] sm:$0xf]
    %v2514 = vld [vmem:[%s11 + $0x25c] sm:$0xf]
    %v2515 = vld [vmem:[%s11 + $0x260] sm:$0xf]
    %v2516 = vld [vmem:[%s11 + $0x264] sm:$0xf]
    %v2517 = vld [vmem:[%s11 + $0x268] sm:$0xf]
    %v2518 = vld [vmem:[%s11 + $0x26c] sm:$0xf]
    %v2519 = vld [vmem:[%s11 + $0x270] sm:$0xf]
    %v2520 = vld [vmem:[%s11 + $0x274] sm:$0xf]
    %v2521 = vld [vmem:[%s11 + $0x278] sm:$0xf]
    %v2522 = vld [vmem:[%s11 + $0x27c] sm:$0xf]
    %v2523 = vld [vmem:[%s11 + $0x280] sm:$0xf]
    %v2524 = vld [vmem:[%s11 + $0x284] sm:$0xf]
    %v2525 = vld [vmem:[%s11 + $0x288] sm:$0xf]
    %v2526 = vld [vmem:[%s11 + $0x28c] sm:$0xf]
    %v2527 = vld [vmem:[%s11 + $0x290] sm:$0xf]
    %v2528 = vld [vmem:[%s11 + $0x294] sm:$0xf]
    %v2529 = vld [vmem:[%s11 + $0x298] sm:$0xf]
    %v2530 = vld [vmem:[%s11 + $0x29c] sm:$0xf]
    %v2531 = vld [vmem:[%s11 + $0x2a0] sm:$0xf]
    %v2532 = vld [vmem:[%s11 + $0x2a4] sm:$0xf]
    %v2533 = vld [vmem:[%s11 + $0x2a8] sm:$0xf]
    %v2534 = vld [vmem:[%s11 + $0x2ac] sm:$0xf]
    %v2535 = vld [vmem:[%s11 + $0x2b0] sm:$0xf]
    %v2536 = vld [vmem:[%s11 + $0x2b4] sm:$0xf]
    %v2537 = vld [vmem:[%s11 + $0x2b8] sm:$0xf]
    %v2538 = vld [vmem:[%s11 + $0x2bc] sm:$0xf]
    %v2539 = vld [vmem:[%s11 + $0x2c0] sm:$0xf]
    %v2540 = vld [vmem:[%s11 + $0x2c4] sm:$0xf]
    %v2541 = vld [vmem:[%s11 + $0x2c8] sm:$0xf]
    %v2542 = vld [vmem:[%s11 + $0x2cc] sm:$0xf]
    %v2543 = vld [vmem:[%s11 + $0x2d0] sm:$0xf]
    %v2544 = vld [vmem:[%s11 + $0x2d4] sm:$0xf]
    %v2545 = vld [vmem:[%s11 + $0x2d8] sm:$0xf]
    %v2546 = vld [vmem:[%s11 + $0x2dc] sm:$0xf]
    %v2547 = vld [vmem:[%s11 + $0x2e0] sm:$0xf]
    %v2548 = vld [vmem:[%s11 + $0x2e4] sm:$0xf]
    %v2549 = vld [vmem:[%s11 + $0x2e8] sm:$0xf]
    %v2550 = vld [vmem:[%s11 + $0x2ec] sm:$0xf]
    %v2551 = vld [vmem:[%s11 + $0x2f0] sm:$0xf]
    %v2552 = vld [vmem:[%s11 + $0x2f4] sm:$0xf]
    %v2553 = vld [vmem:[%s11 + $0x2f8] sm:$0xf]
    %v2554 = vld [vmem:[%s11 + $0x2fc] sm:$0xf]
    %v2555 = vld [vmem:[%s11 + $0x300] sm:$0xf]
    %v2556 = vld [vmem:[%s11 + $0x304] sm:$0xf]
    %v2557 = vld [vmem:[%s11 + $0x308] sm:$0xf]
    %v2558 = vld [vmem:[%s11 + $0x30c] sm:$0xf]
    %v2559 = vld [vmem:[%s11 + $0x310] sm:$0xf]
    %v2560 = vld [vmem:[%s11 + $0x314] sm:$0xf]
    %v2561 = vld [vmem:[%s11 + $0x318] sm:$0xf]
    %v2562 = vld [vmem:[%s11 + $0x31c] sm:$0xf]
    %v2563 = vld [vmem:[%s11 + $0x320] sm:$0xf]
    %v2564 = vld [vmem:[%s11 + $0x324] sm:$0xf]
    %v2565 = vld [vmem:[%s11 + $0x328] sm:$0xf]
    %v2566 = vld [vmem:[%s11 + $0x32c] sm:$0xf]
    %v2567 = vld [vmem:[%s11 + $0x330] sm:$0xf]
    %v2568 = vld [vmem:[%s11 + $0x334] sm:$0xf]
    %v2569 = vld [vmem:[%s11 + $0x338] sm:$0xf]
    %v2570 = vld [vmem:[%s11 + $0x33c] sm:$0xf]
    %v2571 = vld [vmem:[%s11 + $0x340] sm:$0xf]
    %v2572 = vld [vmem:[%s11 + $0x344] sm:$0xf]
    %v2573 = vld [vmem:[%s11 + $0x348] sm:$0xf]
    %v2574 = vld [vmem:[%s11 + $0x34c] sm:$0xf]
    %v2575 = vld [vmem:[%s11 + $0x350] sm:$0xf]
    %v2576 = vld [vmem:[%s11 + $0x354] sm:$0xf]
    %v2577 = vld [vmem:[%s11 + $0x358] sm:$0xf]
    %v2578 = vld [vmem:[%s11 + $0x35c] sm:$0xf]
    %v2579 = vld [vmem:[%s11 + $0x360] sm:$0xf]
    %v2580 = vld [vmem:[%s11 + $0x364] sm:$0xf]
    %v2581 = vld [vmem:[%s11 + $0x368] sm:$0xf]
    %v2582 = vld [vmem:[%s11 + $0x36c] sm:$0xf]
    %v2583 = vld [vmem:[%s11 + $0x370] sm:$0xf]
    %v2584 = vld [vmem:[%s11 + $0x374] sm:$0xf]
    %v2585 = vld [vmem:[%s11 + $0x378] sm:$0xf]
    %v2586 = vld [vmem:[%s11 + $0x37c] sm:$0xf]
    %v2587 = vld [vmem:[%s11 + $0x380] sm:$0xf]
    %v2588 = vld [vmem:[%s11 + $0x384] sm:$0xf]
    %v2589 = vld [vmem:[%s11 + $0x388] sm:$0xf]
    %v2590 = vld [vmem:[%s11 + $0x38c] sm:$0xf]
    %v2591 = vld [vmem:[%s11 + $0x390] sm:$0xf]
    %v2592 = vld [vmem:[%s11 + $0x394] sm:$0xf]
    %v2593 = vld [vmem:[%s11 + $0x398] sm:$0xf]
    %v2594 = vld [vmem:[%s11 + $0x39c] sm:$0xf]
    %v2595 = vld [vmem:[%s11 + $0x3a0] sm:$0xf]
    %v2596 = vld [vmem:[%s11 + $0x3a4] sm:$0xf]
    %v2597 = vld [vmem:[%s11 + $0x3a8] sm:$0xf]
    %v2598 = vld [vmem:[%s11 + $0x3ac] sm:$0xf]
    %v2599 = vld [vmem:[%s11 + $0x3b0] sm:$0xf]
    %v2600 = vld [vmem:[%s11 + $0x3b4] sm:$0xf]
    %v2601 = vld [vmem:[%s11 + $0x3b8] sm:$0xf]
    %v2602 = vld [vmem:[%s11 + $0x3bc] sm:$0xf]
    %v2603 = vld [vmem:[%s11 + $0x3c0] sm:$0xf]
    %v2604 = vld [vmem:[%s11 + $0x3c4] sm:$0xf]
    %v2605 = vld [vmem:[%s11 + $0x3c8] sm:$0xf]
    %v2606 = vld [vmem:[%s11 + $0x3cc] sm:$0xf]
    %v2607 = vld [vmem:[%s11 + $0x3d0] sm:$0xf]
    %v2608 = vld [vmem:[%s11 + $0x3d4] sm:$0xf]
    %v2609 = vld [vmem:[%s11 + $0x3d8] sm:$0xf]
    %v2610 = vld [vmem:[%s11 + $0x3dc] sm:$0xf]
    %v2611 = vld [vmem:[%s11 + $0x3e0] sm:$0xf]
    %v2612 = vld [vmem:[%s11 + $0x3e4] sm:$0xf]
    %v2613 = vld [vmem:[%s11 + $0x3e8] sm:$0xf]
    %v2614 = vld [vmem:[%s11 + $0x3ec] sm:$0xf]
    %v2615 = vld [vmem:[%s11 + $0x3f0] sm:$0xf]
    %v2616 = vld [vmem:[%s11 + $0x3f4] sm:$0xf]
    %v2617 = vld [vmem:[%s11 + $0x3f8] sm:$0xf]
    %v2618 = vld [vmem:[%s11 + $0x3fc] sm:$0xf]
    %v2619 = vld [vmem:[%s12] sm:$0x1]
    %v2621 = vlaneseq
    %v2622 = vshrl.u32 %v2621, 7
    %v2623 = vsub.s32 0, %v2622
    %v2624 = vrot.slane %v2619, %v2623
    %v2882 = vunpack.c.l.b16 %v2363
    %v2883 = vunpack.c.l.b16 %v2364
    %v2884 = vunpack.c.l.b16 %v2365
    %v2885 = vunpack.c.l.b16 %v2366
    %v2886 = vunpack.c.l.b16 %v2367
    %v2887 = vunpack.c.l.b16 %v2368
    %v2888 = vunpack.c.l.b16 %v2369
    %v2889 = vunpack.c.l.b16 %v2370
    %v2890 = vunpack.c.l.b16 %v2371
    %v2891 = vunpack.c.l.b16 %v2372
    %v2892 = vunpack.c.l.b16 %v2373
    %v2893 = vunpack.c.l.b16 %v2374
    %v2894 = vunpack.c.l.b16 %v2375
    %v2895 = vunpack.c.l.b16 %v2376
    %v2896 = vunpack.c.l.b16 %v2377
    %v2897 = vunpack.c.l.b16 %v2378
    %v2898 = vunpack.c.l.b16 %v2379
    %v2899 = vunpack.c.l.b16 %v2380
    %v2900 = vunpack.c.l.b16 %v2381
    %v2901 = vunpack.c.l.b16 %v2382
    %v2902 = vunpack.c.l.b16 %v2383
    %v2903 = vunpack.c.l.b16 %v2384
    %v2904 = vunpack.c.l.b16 %v2385
    %v2905 = vunpack.c.l.b16 %v2386
    %v2906 = vunpack.c.l.b16 %v2387
    %v2907 = vunpack.c.l.b16 %v2388
    %v2908 = vunpack.c.l.b16 %v2389
    %v2909 = vunpack.c.l.b16 %v2390
    %v2910 = vunpack.c.l.b16 %v2391
    %v2911 = vunpack.c.l.b16 %v2392
    %v2912 = vunpack.c.l.b16 %v2393
    %v2913 = vunpack.c.l.b16 %v2394
    %v2914 = vunpack.c.l.b16 %v2395
    %v2915 = vunpack.c.l.b16 %v2396
    %v2916 = vunpack.c.l.b16 %v2397
    %v2917 = vunpack.c.l.b16 %v2398
    %v2918 = vunpack.c.l.b16 %v2399
    %v2919 = vunpack.c.l.b16 %v2400
    %v2920 = vunpack.c.l.b16 %v2401
    %v2921 = vunpack.c.l.b16 %v2402
    %v2922 = vunpack.c.l.b16 %v2403
    %v2923 = vunpack.c.l.b16 %v2404
    %v2924 = vunpack.c.l.b16 %v2405
    %v2925 = vunpack.c.l.b16 %v2406
    %v2926 = vunpack.c.l.b16 %v2407
    %v2927 = vunpack.c.l.b16 %v2408
    %v2928 = vunpack.c.l.b16 %v2409
    %v2929 = vunpack.c.l.b16 %v2410
    %v2930 = vunpack.c.l.b16 %v2411
    %v2931 = vunpack.c.l.b16 %v2412
    %v2932 = vunpack.c.l.b16 %v2413
    %v2933 = vunpack.c.l.b16 %v2414
    %v2934 = vunpack.c.l.b16 %v2415
    %v2935 = vunpack.c.l.b16 %v2416
    %v2936 = vunpack.c.l.b16 %v2417
    %v2937 = vunpack.c.l.b16 %v2418
    %v2938 = vunpack.c.l.b16 %v2419
    %v2939 = vunpack.c.l.b16 %v2420
    %v2940 = vunpack.c.l.b16 %v2421
    %v2941 = vunpack.c.l.b16 %v2422
    %v2942 = vunpack.c.l.b16 %v2423
    %v2943 = vunpack.c.l.b16 %v2424
    %v2944 = vunpack.c.l.b16 %v2425
    %v2945 = vunpack.c.l.b16 %v2426
    %v2946 = vunpack.c.l.b16 %v2427
    %v2947 = vunpack.c.l.b16 %v2428
    %v2948 = vunpack.c.l.b16 %v2429
    %v2949 = vunpack.c.l.b16 %v2430
    %v2950 = vunpack.c.l.b16 %v2431
    %v2951 = vunpack.c.l.b16 %v2432
    %v2952 = vunpack.c.l.b16 %v2433
    %v2953 = vunpack.c.l.b16 %v2434
    %v2954 = vunpack.c.l.b16 %v2435
    %v2955 = vunpack.c.l.b16 %v2436
    %v2956 = vunpack.c.l.b16 %v2437
    %v2957 = vunpack.c.l.b16 %v2438
    %v2958 = vunpack.c.l.b16 %v2439
    %v2959 = vunpack.c.l.b16 %v2440
    %v2960 = vunpack.c.l.b16 %v2441
    %v2961 = vunpack.c.l.b16 %v2442
    %v2962 = vunpack.c.l.b16 %v2443
    %v2963 = vunpack.c.l.b16 %v2444
    %v2964 = vunpack.c.l.b16 %v2445
    %v2965 = vunpack.c.l.b16 %v2446
    %v2966 = vunpack.c.l.b16 %v2447
    %v2967 = vunpack.c.l.b16 %v2448
    %v2968 = vunpack.c.l.b16 %v2449
    %v2969 = vunpack.c.l.b16 %v2450
    %v2970 = vunpack.c.l.b16 %v2451
    %v2971 = vunpack.c.l.b16 %v2452
    %v2972 = vunpack.c.l.b16 %v2453
    %v2973 = vunpack.c.l.b16 %v2454
    %v2974 = vunpack.c.l.b16 %v2455
    %v2975 = vunpack.c.l.b16 %v2456
    %v2976 = vunpack.c.l.b16 %v2457
    %v2977 = vunpack.c.l.b16 %v2458
    %v2978 = vunpack.c.l.b16 %v2459
    %v2979 = vunpack.c.l.b16 %v2460
    %v2980 = vunpack.c.l.b16 %v2461
    %v2981 = vunpack.c.l.b16 %v2462
    %v2982 = vunpack.c.l.b16 %v2463
    %v2983 = vunpack.c.l.b16 %v2464
    %v2984 = vunpack.c.l.b16 %v2465
    %v2985 = vunpack.c.l.b16 %v2466
    %v2986 = vunpack.c.l.b16 %v2467
    %v2987 = vunpack.c.l.b16 %v2468
    %v2988 = vunpack.c.l.b16 %v2469
    %v2989 = vunpack.c.l.b16 %v2470
    %v2990 = vunpack.c.l.b16 %v2471
    %v2991 = vunpack.c.l.b16 %v2472
    %v2992 = vunpack.c.l.b16 %v2473
    %v2993 = vunpack.c.l.b16 %v2474
    %v2994 = vunpack.c.l.b16 %v2475
    %v2995 = vunpack.c.l.b16 %v2476
    %v2996 = vunpack.c.l.b16 %v2477
    %v2997 = vunpack.c.l.b16 %v2478
    %v2998 = vunpack.c.l.b16 %v2479
    %v2999 = vunpack.c.l.b16 %v2480
    %v3000 = vunpack.c.l.b16 %v2481
    %v3001 = vunpack.c.l.b16 %v2482
    %v3002 = vunpack.c.l.b16 %v2483
    %v3003 = vunpack.c.l.b16 %v2484
    %v3004 = vunpack.c.l.b16 %v2485
    %v3005 = vunpack.c.l.b16 %v2486
    %v3006 = vunpack.c.l.b16 %v2487
    %v3007 = vunpack.c.l.b16 %v2488
    %v3008 = vunpack.c.l.b16 %v2489
    %v3009 = vunpack.c.l.b16 %v2490
    %v3010 = vunpack.c.l.b16 %v2491
    %v3011 = vunpack.c.l.b16 %v2492
    %v3012 = vunpack.c.l.b16 %v2493
    %v3013 = vunpack.c.l.b16 %v2494
    %v3014 = vunpack.c.l.b16 %v2495
    %v3015 = vunpack.c.l.b16 %v2496
    %v3016 = vunpack.c.l.b16 %v2497
    %v3017 = vunpack.c.l.b16 %v2498
    %v3018 = vunpack.c.l.b16 %v2499
    %v3019 = vunpack.c.l.b16 %v2500
    %v3020 = vunpack.c.l.b16 %v2501
    %v3021 = vunpack.c.l.b16 %v2502
    %v3022 = vunpack.c.l.b16 %v2503
    %v3023 = vunpack.c.l.b16 %v2504
    %v3024 = vunpack.c.l.b16 %v2505
    %v3025 = vunpack.c.l.b16 %v2506
    %v3026 = vunpack.c.l.b16 %v2507
    %v3027 = vunpack.c.l.b16 %v2508
    %v3028 = vunpack.c.l.b16 %v2509
    %v3029 = vunpack.c.l.b16 %v2510
    %v3030 = vunpack.c.l.b16 %v2511
    %v3031 = vunpack.c.l.b16 %v2512
    %v3032 = vunpack.c.l.b16 %v2513
    %v3033 = vunpack.c.l.b16 %v2514
    %v3034 = vunpack.c.l.b16 %v2515
    %v3035 = vunpack.c.l.b16 %v2516
    %v3036 = vunpack.c.l.b16 %v2517
    %v3037 = vunpack.c.l.b16 %v2518
    %v3038 = vunpack.c.l.b16 %v2519
    %v3039 = vunpack.c.l.b16 %v2520
    %v3040 = vunpack.c.l.b16 %v2521
    %v3041 = vunpack.c.l.b16 %v2522
    %v3042 = vunpack.c.l.b16 %v2523
    %v3043 = vunpack.c.l.b16 %v2524
    %v3044 = vunpack.c.l.b16 %v2525
    %v3045 = vunpack.c.l.b16 %v2526
    %v3046 = vunpack.c.l.b16 %v2527
    %v3047 = vunpack.c.l.b16 %v2528
    %v3048 = vunpack.c.l.b16 %v2529
    %v3049 = vunpack.c.l.b16 %v2530
    %v3050 = vunpack.c.l.b16 %v2531
    %v3051 = vunpack.c.l.b16 %v2532
    %v3052 = vunpack.c.l.b16 %v2533
    %v3053 = vunpack.c.l.b16 %v2534
    %v3054 = vunpack.c.l.b16 %v2535
    %v3055 = vunpack.c.l.b16 %v2536
    %v3056 = vunpack.c.l.b16 %v2537
    %v3057 = vunpack.c.l.b16 %v2538
    %v3058 = vunpack.c.l.b16 %v2539
    %v3059 = vunpack.c.l.b16 %v2540
    %v3060 = vunpack.c.l.b16 %v2541
    %v3061 = vunpack.c.l.b16 %v2542
    %v3062 = vunpack.c.l.b16 %v2543
    %v3063 = vunpack.c.l.b16 %v2544
    %v3064 = vunpack.c.l.b16 %v2545
    %v3065 = vunpack.c.l.b16 %v2546
    %v3066 = vunpack.c.l.b16 %v2547
    %v3067 = vunpack.c.l.b16 %v2548
    %v3068 = vunpack.c.l.b16 %v2549
    %v3069 = vunpack.c.l.b16 %v2550
    %v3070 = vunpack.c.l.b16 %v2551
    %v3071 = vunpack.c.l.b16 %v2552
    %v3072 = vunpack.c.l.b16 %v2553
    %v3073 = vunpack.c.l.b16 %v2554
    %v3074 = vunpack.c.l.b16 %v2555
    %v3075 = vunpack.c.l.b16 %v2556
    %v3076 = vunpack.c.l.b16 %v2557
    %v3077 = vunpack.c.l.b16 %v2558
    %v3078 = vunpack.c.l.b16 %v2559
    %v3079 = vunpack.c.l.b16 %v2560
    %v3080 = vunpack.c.l.b16 %v2561
    %v3081 = vunpack.c.l.b16 %v2562
    %v3082 = vunpack.c.l.b16 %v2563
    %v3083 = vunpack.c.l.b16 %v2564
    %v3084 = vunpack.c.l.b16 %v2565
    %v3085 = vunpack.c.l.b16 %v2566
    %v3086 = vunpack.c.l.b16 %v2567
    %v3087 = vunpack.c.l.b16 %v2568
    %v3088 = vunpack.c.l.b16 %v2569
    %v3089 = vunpack.c.l.b16 %v2570
    %v3090 = vunpack.c.l.b16 %v2571
    %v3091 = vunpack.c.l.b16 %v2572
    %v3092 = vunpack.c.l.b16 %v2573
    %v3093 = vunpack.c.l.b16 %v2574
    %v3094 = vunpack.c.l.b16 %v2575
    %v3095 = vunpack.c.l.b16 %v2576
    %v3096 = vunpack.c.l.b16 %v2577
    %v3097 = vunpack.c.l.b16 %v2578
    %v3098 = vunpack.c.l.b16 %v2579
    %v3099 = vunpack.c.l.b16 %v2580
    %v3100 = vunpack.c.l.b16 %v2581
    %v3101 = vunpack.c.l.b16 %v2582
    %v3102 = vunpack.c.l.b16 %v2583
    %v3103 = vunpack.c.l.b16 %v2584
    %v3104 = vunpack.c.l.b16 %v2585
    %v3105 = vunpack.c.l.b16 %v2586
    %v3106 = vunpack.c.l.b16 %v2587
    %v3107 = vunpack.c.l.b16 %v2588
    %v3108 = vunpack.c.l.b16 %v2589
    %v3109 = vunpack.c.l.b16 %v2590
    %v3110 = vunpack.c.l.b16 %v2591
    %v3111 = vunpack.c.l.b16 %v2592
    %v3112 = vunpack.c.l.b16 %v2593
    %v3113 = vunpack.c.l.b16 %v2594
    %v3114 = vunpack.c.l.b16 %v2595
    %v3115 = vunpack.c.l.b16 %v2596
    %v3116 = vunpack.c.l.b16 %v2597
    %v3117 = vunpack.c.l.b16 %v2598
    %v3118 = vunpack.c.l.b16 %v2599
    %v3119 = vunpack.c.l.b16 %v2600
    %v3120 = vunpack.c.l.b16 %v2601
    %v3121 = vunpack.c.l.b16 %v2602
    %v3122 = vunpack.c.l.b16 %v2603
    %v3123 = vunpack.c.l.b16 %v2604
    %v3124 = vunpack.c.l.b16 %v2605
    %v3125 = vunpack.c.l.b16 %v2606
    %v3126 = vunpack.c.l.b16 %v2607
    %v3127 = vunpack.c.l.b16 %v2608
    %v3128 = vunpack.c.l.b16 %v2609
    %v3129 = vunpack.c.l.b16 %v2610
    %v3130 = vunpack.c.l.b16 %v2611
    %v3131 = vunpack.c.l.b16 %v2612
    %v3132 = vunpack.c.l.b16 %v2613
    %v3133 = vunpack.c.l.b16 %v2614
    %v3134 = vunpack.c.l.b16 %v2615
    %v3135 = vunpack.c.l.b16 %v2616
    %v3136 = vunpack.c.l.b16 %v2617
    %v3137 = vunpack.c.l.b16 %v2618
    %v3138 = vpack.c.b16 %v2883, %v2882
    %v3139 = vpack.c.b16 %v2885, %v2884
    %v3140 = vpack.c.b16 %v2887, %v2886
    %v3141 = vpack.c.b16 %v2889, %v2888
    %v3142 = vpack.c.b16 %v2891, %v2890
    %v3143 = vpack.c.b16 %v2893, %v2892
    %v3144 = vpack.c.b16 %v2895, %v2894
    %v3145 = vpack.c.b16 %v2897, %v2896
    %v3146 = vpack.c.b16 %v2899, %v2898
    %v3147 = vpack.c.b16 %v2901, %v2900
    %v3148 = vpack.c.b16 %v2903, %v2902
    %v3149 = vpack.c.b16 %v2905, %v2904
    %v3150 = vpack.c.b16 %v2907, %v2906
    %v3151 = vpack.c.b16 %v2909, %v2908
    %v3152 = vpack.c.b16 %v2911, %v2910
    %v3153 = vpack.c.b16 %v2913, %v2912
    %v3154 = vpack.c.b16 %v2915, %v2914
    %v3155 = vpack.c.b16 %v2917, %v2916
    %v3156 = vpack.c.b16 %v2919, %v2918
    %v3157 = vpack.c.b16 %v2921, %v2920
    %v3158 = vpack.c.b16 %v2923, %v2922
    %v3159 = vpack.c.b16 %v2925, %v2924
    %v3160 = vpack.c.b16 %v2927, %v2926
    %v3161 = vpack.c.b16 %v2929, %v2928
    %v3162 = vpack.c.b16 %v2931, %v2930
    %v3163 = vpack.c.b16 %v2933, %v2932
    %v3164 = vpack.c.b16 %v2935, %v2934
    %v3165 = vpack.c.b16 %v2937, %v2936
    %v3166 = vpack.c.b16 %v2939, %v2938
    %v3167 = vpack.c.b16 %v2941, %v2940
    %v3168 = vpack.c.b16 %v2943, %v2942
    %v3169 = vpack.c.b16 %v2945, %v2944
    %v3170 = vpack.c.b16 %v2947, %v2946
    %v3171 = vpack.c.b16 %v2949, %v2948
    %v3172 = vpack.c.b16 %v2951, %v2950
    %v3173 = vpack.c.b16 %v2953, %v2952
    %v3174 = vpack.c.b16 %v2955, %v2954
    %v3175 = vpack.c.b16 %v2957, %v2956
    %v3176 = vpack.c.b16 %v2959, %v2958
    %v3177 = vpack.c.b16 %v2961, %v2960
    %v3178 = vpack.c.b16 %v2963, %v2962
    %v3179 = vpack.c.b16 %v2965, %v2964
    %v3180 = vpack.c.b16 %v2967, %v2966
    %v3181 = vpack.c.b16 %v2969, %v2968
    %v3182 = vpack.c.b16 %v2971, %v2970
    %v3183 = vpack.c.b16 %v2973, %v2972
    %v3184 = vpack.c.b16 %v2975, %v2974
    %v3185 = vpack.c.b16 %v2977, %v2976
    %v3186 = vpack.c.b16 %v2979, %v2978
    %v3187 = vpack.c.b16 %v2981, %v2980
    %v3188 = vpack.c.b16 %v2983, %v2982
    %v3189 = vpack.c.b16 %v2985, %v2984
    %v3190 = vpack.c.b16 %v2987, %v2986
    %v3191 = vpack.c.b16 %v2989, %v2988
    %v3192 = vpack.c.b16 %v2991, %v2990
    %v3193 = vpack.c.b16 %v2993, %v2992
    %v3194 = vpack.c.b16 %v2995, %v2994
    %v3195 = vpack.c.b16 %v2997, %v2996
    %v3196 = vpack.c.b16 %v2999, %v2998
    %v3197 = vpack.c.b16 %v3001, %v3000
    %v3198 = vpack.c.b16 %v3003, %v3002
    %v3199 = vpack.c.b16 %v3005, %v3004
    %v3200 = vpack.c.b16 %v3007, %v3006
    %v3201 = vpack.c.b16 %v3009, %v3008
    %v3202 = vpack.c.b16 %v3011, %v3010
    %v3203 = vpack.c.b16 %v3013, %v3012
    %v3204 = vpack.c.b16 %v3015, %v3014
    %v3205 = vpack.c.b16 %v3017, %v3016
    %v3206 = vpack.c.b16 %v3019, %v3018
    %v3207 = vpack.c.b16 %v3021, %v3020
    %v3208 = vpack.c.b16 %v3023, %v3022
    %v3209 = vpack.c.b16 %v3025, %v3024
    %v3210 = vpack.c.b16 %v3027, %v3026
    %v3211 = vpack.c.b16 %v3029, %v3028
    %v3212 = vpack.c.b16 %v3031, %v3030
    %v3213 = vpack.c.b16 %v3033, %v3032
    %v3214 = vpack.c.b16 %v3035, %v3034
    %v3215 = vpack.c.b16 %v3037, %v3036
    %v3216 = vpack.c.b16 %v3039, %v3038
    %v3217 = vpack.c.b16 %v3041, %v3040
    %v3218 = vpack.c.b16 %v3043, %v3042
    %v3219 = vpack.c.b16 %v3045, %v3044
    %v3220 = vpack.c.b16 %v3047, %v3046
    %v3221 = vpack.c.b16 %v3049, %v3048
    %v3222 = vpack.c.b16 %v3051, %v3050
    %v3223 = vpack.c.b16 %v3053, %v3052
    %v3224 = vpack.c.b16 %v3055, %v3054
    %v3225 = vpack.c.b16 %v3057, %v3056
    %v3226 = vpack.c.b16 %v3059, %v3058
    %v3227 = vpack.c.b16 %v3061, %v3060
    %v3228 = vpack.c.b16 %v3063, %v3062
    %v3229 = vpack.c.b16 %v3065, %v3064
    %v3230 = vpack.c.b16 %v3067, %v3066
    %v3231 = vpack.c.b16 %v3069, %v3068
    %v3232 = vpack.c.b16 %v3071, %v3070
    %v3233 = vpack.c.b16 %v3073, %v3072
    %v3234 = vpack.c.b16 %v3075, %v3074
    %v3235 = vpack.c.b16 %v3077, %v3076
    %v3236 = vpack.c.b16 %v3079, %v3078
    %v3237 = vpack.c.b16 %v3081, %v3080
    %v3238 = vpack.c.b16 %v3083, %v3082
    %v3239 = vpack.c.b16 %v3085, %v3084
    %v3240 = vpack.c.b16 %v3087, %v3086
    %v3241 = vpack.c.b16 %v3089, %v3088
    %v3242 = vpack.c.b16 %v3091, %v3090
    %v3243 = vpack.c.b16 %v3093, %v3092
    %v3244 = vpack.c.b16 %v3095, %v3094
    %v3245 = vpack.c.b16 %v3097, %v3096
    %v3246 = vpack.c.b16 %v3099, %v3098
    %v3247 = vpack.c.b16 %v3101, %v3100
    %v3248 = vpack.c.b16 %v3103, %v3102
    %v3249 = vpack.c.b16 %v3105, %v3104
    %v3250 = vpack.c.b16 %v3107, %v3106
    %v3251 = vpack.c.b16 %v3109, %v3108
    %v3252 = vpack.c.b16 %v3111, %v3110
    %v3253 = vpack.c.b16 %v3113, %v3112
    %v3254 = vpack.c.b16 %v3115, %v3114
    %v3255 = vpack.c.b16 %v3117, %v3116
    %v3256 = vpack.c.b16 %v3119, %v3118
    %v3257 = vpack.c.b16 %v3121, %v3120
    %v3258 = vpack.c.b16 %v3123, %v3122
    %v3259 = vpack.c.b16 %v3125, %v3124
    %v3260 = vpack.c.b16 %v3127, %v3126
    %v3261 = vpack.c.b16 %v3129, %v3128
    %v3262 = vpack.c.b16 %v3131, %v3130
    %v3263 = vpack.c.b16 %v3133, %v3132
    %v3264 = vpack.c.b16 %v3135, %v3134
    %v3265 = vpack.c.b16 %v3137, %v3136
    %3394 = vmatprep.subr.bf16.mxu0 0
    %3395 = vmatpush1.bf16.msra.mxu0 %v3138
    %3396 = vmatprep.subr.bf16.mxu0 0
    %3397 = vmatpush1.bf16.msra.mxu0 %v3139
    %3398 = vmatprep.subr.bf16.mxu0 0
    %3399 = vmatpush1.bf16.msra.mxu0 %v3140
    %3400 = vmatprep.subr.bf16.mxu0 0
    %3401 = vmatpush1.bf16.msra.mxu0 %v3141
    %3402 = vmatprep.subr.bf16.mxu0 0
    %3403 = vmatpush1.bf16.msra.mxu0 %v3142
    %3404 = vmatprep.subr.bf16.mxu0 0
    %3405 = vmatpush1.bf16.msra.mxu0 %v3143
    %3406 = vmatprep.subr.bf16.mxu0 0
    %3407 = vmatpush1.bf16.msra.mxu0 %v3144
    %3408 = vmatprep.subr.bf16.mxu0 0
    %3409 = vmatpush1.bf16.msra.mxu0 %v3145
    %3410 = vmatprep.subr.bf16.mxu0 0
    %3411 = vmatpush1.bf16.msra.mxu0 %v3146
    %3412 = vmatprep.subr.bf16.mxu0 0
    %3413 = vmatpush1.bf16.msra.mxu0 %v3147
    %3414 = vmatprep.subr.bf16.mxu0 0
    %3415 = vmatpush1.bf16.msra.mxu0 %v3148
    %3416 = vmatprep.subr.bf16.mxu0 0
    %3417 = vmatpush1.bf16.msra.mxu0 %v3149
    %3418 = vmatprep.subr.bf16.mxu0 0
    %3419 = vmatpush1.bf16.msra.mxu0 %v3150
    %3420 = vmatprep.subr.bf16.mxu0 0
    %3421 = vmatpush1.bf16.msra.mxu0 %v3151
    %3422 = vmatprep.subr.bf16.mxu0 0
    %3423 = vmatpush1.bf16.msra.mxu0 %v3152
    %3424 = vmatprep.subr.bf16.mxu0 0
    %3425 = vmatpush1.bf16.msra.mxu0 %v3153
    %3426 = vmatprep.mubr.bf16.mxu0 %v2348
    %3427 = vmatmul.mubr.bf16.gmra.mrb[0].mxu0 %v2347
    %v3428 = vpop.f32.mrb[0].mxu0
    %v3429 = vadd.f32 %v2624, %v3428
    %v3430 = vpop.f32.mrb[0].mxu0
    %v3431 = vpop.f32.mrb[0].mxu0
    %v3432 = vadd.f32 %v2624, %v3431
    %v3433 = vpop.f32.mrb[0].mxu0
    %3434 = vdwg.mxu0
    %3435 = vmatprep.subr.bf16.mxu0 0
    %3436 = vmatpush1.bf16.msra.mxu0 %v3154
    %3437 = vmatprep.subr.bf16.mxu0 0
    %3438 = vmatpush1.bf16.msra.mxu0 %v3155
    %3439 = vmatprep.subr.bf16.mxu0 0
    %3440 = vmatpush1.bf16.msra.mxu0 %v3156
    %3441 = vmatprep.subr.bf16.mxu0 0
    %3442 = vmatpush1.bf16.msra.mxu0 %v3157
    %3443 = vmatprep.subr.bf16.mxu0 0
    %3444 = vmatpush1.bf16.msra.mxu0 %v3158
    %3445 = vmatprep.subr.bf16.mxu0 0
    %3446 = vmatpush1.bf16.msra.mxu0 %v3159
    %3447 = vmatprep.subr.bf16.mxu0 0
    %3448 = vmatpush1.bf16.msra.mxu0 %v3160
    %3449 = vmatprep.subr.bf16.mxu0 0
    %3450 = vmatpush1.bf16.msra.mxu0 %v3161
    %3451 = vmatprep.subr.bf16.mxu0 0
    %3452 = vmatpush1.bf16.msra.mxu0 %v3162
    %3453 = vmatprep.subr.bf16.mxu0 0
    %3454 = vmatpush1.bf16.msra.mxu0 %v3163
    %3455 = vmatprep.subr.bf16.mxu0 0
    %3456 = vmatpush1.bf16.msra.mxu0 %v3164
    %3457 = vmatprep.subr.bf16.mxu0 0
    %3458 = vmatpush1.bf16.msra.mxu0 %v3165
    %3459 = vmatprep.subr.bf16.mxu0 0
    %3460 = vmatpush1.bf16.msra.mxu0 %v3166
    %3461 = vmatprep.subr.bf16.mxu0 0
    %3462 = vmatpush1.bf16.msra.mxu0 %v3167
    %3463 = vmatprep.subr.bf16.mxu0 0
    %3464 = vmatpush1.bf16.msra.mxu0 %v3168
    %3465 = vmatprep.subr.bf16.mxu0 0
    %3466 = vmatpush1.bf16.msra.mxu0 %v3169
    %3467 = vmatprep.mubr.bf16.mxu0 %v2350
    %3468 = vmatmul.mubr.bf16.gmra.mrb[0].mxu0 %v2349
    %v3469 = vpop.f32.mrb[0].mxu0
    %v3470 = vadd.f32 %v3429, %v3469
    %v3471 = vpop.f32.mrb[0].mxu0
    %v3472 = vpop.f32.mrb[0].mxu0
    %v3473 = vadd.f32 %v3432, %v3472
    %v3474 = vpop.f32.mrb[0].mxu0
    %3475 = vdwg.mxu0
    %3476 = vmatprep.subr.bf16.mxu0 0
    %3477 = vmatpush1.bf16.msra.mxu0 %v3170
    %3478 = vmatprep.subr.bf16.mxu0 0
    %3479 = vmatpush1.bf16.msra.mxu0 %v3171
    %3480 = vmatprep.subr.bf16.mxu0 0
    %3481 = vmatpush1.bf16.msra.mxu0 %v3172
    %3482 = vmatprep.subr.bf16.mxu0 0
    %3483 = vmatpush1.bf16.msra.mxu0 %v3173
    %3484 = vmatprep.subr.bf16.mxu0 0
    %3485 = vmatpush1.bf16.msra.mxu0 %v3174
    %3486 = vmatprep.subr.bf16.mxu0 0
    %3487 = vmatpush1.bf16.msra.mxu0 %v3175
    %3488 = vmatprep.subr.bf16.mxu0 0
    %3489 = vmatpush1.bf16.msra.mxu0 %v3176
    %3490 = vmatprep.subr.bf16.mxu0 0
    %3491 = vmatpush1.bf16.msra.mxu0 %v3177
    %3492 = vmatprep.subr.bf16.mxu0 0
    %3493 = vmatpush1.bf16.msra.mxu0 %v3178
    %3494 = vmatprep.subr.bf16.mxu0 0
    %3495 = vmatpush1.bf16.msra.mxu0 %v3179
    %3496 = vmatprep.subr.bf16.mxu0 0
    %3497 = vmatpush1.bf16.msra.mxu0 %v3180
    %3498 = vmatprep.subr.bf16.mxu0 0
    %3499 = vmatpush1.bf16.msra.mxu0 %v3181
    %3500 = vmatprep.subr.bf16.mxu0 0
    %3501 = vmatpush1.bf16.msra.mxu0 %v3182
    %3502 = vmatprep.subr.bf16.mxu0 0
    %3503 = vmatpush1.bf16.msra.mxu0 %v3183
    %3504 = vmatprep.subr.bf16.mxu0 0
    %3505 = vmatpush1.bf16.msra.mxu0 %v3184
    %3506 = vmatprep.subr.bf16.mxu0 0
    %3507 = vmatpush1.bf16.msra.mxu0 %v3185
    %3508 = vmatprep.mubr.bf16.mxu0 %v2352
    %3509 = vmatmul.mubr.bf16.gmra.mrb[0].mxu0 %v2351
    %v3510 = vpop.f32.mrb[0].mxu0
    %v3511 = vadd.f32 %v3470, %v3510
    %v3512 = vpop.f32.mrb[0].mxu0
    %v3513 = vpop.f32.mrb[0].mxu0
    %v3514 = vadd.f32 %v3473, %v3513
    %v3515 = vpop.f32.mrb[0].mxu0
    %3516 = vdwg.mxu0
    %3517 = vmatprep.subr.bf16.mxu0 0
    %3518 = vmatpush1.bf16.msra.mxu0 %v3186
    %3519 = vmatprep.subr.bf16.mxu0 0
    %3520 = vmatpush1.bf16.msra.mxu0 %v3187
    %3521 = vmatprep.subr.bf16.mxu0 0
    %3522 = vmatpush1.bf16.msra.mxu0 %v3188
    %3523 = vmatprep.subr.bf16.mxu0 0
    %3524 = vmatpush1.bf16.msra.mxu0 %v3189
    %3525 = vmatprep.subr.bf16.mxu0 0
    %3526 = vmatpush1.bf16.msra.mxu0 %v3190
    %3527 = vmatprep.subr.bf16.mxu0 0
    %3528 = vmatpush1.bf16.msra.mxu0 %v3191
    %3529 = vmatprep.subr.bf16.mxu0 0
    %3530 = vmatpush1.bf16.msra.mxu0 %v3192
    %3531 = vmatprep.subr.bf16.mxu0 0
    %3532 = vmatpush1.bf16.msra.mxu0 %v3193
    %3533 = vmatprep.subr.bf16.mxu0 0
    %3534 = vmatpush1.bf16.msra.mxu0 %v3194
    %3535 = vmatprep.subr.bf16.mxu0 0
    %3536 = vmatpush1.bf16.msra.mxu0 %v3195
    %3537 = vmatprep.subr.bf16.mxu0 0
    %3538 = vmatpush1.bf16.msra.mxu0 %v3196
    %3539 = vmatprep.subr.bf16.mxu0 0
    %3540 = vmatpush1.bf16.msra.mxu0 %v3197
    %3541 = vmatprep.subr.bf16.mxu0 0
    %3542 = vmatpush1.bf16.msra.mxu0 %v3198
    %3543 = vmatprep.subr.bf16.mxu0 0
    %3544 = vmatpush1.bf16.msra.mxu0 %v3199
    %3545 = vmatprep.subr.bf16.mxu0 0
    %3546 = vmatpush1.bf16.msra.mxu0 %v3200
    %3547 = vmatprep.subr.bf16.mxu0 0
    %3548 = vmatpush1.bf16.msra.mxu0 %v3201
    %3549 = vmatprep.mubr.bf16.mxu0 %v2354
    %3550 = vmatmul.mubr.bf16.gmra.mrb[0].mxu0 %v2353
    %v3551 = vpop.f32.mrb[0].mxu0
    %v3552 = vadd.f32 %v3511, %v3551
    %v3553 = vpop.f32.mrb[0].mxu0
    %v3554 = vpop.f32.mrb[0].mxu0
    %v3555 = vadd.f32 %v3514, %v3554
    %v3556 = vpop.f32.mrb[0].mxu0
    %3557 = vdwg.mxu0
    %3558 = vmatprep.subr.bf16.mxu0 0
    %3559 = vmatpush1.bf16.msra.mxu0 %v3202
    %3560 = vmatprep.subr.bf16.mxu0 0
    %3561 = vmatpush1.bf16.msra.mxu0 %v3203
    %3562 = vmatprep.subr.bf16.mxu0 0
    %3563 = vmatpush1.bf16.msra.mxu0 %v3204
    %3564 = vmatprep.subr.bf16.mxu0 0
    %3565 = vmatpush1.bf16.msra.mxu0 %v3205
    %3566 = vmatprep.subr.bf16.mxu0 0
    %3567 = vmatpush1.bf16.msra.mxu0 %v3206
    %3568 = vmatprep.subr.bf16.mxu0 0
    %3569 = vmatpush1.bf16.msra.mxu0 %v3207
    %3570 = vmatprep.subr.bf16.mxu0 0
    %3571 = vmatpush1.bf16.msra.mxu0 %v3208
    %3572 = vmatprep.subr.bf16.mxu0 0
    %3573 = vmatpush1.bf16.msra.mxu0 %v3209
    %3574 = vmatprep.subr.bf16.mxu0 0
    %3575 = vmatpush1.bf16.msra.mxu0 %v3210
    %3576 = vmatprep.subr.bf16.mxu0 0
    %3577 = vmatpush1.bf16.msra.mxu0 %v3211
    %3578 = vmatprep.subr.bf16.mxu0 0
    %3579 = vmatpush1.bf16.msra.mxu0 %v3212
    %3580 = vmatprep.subr.bf16.mxu0 0
    %3581 = vmatpush1.bf16.msra.mxu0 %v3213
    %3582 = vmatprep.subr.bf16.mxu0 0
    %3583 = vmatpush1.bf16.msra.mxu0 %v3214
    %3584 = vmatprep.subr.bf16.mxu0 0
    %3585 = vmatpush1.bf16.msra.mxu0 %v3215
    %3586 = vmatprep.subr.bf16.mxu0 0
    %3587 = vmatpush1.bf16.msra.mxu0 %v3216
    %3588 = vmatprep.subr.bf16.mxu0 0
    %3589 = vmatpush1.bf16.msra.mxu0 %v3217
    %3590 = vmatprep.mubr.bf16.mxu0 %v2356
    %3591 = vmatmul.mubr.bf16.gmra.mrb[0].mxu0 %v2355
    %v3592 = vpop.f32.mrb[0].mxu0
    %v3593 = vadd.f32 %v3552, %v3592
    %v3594 = vpop.f32.mrb[0].mxu0
    %v3595 = vpop.f32.mrb[0].mxu0
    %v3596 = vadd.f32 %v3555, %v3595
    %v3597 = vpop.f32.mrb[0].mxu0
    %3598 = vdwg.mxu0
    %3599 = vmatprep.subr.bf16.mxu0 0
    %3600 = vmatpush1.bf16.msra.mxu0 %v3218
    %3601 = vmatprep.subr.bf16.mxu0 0
    %3602 = vmatpush1.bf16.msra.mxu0 %v3219
    %3603 = vmatprep.subr.bf16.mxu0 0
    %3604 = vmatpush1.bf16.msra.mxu0 %v3220
    %3605 = vmatprep.subr.bf16.mxu0 0
    %3606 = vmatpush1.bf16.msra.mxu0 %v3221
    %3607 = vmatprep.subr.bf16.mxu0 0
    %3608 = vmatpush1.bf16.msra.mxu0 %v3222
    %3609 = vmatprep.subr.bf16.mxu0 0
    %3610 = vmatpush1.bf16.msra.mxu0 %v3223
    %3611 = vmatprep.subr.bf16.mxu0 0
    %3612 = vmatpush1.bf16.msra.mxu0 %v3224
    %3613 = vmatprep.subr.bf16.mxu0 0
    %3614 = vmatpush1.bf16.msra.mxu0 %v3225
    %3615 = vmatprep.subr.bf16.mxu0 0
    %3616 = vmatpush1.bf16.msra.mxu0 %v3226
    %3617 = vmatprep.subr.bf16.mxu0 0
    %3618 = vmatpush1.bf16.msra.mxu0 %v3227
    %3619 = vmatprep.subr.bf16.mxu0 0
    %3620 = vmatpush1.bf16.msra.mxu0 %v3228
    %3621 = vmatprep.subr.bf16.mxu0 0
    %3622 = vmatpush1.bf16.msra.mxu0 %v3229
    %3623 = vmatprep.subr.bf16.mxu0 0
    %3624 = vmatpush1.bf16.msra.mxu0 %v3230
    %3625 = vmatprep.subr.bf16.mxu0 0
    %3626 = vmatpush1.bf16.msra.mxu0 %v3231
    %3627 = vmatprep.subr.bf16.mxu0 0
    %3628 = vmatpush1.bf16.msra.mxu0 %v3232
    %3629 = vmatprep.subr.bf16.mxu0 0
    %3630 = vmatpush1.bf16.msra.mxu0 %v3233
    %3631 = vmatprep.mubr.bf16.mxu0 %v2358
    %3632 = vmatmul.mubr.bf16.gmra.mrb[0].mxu0 %v2357
    %v3633 = vpop.f32.mrb[0].mxu0
    %v3634 = vadd.f32 %v3593, %v3633
    %v3635 = vpop.f32.mrb[0].mxu0
    %v3636 = vpop.f32.mrb[0].mxu0
    %v3637 = vadd.f32 %v3596, %v3636
    %v3638 = vpop.f32.mrb[0].mxu0
    %3639 = vdwg.mxu0
    %3640 = vmatprep.subr.bf16.mxu0 0
    %3641 = vmatpush1.bf16.msra.mxu0 %v3234
    %3642 = vmatprep.subr.bf16.mxu0 0
    %3643 = vmatpush1.bf16.msra.mxu0 %v3235
    %3644 = vmatprep.subr.bf16.mxu0 0
    %3645 = vmatpush1.bf16.msra.mxu0 %v3236
    %3646 = vmatprep.subr.bf16.mxu0 0
    %3647 = vmatpush1.bf16.msra.mxu0 %v3237
    %3648 = vmatprep.subr.bf16.mxu0 0
    %3649 = vmatpush1.bf16.msra.mxu0 %v3238
    %3650 = vmatprep.subr.bf16.mxu0 0
    %3651 = vmatpush1.bf16.msra.mxu0 %v3239
    %3652 = vmatprep.subr.bf16.mxu0 0
    %3653 = vmatpush1.bf16.msra.mxu0 %v3240
    %3654 = vmatprep.subr.bf16.mxu0 0
    %3655 = vmatpush1.bf16.msra.mxu0 %v3241
    %3656 = vmatprep.subr.bf16.mxu0 0
    %3657 = vmatpush1.bf16.msra.mxu0 %v3242
    %3658 = vmatprep.subr.bf16.mxu0 0
    %3659 = vmatpush1.bf16.msra.mxu0 %v3243
    %3660 = vmatprep.subr.bf16.mxu0 0
    %3661 = vmatpush1.bf16.msra.mxu0 %v3244
    %3662 = vmatprep.subr.bf16.mxu0 0
    %3663 = vmatpush1.bf16.msra.mxu0 %v3245
    %3664 = vmatprep.subr.bf16.mxu0 0
    %3665 = vmatpush1.bf16.msra.mxu0 %v3246
    %3666 = vmatprep.subr.bf16.mxu0 0
    %3667 = vmatpush1.bf16.msra.mxu0 %v3247
    %3668 = vmatprep.subr.bf16.mxu0 0
    %3669 = vmatpush1.bf16.msra.mxu0 %v3248
    %3670 = vmatprep.subr.bf16.mxu0 0
    %3671 = vmatpush1.bf16.msra.mxu0 %v3249
    %3672 = vmatprep.mubr.bf16.mxu0 %v2360
    %3673 = vmatmul.mubr.bf16.gmra.mrb[0].mxu0 %v2359
    %v3674 = vpop.f32.mrb[0].mxu0
    %v3675 = vadd.f32 %v3634, %v3674
    %v3676 = vpop.f32.mrb[0].mxu0
    %v3677 = vpop.f32.mrb[0].mxu0
    %v3678 = vadd.f32 %v3637, %v3677
    %v3679 = vpop.f32.mrb[0].mxu0
    %3680 = vdwg.mxu0
    %3681 = vmatprep.subr.bf16.mxu0 0
    %3682 = vmatpush1.bf16.msra.mxu0 %v3250
    %3683 = vmatprep.subr.bf16.mxu0 0
    %3684 = vmatpush1.bf16.msra.mxu0 %v3251
    %3685 = vmatprep.subr.bf16.mxu0 0
    %3686 = vmatpush1.bf16.msra.mxu0 %v3252
    %3687 = vmatprep.subr.bf16.mxu0 0
    %3688 = vmatpush1.bf16.msra.mxu0 %v3253
    %3689 = vmatprep.subr.bf16.mxu0 0
    %3690 = vmatpush1.bf16.msra.mxu0 %v3254
    %3691 = vmatprep.subr.bf16.mxu0 0
    %3692 = vmatpush1.bf16.msra.mxu0 %v3255
    %3693 = vmatprep.subr.bf16.mxu0 0
    %3694 = vmatpush1.bf16.msra.mxu0 %v3256
    %3695 = vmatprep.subr.bf16.mxu0 0
    %3696 = vmatpush1.bf16.msra.mxu0 %v3257
    %3697 = vmatprep.subr.bf16.mxu0 0
    %3698 = vmatpush1.bf16.msra.mxu0 %v3258
    %3699 = vmatprep.subr.bf16.mxu0 0
    %3700 = vmatpush1.bf16.msra.mxu0 %v3259
    %3701 = vmatprep.subr.bf16.mxu0 0
    %3702 = vmatpush1.bf16.msra.mxu0 %v3260
    %3703 = vmatprep.subr.bf16.mxu0 0
    %3704 = vmatpush1.bf16.msra.mxu0 %v3261
    %3705 = vmatprep.subr.bf16.mxu0 0
    %3706 = vmatpush1.bf16.msra.mxu0 %v3262
    %3707 = vmatprep.subr.bf16.mxu0 0
    %3708 = vmatpush1.bf16.msra.mxu0 %v3263
    %3709 = vmatprep.subr.bf16.mxu0 0
    %3710 = vmatpush1.bf16.msra.mxu0 %v3264
    %3711 = vmatprep.subr.bf16.mxu0 0
    %3712 = vmatpush1.bf16.msra.mxu0 %v3265
    %3713 = vmatprep.mubr.bf16.mxu0 %v2362
    %3714 = vmatmul.mubr.bf16.gmra.mrb[0].mxu0 %v2361
    %v3715 = vpop.f32.mrb[0].mxu0
    %v3716 = vadd.f32 %v3675, %v3715
    %v3717 = vpop.f32.mrb[0].mxu0
    %v3718 = vpop.f32.mrb[0].mxu0
    %v3719 = vadd.f32 %v3678, %v3718
    %v3720 = vpop.f32.mrb[0].mxu0
    %3721 = vdwg.mxu0
    %v3722 = vadd.f32 %v1689, %v3716
    %v3723 = vadd.f32 %v1690, %v3719
    %v3724 = vld [vmem:[%s13] sm:$0x1]
    %v3725 = vld [vmem:[%s14] sm:$0x1]
    %v3726 = vsel %vm172, %v3722, 0.0
    %3727 = vadd.xlane.f32.xlu0 %v3726
    %v3728 = vpop.xlane.xlu0 %3727
    %v3729 = vsel %vm172, %v3723, 0.0
    %3730 = vadd.xlane.f32.xlu0 %v3729
    %v3731 = vpop.xlane.xlu0 %3730
    %v3732 = vmul.f32 %v3728, %v1654
    %v3733 = vmul.f32 %v3731, %v1654
    %v3734 = vsub.f32 %v3722, %v3732
    %v3735 = vsub.f32 %v3723, %v3733
    %v3736 = vmul.f32 %v3734, %v3734
    %v3737 = vmul.f32 %v3735, %v3735
    %v3738 = vsel %vm172, %v3736, 0.0
    %3739 = vadd.xlane.f32.xlu0 %v3738
    %v3740 = vpop.xlane.xlu0 %3739
    %v3741 = vsel %vm172, %v3737, 0.0
    %3742 = vadd.xlane.f32.xlu0 %v3741
    %v3743 = vpop.xlane.xlu0 %3742
    %v3744 = vmul.f32 %v3740, %v1654
    %v3745 = vmul.f32 %v3743, %v1654
    %v3746 = vadd.f32 %v3744, 1e-05
    %v3747 = vadd.f32 %v3745, 1e-05
    %v3748 = vrsqrt.pop %v3746
    %v3749 = vrsqrt.pop %v3747
    %v3750 = vmul.f32 %v3734, %v3748
    %v3751 = vmul.f32 %v3735, %v3749
    %v3753 = vlaneseq
    %v3754 = vshrl.u32 %v3753, 7
    %v3755 = vsub.s32 0, %v3754
    %v3756 = vrot.slane %v3724, %v3755
    %v3758 = vmul.f32 %v3750, %v3756
    %v3759 = vmul.f32 %v3751, %v3756
    %v3761 = vlaneseq
    %v3762 = vshrl.u32 %v3761, 7
    %v3763 = vsub.s32 0, %v3762
    %v3764 = vrot.slane %v3725, %v3763
    %v3766 = vadd.f32 %v3758, %v3764
    %v3767 = vadd.f32 %v3759, %v3764
    %v3768 = vpack.c.bf16 %v3767, %v3766
    %s3769 = scalar_lea.vmem %s3, 16
    %v3770 = vld [vmem:[%s3769] sm:$0xf]
    %v3771 = vld [vmem:[%s3769 + $0x4] sm:$0xf]
    %v3772 = vld [vmem:[%s3769 + $0x8] sm:$0xf]
    %v3773 = vld [vmem:[%s3769 + $0xc] sm:$0xf]
    %s3774 = scalar_lea.vmem %s4, 1
    %v3775 = vld [vmem:[%s3774] sm:$0x1]
    %v3777 = vlaneseq
    %v3778 = vshrl.u32 %v3777, 7
    %v3779 = vsub.s32 0, %v3778
    %v3780 = vrot.slane %v3775, %v3779
    %v3786 = vunpack.c.l.b16 %v3770
    %v3787 = vunpack.c.l.b16 %v3771
    %v3788 = vunpack.c.l.b16 %v3772
    %v3789 = vunpack.c.l.b16 %v3773
    %v3790 = vpack.c.b16 %v3787, %v3786
    %v3791 = vpack.c.b16 %v3789, %v3788
    %v3795 = vsel %vm172, %v3768, 0
    %3797 = vmatprep.subr.bf16.mxu0 0
    %3798 = vmatpush1.bf16.msra.mxu0 %v3790
    %3799 = vmatprep.subr.bf16.mxu0 0
    %3800 = vmatpush1.bf16.msra.mxu0 %v3791
    %3801 = vmatprep.subr.bf16.mxu0 0
    %3802 = vmatpush1.bf16.msra.mxu0 0
    %3803 = vmatprep.subr.bf16.mxu0 0
    %3804 = vmatpush1.bf16.msra.mxu0 0
    %3805 = vmatprep.subr.bf16.mxu0 0
    %3806 = vmatpush1.bf16.msra.mxu0 0
    %3807 = vmatprep.subr.bf16.mxu0 0
    %3808 = vmatpush1.bf16.msra.mxu0 0
    %3809 = vmatprep.subr.bf16.mxu0 0
    %3810 = vmatpush1.bf16.msra.mxu0 0
    %3811 = vmatprep.subr.bf16.mxu0 0
    %3812 = vmatpush1.bf16.msra.mxu0 0
    %3813 = vmatprep.subr.bf16.mxu0 0
    %3814 = vmatpush1.bf16.msra.mxu0 0
    %3815 = vmatprep.subr.bf16.mxu0 0
    %3816 = vmatpush1.bf16.msra.mxu0 0
    %3817 = vmatprep.subr.bf16.mxu0 0
    %3818 = vmatpush1.bf16.msra.mxu0 0
    %3819 = vmatprep.subr.bf16.mxu0 0
    %3820 = vmatpush1.bf16.msra.mxu0 0
    %3821 = vmatprep.subr.bf16.mxu0 0
    %3822 = vmatpush1.bf16.msra.mxu0 0
    %3823 = vmatprep.subr.bf16.mxu0 0
    %3824 = vmatpush1.bf16.msra.mxu0 0
    %3825 = vmatprep.subr.bf16.mxu0 0
    %3826 = vmatpush1.bf16.msra.mxu0 0
    %3827 = vmatprep.subr.bf16.mxu0 0
    %3828 = vmatpush1.bf16.msra.mxu0 0
    %3829 = vmatprep.mubr.bf16.mxu0 0
    %3830 = vmatmul.mubr.bf16.gmra.mrb[0].mxu0 %v3795
    %v3831 = vpop.f32.mrb[0].mxu0
    %v3832 = vadd.f32 %v3780, %v3831
    %v3833 = vpop.f32.mrb[0].mxu0
    %v3834 = vpop.f32.mrb[0].mxu0
    %v3835 = vadd.f32 %v3780, %v3834
    %v3836 = vpop.f32.mrb[0].mxu0
    %3837 = vdwg.mxu0
    %3840 = vrot.lane.b32.xlu0 %v3832, 120
    %v3841 = vpop.permute.xlu0 %3840
    %3842 = vrot.lane.b32.xlu0 %v3835, 120
    %v3843 = vpop.permute.xlu0 %3842
    %3844 = vrot.lane.b32.xlu0 %v3832, 112
    %v3845 = vpop.permute.xlu0 %3844
    %3846 = vrot.lane.b32.xlu0 %v3835, 112
    %v3847 = vpop.permute.xlu0 %3846
    %3848 = vrot.lane.b32.xlu0 %v3832, 104
    %v3849 = vpop.permute.xlu0 %3848
    %3850 = vrot.lane.b32.xlu0 %v3835, 104
    %v3851 = vpop.permute.xlu0 %3850
    %3852 = vrot.lane.b32.xlu0 %v3832, 96
    %v3853 = vpop.permute.xlu0 %3852
    %v3854 = vsel %vm233, %v3832, 0
    %v3856 = vsel %vm233, %v3853, 0
    %3858 = vmatprep.subr.mxu0 0.0
    %3859 = vmatpush1.xpose.msra.mxu0 %v3856
    %3860 = vmatprep.subr.mxu0 0.0
    %3861 = vmatpush1.xpose.msra.mxu0 0.0
    %3862 = vmatprep.subr.mxu0 0.0
    %3863 = vmatpush1.xpose.msra.mxu0 0.0
    %3864 = vmatprep.subr.mxu0 0.0
    %3865 = vmatpush1.xpose.msra.mxu0 0.0
    %3866 = vmatprep.subr.mxu0 0.0
    %3867 = vmatpush1.xpose.msra.mxu0 0.0
    %3868 = vmatprep.subr.mxu0 0.0
    %3869 = vmatpush1.xpose.msra.mxu0 0.0
    %3870 = vmatprep.subr.mxu0 0.0
    %3871 = vmatpush1.xpose.msra.mxu0 0.0
    %3872 = vmatprep.subr.mxu0 0.0
    %3873 = vmatpush1.xpose.msra.mxu0 0.0
    %3874 = vmatprep.subr.mxu0 0.0
    %3875 = vmatpush1.xpose.msra.mxu0 0.0
    %3876 = vmatprep.subr.mxu0 0.0
    %3877 = vmatpush1.xpose.msra.mxu0 0.0
    %3878 = vmatprep.subr.mxu0 0.0
    %3879 = vmatpush1.xpose.msra.mxu0 0.0
    %3880 = vmatprep.subr.mxu0 0.0
    %3881 = vmatpush1.xpose.msra.mxu0 0.0
    %3882 = vmatprep.subr.mxu0 0.0
    %3883 = vmatpush1.xpose.msra.mxu0 0.0
    %3884 = vmatprep.subr.mxu0 0.0
    %3885 = vmatpush1.xpose.msra.mxu0 0.0
    %3886 = vmatprep.subr.mxu0 0.0
    %3887 = vmatpush1.xpose.msra.mxu0 0.0
    %3888 = vmatprep.subr.mxu0 0.0
    %3889 = vmatpush1.xpose.msra.mxu0 0.0
    %3890 = vmatprep.subr.mxu0 0.0
    %3891 = vmatpush1.xpose.msra.mxu0 0.0
    %3892 = vmatprep.subr.mxu0 0.0
    %3893 = vmatpush1.xpose.msra.mxu0 0.0
    %3894 = vmatprep.subr.mxu0 0.0
    %3895 = vmatpush1.xpose.msra.mxu0 0.0
    %3896 = vmatprep.subr.mxu0 0.0
    %3897 = vmatpush1.xpose.msra.mxu0 0.0
    %3898 = vmatprep.subr.mxu0 0.0
    %3899 = vmatpush1.xpose.msra.mxu0 0.0
    %3900 = vmatprep.subr.mxu0 0.0
    %3901 = vmatpush1.xpose.msra.mxu0 0.0
    %3902 = vmatprep.subr.mxu0 0.0
    %3903 = vmatpush1.xpose.msra.mxu0 0.0
    %3904 = vmatprep.subr.mxu0 0.0
    %3905 = vmatpush1.xpose.msra.mxu0 0.0
    %3906 = vmatprep.subr.mxu0 0.0
    %3907 = vmatpush1.xpose.msra.mxu0 0.0
    %3908 = vmatprep.subr.mxu0 0.0
    %3909 = vmatpush1.xpose.msra.mxu0 0.0
    %3910 = vmatprep.subr.mxu0 0.0
    %3911 = vmatpush1.xpose.msra.mxu0 0.0
    %3912 = vmatprep.subr.mxu0 0.0
    %3913 = vmatpush1.xpose.msra.mxu0 0.0
    %3914 = vmatprep.subr.mxu0 0.0
    %3915 = vmatpush1.xpose.msra.mxu0 0.0
    %3916 = vmatprep.subr.mxu0 0.0
    %3917 = vmatpush1.xpose.msra.mxu0 0.0
    %3918 = vmatprep.subr.mxu0 0.0
    %3919 = vmatpush1.xpose.msra.mxu0 0.0
    %3920 = vmatprep.subr.mxu0 0.0
    %3921 = vmatpush1.xpose.msra.mxu0 0.0
    %3922 = vmatprep.mubr.f32.mxu0 0.0
    %3923 = vmatmul.mubr.f32.gmra.mrb[0].mxu0 %v3854
    %v3924 = vpop.f32.mrb[0].mxu0
    %v3925 = vadd.f32 0.0, %v3924
    %v3926 = vpop.f32.mrb[0].mxu0
    %3927 = vdwg.mxu0
    %3928 = vrot.lane.b32.xlu0 %v3835, 96
    %v3929 = vpop.permute.xlu0 %3928
    %v3930 = vsel %vm233, %v3835, 0
    %v3932 = vsel %vm233, %v3929, 0
    %3934 = vmatprep.subr.mxu0 0.0
    %3935 = vmatpush1.xpose.msra.mxu0 %v3932
    %3936 = vmatprep.subr.mxu0 0.0
    %3937 = vmatpush1.xpose.msra.mxu0 0.0
    %3938 = vmatprep.subr.mxu0 0.0
    %3939 = vmatpush1.xpose.msra.mxu0 0.0
    %3940 = vmatprep.subr.mxu0 0.0
    %3941 = vmatpush1.xpose.msra.mxu0 0.0
    %3942 = vmatprep.subr.mxu0 0.0
    %3943 = vmatpush1.xpose.msra.mxu0 0.0
    %3944 = vmatprep.subr.mxu0 0.0
    %3945 = vmatpush1.xpose.msra.mxu0 0.0
    %3946 = vmatprep.subr.mxu0 0.0
    %3947 = vmatpush1.xpose.msra.mxu0 0.0
    %3948 = vmatprep.subr.mxu0 0.0
    %3949 = vmatpush1.xpose.msra.mxu0 0.0
    %3950 = vmatprep.subr.mxu0 0.0
    %3951 = vmatpush1.xpose.msra.mxu0 0.0
    %3952 = vmatprep.subr.mxu0 0.0
    %3953 = vmatpush1.xpose.msra.mxu0 0.0
    %3954 = vmatprep.subr.mxu0 0.0
    %3955 = vmatpush1.xpose.msra.mxu0 0.0
    %3956 = vmatprep.subr.mxu0 0.0
    %3957 = vmatpush1.xpose.msra.mxu0 0.0
    %3958 = vmatprep.subr.mxu0 0.0
    %3959 = vmatpush1.xpose.msra.mxu0 0.0
    %3960 = vmatprep.subr.mxu0 0.0
    %3961 = vmatpush1.xpose.msra.mxu0 0.0
    %3962 = vmatprep.subr.mxu0 0.0
    %3963 = vmatpush1.xpose.msra.mxu0 0.0
    %3964 = vmatprep.subr.mxu0 0.0
    %3965 = vmatpush1.xpose.msra.mxu0 0.0
    %3966 = vmatprep.subr.mxu0 0.0
    %3967 = vmatpush1.xpose.msra.mxu0 0.0
    %3968 = vmatprep.subr.mxu0 0.0
    %3969 = vmatpush1.xpose.msra.mxu0 0.0
    %3970 = vmatprep.subr.mxu0 0.0
    %3971 = vmatpush1.xpose.msra.mxu0 0.0
    %3972 = vmatprep.subr.mxu0 0.0
    %3973 = vmatpush1.xpose.msra.mxu0 0.0
    %3974 = vmatprep.subr.mxu0 0.0
    %3975 = vmatpush1.xpose.msra.mxu0 0.0
    %3976 = vmatprep.subr.mxu0 0.0
    %3977 = vmatpush1.xpose.msra.mxu0 0.0
    %3978 = vmatprep.subr.mxu0 0.0
    %3979 = vmatpush1.xpose.msra.mxu0 0.0
    %3980 = vmatprep.subr.mxu0 0.0
    %3981 = vmatpush1.xpose.msra.mxu0 0.0
    %3982 = vmatprep.subr.mxu0 0.0
    %3983 = vmatpush1.xpose.msra.mxu0 0.0
    %3984 = vmatprep.subr.mxu0 0.0
    %3985 = vmatpush1.xpose.msra.mxu0 0.0
    %3986 = vmatprep.subr.mxu0 0.0
    %3987 = vmatpush1.xpose.msra.mxu0 0.0
    %3988 = vmatprep.subr.mxu0 0.0
    %3989 = vmatpush1.xpose.msra.mxu0 0.0
    %3990 = vmatprep.subr.mxu0 0.0
    %3991 = vmatpush1.xpose.msra.mxu0 0.0
    %3992 = vmatprep.subr.mxu0 0.0
    %3993 = vmatpush1.xpose.msra.mxu0 0.0
    %3994 = vmatprep.subr.mxu0 0.0
    %3995 = vmatpush1.xpose.msra.mxu0 0.0
    %3996 = vmatprep.subr.mxu0 0.0
    %3997 = vmatpush1.xpose.msra.mxu0 0.0
    %3998 = vmatprep.mubr.f32.mxu0 0.0
    %3999 = vmatmul.mubr.f32.gmra.mrb[0].mxu0 %v3930
    %v4000 = vpop.f32.mrb[0].mxu0
    %v4001 = vadd.f32 0.0, %v4000
    %v4002 = vpop.f32.mrb[0].mxu0
    %4003 = vdwg.mxu0
    %4004 = vrot.lane.b32.xlu0 %v3841, 96
    %v4005 = vpop.permute.xlu0 %4004
    %v4006 = vsel %vm233, %v3841, 0
    %v4008 = vsel %vm233, %v4005, 0
    %4010 = vmatprep.subr.mxu0 0.0
    %4011 = vmatpush1.xpose.msra.mxu0 %v4008
    %4012 = vmatprep.subr.mxu0 0.0
    %4013 = vmatpush1.xpose.msra.mxu0 0.0
    %4014 = vmatprep.subr.mxu0 0.0
    %4015 = vmatpush1.xpose.msra.mxu0 0.0
    %4016 = vmatprep.subr.mxu0 0.0
    %4017 = vmatpush1.xpose.msra.mxu0 0.0
    %4018 = vmatprep.subr.mxu0 0.0
    %4019 = vmatpush1.xpose.msra.mxu0 0.0
    %4020 = vmatprep.subr.mxu0 0.0
    %4021 = vmatpush1.xpose.msra.mxu0 0.0
    %4022 = vmatprep.subr.mxu0 0.0
    %4023 = vmatpush1.xpose.msra.mxu0 0.0
    %4024 = vmatprep.subr.mxu0 0.0
    %4025 = vmatpush1.xpose.msra.mxu0 0.0
    %4026 = vmatprep.subr.mxu0 0.0
    %4027 = vmatpush1.xpose.msra.mxu0 0.0
    %4028 = vmatprep.subr.mxu0 0.0
    %4029 = vmatpush1.xpose.msra.mxu0 0.0
    %4030 = vmatprep.subr.mxu0 0.0
    %4031 = vmatpush1.xpose.msra.mxu0 0.0
    %4032 = vmatprep.subr.mxu0 0.0
    %4033 = vmatpush1.xpose.msra.mxu0 0.0
    %4034 = vmatprep.subr.mxu0 0.0
    %4035 = vmatpush1.xpose.msra.mxu0 0.0
    %4036 = vmatprep.subr.mxu0 0.0
    %4037 = vmatpush1.xpose.msra.mxu0 0.0
    %4038 = vmatprep.subr.mxu0 0.0
    %4039 = vmatpush1.xpose.msra.mxu0 0.0
    %4040 = vmatprep.subr.mxu0 0.0
    %4041 = vmatpush1.xpose.msra.mxu0 0.0
    %4042 = vmatprep.subr.mxu0 0.0
    %4043 = vmatpush1.xpose.msra.mxu0 0.0
    %4044 = vmatprep.subr.mxu0 0.0
    %4045 = vmatpush1.xpose.msra.mxu0 0.0
    %4046 = vmatprep.subr.mxu0 0.0
    %4047 = vmatpush1.xpose.msra.mxu0 0.0
    %4048 = vmatprep.subr.mxu0 0.0
    %4049 = vmatpush1.xpose.msra.mxu0 0.0
    %4050 = vmatprep.subr.mxu0 0.0
    %4051 = vmatpush1.xpose.msra.mxu0 0.0
    %4052 = vmatprep.subr.mxu0 0.0
    %4053 = vmatpush1.xpose.msra.mxu0 0.0
    %4054 = vmatprep.subr.mxu0 0.0
    %4055 = vmatpush1.xpose.msra.mxu0 0.0
    %4056 = vmatprep.subr.mxu0 0.0
    %4057 = vmatpush1.xpose.msra.mxu0 0.0
    %4058 = vmatprep.subr.mxu0 0.0
    %4059 = vmatpush1.xpose.msra.mxu0 0.0
    %4060 = vmatprep.subr.mxu0 0.0
    %4061 = vmatpush1.xpose.msra.mxu0 0.0
    %4062 = vmatprep.subr.mxu0 0.0
    %4063 = vmatpush1.xpose.msra.mxu0 0.0
    %4064 = vmatprep.subr.mxu0 0.0
    %4065 = vmatpush1.xpose.msra.mxu0 0.0
    %4066 = vmatprep.subr.mxu0 0.0
    %4067 = vmatpush1.xpose.msra.mxu0 0.0
    %4068 = vmatprep.subr.mxu0 0.0
    %4069 = vmatpush1.xpose.msra.mxu0 0.0
    %4070 = vmatprep.subr.mxu0 0.0
    %4071 = vmatpush1.xpose.msra.mxu0 0.0
    %4072 = vmatprep.subr.mxu0 0.0
    %4073 = vmatpush1.xpose.msra.mxu0 0.0
    %4074 = vmatprep.mubr.f32.mxu0 0.0
    %4075 = vmatmul.mubr.f32.gmra.mrb[0].mxu0 %v4006
    %v4076 = vpop.f32.mrb[0].mxu0
    %v4077 = vadd.f32 0.0, %v4076
    %v4078 = vpop.f32.mrb[0].mxu0
    %4079 = vdwg.mxu0
    %4080 = vrot.lane.b32.xlu0 %v3843, 96
    %v4081 = vpop.permute.xlu0 %4080
    %v4082 = vsel %vm233, %v3843, 0
    %v4084 = vsel %vm233, %v4081, 0
    %4086 = vmatprep.subr.mxu0 0.0
    %4087 = vmatpush1.xpose.msra.mxu0 %v4084
    %4088 = vmatprep.subr.mxu0 0.0
    %4089 = vmatpush1.xpose.msra.mxu0 0.0
    %4090 = vmatprep.subr.mxu0 0.0
    %4091 = vmatpush1.xpose.msra.mxu0 0.0
    %4092 = vmatprep.subr.mxu0 0.0
    %4093 = vmatpush1.xpose.msra.mxu0 0.0
    %4094 = vmatprep.subr.mxu0 0.0
    %4095 = vmatpush1.xpose.msra.mxu0 0.0
    %4096 = vmatprep.subr.mxu0 0.0
    %4097 = vmatpush1.xpose.msra.mxu0 0.0
    %4098 = vmatprep.subr.mxu0 0.0
    %4099 = vmatpush1.xpose.msra.mxu0 0.0
    %4100 = vmatprep.subr.mxu0 0.0
    %4101 = vmatpush1.xpose.msra.mxu0 0.0
    %4102 = vmatprep.subr.mxu0 0.0
    %4103 = vmatpush1.xpose.msra.mxu0 0.0
    %4104 = vmatprep.subr.mxu0 0.0
    %4105 = vmatpush1.xpose.msra.mxu0 0.0
    %4106 = vmatprep.subr.mxu0 0.0
    %4107 = vmatpush1.xpose.msra.mxu0 0.0
    %4108 = vmatprep.subr.mxu0 0.0
    %4109 = vmatpush1.xpose.msra.mxu0 0.0
    %4110 = vmatprep.subr.mxu0 0.0
    %4111 = vmatpush1.xpose.msra.mxu0 0.0
    %4112 = vmatprep.subr.mxu0 0.0
    %4113 = vmatpush1.xpose.msra.mxu0 0.0
    %4114 = vmatprep.subr.mxu0 0.0
    %4115 = vmatpush1.xpose.msra.mxu0 0.0
    %4116 = vmatprep.subr.mxu0 0.0
    %4117 = vmatpush1.xpose.msra.mxu0 0.0
    %4118 = vmatprep.subr.mxu0 0.0
    %4119 = vmatpush1.xpose.msra.mxu0 0.0
    %4120 = vmatprep.subr.mxu0 0.0
    %4121 = vmatpush1.xpose.msra.mxu0 0.0
    %4122 = vmatprep.subr.mxu0 0.0
    %4123 = vmatpush1.xpose.msra.mxu0 0.0
    %4124 = vmatprep.subr.mxu0 0.0
    %4125 = vmatpush1.xpose.msra.mxu0 0.0
    %4126 = vmatprep.subr.mxu0 0.0
    %4127 = vmatpush1.xpose.msra.mxu0 0.0
    %4128 = vmatprep.subr.mxu0 0.0
    %4129 = vmatpush1.xpose.msra.mxu0 0.0
    %4130 = vmatprep.subr.mxu0 0.0
    %4131 = vmatpush1.xpose.msra.mxu0 0.0
    %4132 = vmatprep.subr.mxu0 0.0
    %4133 = vmatpush1.xpose.msra.mxu0 0.0
    %4134 = vmatprep.subr.mxu0 0.0
    %4135 = vmatpush1.xpose.msra.mxu0 0.0
    %4136 = vmatprep.subr.mxu0 0.0
    %4137 = vmatpush1.xpose.msra.mxu0 0.0
    %4138 = vmatprep.subr.mxu0 0.0
    %4139 = vmatpush1.xpose.msra.mxu0 0.0
    %4140 = vmatprep.subr.mxu0 0.0
    %4141 = vmatpush1.xpose.msra.mxu0 0.0
    %4142 = vmatprep.subr.mxu0 0.0
    %4143 = vmatpush1.xpose.msra.mxu0 0.0
    %4144 = vmatprep.subr.mxu0 0.0
    %4145 = vmatpush1.xpose.msra.mxu0 0.0
    %4146 = vmatprep.subr.mxu0 0.0
    %4147 = vmatpush1.xpose.msra.mxu0 0.0
    %4148 = vmatprep.subr.mxu0 0.0
    %4149 = vmatpush1.xpose.msra.mxu0 0.0
    %4150 = vmatprep.mubr.f32.mxu0 0.0
    %4151 = vmatmul.mubr.f32.gmra.mrb[0].mxu0 %v4082
    %v4152 = vpop.f32.mrb[0].mxu0
    %v4153 = vadd.f32 0.0, %v4152
    %v4154 = vpop.f32.mrb[0].mxu0
    %4155 = vdwg.mxu0
    %4156 = vrot.lane.b32.xlu0 %v3845, 96
    %v4157 = vpop.permute.xlu0 %4156
    %v4158 = vsel %vm233, %v3845, 0
    %v4160 = vsel %vm233, %v4157, 0
    %4162 = vmatprep.subr.mxu0 0.0
    %4163 = vmatpush1.xpose.msra.mxu0 %v4160
    %4164 = vmatprep.subr.mxu0 0.0
    %4165 = vmatpush1.xpose.msra.mxu0 0.0
    %4166 = vmatprep.subr.mxu0 0.0
    %4167 = vmatpush1.xpose.msra.mxu0 0.0
    %4168 = vmatprep.subr.mxu0 0.0
    %4169 = vmatpush1.xpose.msra.mxu0 0.0
    %4170 = vmatprep.subr.mxu0 0.0
    %4171 = vmatpush1.xpose.msra.mxu0 0.0
    %4172 = vmatprep.subr.mxu0 0.0
    %4173 = vmatpush1.xpose.msra.mxu0 0.0
    %4174 = vmatprep.subr.mxu0 0.0
    %4175 = vmatpush1.xpose.msra.mxu0 0.0
    %4176 = vmatprep.subr.mxu0 0.0
    %4177 = vmatpush1.xpose.msra.mxu0 0.0
    %4178 = vmatprep.subr.mxu0 0.0
    %4179 = vmatpush1.xpose.msra.mxu0 0.0
    %4180 = vmatprep.subr.mxu0 0.0
    %4181 = vmatpush1.xpose.msra.mxu0 0.0
    %4182 = vmatprep.subr.mxu0 0.0
    %4183 = vmatpush1.xpose.msra.mxu0 0.0
    %4184 = vmatprep.subr.mxu0 0.0
    %4185 = vmatpush1.xpose.msra.mxu0 0.0
    %4186 = vmatprep.subr.mxu0 0.0
    %4187 = vmatpush1.xpose.msra.mxu0 0.0
    %4188 = vmatprep.subr.mxu0 0.0
    %4189 = vmatpush1.xpose.msra.mxu0 0.0
    %4190 = vmatprep.subr.mxu0 0.0
    %4191 = vmatpush1.xpose.msra.mxu0 0.0
    %4192 = vmatprep.subr.mxu0 0.0
    %4193 = vmatpush1.xpose.msra.mxu0 0.0
    %4194 = vmatprep.subr.mxu0 0.0
    %4195 = vmatpush1.xpose.msra.mxu0 0.0
    %4196 = vmatprep.subr.mxu0 0.0
    %4197 = vmatpush1.xpose.msra.mxu0 0.0
    %4198 = vmatprep.subr.mxu0 0.0
    %4199 = vmatpush1.xpose.msra.mxu0 0.0
    %4200 = vmatprep.subr.mxu0 0.0
    %4201 = vmatpush1.xpose.msra.mxu0 0.0
    %4202 = vmatprep.subr.mxu0 0.0
    %4203 = vmatpush1.xpose.msra.mxu0 0.0
    %4204 = vmatprep.subr.mxu0 0.0
    %4205 = vmatpush1.xpose.msra.mxu0 0.0
    %4206 = vmatprep.subr.mxu0 0.0
    %4207 = vmatpush1.xpose.msra.mxu0 0.0
    %4208 = vmatprep.subr.mxu0 0.0
    %4209 = vmatpush1.xpose.msra.mxu0 0.0
    %4210 = vmatprep.subr.mxu0 0.0
    %4211 = vmatpush1.xpose.msra.mxu0 0.0
    %4212 = vmatprep.subr.mxu0 0.0
    %4213 = vmatpush1.xpose.msra.mxu0 0.0
    %4214 = vmatprep.subr.mxu0 0.0
    %4215 = vmatpush1.xpose.msra.mxu0 0.0
    %4216 = vmatprep.subr.mxu0 0.0
    %4217 = vmatpush1.xpose.msra.mxu0 0.0
    %4218 = vmatprep.subr.mxu0 0.0
    %4219 = vmatpush1.xpose.msra.mxu0 0.0
    %4220 = vmatprep.subr.mxu0 0.0
    %4221 = vmatpush1.xpose.msra.mxu0 0.0
    %4222 = vmatprep.subr.mxu0 0.0
    %4223 = vmatpush1.xpose.msra.mxu0 0.0
    %4224 = vmatprep.subr.mxu0 0.0
    %4225 = vmatpush1.xpose.msra.mxu0 0.0
    %4226 = vmatprep.mubr.f32.mxu0 0.0
    %4227 = vmatmul.mubr.f32.gmra.mrb[0].mxu0 %v4158
    %v4228 = vpop.f32.mrb[0].mxu0
    %v4229 = vadd.f32 0.0, %v4228
    %v4230 = vpop.f32.mrb[0].mxu0
    %4231 = vdwg.mxu0
    %4232 = vrot.lane.b32.xlu0 %v3847, 96
    %v4233 = vpop.permute.xlu0 %4232
    %v4234 = vsel %vm233, %v3847, 0
    %v4236 = vsel %vm233, %v4233, 0
    %4238 = vmatprep.subr.mxu0 0.0
    %4239 = vmatpush1.xpose.msra.mxu0 %v4236
    %4240 = vmatprep.subr.mxu0 0.0
    %4241 = vmatpush1.xpose.msra.mxu0 0.0
    %4242 = vmatprep.subr.mxu0 0.0
    %4243 = vmatpush1.xpose.msra.mxu0 0.0
    %4244 = vmatprep.subr.mxu0 0.0
    %4245 = vmatpush1.xpose.msra.mxu0 0.0
    %4246 = vmatprep.subr.mxu0 0.0
    %4247 = vmatpush1.xpose.msra.mxu0 0.0
    %4248 = vmatprep.subr.mxu0 0.0
    %4249 = vmatpush1.xpose.msra.mxu0 0.0
    %4250 = vmatprep.subr.mxu0 0.0
    %4251 = vmatpush1.xpose.msra.mxu0 0.0
    %4252 = vmatprep.subr.mxu0 0.0
    %4253 = vmatpush1.xpose.msra.mxu0 0.0
    %4254 = vmatprep.subr.mxu0 0.0
    %4255 = vmatpush1.xpose.msra.mxu0 0.0
    %4256 = vmatprep.subr.mxu0 0.0
    %4257 = vmatpush1.xpose.msra.mxu0 0.0
    %4258 = vmatprep.subr.mxu0 0.0
    %4259 = vmatpush1.xpose.msra.mxu0 0.0
    %4260 = vmatprep.subr.mxu0 0.0
    %4261 = vmatpush1.xpose.msra.mxu0 0.0
    %4262 = vmatprep.subr.mxu0 0.0
    %4263 = vmatpush1.xpose.msra.mxu0 0.0
    %4264 = vmatprep.subr.mxu0 0.0
    %4265 = vmatpush1.xpose.msra.mxu0 0.0
    %4266 = vmatprep.subr.mxu0 0.0
    %4267 = vmatpush1.xpose.msra.mxu0 0.0
    %4268 = vmatprep.subr.mxu0 0.0
    %4269 = vmatpush1.xpose.msra.mxu0 0.0
    %4270 = vmatprep.subr.mxu0 0.0
    %4271 = vmatpush1.xpose.msra.mxu0 0.0
    %4272 = vmatprep.subr.mxu0 0.0
    %4273 = vmatpush1.xpose.msra.mxu0 0.0
    %4274 = vmatprep.subr.mxu0 0.0
    %4275 = vmatpush1.xpose.msra.mxu0 0.0
    %4276 = vmatprep.subr.mxu0 0.0
    %4277 = vmatpush1.xpose.msra.mxu0 0.0
    %4278 = vmatprep.subr.mxu0 0.0
    %4279 = vmatpush1.xpose.msra.mxu0 0.0
    %4280 = vmatprep.subr.mxu0 0.0
    %4281 = vmatpush1.xpose.msra.mxu0 0.0
    %4282 = vmatprep.subr.mxu0 0.0
    %4283 = vmatpush1.xpose.msra.mxu0 0.0
    %4284 = vmatprep.subr.mxu0 0.0
    %4285 = vmatpush1.xpose.msra.mxu0 0.0
    %4286 = vmatprep.subr.mxu0 0.0
    %4287 = vmatpush1.xpose.msra.mxu0 0.0
    %4288 = vmatprep.subr.mxu0 0.0
    %4289 = vmatpush1.xpose.msra.mxu0 0.0
    %4290 = vmatprep.subr.mxu0 0.0
    %4291 = vmatpush1.xpose.msra.mxu0 0.0
    %4292 = vmatprep.subr.mxu0 0.0
    %4293 = vmatpush1.xpose.msra.mxu0 0.0
    %4294 = vmatprep.subr.mxu0 0.0
    %4295 = vmatpush1.xpose.msra.mxu0 0.0
    %4296 = vmatprep.subr.mxu0 0.0
    %4297 = vmatpush1.xpose.msra.mxu0 0.0
    %4298 = vmatprep.subr.mxu0 0.0
    %4299 = vmatpush1.xpose.msra.mxu0 0.0
    %4300 = vmatprep.subr.mxu0 0.0
    %4301 = vmatpush1.xpose.msra.mxu0 0.0
    %4302 = vmatprep.mubr.f32.mxu0 0.0
    %4303 = vmatmul.mubr.f32.gmra.mrb[0].mxu0 %v4234
    %v4304 = vpop.f32.mrb[0].mxu0
    %v4305 = vadd.f32 0.0, %v4304
    %v4306 = vpop.f32.mrb[0].mxu0
    %4307 = vdwg.mxu0
    %4308 = vrot.lane.b32.xlu0 %v3849, 96
    %v4309 = vpop.permute.xlu0 %4308
    %v4310 = vsel %vm233, %v3849, 0
    %v4312 = vsel %vm233, %v4309, 0
    %4314 = vmatprep.subr.mxu0 0.0
    %4315 = vmatpush1.xpose.msra.mxu0 %v4312
    %4316 = vmatprep.subr.mxu0 0.0
    %4317 = vmatpush1.xpose.msra.mxu0 0.0
    %4318 = vmatprep.subr.mxu0 0.0
    %4319 = vmatpush1.xpose.msra.mxu0 0.0
    %4320 = vmatprep.subr.mxu0 0.0
    %4321 = vmatpush1.xpose.msra.mxu0 0.0
    %4322 = vmatprep.subr.mxu0 0.0
    %4323 = vmatpush1.xpose.msra.mxu0 0.0
    %4324 = vmatprep.subr.mxu0 0.0
    %4325 = vmatpush1.xpose.msra.mxu0 0.0
    %4326 = vmatprep.subr.mxu0 0.0
    %4327 = vmatpush1.xpose.msra.mxu0 0.0
    %4328 = vmatprep.subr.mxu0 0.0
    %4329 = vmatpush1.xpose.msra.mxu0 0.0
    %4330 = vmatprep.subr.mxu0 0.0
    %4331 = vmatpush1.xpose.msra.mxu0 0.0
    %4332 = vmatprep.subr.mxu0 0.0
    %4333 = vmatpush1.xpose.msra.mxu0 0.0
    %4334 = vmatprep.subr.mxu0 0.0
    %4335 = vmatpush1.xpose.msra.mxu0 0.0
    %4336 = vmatprep.subr.mxu0 0.0
    %4337 = vmatpush1.xpose.msra.mxu0 0.0
    %4338 = vmatprep.subr.mxu0 0.0
    %4339 = vmatpush1.xpose.msra.mxu0 0.0
    %4340 = vmatprep.subr.mxu0 0.0
    %4341 = vmatpush1.xpose.msra.mxu0 0.0
    %4342 = vmatprep.subr.mxu0 0.0
    %4343 = vmatpush1.xpose.msra.mxu0 0.0
    %4344 = vmatprep.subr.mxu0 0.0
    %4345 = vmatpush1.xpose.msra.mxu0 0.0
    %4346 = vmatprep.subr.mxu0 0.0
    %4347 = vmatpush1.xpose.msra.mxu0 0.0
    %4348 = vmatprep.subr.mxu0 0.0
    %4349 = vmatpush1.xpose.msra.mxu0 0.0
    %4350 = vmatprep.subr.mxu0 0.0
    %4351 = vmatpush1.xpose.msra.mxu0 0.0
    %4352 = vmatprep.subr.mxu0 0.0
    %4353 = vmatpush1.xpose.msra.mxu0 0.0
    %4354 = vmatprep.subr.mxu0 0.0
    %4355 = vmatpush1.xpose.msra.mxu0 0.0
    %4356 = vmatprep.subr.mxu0 0.0
    %4357 = vmatpush1.xpose.msra.mxu0 0.0
    %4358 = vmatprep.subr.mxu0 0.0
    %4359 = vmatpush1.xpose.msra.mxu0 0.0
    %4360 = vmatprep.subr.mxu0 0.0
    %4361 = vmatpush1.xpose.msra.mxu0 0.0
    %4362 = vmatprep.subr.mxu0 0.0
    %4363 = vmatpush1.xpose.msra.mxu0 0.0
    %4364 = vmatprep.subr.mxu0 0.0
    %4365 = vmatpush1.xpose.msra.mxu0 0.0
    %4366 = vmatprep.subr.mxu0 0.0
    %4367 = vmatpush1.xpose.msra.mxu0 0.0
    %4368 = vmatprep.subr.mxu0 0.0
    %4369 = vmatpush1.xpose.msra.mxu0 0.0
    %4370 = vmatprep.subr.mxu0 0.0
    %4371 = vmatpush1.xpose.msra.mxu0 0.0
    %4372 = vmatprep.subr.mxu0 0.0
    %4373 = vmatpush1.xpose.msra.mxu0 0.0
    %4374 = vmatprep.subr.mxu0 0.0
    %4375 = vmatpush1.xpose.msra.mxu0 0.0
    %4376 = vmatprep.subr.mxu0 0.0
    %4377 = vmatpush1.xpose.msra.mxu0 0.0
    %4378 = vmatprep.mubr.f32.mxu0 0.0
    %4379 = vmatmul.mubr.f32.gmra.mrb[0].mxu0 %v4310
    %v4380 = vpop.f32.mrb[0].mxu0
    %v4381 = vadd.f32 0.0, %v4380
    %v4382 = vpop.f32.mrb[0].mxu0
    %4383 = vdwg.mxu0
    %4384 = vrot.lane.b32.xlu0 %v3851, 96
    %v4385 = vpop.permute.xlu0 %4384
    %v4386 = vsel %vm233, %v3851, 0
    %v4388 = vsel %vm233, %v4385, 0
    %4390 = vmatprep.subr.mxu0 0.0
    %4391 = vmatpush1.xpose.msra.mxu0 %v4388
    %4392 = vmatprep.subr.mxu0 0.0
    %4393 = vmatpush1.xpose.msra.mxu0 0.0
    %4394 = vmatprep.subr.mxu0 0.0
    %4395 = vmatpush1.xpose.msra.mxu0 0.0
    %4396 = vmatprep.subr.mxu0 0.0
    %4397 = vmatpush1.xpose.msra.mxu0 0.0
    %4398 = vmatprep.subr.mxu0 0.0
    %4399 = vmatpush1.xpose.msra.mxu0 0.0
    %4400 = vmatprep.subr.mxu0 0.0
    %4401 = vmatpush1.xpose.msra.mxu0 0.0
    %4402 = vmatprep.subr.mxu0 0.0
    %4403 = vmatpush1.xpose.msra.mxu0 0.0
    %4404 = vmatprep.subr.mxu0 0.0
    %4405 = vmatpush1.xpose.msra.mxu0 0.0
    %4406 = vmatprep.subr.mxu0 0.0
    %4407 = vmatpush1.xpose.msra.mxu0 0.0
    %4408 = vmatprep.subr.mxu0 0.0
    %4409 = vmatpush1.xpose.msra.mxu0 0.0
    %4410 = vmatprep.subr.mxu0 0.0
    %4411 = vmatpush1.xpose.msra.mxu0 0.0
    %4412 = vmatprep.subr.mxu0 0.0
    %4413 = vmatpush1.xpose.msra.mxu0 0.0
    %4414 = vmatprep.subr.mxu0 0.0
    %4415 = vmatpush1.xpose.msra.mxu0 0.0
    %4416 = vmatprep.subr.mxu0 0.0
    %4417 = vmatpush1.xpose.msra.mxu0 0.0
    %4418 = vmatprep.subr.mxu0 0.0
    %4419 = vmatpush1.xpose.msra.mxu0 0.0
    %4420 = vmatprep.subr.mxu0 0.0
    %4421 = vmatpush1.xpose.msra.mxu0 0.0
    %4422 = vmatprep.subr.mxu0 0.0
    %4423 = vmatpush1.xpose.msra.mxu0 0.0
    %4424 = vmatprep.subr.mxu0 0.0
    %4425 = vmatpush1.xpose.msra.mxu0 0.0
    %4426 = vmatprep.subr.mxu0 0.0
    %4427 = vmatpush1.xpose.msra.mxu0 0.0
    %4428 = vmatprep.subr.mxu0 0.0
    %4429 = vmatpush1.xpose.msra.mxu0 0.0
    %4430 = vmatprep.subr.mxu0 0.0
    %4431 = vmatpush1.xpose.msra.mxu0 0.0
    %4432 = vmatprep.subr.mxu0 0.0
    %4433 = vmatpush1.xpose.msra.mxu0 0.0
    %4434 = vmatprep.subr.mxu0 0.0
    %4435 = vmatpush1.xpose.msra.mxu0 0.0
    %4436 = vmatprep.subr.mxu0 0.0
    %4437 = vmatpush1.xpose.msra.mxu0 0.0
    %4438 = vmatprep.subr.mxu0 0.0
    %4439 = vmatpush1.xpose.msra.mxu0 0.0
    %4440 = vmatprep.subr.mxu0 0.0
    %4441 = vmatpush1.xpose.msra.mxu0 0.0
    %4442 = vmatprep.subr.mxu0 0.0
    %4443 = vmatpush1.xpose.msra.mxu0 0.0
    %4444 = vmatprep.subr.mxu0 0.0
    %4445 = vmatpush1.xpose.msra.mxu0 0.0
    %4446 = vmatprep.subr.mxu0 0.0
    %4447 = vmatpush1.xpose.msra.mxu0 0.0
    %4448 = vmatprep.subr.mxu0 0.0
    %4449 = vmatpush1.xpose.msra.mxu0 0.0
    %4450 = vmatprep.subr.mxu0 0.0
    %4451 = vmatpush1.xpose.msra.mxu0 0.0
    %4452 = vmatprep.subr.mxu0 0.0
    %4453 = vmatpush1.xpose.msra.mxu0 0.0
    %4454 = vmatprep.mubr.f32.mxu0 0.0
    %4455 = vmatmul.mubr.f32.gmra.mrb[0].mxu0 %v4386
    %v4456 = vpop.f32.mrb[0].mxu0
    %v4457 = vadd.f32 0.0, %v4456
    %v4458 = vpop.f32.mrb[0].mxu0
    %4459 = vdwg.mxu0
    %v4460 = vmul.f32 %v3925, 0.35355338
    %v4461 = vmul.f32 %v4001, 0.35355338
    %v4462 = vmul.f32 %v4077, 0.35355338
    %v4463 = vmul.f32 %v4153, 0.35355338
    %v4464 = vmul.f32 %v4229, 0.35355338
    %v4465 = vmul.f32 %v4305, 0.35355338
    %v4466 = vmul.f32 %v4381, 0.35355338
    %v4467 = vmul.f32 %v4457, 0.35355338
    %v4468 = vsel %vm233, %v4460, -inf
    %4469 = vmax.xlane.f32.xlu0 %v4468
    %v4470 = vpop.xlane.xlu0 %4469
    %v4471 = vsel %vm233, %v4461, -inf
    %4472 = vmax.xlane.f32.xlu0 %v4471
    %v4473 = vpop.xlane.xlu0 %4472
    %v4474 = vsel %vm233, %v4462, -inf
    %4475 = vmax.xlane.f32.xlu0 %v4474
    %v4476 = vpop.xlane.xlu0 %4475
    %v4477 = vsel %vm233, %v4463, -inf
    %4478 = vmax.xlane.f32.xlu0 %v4477
    %v4479 = vpop.xlane.xlu0 %4478
    %v4480 = vsel %vm233, %v4464, -inf
    %4481 = vmax.xlane.f32.xlu0 %v4480
    %v4482 = vpop.xlane.xlu0 %4481
    %v4483 = vsel %vm233, %v4465, -inf
    %4484 = vmax.xlane.f32.xlu0 %v4483
    %v4485 = vpop.xlane.xlu0 %4484
    %v4486 = vsel %vm233, %v4466, -inf
    %4487 = vmax.xlane.f32.xlu0 %v4486
    %v4488 = vpop.xlane.xlu0 %4487
    %v4489 = vsel %vm233, %v4467, -inf
    %4490 = vmax.xlane.f32.xlu0 %v4489
    %v4491 = vpop.xlane.xlu0 %4490
    %v4492 = vsub.f32 %v4460, %v4470
    %v4493 = vsub.f32 %v4461, %v4473
    %v4494 = vsub.f32 %v4462, %v4476
    %v4495 = vsub.f32 %v4463, %v4479
    %v4496 = vsub.f32 %v4464, %v4482
    %v4497 = vsub.f32 %v4465, %v4485
    %v4498 = vsub.f32 %v4466, %v4488
    %v4499 = vsub.f32 %v4467, %v4491
    %v4500 = vmul.f32 %v4492, 1.442695
    %v4501 = vpow.pop %v4500
    %v4502 = vmul.f32 %v4493, 1.442695
    %v4503 = vpow.pop %v4502
    %v4504 = vmul.f32 %v4494, 1.442695
    %v4505 = vpow.pop %v4504
    %v4506 = vmul.f32 %v4495, 1.442695
    %v4507 = vpow.pop %v4506
    %v4508 = vmul.f32 %v4496, 1.442695
    %v4509 = vpow.pop %v4508
    %v4510 = vmul.f32 %v4497, 1.442695
    %v4511 = vpow.pop %v4510
    %v4512 = vmul.f32 %v4498, 1.442695
    %v4513 = vpow.pop %v4512
    %v4514 = vmul.f32 %v4499, 1.442695
    %v4515 = vpow.pop %v4514
    %v4516 = vsel %vm233, %v4501, 0.0
    %4517 = vadd.xlane.f32.xlu0 %v4516
    %v4518 = vpop.xlane.xlu0 %4517
    %v4519 = vsel %vm233, %v4503, 0.0
    %4520 = vadd.xlane.f32.xlu0 %v4519
    %v4521 = vpop.xlane.xlu0 %4520
    %v4522 = vsel %vm233, %v4505, 0.0
    %4523 = vadd.xlane.f32.xlu0 %v4522
    %v4524 = vpop.xlane.xlu0 %4523
    %v4525 = vsel %vm233, %v4507, 0.0
    %4526 = vadd.xlane.f32.xlu0 %v4525
    %v4527 = vpop.xlane.xlu0 %4526
    %v4528 = vsel %vm233, %v4509, 0.0
    %4529 = vadd.xlane.f32.xlu0 %v4528
    %v4530 = vpop.xlane.xlu0 %4529
    %v4531 = vsel %vm233, %v4511, 0.0
    %4532 = vadd.xlane.f32.xlu0 %v4531
    %v4533 = vpop.xlane.xlu0 %4532
    %v4534 = vsel %vm233, %v4513, 0.0
    %4535 = vadd.xlane.f32.xlu0 %v4534
    %v4536 = vpop.xlane.xlu0 %4535
    %v4537 = vsel %vm233, %v4515, 0.0
    %4538 = vadd.xlane.f32.xlu0 %v4537
    %v4539 = vpop.xlane.xlu0 %4538
    %v4540 = vrcp.pop %v4518
    %v4541 = vrcp.pop %v4521
    %v4542 = vrcp.pop %v4524
    %v4543 = vrcp.pop %v4527
    %v4544 = vrcp.pop %v4530
    %v4545 = vrcp.pop %v4533
    %v4546 = vrcp.pop %v4536
    %v4547 = vrcp.pop %v4539
    %v4548 = vmul.f32 %v4501, %v4540
    %v4549 = vmul.f32 %v4503, %v4541
    %v4550 = vmul.f32 %v4505, %v4542
    %v4551 = vmul.f32 %v4507, %v4543
    %v4552 = vmul.f32 %v4509, %v4544
    %v4553 = vmul.f32 %v4511, %v4545
    %v4554 = vmul.f32 %v4513, %v4546
    %v4555 = vmul.f32 %v4515, %v4547
    %4556 = vrot.lane.b32.xlu0 %v3832, 64
    %v4557 = vpop.permute.xlu0 %4556
    %v4560 = vsel %vm233, %v4548, 0
    %4562 = vmatprep.subr.mxu0 0.0
    %4563 = vmatpush1.msra.mxu0 %v4557
    %4564 = vmatprep.subr.mxu0 0.0
    %4565 = vmatpush1.msra.mxu0 0.0
    %4566 = vmatprep.subr.mxu0 0.0
    %4567 = vmatpush1.msra.mxu0 0.0
    %4568 = vmatprep.subr.mxu0 0.0
    %4569 = vmatpush1.msra.mxu0 0.0
    %4570 = vmatprep.subr.mxu0 0.0
    %4571 = vmatpush1.msra.mxu0 0.0
    %4572 = vmatprep.subr.mxu0 0.0
    %4573 = vmatpush1.msra.mxu0 0.0
    %4574 = vmatprep.subr.mxu0 0.0
    %4575 = vmatpush1.msra.mxu0 0.0
    %4576 = vmatprep.subr.mxu0 0.0
    %4577 = vmatpush1.msra.mxu0 0.0
    %4578 = vmatprep.subr.mxu0 0.0
    %4579 = vmatpush1.msra.mxu0 0.0
    %4580 = vmatprep.subr.mxu0 0.0
    %4581 = vmatpush1.msra.mxu0 0.0
    %4582 = vmatprep.subr.mxu0 0.0
    %4583 = vmatpush1.msra.mxu0 0.0
    %4584 = vmatprep.subr.mxu0 0.0
    %4585 = vmatpush1.msra.mxu0 0.0
    %4586 = vmatprep.subr.mxu0 0.0
    %4587 = vmatpush1.msra.mxu0 0.0
    %4588 = vmatprep.subr.mxu0 0.0
    %4589 = vmatpush1.msra.mxu0 0.0
    %4590 = vmatprep.subr.mxu0 0.0
    %4591 = vmatpush1.msra.mxu0 0.0
    %4592 = vmatprep.subr.mxu0 0.0
    %4593 = vmatpush1.msra.mxu0 0.0
    %4594 = vmatprep.subr.mxu0 0.0
    %4595 = vmatpush1.msra.mxu0 0.0
    %4596 = vmatprep.subr.mxu0 0.0
    %4597 = vmatpush1.msra.mxu0 0.0
    %4598 = vmatprep.subr.mxu0 0.0
    %4599 = vmatpush1.msra.mxu0 0.0
    %4600 = vmatprep.subr.mxu0 0.0
    %4601 = vmatpush1.msra.mxu0 0.0
    %4602 = vmatprep.subr.mxu0 0.0
    %4603 = vmatpush1.msra.mxu0 0.0
    %4604 = vmatprep.subr.mxu0 0.0
    %4605 = vmatpush1.msra.mxu0 0.0
    %4606 = vmatprep.subr.mxu0 0.0
    %4607 = vmatpush1.msra.mxu0 0.0
    %4608 = vmatprep.subr.mxu0 0.0
    %4609 = vmatpush1.msra.mxu0 0.0
    %4610 = vmatprep.subr.mxu0 0.0
    %4611 = vmatpush1.msra.mxu0 0.0
    %4612 = vmatprep.subr.mxu0 0.0
    %4613 = vmatpush1.msra.mxu0 0.0
    %4614 = vmatprep.subr.mxu0 0.0
    %4615 = vmatpush1.msra.mxu0 0.0
    %4616 = vmatprep.subr.mxu0 0.0
    %4617 = vmatpush1.msra.mxu0 0.0
    %4618 = vmatprep.subr.mxu0 0.0
    %4619 = vmatpush1.msra.mxu0 0.0
    %4620 = vmatprep.subr.mxu0 0.0
    %4621 = vmatpush1.msra.mxu0 0.0
    %4622 = vmatprep.subr.mxu0 0.0
    %4623 = vmatpush1.msra.mxu0 0.0
    %4624 = vmatprep.subr.mxu0 0.0
    %4625 = vmatpush1.msra.mxu0 0.0
    %4626 = vmatprep.mubr.f32.mxu0 0.0
    %4627 = vmatmul.mubr.f32.gmra.mrb[0].mxu0 %v4560
    %v4628 = vpop.f32.mrb[0].mxu0
    %v4629 = vadd.f32 0.0, %v4628
    %v4630 = vpop.f32.mrb[0].mxu0
    %4631 = vdwg.mxu0
    %4632 = vrot.lane.b32.xlu0 %v3835, 64
    %v4633 = vpop.permute.xlu0 %4632
    %v4636 = vsel %vm233, %v4549, 0
    %4638 = vmatprep.subr.mxu0 0.0
    %4639 = vmatpush1.msra.mxu0 %v4633
    %4640 = vmatprep.subr.mxu0 0.0
    %4641 = vmatpush1.msra.mxu0 0.0
    %4642 = vmatprep.subr.mxu0 0.0
    %4643 = vmatpush1.msra.mxu0 0.0
    %4644 = vmatprep.subr.mxu0 0.0
    %4645 = vmatpush1.msra.mxu0 0.0
    %4646 = vmatprep.subr.mxu0 0.0
    %4647 = vmatpush1.msra.mxu0 0.0
    %4648 = vmatprep.subr.mxu0 0.0
    %4649 = vmatpush1.msra.mxu0 0.0
    %4650 = vmatprep.subr.mxu0 0.0
    %4651 = vmatpush1.msra.mxu0 0.0
    %4652 = vmatprep.subr.mxu0 0.0
    %4653 = vmatpush1.msra.mxu0 0.0
    %4654 = vmatprep.subr.mxu0 0.0
    %4655 = vmatpush1.msra.mxu0 0.0
    %4656 = vmatprep.subr.mxu0 0.0
    %4657 = vmatpush1.msra.mxu0 0.0
    %4658 = vmatprep.subr.mxu0 0.0
    %4659 = vmatpush1.msra.mxu0 0.0
    %4660 = vmatprep.subr.mxu0 0.0
    %4661 = vmatpush1.msra.mxu0 0.0
    %4662 = vmatprep.subr.mxu0 0.0
    %4663 = vmatpush1.msra.mxu0 0.0
    %4664 = vmatprep.subr.mxu0 0.0
    %4665 = vmatpush1.msra.mxu0 0.0
    %4666 = vmatprep.subr.mxu0 0.0
    %4667 = vmatpush1.msra.mxu0 0.0
    %4668 = vmatprep.subr.mxu0 0.0
    %4669 = vmatpush1.msra.mxu0 0.0
    %4670 = vmatprep.subr.mxu0 0.0
    %4671 = vmatpush1.msra.mxu0 0.0
    %4672 = vmatprep.subr.mxu0 0.0
    %4673 = vmatpush1.msra.mxu0 0.0
    %4674 = vmatprep.subr.mxu0 0.0
    %4675 = vmatpush1.msra.mxu0 0.0
    %4676 = vmatprep.subr.mxu0 0.0
    %4677 = vmatpush1.msra.mxu0 0.0
    %4678 = vmatprep.subr.mxu0 0.0
    %4679 = vmatpush1.msra.mxu0 0.0
    %4680 = vmatprep.subr.mxu0 0.0
    %4681 = vmatpush1.msra.mxu0 0.0
    %4682 = vmatprep.subr.mxu0 0.0
    %4683 = vmatpush1.msra.mxu0 0.0
    %4684 = vmatprep.subr.mxu0 0.0
    %4685 = vmatpush1.msra.mxu0 0.0
    %4686 = vmatprep.subr.mxu0 0.0
    %4687 = vmatpush1.msra.mxu0 0.0
    %4688 = vmatprep.subr.mxu0 0.0
    %4689 = vmatpush1.msra.mxu0 0.0
    %4690 = vmatprep.subr.mxu0 0.0
    %4691 = vmatpush1.msra.mxu0 0.0
    %4692 = vmatprep.subr.mxu0 0.0
    %4693 = vmatpush1.msra.mxu0 0.0
    %4694 = vmatprep.subr.mxu0 0.0
    %4695 = vmatpush1.msra.mxu0 0.0
    %4696 = vmatprep.subr.mxu0 0.0
    %4697 = vmatpush1.msra.mxu0 0.0
    %4698 = vmatprep.subr.mxu0 0.0
    %4699 = vmatpush1.msra.mxu0 0.0
    %4700 = vmatprep.subr.mxu0 0.0
    %4701 = vmatpush1.msra.mxu0 0.0
    %4702 = vmatprep.mubr.f32.mxu0 0.0
    %4703 = vmatmul.mubr.f32.gmra.mrb[0].mxu0 %v4636
    %v4704 = vpop.f32.mrb[0].mxu0
    %v4705 = vadd.f32 0.0, %v4704
    %v4706 = vpop.f32.mrb[0].mxu0
    %4707 = vdwg.mxu0
    %4708 = vrot.lane.b32.xlu0 %v3841, 64
    %v4709 = vpop.permute.xlu0 %4708
    %v4712 = vsel %vm233, %v4550, 0
    %4714 = vmatprep.subr.mxu0 0.0
    %4715 = vmatpush1.msra.mxu0 %v4709
    %4716 = vmatprep.subr.mxu0 0.0
    %4717 = vmatpush1.msra.mxu0 0.0
    %4718 = vmatprep.subr.mxu0 0.0
    %4719 = vmatpush1.msra.mxu0 0.0
    %4720 = vmatprep.subr.mxu0 0.0
    %4721 = vmatpush1.msra.mxu0 0.0
    %4722 = vmatprep.subr.mxu0 0.0
    %4723 = vmatpush1.msra.mxu0 0.0
    %4724 = vmatprep.subr.mxu0 0.0
    %4725 = vmatpush1.msra.mxu0 0.0
    %4726 = vmatprep.subr.mxu0 0.0
    %4727 = vmatpush1.msra.mxu0 0.0
    %4728 = vmatprep.subr.mxu0 0.0
    %4729 = vmatpush1.msra.mxu0 0.0
    %4730 = vmatprep.subr.mxu0 0.0
    %4731 = vmatpush1.msra.mxu0 0.0
    %4732 = vmatprep.subr.mxu0 0.0
    %4733 = vmatpush1.msra.mxu0 0.0
    %4734 = vmatprep.subr.mxu0 0.0
    %4735 = vmatpush1.msra.mxu0 0.0
    %4736 = vmatprep.subr.mxu0 0.0
    %4737 = vmatpush1.msra.mxu0 0.0
    %4738 = vmatprep.subr.mxu0 0.0
    %4739 = vmatpush1.msra.mxu0 0.0
    %4740 = vmatprep.subr.mxu0 0.0
    %4741 = vmatpush1.msra.mxu0 0.0
    %4742 = vmatprep.subr.mxu0 0.0
    %4743 = vmatpush1.msra.mxu0 0.0
    %4744 = vmatprep.subr.mxu0 0.0
    %4745 = vmatpush1.msra.mxu0 0.0
    %4746 = vmatprep.subr.mxu0 0.0
    %4747 = vmatpush1.msra.mxu0 0.0
    %4748 = vmatprep.subr.mxu0 0.0
    %4749 = vmatpush1.msra.mxu0 0.0
    %4750 = vmatprep.subr.mxu0 0.0
    %4751 = vmatpush1.msra.mxu0 0.0
    %4752 = vmatprep.subr.mxu0 0.0
    %4753 = vmatpush1.msra.mxu0 0.0
    %4754 = vmatprep.subr.mxu0 0.0
    %4755 = vmatpush1.msra.mxu0 0.0
    %4756 = vmatprep.subr.mxu0 0.0
    %4757 = vmatpush1.msra.mxu0 0.0
    %4758 = vmatprep.subr.mxu0 0.0
    %4759 = vmatpush1.msra.mxu0 0.0
    %4760 = vmatprep.subr.mxu0 0.0
    %4761 = vmatpush1.msra.mxu0 0.0
    %4762 = vmatprep.subr.mxu0 0.0
    %4763 = vmatpush1.msra.mxu0 0.0
    %4764 = vmatprep.subr.mxu0 0.0
    %4765 = vmatpush1.msra.mxu0 0.0
    %4766 = vmatprep.subr.mxu0 0.0
    %4767 = vmatpush1.msra.mxu0 0.0
    %4768 = vmatprep.subr.mxu0 0.0
    %4769 = vmatpush1.msra.mxu0 0.0
    %4770 = vmatprep.subr.mxu0 0.0
    %4771 = vmatpush1.msra.mxu0 0.0
    %4772 = vmatprep.subr.mxu0 0.0
    %4773 = vmatpush1.msra.mxu0 0.0
    %4774 = vmatprep.subr.mxu0 0.0
    %4775 = vmatpush1.msra.mxu0 0.0
    %4776 = vmatprep.subr.mxu0 0.0
    %4777 = vmatpush1.msra.mxu0 0.0
    %4778 = vmatprep.mubr.f32.mxu0 0.0
    %4779 = vmatmul.mubr.f32.gmra.mrb[0].mxu0 %v4712
    %v4780 = vpop.f32.mrb[0].mxu0
    %v4781 = vadd.f32 0.0, %v4780
    %v4782 = vpop.f32.mrb[0].mxu0
    %4783 = vdwg.mxu0
    %4784 = vrot.lane.b32.xlu0 %v3843, 64
    %v4785 = vpop.permute.xlu0 %4784
    %v4788 = vsel %vm233, %v4551, 0
    %4790 = vmatprep.subr.mxu0 0.0
    %4791 = vmatpush1.msra.mxu0 %v4785
    %4792 = vmatprep.subr.mxu0 0.0
    %4793 = vmatpush1.msra.mxu0 0.0
    %4794 = vmatprep.subr.mxu0 0.0
    %4795 = vmatpush1.msra.mxu0 0.0
    %4796 = vmatprep.subr.mxu0 0.0
    %4797 = vmatpush1.msra.mxu0 0.0
    %4798 = vmatprep.subr.mxu0 0.0
    %4799 = vmatpush1.msra.mxu0 0.0
    %4800 = vmatprep.subr.mxu0 0.0
    %4801 = vmatpush1.msra.mxu0 0.0
    %4802 = vmatprep.subr.mxu0 0.0
    %4803 = vmatpush1.msra.mxu0 0.0
    %4804 = vmatprep.subr.mxu0 0.0
    %4805 = vmatpush1.msra.mxu0 0.0
    %4806 = vmatprep.subr.mxu0 0.0
    %4807 = vmatpush1.msra.mxu0 0.0
    %4808 = vmatprep.subr.mxu0 0.0
    %4809 = vmatpush1.msra.mxu0 0.0
    %4810 = vmatprep.subr.mxu0 0.0
    %4811 = vmatpush1.msra.mxu0 0.0
    %4812 = vmatprep.subr.mxu0 0.0
    %4813 = vmatpush1.msra.mxu0 0.0
    %4814 = vmatprep.subr.mxu0 0.0
    %4815 = vmatpush1.msra.mxu0 0.0
    %4816 = vmatprep.subr.mxu0 0.0
    %4817 = vmatpush1.msra.mxu0 0.0
    %4818 = vmatprep.subr.mxu0 0.0
    %4819 = vmatpush1.msra.mxu0 0.0
    %4820 = vmatprep.subr.mxu0 0.0
    %4821 = vmatpush1.msra.mxu0 0.0
    %4822 = vmatprep.subr.mxu0 0.0
    %4823 = vmatpush1.msra.mxu0 0.0
    %4824 = vmatprep.subr.mxu0 0.0
    %4825 = vmatpush1.msra.mxu0 0.0
    %4826 = vmatprep.subr.mxu0 0.0
    %4827 = vmatpush1.msra.mxu0 0.0
    %4828 = vmatprep.subr.mxu0 0.0
    %4829 = vmatpush1.msra.mxu0 0.0
    %4830 = vmatprep.subr.mxu0 0.0
    %4831 = vmatpush1.msra.mxu0 0.0
    %4832 = vmatprep.subr.mxu0 0.0
    %4833 = vmatpush1.msra.mxu0 0.0
    %4834 = vmatprep.subr.mxu0 0.0
    %4835 = vmatpush1.msra.mxu0 0.0
    %4836 = vmatprep.subr.mxu0 0.0
    %4837 = vmatpush1.msra.mxu0 0.0
    %4838 = vmatprep.subr.mxu0 0.0
    %4839 = vmatpush1.msra.mxu0 0.0
    %4840 = vmatprep.subr.mxu0 0.0
    %4841 = vmatpush1.msra.mxu0 0.0
    %4842 = vmatprep.subr.mxu0 0.0
    %4843 = vmatpush1.msra.mxu0 0.0
    %4844 = vmatprep.subr.mxu0 0.0
    %4845 = vmatpush1.msra.mxu0 0.0
    %4846 = vmatprep.subr.mxu0 0.0
    %4847 = vmatpush1.msra.mxu0 0.0
    %4848 = vmatprep.subr.mxu0 0.0
    %4849 = vmatpush1.msra.mxu0 0.0
    %4850 = vmatprep.subr.mxu0 0.0
    %4851 = vmatpush1.msra.mxu0 0.0
    %4852 = vmatprep.subr.mxu0 0.0
    %4853 = vmatpush1.msra.mxu0 0.0
    %4854 = vmatprep.mubr.f32.mxu0 0.0
    %4855 = vmatmul.mubr.f32.gmra.mrb[0].mxu0 %v4788
    %v4856 = vpop.f32.mrb[0].mxu0
    %v4857 = vadd.f32 0.0, %v4856
    %v4858 = vpop.f32.mrb[0].mxu0
    %4859 = vdwg.mxu0
    %4860 = vrot.lane.b32.xlu0 %v3845, 64
    %v4861 = vpop.permute.xlu0 %4860
    %v4864 = vsel %vm233, %v4552, 0
    %4866 = vmatprep.subr.mxu0 0.0
    %4867 = vmatpush1.msra.mxu0 %v4861
    %4868 = vmatprep.subr.mxu0 0.0
    %4869 = vmatpush1.msra.mxu0 0.0
    %4870 = vmatprep.subr.mxu0 0.0
    %4871 = vmatpush1.msra.mxu0 0.0
    %4872 = vmatprep.subr.mxu0 0.0
    %4873 = vmatpush1.msra.mxu0 0.0
    %4874 = vmatprep.subr.mxu0 0.0
    %4875 = vmatpush1.msra.mxu0 0.0
    %4876 = vmatprep.subr.mxu0 0.0
    %4877 = vmatpush1.msra.mxu0 0.0
    %4878 = vmatprep.subr.mxu0 0.0
    %4879 = vmatpush1.msra.mxu0 0.0
    %4880 = vmatprep.subr.mxu0 0.0
    %4881 = vmatpush1.msra.mxu0 0.0
    %4882 = vmatprep.subr.mxu0 0.0
    %4883 = vmatpush1.msra.mxu0 0.0
    %4884 = vmatprep.subr.mxu0 0.0
    %4885 = vmatpush1.msra.mxu0 0.0
    %4886 = vmatprep.subr.mxu0 0.0
    %4887 = vmatpush1.msra.mxu0 0.0
    %4888 = vmatprep.subr.mxu0 0.0
    %4889 = vmatpush1.msra.mxu0 0.0
    %4890 = vmatprep.subr.mxu0 0.0
    %4891 = vmatpush1.msra.mxu0 0.0
    %4892 = vmatprep.subr.mxu0 0.0
    %4893 = vmatpush1.msra.mxu0 0.0
    %4894 = vmatprep.subr.mxu0 0.0
    %4895 = vmatpush1.msra.mxu0 0.0
    %4896 = vmatprep.subr.mxu0 0.0
    %4897 = vmatpush1.msra.mxu0 0.0
    %4898 = vmatprep.subr.mxu0 0.0
    %4899 = vmatpush1.msra.mxu0 0.0
    %4900 = vmatprep.subr.mxu0 0.0
    %4901 = vmatpush1.msra.mxu0 0.0
    %4902 = vmatprep.subr.mxu0 0.0
    %4903 = vmatpush1.msra.mxu0 0.0
    %4904 = vmatprep.subr.mxu0 0.0
    %4905 = vmatpush1.msra.mxu0 0.0
    %4906 = vmatprep.subr.mxu0 0.0
    %4907 = vmatpush1.msra.mxu0 0.0
    %4908 = vmatprep.subr.mxu0 0.0
    %4909 = vmatpush1.msra.mxu0 0.0
    %4910 = vmatprep.subr.mxu0 0.0
    %4911 = vmatpush1.msra.mxu0 0.0
    %4912 = vmatprep.subr.mxu0 0.0
    %4913 = vmatpush1.msra.mxu0 0.0
    %4914 = vmatprep.subr.mxu0 0.0
    %4915 = vmatpush1.msra.mxu0 0.0
    %4916 = vmatprep.subr.mxu0 0.0
    %4917 = vmatpush1.msra.mxu0 0.0
    %4918 = vmatprep.subr.mxu0 0.0
    %4919 = vmatpush1.msra.mxu0 0.0
    %4920 = vmatprep.subr.mxu0 0.0
    %4921 = vmatpush1.msra.mxu0 0.0
    %4922 = vmatprep.subr.mxu0 0.0
    %4923 = vmatpush1.msra.mxu0 0.0
    %4924 = vmatprep.subr.mxu0 0.0
    %4925 = vmatpush1.msra.mxu0 0.0
    %4926 = vmatprep.subr.mxu0 0.0
    %4927 = vmatpush1.msra.mxu0 0.0
    %4928 = vmatprep.subr.mxu0 0.0
    %4929 = vmatpush1.msra.mxu0 0.0
    %4930 = vmatprep.mubr.f32.mxu0 0.0
    %4931 = vmatmul.mubr.f32.gmra.mrb[0].mxu0 %v4864
    %v4932 = vpop.f32.mrb[0].mxu0
    %v4933 = vadd.f32 0.0, %v4932
    %v4934 = vpop.f32.mrb[0].mxu0
    %4935 = vdwg.mxu0
    %4936 = vrot.lane.b32.xlu0 %v3847, 64
    %v4937 = vpop.permute.xlu0 %4936
    %v4940 = vsel %vm233, %v4553, 0
    %4942 = vmatprep.subr.mxu0 0.0
    %4943 = vmatpush1.msra.mxu0 %v4937
    %4944 = vmatprep.subr.mxu0 0.0
    %4945 = vmatpush1.msra.mxu0 0.0
    %4946 = vmatprep.subr.mxu0 0.0
    %4947 = vmatpush1.msra.mxu0 0.0
    %4948 = vmatprep.subr.mxu0 0.0
    %4949 = vmatpush1.msra.mxu0 0.0
    %4950 = vmatprep.subr.mxu0 0.0
    %4951 = vmatpush1.msra.mxu0 0.0
    %4952 = vmatprep.subr.mxu0 0.0
    %4953 = vmatpush1.msra.mxu0 0.0
    %4954 = vmatprep.subr.mxu0 0.0
    %4955 = vmatpush1.msra.mxu0 0.0
    %4956 = vmatprep.subr.mxu0 0.0
    %4957 = vmatpush1.msra.mxu0 0.0
    %4958 = vmatprep.subr.mxu0 0.0
    %4959 = vmatpush1.msra.mxu0 0.0
    %4960 = vmatprep.subr.mxu0 0.0
    %4961 = vmatpush1.msra.mxu0 0.0
    %4962 = vmatprep.subr.mxu0 0.0
    %4963 = vmatpush1.msra.mxu0 0.0
    %4964 = vmatprep.subr.mxu0 0.0
    %4965 = vmatpush1.msra.mxu0 0.0
    %4966 = vmatprep.subr.mxu0 0.0
    %4967 = vmatpush1.msra.mxu0 0.0
    %4968 = vmatprep.subr.mxu0 0.0
    %4969 = vmatpush1.msra.mxu0 0.0
    %4970 = vmatprep.subr.mxu0 0.0
    %4971 = vmatpush1.msra.mxu0 0.0
    %4972 = vmatprep.subr.mxu0 0.0
    %4973 = vmatpush1.msra.mxu0 0.0
    %4974 = vmatprep.subr.mxu0 0.0
    %4975 = vmatpush1.msra.mxu0 0.0
    %4976 = vmatprep.subr.mxu0 0.0
    %4977 = vmatpush1.msra.mxu0 0.0
    %4978 = vmatprep.subr.mxu0 0.0
    %4979 = vmatpush1.msra.mxu0 0.0
    %4980 = vmatprep.subr.mxu0 0.0
    %4981 = vmatpush1.msra.mxu0 0.0
    %4982 = vmatprep.subr.mxu0 0.0
    %4983 = vmatpush1.msra.mxu0 0.0
    %4984 = vmatprep.subr.mxu0 0.0
    %4985 = vmatpush1.msra.mxu0 0.0
    %4986 = vmatprep.subr.mxu0 0.0
    %4987 = vmatpush1.msra.mxu0 0.0
    %4988 = vmatprep.subr.mxu0 0.0
    %4989 = vmatpush1.msra.mxu0 0.0
    %4990 = vmatprep.subr.mxu0 0.0
    %4991 = vmatpush1.msra.mxu0 0.0
    %4992 = vmatprep.subr.mxu0 0.0
    %4993 = vmatpush1.msra.mxu0 0.0
    %4994 = vmatprep.subr.mxu0 0.0
    %4995 = vmatpush1.msra.mxu0 0.0
    %4996 = vmatprep.subr.mxu0 0.0
    %4997 = vmatpush1.msra.mxu0 0.0
    %4998 = vmatprep.subr.mxu0 0.0
    %4999 = vmatpush1.msra.mxu0 0.0
    %5000 = vmatprep.subr.mxu0 0.0
    %5001 = vmatpush1.msra.mxu0 0.0
    %5002 = vmatprep.subr.mxu0 0.0
    %5003 = vmatpush1.msra.mxu0 0.0
    %5004 = vmatprep.subr.mxu0 0.0
    %5005 = vmatpush1.msra.mxu0 0.0
    %5006 = vmatprep.mubr.f32.mxu0 0.0
    %5007 = vmatmul.mubr.f32.gmra.mrb[0].mxu0 %v4940
    %v5008 = vpop.f32.mrb[0].mxu0
    %v5009 = vadd.f32 0.0, %v5008
    %v5010 = vpop.f32.mrb[0].mxu0
    %5011 = vdwg.mxu0
    %5012 = vrot.lane.b32.xlu0 %v3849, 64
    %v5013 = vpop.permute.xlu0 %5012
    %v5016 = vsel %vm233, %v4554, 0
    %5018 = vmatprep.subr.mxu0 0.0
    %5019 = vmatpush1.msra.mxu0 %v5013
    %5020 = vmatprep.subr.mxu0 0.0
    %5021 = vmatpush1.msra.mxu0 0.0
    %5022 = vmatprep.subr.mxu0 0.0
    %5023 = vmatpush1.msra.mxu0 0.0
    %5024 = vmatprep.subr.mxu0 0.0
    %5025 = vmatpush1.msra.mxu0 0.0
    %5026 = vmatprep.subr.mxu0 0.0
    %5027 = vmatpush1.msra.mxu0 0.0
    %5028 = vmatprep.subr.mxu0 0.0
    %5029 = vmatpush1.msra.mxu0 0.0
    %5030 = vmatprep.subr.mxu0 0.0
    %5031 = vmatpush1.msra.mxu0 0.0
    %5032 = vmatprep.subr.mxu0 0.0
    %5033 = vmatpush1.msra.mxu0 0.0
    %5034 = vmatprep.subr.mxu0 0.0
    %5035 = vmatpush1.msra.mxu0 0.0
    %5036 = vmatprep.subr.mxu0 0.0
    %5037 = vmatpush1.msra.mxu0 0.0
    %5038 = vmatprep.subr.mxu0 0.0
    %5039 = vmatpush1.msra.mxu0 0.0
    %5040 = vmatprep.subr.mxu0 0.0
    %5041 = vmatpush1.msra.mxu0 0.0
    %5042 = vmatprep.subr.mxu0 0.0
    %5043 = vmatpush1.msra.mxu0 0.0
    %5044 = vmatprep.subr.mxu0 0.0
    %5045 = vmatpush1.msra.mxu0 0.0
    %5046 = vmatprep.subr.mxu0 0.0
    %5047 = vmatpush1.msra.mxu0 0.0
    %5048 = vmatprep.subr.mxu0 0.0
    %5049 = vmatpush1.msra.mxu0 0.0
    %5050 = vmatprep.subr.mxu0 0.0
    %5051 = vmatpush1.msra.mxu0 0.0
    %5052 = vmatprep.subr.mxu0 0.0
    %5053 = vmatpush1.msra.mxu0 0.0
    %5054 = vmatprep.subr.mxu0 0.0
    %5055 = vmatpush1.msra.mxu0 0.0
    %5056 = vmatprep.subr.mxu0 0.0
    %5057 = vmatpush1.msra.mxu0 0.0
    %5058 = vmatprep.subr.mxu0 0.0
    %5059 = vmatpush1.msra.mxu0 0.0
    %5060 = vmatprep.subr.mxu0 0.0
    %5061 = vmatpush1.msra.mxu0 0.0
    %5062 = vmatprep.subr.mxu0 0.0
    %5063 = vmatpush1.msra.mxu0 0.0
    %5064 = vmatprep.subr.mxu0 0.0
    %5065 = vmatpush1.msra.mxu0 0.0
    %5066 = vmatprep.subr.mxu0 0.0
    %5067 = vmatpush1.msra.mxu0 0.0
    %5068 = vmatprep.subr.mxu0 0.0
    %5069 = vmatpush1.msra.mxu0 0.0
    %5070 = vmatprep.subr.mxu0 0.0
    %5071 = vmatpush1.msra.mxu0 0.0
    %5072 = vmatprep.subr.mxu0 0.0
    %5073 = vmatpush1.msra.mxu0 0.0
    %5074 = vmatprep.subr.mxu0 0.0
    %5075 = vmatpush1.msra.mxu0 0.0
    %5076 = vmatprep.subr.mxu0 0.0
    %5077 = vmatpush1.msra.mxu0 0.0
    %5078 = vmatprep.subr.mxu0 0.0
    %5079 = vmatpush1.msra.mxu0 0.0
    %5080 = vmatprep.subr.mxu0 0.0
    %5081 = vmatpush1.msra.mxu0 0.0
    %5082 = vmatprep.mubr.f32.mxu0 0.0
    %5083 = vmatmul.mubr.f32.gmra.mrb[0].mxu0 %v5016
    %v5084 = vpop.f32.mrb[0].mxu0
    %v5085 = vadd.f32 0.0, %v5084
    %v5086 = vpop.f32.mrb[0].mxu0
    %5087 = vdwg.mxu0
    %5088 = vrot.lane.b32.xlu0 %v3851, 64
    %v5089 = vpop.permute.xlu0 %5088
    %v5092 = vsel %vm233, %v4555, 0
    %5094 = vmatprep.subr.mxu0 0.0
    %5095 = vmatpush1.msra.mxu0 %v5089
    %5096 = vmatprep.subr.mxu0 0.0
    %5097 = vmatpush1.msra.mxu0 0.0
    %5098 = vmatprep.subr.mxu0 0.0
    %5099 = vmatpush1.msra.mxu0 0.0
    %5100 = vmatprep.subr.mxu0 0.0
    %5101 = vmatpush1.msra.mxu0 0.0
    %5102 = vmatprep.subr.mxu0 0.0
    %5103 = vmatpush1.msra.mxu0 0.0
    %5104 = vmatprep.subr.mxu0 0.0
    %5105 = vmatpush1.msra.mxu0 0.0
    %5106 = vmatprep.subr.mxu0 0.0
    %5107 = vmatpush1.msra.mxu0 0.0
    %5108 = vmatprep.subr.mxu0 0.0
    %5109 = vmatpush1.msra.mxu0 0.0
    %5110 = vmatprep.subr.mxu0 0.0
    %5111 = vmatpush1.msra.mxu0 0.0
    %5112 = vmatprep.subr.mxu0 0.0
    %5113 = vmatpush1.msra.mxu0 0.0
    %5114 = vmatprep.subr.mxu0 0.0
    %5115 = vmatpush1.msra.mxu0 0.0
    %5116 = vmatprep.subr.mxu0 0.0
    %5117 = vmatpush1.msra.mxu0 0.0
    %5118 = vmatprep.subr.mxu0 0.0
    %5119 = vmatpush1.msra.mxu0 0.0
    %5120 = vmatprep.subr.mxu0 0.0
    %5121 = vmatpush1.msra.mxu0 0.0
    %5122 = vmatprep.subr.mxu0 0.0
    %5123 = vmatpush1.msra.mxu0 0.0
    %5124 = vmatprep.subr.mxu0 0.0
    %5125 = vmatpush1.msra.mxu0 0.0
    %5126 = vmatprep.subr.mxu0 0.0
    %5127 = vmatpush1.msra.mxu0 0.0
    %5128 = vmatprep.subr.mxu0 0.0
    %5129 = vmatpush1.msra.mxu0 0.0
    %5130 = vmatprep.subr.mxu0 0.0
    %5131 = vmatpush1.msra.mxu0 0.0
    %5132 = vmatprep.subr.mxu0 0.0
    %5133 = vmatpush1.msra.mxu0 0.0
    %5134 = vmatprep.subr.mxu0 0.0
    %5135 = vmatpush1.msra.mxu0 0.0
    %5136 = vmatprep.subr.mxu0 0.0
    %5137 = vmatpush1.msra.mxu0 0.0
    %5138 = vmatprep.subr.mxu0 0.0
    %5139 = vmatpush1.msra.mxu0 0.0
    %5140 = vmatprep.subr.mxu0 0.0
    %5141 = vmatpush1.msra.mxu0 0.0
    %5142 = vmatprep.subr.mxu0 0.0
    %5143 = vmatpush1.msra.mxu0 0.0
    %5144 = vmatprep.subr.mxu0 0.0
    %5145 = vmatpush1.msra.mxu0 0.0
    %5146 = vmatprep.subr.mxu0 0.0
    %5147 = vmatpush1.msra.mxu0 0.0
    %5148 = vmatprep.subr.mxu0 0.0
    %5149 = vmatpush1.msra.mxu0 0.0
    %5150 = vmatprep.subr.mxu0 0.0
    %5151 = vmatpush1.msra.mxu0 0.0
    %5152 = vmatprep.subr.mxu0 0.0
    %5153 = vmatpush1.msra.mxu0 0.0
    %5154 = vmatprep.subr.mxu0 0.0
    %5155 = vmatpush1.msra.mxu0 0.0
    %5156 = vmatprep.subr.mxu0 0.0
    %5157 = vmatpush1.msra.mxu0 0.0
    %5158 = vmatprep.mubr.f32.mxu0 0.0
    %5159 = vmatmul.mubr.f32.gmra.mrb[0].mxu0 %v5092
    %v5160 = vpop.f32.mrb[0].mxu0
    %v5161 = vadd.f32 0.0, %v5160
    %v5162 = vpop.f32.mrb[0].mxu0
    %5163 = vdwg.mxu0
    %5166 = vrot.lane.b32.xlu0 %v4781, 8
    %v5167 = vpop.permute.xlu0 %5166
    %5168 = vrot.lane.b32.xlu0 %v4857, 8
    %v5169 = vpop.permute.xlu0 %5168
    %5174 = vrot.lane.b32.xlu0 %v4933, 16
    %v5175 = vpop.permute.xlu0 %5174
    %5176 = vrot.lane.b32.xlu0 %v5009, 16
    %v5177 = vpop.permute.xlu0 %5176
    %5182 = vrot.lane.b32.xlu0 %v5085, 24
    %v5183 = vpop.permute.xlu0 %5182
    %5184 = vrot.lane.b32.xlu0 %v5161, 24
    %v5185 = vpop.permute.xlu0 %5184
    %v5188 = vsel %vm233, %v4629, %v5167
    %v5189 = vsel %vm233, %v4705, %v5169
    %v5190 = vsel %vm1570, %v5188, %v5175
    %v5191 = vsel %vm1570, %v5189, %v5177
    %v5192 = vsel %vm1573, %v5190, %v5183
    %v5193 = vsel %vm1573, %v5191, %v5185
    %v5194 = vpack.c.bf16 %v5193, %v5192
    %s5195 = scalar_lea.vmem %s5, 16
    %v5196 = vld [vmem:[%s5195] sm:$0xf]
    %v5197 = vld [vmem:[%s5195 + $0x4] sm:$0xf]
    %v5198 = vld [vmem:[%s5195 + $0x8] sm:$0xf]
    %v5199 = vld [vmem:[%s5195 + $0xc] sm:$0xf]
    %s5200 = scalar_lea.vmem %s6, 1
    %v5201 = vld [vmem:[%s5200] sm:$0x1]
    %v5203 = vlaneseq
    %v5204 = vshrl.u32 %v5203, 7
    %v5205 = vsub.s32 0, %v5204
    %v5206 = vrot.slane %v5201, %v5205
    %v5212 = vunpack.c.l.b16 %v5196
    %v5213 = vunpack.c.l.b16 %v5197
    %v5214 = vunpack.c.l.b16 %v5198
    %v5215 = vunpack.c.l.b16 %v5199
    %v5216 = vpack.c.b16 %v5213, %v5212
    %v5217 = vpack.c.b16 %v5215, %v5214
    %v5221 = vsel %vm172, %v5194, 0
    %5223 = vmatprep.subr.bf16.mxu0 0
    %5224 = vmatpush1.bf16.msra.mxu0 %v5216
    %5225 = vmatprep.subr.bf16.mxu0 0
    %5226 = vmatpush1.bf16.msra.mxu0 %v5217
    %5227 = vmatprep.subr.bf16.mxu0 0
    %5228 = vmatpush1.bf16.msra.mxu0 0
    %5229 = vmatprep.subr.bf16.mxu0 0
    %5230 = vmatpush1.bf16.msra.mxu0 0
    %5231 = vmatprep.subr.bf16.mxu0 0
    %5232 = vmatpush1.bf16.msra.mxu0 0
    %5233 = vmatprep.subr.bf16.mxu0 0
    %5234 = vmatpush1.bf16.msra.mxu0 0
    %5235 = vmatprep.subr.bf16.mxu0 0
    %5236 = vmatpush1.bf16.msra.mxu0 0
    %5237 = vmatprep.subr.bf16.mxu0 0
    %5238 = vmatpush1.bf16.msra.mxu0 0
    %5239 = vmatprep.subr.bf16.mxu0 0
    %5240 = vmatpush1.bf16.msra.mxu0 0
    %5241 = vmatprep.subr.bf16.mxu0 0
    %5242 = vmatpush1.bf16.msra.mxu0 0
    %5243 = vmatprep.subr.bf16.mxu0 0
    %5244 = vmatpush1.bf16.msra.mxu0 0
    %5245 = vmatprep.subr.bf16.mxu0 0
    %5246 = vmatpush1.bf16.msra.mxu0 0
    %5247 = vmatprep.subr.bf16.mxu0 0
    %5248 = vmatpush1.bf16.msra.mxu0 0
    %5249 = vmatprep.subr.bf16.mxu0 0
    %5250 = vmatpush1.bf16.msra.mxu0 0
    %5251 = vmatprep.subr.bf16.mxu0 0
    %5252 = vmatpush1.bf16.msra.mxu0 0
    %5253 = vmatprep.subr.bf16.mxu0 0
    %5254 = vmatpush1.bf16.msra.mxu0 0
    %5255 = vmatprep.mubr.bf16.mxu0 0
    %5256 = vmatmul.mubr.bf16.gmra.mrb[0].mxu0 %v5221
    %v5257 = vpop.f32.mrb[0].mxu0
    %v5258 = vadd.f32 %v5206, %v5257
    %v5259 = vpop.f32.mrb[0].mxu0
    %v5260 = vpop.f32.mrb[0].mxu0
    %v5261 = vadd.f32 %v5206, %v5260
    %v5262 = vpop.f32.mrb[0].mxu0
    %5263 = vdwg.mxu0
    %v5264 = vadd.f32 %v3766, %v5258
    %v5265 = vadd.f32 %v3767, %v5261
    %s5266 = scalar_lea.vmem %s7, 1
    %v5267 = vld [vmem:[%s5266] sm:$0x1]
    %s5268 = scalar_lea.vmem %s8, 1
    %v5269 = vld [vmem:[%s5268] sm:$0x1]
    %v5270 = vsel %vm172, %v5264, 0.0
    %5271 = vadd.xlane.f32.xlu0 %v5270
    %v5272 = vpop.xlane.xlu0 %5271
    %v5273 = vsel %vm172, %v5265, 0.0
    %5274 = vadd.xlane.f32.xlu0 %v5273
    %v5275 = vpop.xlane.xlu0 %5274
    %v5276 = vmul.f32 %v5272, %v1654
    %v5277 = vmul.f32 %v5275, %v1654
    %v5278 = vsub.f32 %v5264, %v5276
    %v5279 = vsub.f32 %v5265, %v5277
    %v5280 = vmul.f32 %v5278, %v5278
    %v5281 = vmul.f32 %v5279, %v5279
    %v5282 = vsel %vm172, %v5280, 0.0
    %5283 = vadd.xlane.f32.xlu0 %v5282
    %v5284 = vpop.xlane.xlu0 %5283
    %v5285 = vsel %vm172, %v5281, 0.0
    %5286 = vadd.xlane.f32.xlu0 %v5285
    %v5287 = vpop.xlane.xlu0 %5286
    %v5288 = vmul.f32 %v5284, %v1654
    %v5289 = vmul.f32 %v5287, %v1654
    %v5290 = vadd.f32 %v5288, 1e-05
    %v5291 = vadd.f32 %v5289, 1e-05
    %v5292 = vrsqrt.pop %v5290
    %v5293 = vrsqrt.pop %v5291
    %v5294 = vmul.f32 %v5278, %v5292
    %v5295 = vmul.f32 %v5279, %v5293
    %v5297 = vlaneseq
    %v5298 = vshrl.u32 %v5297, 7
    %v5299 = vsub.s32 0, %v5298
    %v5300 = vrot.slane %v5267, %v5299
    %v5302 = vmul.f32 %v5294, %v5300
    %v5303 = vmul.f32 %v5295, %v5300
    %v5305 = vlaneseq
    %v5306 = vshrl.u32 %v5305, 7
    %v5307 = vsub.s32 0, %v5306
    %v5308 = vrot.slane %v5269, %v5307
    %v5310 = vadd.f32 %v5302, %v5308
    %v5311 = vadd.f32 %v5303, %v5308
    %v5312 = vpack.c.bf16 %v5311, %v5310
    %s5313 = scalar_lea.vmem %s9, 256
    %v5314 = vld [vmem:[%s5313] sm:$0xff]
    %v5315 = vld [vmem:[%s5313 + $0x8] sm:$0xff]
    %v5316 = vld [vmem:[%s5313 + $0x10] sm:$0xff]
    %v5317 = vld [vmem:[%s5313 + $0x18] sm:$0xff]
    %v5318 = vld [vmem:[%s5313 + $0x20] sm:$0xff]
    %v5319 = vld [vmem:[%s5313 + $0x28] sm:$0xff]
    %v5320 = vld [vmem:[%s5313 + $0x30] sm:$0xff]
    %v5321 = vld [vmem:[%s5313 + $0x38] sm:$0xff]
    %v5322 = vld [vmem:[%s5313 + $0x40] sm:$0xff]
    %v5323 = vld [vmem:[%s5313 + $0x48] sm:$0xff]
    %v5324 = vld [vmem:[%s5313 + $0x50] sm:$0xff]
    %v5325 = vld [vmem:[%s5313 + $0x58] sm:$0xff]
    %v5326 = vld [vmem:[%s5313 + $0x60] sm:$0xff]
    %v5327 = vld [vmem:[%s5313 + $0x68] sm:$0xff]
    %v5328 = vld [vmem:[%s5313 + $0x70] sm:$0xff]
    %v5329 = vld [vmem:[%s5313 + $0x78] sm:$0xff]
    %v5330 = vld [vmem:[%s5313 + $0x80] sm:$0xff]
    %v5331 = vld [vmem:[%s5313 + $0x88] sm:$0xff]
    %v5332 = vld [vmem:[%s5313 + $0x90] sm:$0xff]
    %v5333 = vld [vmem:[%s5313 + $0x98] sm:$0xff]
    %v5334 = vld [vmem:[%s5313 + $0xa0] sm:$0xff]
    %v5335 = vld [vmem:[%s5313 + $0xa8] sm:$0xff]
    %v5336 = vld [vmem:[%s5313 + $0xb0] sm:$0xff]
    %v5337 = vld [vmem:[%s5313 + $0xb8] sm:$0xff]
    %v5338 = vld [vmem:[%s5313 + $0xc0] sm:$0xff]
    %v5339 = vld [vmem:[%s5313 + $0xc8] sm:$0xff]
    %v5340 = vld [vmem:[%s5313 + $0xd0] sm:$0xff]
    %v5341 = vld [vmem:[%s5313 + $0xd8] sm:$0xff]
    %v5342 = vld [vmem:[%s5313 + $0xe0] sm:$0xff]
    %v5343 = vld [vmem:[%s5313 + $0xe8] sm:$0xff]
    %v5344 = vld [vmem:[%s5313 + $0xf0] sm:$0xff]
    %v5345 = vld [vmem:[%s5313 + $0xf8] sm:$0xff]
    %s5346 = scalar_lea.vmem %s10, 16
    %v5347 = vld [vmem:[%s5346] sm:$0xff]
    %v5348 = vld [vmem:[%s5346 + $0x8] sm:$0xff]
    %v5351 = vlaneseq
    %v5352 = vshrl.u32 %v5351, 7
    %v5353 = vsub.s32 0, %v5352
    %v5354 = vrot.slane %v5347, %v5353
    %v5355 = vlaneseq
    %v5356 = vshrl.u32 %v5355, 7
    %v5357 = vsub.s32 1, %v5356
    %v5358 = vrot.slane %v5347, %v5357
    %v5359 = vlaneseq
    %v5360 = vshrl.u32 %v5359, 7
    %v5361 = vsub.s32 2, %v5360
    %v5362 = vrot.slane %v5347, %v5361
    %v5363 = vlaneseq
    %v5364 = vshrl.u32 %v5363, 7
    %v5365 = vsub.s32 3, %v5364
    %v5366 = vrot.slane %v5347, %v5365
    %v5367 = vlaneseq
    %v5368 = vshrl.u32 %v5367, 7
    %v5369 = vsub.s32 4, %v5368
    %v5370 = vrot.slane %v5347, %v5369
    %v5371 = vlaneseq
    %v5372 = vshrl.u32 %v5371, 7
    %v5373 = vsub.s32 5, %v5372
    %v5374 = vrot.slane %v5347, %v5373
    %v5375 = vlaneseq
    %v5376 = vshrl.u32 %v5375, 7
    %v5377 = vsub.s32 6, %v5376
    %v5378 = vrot.slane %v5347, %v5377
    %v5379 = vlaneseq
    %v5380 = vshrl.u32 %v5379, 7
    %v5381 = vsub.s32 7, %v5380
    %v5382 = vrot.slane %v5347, %v5381
    %v5383 = vlaneseq
    %v5384 = vshrl.u32 %v5383, 7
    %v5385 = vsub.s32 0, %v5384
    %v5386 = vrot.slane %v5348, %v5385
    %v5387 = vlaneseq
    %v5388 = vshrl.u32 %v5387, 7
    %v5389 = vsub.s32 1, %v5388
    %v5390 = vrot.slane %v5348, %v5389
    %v5391 = vlaneseq
    %v5392 = vshrl.u32 %v5391, 7
    %v5393 = vsub.s32 2, %v5392
    %v5394 = vrot.slane %v5348, %v5393
    %v5395 = vlaneseq
    %v5396 = vshrl.u32 %v5395, 7
    %v5397 = vsub.s32 3, %v5396
    %v5398 = vrot.slane %v5348, %v5397
    %v5399 = vlaneseq
    %v5400 = vshrl.u32 %v5399, 7
    %v5401 = vsub.s32 4, %v5400
    %v5402 = vrot.slane %v5348, %v5401
    %v5403 = vlaneseq
    %v5404 = vshrl.u32 %v5403, 7
    %v5405 = vsub.s32 5, %v5404
    %v5406 = vrot.slane %v5348, %v5405
    %v5407 = vlaneseq
    %v5408 = vshrl.u32 %v5407, 7
    %v5409 = vsub.s32 6, %v5408
    %v5410 = vrot.slane %v5348, %v5409
    %v5411 = vlaneseq
    %v5412 = vshrl.u32 %v5411, 7
    %v5413 = vsub.s32 7, %v5412
    %v5414 = vrot.slane %v5348, %v5413
    %v5463 = vunpack.c.l.b16 %v5314
    %v5464 = vunpack.c.h.b16 %v5314
    %v5465 = vunpack.c.l.b16 %v5315
    %v5466 = vunpack.c.h.b16 %v5315
    %v5467 = vunpack.c.l.b16 %v5316
    %v5468 = vunpack.c.h.b16 %v5316
    %v5469 = vunpack.c.l.b16 %v5317
    %v5470 = vunpack.c.h.b16 %v5317
    %v5471 = vunpack.c.l.b16 %v5318
    %v5472 = vunpack.c.h.b16 %v5318
    %v5473 = vunpack.c.l.b16 %v5319
    %v5474 = vunpack.c.h.b16 %v5319
    %v5475 = vunpack.c.l.b16 %v5320
    %v5476 = vunpack.c.h.b16 %v5320
    %v5477 = vunpack.c.l.b16 %v5321
    %v5478 = vunpack.c.h.b16 %v5321
    %v5479 = vunpack.c.l.b16 %v5322
    %v5480 = vunpack.c.h.b16 %v5322
    %v5481 = vunpack.c.l.b16 %v5323
    %v5482 = vunpack.c.h.b16 %v5323
    %v5483 = vunpack.c.l.b16 %v5324
    %v5484 = vunpack.c.h.b16 %v5324
    %v5485 = vunpack.c.l.b16 %v5325
    %v5486 = vunpack.c.h.b16 %v5325
    %v5487 = vunpack.c.l.b16 %v5326
    %v5488 = vunpack.c.h.b16 %v5326
    %v5489 = vunpack.c.l.b16 %v5327
    %v5490 = vunpack.c.h.b16 %v5327
    %v5491 = vunpack.c.l.b16 %v5328
    %v5492 = vunpack.c.h.b16 %v5328
    %v5493 = vunpack.c.l.b16 %v5329
    %v5494 = vunpack.c.h.b16 %v5329
    %v5495 = vunpack.c.l.b16 %v5330
    %v5496 = vunpack.c.h.b16 %v5330
    %v5497 = vunpack.c.l.b16 %v5331
    %v5498 = vunpack.c.h.b16 %v5331
    %v5499 = vunpack.c.l.b16 %v5332
    %v5500 = vunpack.c.h.b16 %v5332
    %v5501 = vunpack.c.l.b16 %v5333
    %v5502 = vunpack.c.h.b16 %v5333
    %v5503 = vunpack.c.l.b16 %v5334
    %v5504 = vunpack.c.h.b16 %v5334
    %v5505 = vunpack.c.l.b16 %v5335
    %v5506 = vunpack.c.h.b16 %v5335
    %v5507 = vunpack.c.l.b16 %v5336
    %v5508 = vunpack.c.h.b16 %v5336
    %v5509 = vunpack.c.l.b16 %v5337
    %v5510 = vunpack.c.h.b16 %v5337
    %v5511 = vunpack.c.l.b16 %v5338
    %v5512 = vunpack.c.h.b16 %v5338
    %v5513 = vunpack.c.l.b16 %v5339
    %v5514 = vunpack.c.h.b16 %v5339
    %v5515 = vunpack.c.l.b16 %v5340
    %v5516 = vunpack.c.h.b16 %v5340
    %v5517 = vunpack.c.l.b16 %v5341
    %v5518 = vunpack.c.h.b16 %v5341
    %v5519 = vunpack.c.l.b16 %v5342
    %v5520 = vunpack.c.h.b16 %v5342
    %v5521 = vunpack.c.l.b16 %v5343
    %v5522 = vunpack.c.h.b16 %v5343
    %v5523 = vunpack.c.l.b16 %v5344
    %v5524 = vunpack.c.h.b16 %v5344
    %v5525 = vunpack.c.l.b16 %v5345
    %v5526 = vunpack.c.h.b16 %v5345
    %v5527 = vpack.c.b16 %v5479, %v5463
    %v5528 = vpack.c.b16 %v5480, %v5464
    %v5529 = vpack.c.b16 %v5481, %v5465
    %v5530 = vpack.c.b16 %v5482, %v5466
    %v5531 = vpack.c.b16 %v5483, %v5467
    %v5532 = vpack.c.b16 %v5484, %v5468
    %v5533 = vpack.c.b16 %v5485, %v5469
    %v5534 = vpack.c.b16 %v5486, %v5470
    %v5535 = vpack.c.b16 %v5487, %v5471
    %v5536 = vpack.c.b16 %v5488, %v5472
    %v5537 = vpack.c.b16 %v5489, %v5473
    %v5538 = vpack.c.b16 %v5490, %v5474
    %v5539 = vpack.c.b16 %v5491, %v5475
    %v5540 = vpack.c.b16 %v5492, %v5476
    %v5541 = vpack.c.b16 %v5493, %v5477
    %v5542 = vpack.c.b16 %v5494, %v5478
    %v5543 = vpack.c.b16 %v5511, %v5495
    %v5544 = vpack.c.b16 %v5512, %v5496
    %v5545 = vpack.c.b16 %v5513, %v5497
    %v5546 = vpack.c.b16 %v5514, %v5498
    %v5547 = vpack.c.b16 %v5515, %v5499
    %v5548 = vpack.c.b16 %v5516, %v5500
    %v5549 = vpack.c.b16 %v5517, %v5501
    %v5550 = vpack.c.b16 %v5518, %v5502
    %v5551 = vpack.c.b16 %v5519, %v5503
    %v5552 = vpack.c.b16 %v5520, %v5504
    %v5553 = vpack.c.b16 %v5521, %v5505
    %v5554 = vpack.c.b16 %v5522, %v5506
    %v5555 = vpack.c.b16 %v5523, %v5507
    %v5556 = vpack.c.b16 %v5524, %v5508
    %v5557 = vpack.c.b16 %v5525, %v5509
    %v5558 = vpack.c.b16 %v5526, %v5510
    %v5592 = vsel %vm172, %v5312, 0
    %5594 = vmatprep.subr.bf16.mxu0 %v5528
    %5595 = vmatpush1.bf16.msra.mxu0 %v5527
    %5596 = vmatprep.subr.bf16.mxu0 %v5544
    %5597 = vmatpush1.bf16.msra.mxu0 %v5543
    %5598 = vmatprep.subr.bf16.mxu0 0
    %5599 = vmatpush1.bf16.msra.mxu0 0
    %5600 = vmatprep.subr.bf16.mxu0 0
    %5601 = vmatpush1.bf16.msra.mxu0 0
    %5602 = vmatprep.subr.bf16.mxu0 0
    %5603 = vmatpush1.bf16.msra.mxu0 0
    %5604 = vmatprep.subr.bf16.mxu0 0
    %5605 = vmatpush1.bf16.msra.mxu0 0
    %5606 = vmatprep.subr.bf16.mxu0 0
    %5607 = vmatpush1.bf16.msra.mxu0 0
    %5608 = vmatprep.subr.bf16.mxu0 0
    %5609 = vmatpush1.bf16.msra.mxu0 0
    %5610 = vmatprep.subr.bf16.mxu0 0
    %5611 = vmatpush1.bf16.msra.mxu0 0
    %5612 = vmatprep.subr.bf16.mxu0 0
    %5613 = vmatpush1.bf16.msra.mxu0 0
    %5614 = vmatprep.subr.bf16.mxu0 0
    %5615 = vmatpush1.bf16.msra.mxu0 0
    %5616 = vmatprep.subr.bf16.mxu0 0
    %5617 = vmatpush1.bf16.msra.mxu0 0
    %5618 = vmatprep.subr.bf16.mxu0 0
    %5619 = vmatpush1.bf16.msra.mxu0 0
    %5620 = vmatprep.subr.bf16.mxu0 0
    %5621 = vmatpush1.bf16.msra.mxu0 0
    %5622 = vmatprep.subr.bf16.mxu0 0
    %5623 = vmatpush1.bf16.msra.mxu0 0
    %5624 = vmatprep.subr.bf16.mxu0 0
    %5625 = vmatpush1.bf16.msra.mxu0 0
    %5626 = vmatprep.mubr.bf16.mxu0 0
    %5627 = vmatmul.mubr.bf16.gmra.mrb[0].mxu0 %v5592
    %v5628 = vpop.f32.mrb[0].mxu0
    %v5629 = vadd.f32 %v5354, %v5628
    %v5630 = vpop.f32.mrb[0].mxu0
    %v5631 = vadd.f32 %v5358, %v5630
    %v5632 = vpop.f32.mrb[0].mxu0
    %v5633 = vadd.f32 %v5354, %v5632
    %v5634 = vpop.f32.mrb[0].mxu0
    %v5635 = vadd.f32 %v5358, %v5634
    %5636 = vdwg.mxu0
    %5637 = vmatprep.subr.bf16.mxu0 %v5530
    %5638 = vmatpush1.bf16.msra.mxu0 %v5529
    %5639 = vmatprep.subr.bf16.mxu0 %v5546
    %5640 = vmatpush1.bf16.msra.mxu0 %v5545
    %5641 = vmatprep.subr.bf16.mxu0 0
    %5642 = vmatpush1.bf16.msra.mxu0 0
    %5643 = vmatprep.subr.bf16.mxu0 0
    %5644 = vmatpush1.bf16.msra.mxu0 0
    %5645 = vmatprep.subr.bf16.mxu0 0
    %5646 = vmatpush1.bf16.msra.mxu0 0
    %5647 = vmatprep.subr.bf16.mxu0 0
    %5648 = vmatpush1.bf16.msra.mxu0 0
    %5649 = vmatprep.subr.bf16.mxu0 0
    %5650 = vmatpush1.bf16.msra.mxu0 0
    %5651 = vmatprep.subr.bf16.mxu0 0
    %5652 = vmatpush1.bf16.msra.mxu0 0
    %5653 = vmatprep.subr.bf16.mxu0 0
    %5654 = vmatpush1.bf16.msra.mxu0 0
    %5655 = vmatprep.subr.bf16.mxu0 0
    %5656 = vmatpush1.bf16.msra.mxu0 0
    %5657 = vmatprep.subr.bf16.mxu0 0
    %5658 = vmatpush1.bf16.msra.mxu0 0
    %5659 = vmatprep.subr.bf16.mxu0 0
    %5660 = vmatpush1.bf16.msra.mxu0 0
    %5661 = vmatprep.subr.bf16.mxu0 0
    %5662 = vmatpush1.bf16.msra.mxu0 0
    %5663 = vmatprep.subr.bf16.mxu0 0
    %5664 = vmatpush1.bf16.msra.mxu0 0
    %5665 = vmatprep.subr.bf16.mxu0 0
    %5666 = vmatpush1.bf16.msra.mxu0 0
    %5667 = vmatprep.subr.bf16.mxu0 0
    %5668 = vmatpush1.bf16.msra.mxu0 0
    %5669 = vmatprep.mubr.bf16.mxu0 0
    %5670 = vmatmul.mubr.bf16.gmra.mrb[0].mxu0 %v5592
    %v5671 = vpop.f32.mrb[0].mxu0
    %v5672 = vadd.f32 %v5362, %v5671
    %v5673 = vpop.f32.mrb[0].mxu0
    %v5674 = vadd.f32 %v5366, %v5673
    %v5675 = vpop.f32.mrb[0].mxu0
    %v5676 = vadd.f32 %v5362, %v5675
    %v5677 = vpop.f32.mrb[0].mxu0
    %v5678 = vadd.f32 %v5366, %v5677
    %5679 = vdwg.mxu0
    %5680 = vmatprep.subr.bf16.mxu0 %v5532
    %5681 = vmatpush1.bf16.msra.mxu0 %v5531
    %5682 = vmatprep.subr.bf16.mxu0 %v5548
    %5683 = vmatpush1.bf16.msra.mxu0 %v5547
    %5684 = vmatprep.subr.bf16.mxu0 0
    %5685 = vmatpush1.bf16.msra.mxu0 0
    %5686 = vmatprep.subr.bf16.mxu0 0
    %5687 = vmatpush1.bf16.msra.mxu0 0
    %5688 = vmatprep.subr.bf16.mxu0 0
    %5689 = vmatpush1.bf16.msra.mxu0 0
    %5690 = vmatprep.subr.bf16.mxu0 0
    %5691 = vmatpush1.bf16.msra.mxu0 0
    %5692 = vmatprep.subr.bf16.mxu0 0
    %5693 = vmatpush1.bf16.msra.mxu0 0
    %5694 = vmatprep.subr.bf16.mxu0 0
    %5695 = vmatpush1.bf16.msra.mxu0 0
    %5696 = vmatprep.subr.bf16.mxu0 0
    %5697 = vmatpush1.bf16.msra.mxu0 0
    %5698 = vmatprep.subr.bf16.mxu0 0
    %5699 = vmatpush1.bf16.msra.mxu0 0
    %5700 = vmatprep.subr.bf16.mxu0 0
    %5701 = vmatpush1.bf16.msra.mxu0 0
    %5702 = vmatprep.subr.bf16.mxu0 0
    %5703 = vmatpush1.bf16.msra.mxu0 0
    %5704 = vmatprep.subr.bf16.mxu0 0
    %5705 = vmatpush1.bf16.msra.mxu0 0
    %5706 = vmatprep.subr.bf16.mxu0 0
    %5707 = vmatpush1.bf16.msra.mxu0 0
    %5708 = vmatprep.subr.bf16.mxu0 0
    %5709 = vmatpush1.bf16.msra.mxu0 0
    %5710 = vmatprep.subr.bf16.mxu0 0
    %5711 = vmatpush1.bf16.msra.mxu0 0
    %5712 = vmatprep.mubr.bf16.mxu0 0
    %5713 = vmatmul.mubr.bf16.gmra.mrb[0].mxu0 %v5592
    %v5714 = vpop.f32.mrb[0].mxu0
    %v5715 = vadd.f32 %v5370, %v5714
    %v5716 = vpop.f32.mrb[0].mxu0
    %v5717 = vadd.f32 %v5374, %v5716
    %v5718 = vpop.f32.mrb[0].mxu0
    %v5719 = vadd.f32 %v5370, %v5718
    %v5720 = vpop.f32.mrb[0].mxu0
    %v5721 = vadd.f32 %v5374, %v5720
    %5722 = vdwg.mxu0
    %5723 = vmatprep.subr.bf16.mxu0 %v5534
    %5724 = vmatpush1.bf16.msra.mxu0 %v5533
    %5725 = vmatprep.subr.bf16.mxu0 %v5550
    %5726 = vmatpush1.bf16.msra.mxu0 %v5549
    %5727 = vmatprep.subr.bf16.mxu0 0
    %5728 = vmatpush1.bf16.msra.mxu0 0
    %5729 = vmatprep.subr.bf16.mxu0 0
    %5730 = vmatpush1.bf16.msra.mxu0 0
    %5731 = vmatprep.subr.bf16.mxu0 0
    %5732 = vmatpush1.bf16.msra.mxu0 0
    %5733 = vmatprep.subr.bf16.mxu0 0
    %5734 = vmatpush1.bf16.msra.mxu0 0
    %5735 = vmatprep.subr.bf16.mxu0 0
    %5736 = vmatpush1.bf16.msra.mxu0 0
    %5737 = vmatprep.subr.bf16.mxu0 0
    %5738 = vmatpush1.bf16.msra.mxu0 0
    %5739 = vmatprep.subr.bf16.mxu0 0
    %5740 = vmatpush1.bf16.msra.mxu0 0
    %5741 = vmatprep.subr.bf16.mxu0 0
    %5742 = vmatpush1.bf16.msra.mxu0 0
    %5743 = vmatprep.subr.bf16.mxu0 0
    %5744 = vmatpush1.bf16.msra.mxu0 0
    %5745 = vmatprep.subr.bf16.mxu0 0
    %5746 = vmatpush1.bf16.msra.mxu0 0
    %5747 = vmatprep.subr.bf16.mxu0 0
    %5748 = vmatpush1.bf16.msra.mxu0 0
    %5749 = vmatprep.subr.bf16.mxu0 0
    %5750 = vmatpush1.bf16.msra.mxu0 0
    %5751 = vmatprep.subr.bf16.mxu0 0
    %5752 = vmatpush1.bf16.msra.mxu0 0
    %5753 = vmatprep.subr.bf16.mxu0 0
    %5754 = vmatpush1.bf16.msra.mxu0 0
    %5755 = vmatprep.mubr.bf16.mxu0 0
    %5756 = vmatmul.mubr.bf16.gmra.mrb[0].mxu0 %v5592
    %v5757 = vpop.f32.mrb[0].mxu0
    %v5758 = vadd.f32 %v5378, %v5757
    %v5759 = vpop.f32.mrb[0].mxu0
    %v5760 = vadd.f32 %v5382, %v5759
    %v5761 = vpop.f32.mrb[0].mxu0
    %v5762 = vadd.f32 %v5378, %v5761
    %v5763 = vpop.f32.mrb[0].mxu0
    %v5764 = vadd.f32 %v5382, %v5763
    %5765 = vdwg.mxu0
    %5766 = vmatprep.subr.bf16.mxu0 %v5536
    %5767 = vmatpush1.bf16.msra.mxu0 %v5535
    %5768 = vmatprep.subr.bf16.mxu0 %v5552
    %5769 = vmatpush1.bf16.msra.mxu0 %v5551
    %5770 = vmatprep.subr.bf16.mxu0 0
    %5771 = vmatpush1.bf16.msra.mxu0 0
    %5772 = vmatprep.subr.bf16.mxu0 0
    %5773 = vmatpush1.bf16.msra.mxu0 0
    %5774 = vmatprep.subr.bf16.mxu0 0
    %5775 = vmatpush1.bf16.msra.mxu0 0
    %5776 = vmatprep.subr.bf16.mxu0 0
    %5777 = vmatpush1.bf16.msra.mxu0 0
    %5778 = vmatprep.subr.bf16.mxu0 0
    %5779 = vmatpush1.bf16.msra.mxu0 0
    %5780 = vmatprep.subr.bf16.mxu0 0
    %5781 = vmatpush1.bf16.msra.mxu0 0
    %5782 = vmatprep.subr.bf16.mxu0 0
    %5783 = vmatpush1.bf16.msra.mxu0 0
    %5784 = vmatprep.subr.bf16.mxu0 0
    %5785 = vmatpush1.bf16.msra.mxu0 0
    %5786 = vmatprep.subr.bf16.mxu0 0
    %5787 = vmatpush1.bf16.msra.mxu0 0
    %5788 = vmatprep.subr.bf16.mxu0 0
    %5789 = vmatpush1.bf16.msra.mxu0 0
    %5790 = vmatprep.subr.bf16.mxu0 0
    %5791 = vmatpush1.bf16.msra.mxu0 0
    %5792 = vmatprep.subr.bf16.mxu0 0
    %5793 = vmatpush1.bf16.msra.mxu0 0
    %5794 = vmatprep.subr.bf16.mxu0 0
    %5795 = vmatpush1.bf16.msra.mxu0 0
    %5796 = vmatprep.subr.bf16.mxu0 0
    %5797 = vmatpush1.bf16.msra.mxu0 0
    %5798 = vmatprep.mubr.bf16.mxu0 0
    %5799 = vmatmul.mubr.bf16.gmra.mrb[0].mxu0 %v5592
    %v5800 = vpop.f32.mrb[0].mxu0
    %v5801 = vadd.f32 %v5386, %v5800
    %v5802 = vpop.f32.mrb[0].mxu0
    %v5803 = vadd.f32 %v5390, %v5802
    %v5804 = vpop.f32.mrb[0].mxu0
    %v5805 = vadd.f32 %v5386, %v5804
    %v5806 = vpop.f32.mrb[0].mxu0
    %v5807 = vadd.f32 %v5390, %v5806
    %5808 = vdwg.mxu0
    %5809 = vmatprep.subr.bf16.mxu0 %v5538
    %5810 = vmatpush1.bf16.msra.mxu0 %v5537
    %5811 = vmatprep.subr.bf16.mxu0 %v5554
    %5812 = vmatpush1.bf16.msra.mxu0 %v5553
    %5813 = vmatprep.subr.bf16.mxu0 0
    %5814 = vmatpush1.bf16.msra.mxu0 0
    %5815 = vmatprep.subr.bf16.mxu0 0
    %5816 = vmatpush1.bf16.msra.mxu0 0
    %5817 = vmatprep.subr.bf16.mxu0 0
    %5818 = vmatpush1.bf16.msra.mxu0 0
    %5819 = vmatprep.subr.bf16.mxu0 0
    %5820 = vmatpush1.bf16.msra.mxu0 0
    %5821 = vmatprep.subr.bf16.mxu0 0
    %5822 = vmatpush1.bf16.msra.mxu0 0
    %5823 = vmatprep.subr.bf16.mxu0 0
    %5824 = vmatpush1.bf16.msra.mxu0 0
    %5825 = vmatprep.subr.bf16.mxu0 0
    %5826 = vmatpush1.bf16.msra.mxu0 0
    %5827 = vmatprep.subr.bf16.mxu0 0
    %5828 = vmatpush1.bf16.msra.mxu0 0
    %5829 = vmatprep.subr.bf16.mxu0 0
    %5830 = vmatpush1.bf16.msra.mxu0 0
    %5831 = vmatprep.subr.bf16.mxu0 0
    %5832 = vmatpush1.bf16.msra.mxu0 0
    %5833 = vmatprep.subr.bf16.mxu0 0
    %5834 = vmatpush1.bf16.msra.mxu0 0
    %5835 = vmatprep.subr.bf16.mxu0 0
    %5836 = vmatpush1.bf16.msra.mxu0 0
    %5837 = vmatprep.subr.bf16.mxu0 0
    %5838 = vmatpush1.bf16.msra.mxu0 0
    %5839 = vmatprep.subr.bf16.mxu0 0
    %5840 = vmatpush1.bf16.msra.mxu0 0
    %5841 = vmatprep.mubr.bf16.mxu0 0
    %5842 = vmatmul.mubr.bf16.gmra.mrb[0].mxu0 %v5592
    %v5843 = vpop.f32.mrb[0].mxu0
    %v5844 = vadd.f32 %v5394, %v5843
    %v5845 = vpop.f32.mrb[0].mxu0
    %v5846 = vadd.f32 %v5398, %v5845
    %v5847 = vpop.f32.mrb[0].mxu0
    %v5848 = vadd.f32 %v5394, %v5847
    %v5849 = vpop.f32.mrb[0].mxu0
    %v5850 = vadd.f32 %v5398, %v5849
    %5851 = vdwg.mxu0
    %5852 = vmatprep.subr.bf16.mxu0 %v5540
    %5853 = vmatpush1.bf16.msra.mxu0 %v5539
    %5854 = vmatprep.subr.bf16.mxu0 %v5556
    %5855 = vmatpush1.bf16.msra.mxu0 %v5555
    %5856 = vmatprep.subr.bf16.mxu0 0
    %5857 = vmatpush1.bf16.msra.mxu0 0
    %5858 = vmatprep.subr.bf16.mxu0 0
    %5859 = vmatpush1.bf16.msra.mxu0 0
    %5860 = vmatprep.subr.bf16.mxu0 0
    %5861 = vmatpush1.bf16.msra.mxu0 0
    %5862 = vmatprep.subr.bf16.mxu0 0
    %5863 = vmatpush1.bf16.msra.mxu0 0
    %5864 = vmatprep.subr.bf16.mxu0 0
    %5865 = vmatpush1.bf16.msra.mxu0 0
    %5866 = vmatprep.subr.bf16.mxu0 0
    %5867 = vmatpush1.bf16.msra.mxu0 0
    %5868 = vmatprep.subr.bf16.mxu0 0
    %5869 = vmatpush1.bf16.msra.mxu0 0
    %5870 = vmatprep.subr.bf16.mxu0 0
    %5871 = vmatpush1.bf16.msra.mxu0 0
    %5872 = vmatprep.subr.bf16.mxu0 0
    %5873 = vmatpush1.bf16.msra.mxu0 0
    %5874 = vmatprep.subr.bf16.mxu0 0
    %5875 = vmatpush1.bf16.msra.mxu0 0
    %5876 = vmatprep.subr.bf16.mxu0 0
    %5877 = vmatpush1.bf16.msra.mxu0 0
    %5878 = vmatprep.subr.bf16.mxu0 0
    %5879 = vmatpush1.bf16.msra.mxu0 0
    %5880 = vmatprep.subr.bf16.mxu0 0
    %5881 = vmatpush1.bf16.msra.mxu0 0
    %5882 = vmatprep.subr.bf16.mxu0 0
    %5883 = vmatpush1.bf16.msra.mxu0 0
    %5884 = vmatprep.mubr.bf16.mxu0 0
    %5885 = vmatmul.mubr.bf16.gmra.mrb[0].mxu0 %v5592
    %v5886 = vpop.f32.mrb[0].mxu0
    %v5887 = vadd.f32 %v5402, %v5886
    %v5888 = vpop.f32.mrb[0].mxu0
    %v5889 = vadd.f32 %v5406, %v5888
    %v5890 = vpop.f32.mrb[0].mxu0
    %v5891 = vadd.f32 %v5402, %v5890
    %v5892 = vpop.f32.mrb[0].mxu0
    %v5893 = vadd.f32 %v5406, %v5892
    %5894 = vdwg.mxu0
    %5895 = vmatprep.subr.bf16.mxu0 %v5542
    %5896 = vmatpush1.bf16.msra.mxu0 %v5541
    %5897 = vmatprep.subr.bf16.mxu0 %v5558
    %5898 = vmatpush1.bf16.msra.mxu0 %v5557
    %5899 = vmatprep.subr.bf16.mxu0 0
    %5900 = vmatpush1.bf16.msra.mxu0 0
    %5901 = vmatprep.subr.bf16.mxu0 0
    %5902 = vmatpush1.bf16.msra.mxu0 0
    %5903 = vmatprep.subr.bf16.mxu0 0
    %5904 = vmatpush1.bf16.msra.mxu0 0
    %5905 = vmatprep.subr.bf16.mxu0 0
    %5906 = vmatpush1.bf16.msra.mxu0 0
    %5907 = vmatprep.subr.bf16.mxu0 0
    %5908 = vmatpush1.bf16.msra.mxu0 0
    %5909 = vmatprep.subr.bf16.mxu0 0
    %5910 = vmatpush1.bf16.msra.mxu0 0
    %5911 = vmatprep.subr.bf16.mxu0 0
    %5912 = vmatpush1.bf16.msra.mxu0 0
    %5913 = vmatprep.subr.bf16.mxu0 0
    %5914 = vmatpush1.bf16.msra.mxu0 0
    %5915 = vmatprep.subr.bf16.mxu0 0
    %5916 = vmatpush1.bf16.msra.mxu0 0
    %5917 = vmatprep.subr.bf16.mxu0 0
    %5918 = vmatpush1.bf16.msra.mxu0 0
    %5919 = vmatprep.subr.bf16.mxu0 0
    %5920 = vmatpush1.bf16.msra.mxu0 0
    %5921 = vmatprep.subr.bf16.mxu0 0
    %5922 = vmatpush1.bf16.msra.mxu0 0
    %5923 = vmatprep.subr.bf16.mxu0 0
    %5924 = vmatpush1.bf16.msra.mxu0 0
    %5925 = vmatprep.subr.bf16.mxu0 0
    %5926 = vmatpush1.bf16.msra.mxu0 0
    %5927 = vmatprep.mubr.bf16.mxu0 0
    %5928 = vmatmul.mubr.bf16.gmra.mrb[0].mxu0 %v5592
    %v5929 = vpop.f32.mrb[0].mxu0
    %v5930 = vadd.f32 %v5410, %v5929
    %v5931 = vpop.f32.mrb[0].mxu0
    %v5932 = vadd.f32 %v5414, %v5931
    %v5933 = vpop.f32.mrb[0].mxu0
    %v5934 = vadd.f32 %v5410, %v5933
    %v5935 = vpop.f32.mrb[0].mxu0
    %v5936 = vadd.f32 %v5414, %v5935
    %5937 = vdwg.mxu0
    %v5938 = vmax.f32 %v5629, 0.0
    %v5939 = vmax.f32 %v5631, 0.0
    %v5940 = vmax.f32 %v5672, 0.0
    %v5941 = vmax.f32 %v5674, 0.0
    %v5942 = vmax.f32 %v5715, 0.0
    %v5943 = vmax.f32 %v5717, 0.0
    %v5944 = vmax.f32 %v5758, 0.0
    %v5945 = vmax.f32 %v5760, 0.0
    %v5946 = vmax.f32 %v5801, 0.0
    %v5947 = vmax.f32 %v5803, 0.0
    %v5948 = vmax.f32 %v5844, 0.0
    %v5949 = vmax.f32 %v5846, 0.0
    %v5950 = vmax.f32 %v5887, 0.0
    %v5951 = vmax.f32 %v5889, 0.0
    %v5952 = vmax.f32 %v5930, 0.0
    %v5953 = vmax.f32 %v5932, 0.0
    %v5954 = vmax.f32 %v5633, 0.0
    %v5955 = vmax.f32 %v5635, 0.0
    %v5956 = vmax.f32 %v5676, 0.0
    %v5957 = vmax.f32 %v5678, 0.0
    %v5958 = vmax.f32 %v5719, 0.0
    %v5959 = vmax.f32 %v5721, 0.0
    %v5960 = vmax.f32 %v5762, 0.0
    %v5961 = vmax.f32 %v5764, 0.0
    %v5962 = vmax.f32 %v5805, 0.0
    %v5963 = vmax.f32 %v5807, 0.0
    %v5964 = vmax.f32 %v5848, 0.0
    %v5965 = vmax.f32 %v5850, 0.0
    %v5966 = vmax.f32 %v5891, 0.0
    %v5967 = vmax.f32 %v5893, 0.0
    %v5968 = vmax.f32 %v5934, 0.0
    %v5969 = vmax.f32 %v5936, 0.0
    %v5970 = vpack.c.bf16 %v5954, %v5938
    %v5971 = vpack.c.bf16 %v5955, %v5939
    %v5972 = vpack.c.bf16 %v5956, %v5940
    %v5973 = vpack.c.bf16 %v5957, %v5941
    %v5974 = vpack.c.bf16 %v5958, %v5942
    %v5975 = vpack.c.bf16 %v5959, %v5943
    %v5976 = vpack.c.bf16 %v5960, %v5944
    %v5977 = vpack.c.bf16 %v5961, %v5945
    %v5978 = vpack.c.bf16 %v5962, %v5946
    %v5979 = vpack.c.bf16 %v5963, %v5947
    %v5980 = vpack.c.bf16 %v5964, %v5948
    %v5981 = vpack.c.bf16 %v5965, %v5949
    %v5982 = vpack.c.bf16 %v5966, %v5950
    %v5983 = vpack.c.bf16 %v5967, %v5951
    %v5984 = vpack.c.bf16 %v5968, %v5952
    %v5985 = vpack.c.bf16 %v5969, %v5953
    %s5986 = scalar_lea.vmem %s11, 1024
    %v5987 = vld [vmem:[%s5986] sm:$0xf]
    %v5988 = vld [vmem:[%s5986 + $0x4] sm:$0xf]
    %v5989 = vld [vmem:[%s5986 + $0x8] sm:$0xf]
    %v5990 = vld [vmem:[%s5986 + $0xc] sm:$0xf]
    %v5991 = vld [vmem:[%s5986 + $0x10] sm:$0xf]
    %v5992 = vld [vmem:[%s5986 + $0x14] sm:$0xf]
    %v5993 = vld [vmem:[%s5986 + $0x18] sm:$0xf]
    %v5994 = vld [vmem:[%s5986 + $0x1c] sm:$0xf]
    %v5995 = vld [vmem:[%s5986 + $0x20] sm:$0xf]
    %v5996 = vld [vmem:[%s5986 + $0x24] sm:$0xf]
    %v5997 = vld [vmem:[%s5986 + $0x28] sm:$0xf]
    %v5998 = vld [vmem:[%s5986 + $0x2c] sm:$0xf]
    %v5999 = vld [vmem:[%s5986 + $0x30] sm:$0xf]
    %v6000 = vld [vmem:[%s5986 + $0x34] sm:$0xf]
    %v6001 = vld [vmem:[%s5986 + $0x38] sm:$0xf]
    %v6002 = vld [vmem:[%s5986 + $0x3c] sm:$0xf]
    %v6003 = vld [vmem:[%s5986 + $0x40] sm:$0xf]
    %v6004 = vld [vmem:[%s5986 + $0x44] sm:$0xf]
    %v6005 = vld [vmem:[%s5986 + $0x48] sm:$0xf]
    %v6006 = vld [vmem:[%s5986 + $0x4c] sm:$0xf]
    %v6007 = vld [vmem:[%s5986 + $0x50] sm:$0xf]
    %v6008 = vld [vmem:[%s5986 + $0x54] sm:$0xf]
    %v6009 = vld [vmem:[%s5986 + $0x58] sm:$0xf]
    %v6010 = vld [vmem:[%s5986 + $0x5c] sm:$0xf]
    %v6011 = vld [vmem:[%s5986 + $0x60] sm:$0xf]
    %v6012 = vld [vmem:[%s5986 + $0x64] sm:$0xf]
    %v6013 = vld [vmem:[%s5986 + $0x68] sm:$0xf]
    %v6014 = vld [vmem:[%s5986 + $0x6c] sm:$0xf]
    %v6015 = vld [vmem:[%s5986 + $0x70] sm:$0xf]
    %v6016 = vld [vmem:[%s5986 + $0x74] sm:$0xf]
    %v6017 = vld [vmem:[%s5986 + $0x78] sm:$0xf]
    %v6018 = vld [vmem:[%s5986 + $0x7c] sm:$0xf]
    %v6019 = vld [vmem:[%s5986 + $0x80] sm:$0xf]
    %v6020 = vld [vmem:[%s5986 + $0x84] sm:$0xf]
    %v6021 = vld [vmem:[%s5986 + $0x88] sm:$0xf]
    %v6022 = vld [vmem:[%s5986 + $0x8c] sm:$0xf]
    %v6023 = vld [vmem:[%s5986 + $0x90] sm:$0xf]
    %v6024 = vld [vmem:[%s5986 + $0x94] sm:$0xf]
    %v6025 = vld [vmem:[%s5986 + $0x98] sm:$0xf]
    %v6026 = vld [vmem:[%s5986 + $0x9c] sm:$0xf]
    %v6027 = vld [vmem:[%s5986 + $0xa0] sm:$0xf]
    %v6028 = vld [vmem:[%s5986 + $0xa4] sm:$0xf]
    %v6029 = vld [vmem:[%s5986 + $0xa8] sm:$0xf]
    %v6030 = vld [vmem:[%s5986 + $0xac] sm:$0xf]
    %v6031 = vld [vmem:[%s5986 + $0xb0] sm:$0xf]
    %v6032 = vld [vmem:[%s5986 + $0xb4] sm:$0xf]
    %v6033 = vld [vmem:[%s5986 + $0xb8] sm:$0xf]
    %v6034 = vld [vmem:[%s5986 + $0xbc] sm:$0xf]
    %v6035 = vld [vmem:[%s5986 + $0xc0] sm:$0xf]
    %v6036 = vld [vmem:[%s5986 + $0xc4] sm:$0xf]
    %v6037 = vld [vmem:[%s5986 + $0xc8] sm:$0xf]
    %v6038 = vld [vmem:[%s5986 + $0xcc] sm:$0xf]
    %v6039 = vld [vmem:[%s5986 + $0xd0] sm:$0xf]
    %v6040 = vld [vmem:[%s5986 + $0xd4] sm:$0xf]
    %v6041 = vld [vmem:[%s5986 + $0xd8] sm:$0xf]
    %v6042 = vld [vmem:[%s5986 + $0xdc] sm:$0xf]
    %v6043 = vld [vmem:[%s5986 + $0xe0] sm:$0xf]
    %v6044 = vld [vmem:[%s5986 + $0xe4] sm:$0xf]
    %v6045 = vld [vmem:[%s5986 + $0xe8] sm:$0xf]
    %v6046 = vld [vmem:[%s5986 + $0xec] sm:$0xf]
    %v6047 = vld [vmem:[%s5986 + $0xf0] sm:$0xf]
    %v6048 = vld [vmem:[%s5986 + $0xf4] sm:$0xf]
    %v6049 = vld [vmem:[%s5986 + $0xf8] sm:$0xf]
    %v6050 = vld [vmem:[%s5986 + $0xfc] sm:$0xf]
    %v6051 = vld [vmem:[%s5986 + $0x100] sm:$0xf]
    %v6052 = vld [vmem:[%s5986 + $0x104] sm:$0xf]
    %v6053 = vld [vmem:[%s5986 + $0x108] sm:$0xf]
    %v6054 = vld [vmem:[%s5986 + $0x10c] sm:$0xf]
    %v6055 = vld [vmem:[%s5986 + $0x110] sm:$0xf]
    %v6056 = vld [vmem:[%s5986 + $0x114] sm:$0xf]
    %v6057 = vld [vmem:[%s5986 + $0x118] sm:$0xf]
    %v6058 = vld [vmem:[%s5986 + $0x11c] sm:$0xf]
    %v6059 = vld [vmem:[%s5986 + $0x120] sm:$0xf]
    %v6060 = vld [vmem:[%s5986 + $0x124] sm:$0xf]
    %v6061 = vld [vmem:[%s5986 + $0x128] sm:$0xf]
    %v6062 = vld [vmem:[%s5986 + $0x12c] sm:$0xf]
    %v6063 = vld [vmem:[%s5986 + $0x130] sm:$0xf]
    %v6064 = vld [vmem:[%s5986 + $0x134] sm:$0xf]
    %v6065 = vld [vmem:[%s5986 + $0x138] sm:$0xf]
    %v6066 = vld [vmem:[%s5986 + $0x13c] sm:$0xf]
    %v6067 = vld [vmem:[%s5986 + $0x140] sm:$0xf]
    %v6068 = vld [vmem:[%s5986 + $0x144] sm:$0xf]
    %v6069 = vld [vmem:[%s5986 + $0x148] sm:$0xf]
    %v6070 = vld [vmem:[%s5986 + $0x14c] sm:$0xf]
    %v6071 = vld [vmem:[%s5986 + $0x150] sm:$0xf]
    %v6072 = vld [vmem:[%s5986 + $0x154] sm:$0xf]
    %v6073 = vld [vmem:[%s5986 + $0x158] sm:$0xf]
    %v6074 = vld [vmem:[%s5986 + $0x15c] sm:$0xf]
    %v6075 = vld [vmem:[%s5986 + $0x160] sm:$0xf]
    %v6076 = vld [vmem:[%s5986 + $0x164] sm:$0xf]
    %v6077 = vld [vmem:[%s5986 + $0x168] sm:$0xf]
    %v6078 = vld [vmem:[%s5986 + $0x16c] sm:$0xf]
    %v6079 = vld [vmem:[%s5986 + $0x170] sm:$0xf]
    %v6080 = vld [vmem:[%s5986 + $0x174] sm:$0xf]
    %v6081 = vld [vmem:[%s5986 + $0x178] sm:$0xf]
    %v6082 = vld [vmem:[%s5986 + $0x17c] sm:$0xf]
    %v6083 = vld [vmem:[%s5986 + $0x180] sm:$0xf]
    %v6084 = vld [vmem:[%s5986 + $0x184] sm:$0xf]
    %v6085 = vld [vmem:[%s5986 + $0x188] sm:$0xf]
    %v6086 = vld [vmem:[%s5986 + $0x18c] sm:$0xf]
    %v6087 = vld [vmem:[%s5986 + $0x190] sm:$0xf]
    %v6088 = vld [vmem:[%s5986 + $0x194] sm:$0xf]
    %v6089 = vld [vmem:[%s5986 + $0x198] sm:$0xf]
    %v6090 = vld [vmem:[%s5986 + $0x19c] sm:$0xf]
    %v6091 = vld [vmem:[%s5986 + $0x1a0] sm:$0xf]
    %v6092 = vld [vmem:[%s5986 + $0x1a4] sm:$0xf]
    %v6093 = vld [vmem:[%s5986 + $0x1a8] sm:$0xf]
    %v6094 = vld [vmem:[%s5986 + $0x1ac] sm:$0xf]
    %v6095 = vld [vmem:[%s5986 + $0x1b0] sm:$0xf]
    %v6096 = vld [vmem:[%s5986 + $0x1b4] sm:$0xf]
    %v6097 = vld [vmem:[%s5986 + $0x1b8] sm:$0xf]
    %v6098 = vld [vmem:[%s5986 + $0x1bc] sm:$0xf]
    %v6099 = vld [vmem:[%s5986 + $0x1c0] sm:$0xf]
    %v6100 = vld [vmem:[%s5986 + $0x1c4] sm:$0xf]
    %v6101 = vld [vmem:[%s5986 + $0x1c8] sm:$0xf]
    %v6102 = vld [vmem:[%s5986 + $0x1cc] sm:$0xf]
    %v6103 = vld [vmem:[%s5986 + $0x1d0] sm:$0xf]
    %v6104 = vld [vmem:[%s5986 + $0x1d4] sm:$0xf]
    %v6105 = vld [vmem:[%s5986 + $0x1d8] sm:$0xf]
    %v6106 = vld [vmem:[%s5986 + $0x1dc] sm:$0xf]
    %v6107 = vld [vmem:[%s5986 + $0x1e0] sm:$0xf]
    %v6108 = vld [vmem:[%s5986 + $0x1e4] sm:$0xf]
    %v6109 = vld [vmem:[%s5986 + $0x1e8] sm:$0xf]
    %v6110 = vld [vmem:[%s5986 + $0x1ec] sm:$0xf]
    %v6111 = vld [vmem:[%s5986 + $0x1f0] sm:$0xf]
    %v6112 = vld [vmem:[%s5986 + $0x1f4] sm:$0xf]
    %v6113 = vld [vmem:[%s5986 + $0x1f8] sm:$0xf]
    %v6114 = vld [vmem:[%s5986 + $0x1fc] sm:$0xf]
    %v6115 = vld [vmem:[%s5986 + $0x200] sm:$0xf]
    %v6116 = vld [vmem:[%s5986 + $0x204] sm:$0xf]
    %v6117 = vld [vmem:[%s5986 + $0x208] sm:$0xf]
    %v6118 = vld [vmem:[%s5986 + $0x20c] sm:$0xf]
    %v6119 = vld [vmem:[%s5986 + $0x210] sm:$0xf]
    %v6120 = vld [vmem:[%s5986 + $0x214] sm:$0xf]
    %v6121 = vld [vmem:[%s5986 + $0x218] sm:$0xf]
    %v6122 = vld [vmem:[%s5986 + $0x21c] sm:$0xf]
    %v6123 = vld [vmem:[%s5986 + $0x220] sm:$0xf]
    %v6124 = vld [vmem:[%s5986 + $0x224] sm:$0xf]
    %v6125 = vld [vmem:[%s5986 + $0x228] sm:$0xf]
    %v6126 = vld [vmem:[%s5986 + $0x22c] sm:$0xf]
    %v6127 = vld [vmem:[%s5986 + $0x230] sm:$0xf]
    %v6128 = vld [vmem:[%s5986 + $0x234] sm:$0xf]
    %v6129 = vld [vmem:[%s5986 + $0x238] sm:$0xf]
    %v6130 = vld [vmem:[%s5986 + $0x23c] sm:$0xf]
    %v6131 = vld [vmem:[%s5986 + $0x240] sm:$0xf]
    %v6132 = vld [vmem:[%s5986 + $0x244] sm:$0xf]
    %v6133 = vld [vmem:[%s5986 + $0x248] sm:$0xf]
    %v6134 = vld [vmem:[%s5986 + $0x24c] sm:$0xf]
    %v6135 = vld [vmem:[%s5986 + $0x250] sm:$0xf]
    %v6136 = vld [vmem:[%s5986 + $0x254] sm:$0xf]
    %v6137 = vld [vmem:[%s5986 + $0x258] sm:$0xf]
    %v6138 = vld [vmem:[%s5986 + $0x25c] sm:$0xf]
    %v6139 = vld [vmem:[%s5986 + $0x260] sm:$0xf]
    %v6140 = vld [vmem:[%s5986 + $0x264] sm:$0xf]
    %v6141 = vld [vmem:[%s5986 + $0x268] sm:$0xf]
    %v6142 = vld [vmem:[%s5986 + $0x26c] sm:$0xf]
    %v6143 = vld [vmem:[%s5986 + $0x270] sm:$0xf]
    %v6144 = vld [vmem:[%s5986 + $0x274] sm:$0xf]
    %v6145 = vld [vmem:[%s5986 + $0x278] sm:$0xf]
    %v6146 = vld [vmem:[%s5986 + $0x27c] sm:$0xf]
    %v6147 = vld [vmem:[%s5986 + $0x280] sm:$0xf]
    %v6148 = vld [vmem:[%s5986 + $0x284] sm:$0xf]
    %v6149 = vld [vmem:[%s5986 + $0x288] sm:$0xf]
    %v6150 = vld [vmem:[%s5986 + $0x28c] sm:$0xf]
    %v6151 = vld [vmem:[%s5986 + $0x290] sm:$0xf]
    %v6152 = vld [vmem:[%s5986 + $0x294] sm:$0xf]
    %v6153 = vld [vmem:[%s5986 + $0x298] sm:$0xf]
    %v6154 = vld [vmem:[%s5986 + $0x29c] sm:$0xf]
    %v6155 = vld [vmem:[%s5986 + $0x2a0] sm:$0xf]
    %v6156 = vld [vmem:[%s5986 + $0x2a4] sm:$0xf]
    %v6157 = vld [vmem:[%s5986 + $0x2a8] sm:$0xf]
    %v6158 = vld [vmem:[%s5986 + $0x2ac] sm:$0xf]
    %v6159 = vld [vmem:[%s5986 + $0x2b0] sm:$0xf]
    %v6160 = vld [vmem:[%s5986 + $0x2b4] sm:$0xf]
    %v6161 = vld [vmem:[%s5986 + $0x2b8] sm:$0xf]
    %v6162 = vld [vmem:[%s5986 + $0x2bc] sm:$0xf]
    %v6163 = vld [vmem:[%s5986 + $0x2c0] sm:$0xf]
    %v6164 = vld [vmem:[%s5986 + $0x2c4] sm:$0xf]
    %v6165 = vld [vmem:[%s5986 + $0x2c8] sm:$0xf]
    %v6166 = vld [vmem:[%s5986 + $0x2cc] sm:$0xf]
    %v6167 = vld [vmem:[%s5986 + $0x2d0] sm:$0xf]
    %v6168 = vld [vmem:[%s5986 + $0x2d4] sm:$0xf]
    %v6169 = vld [vmem:[%s5986 + $0x2d8] sm:$0xf]
    %v6170 = vld [vmem:[%s5986 + $0x2dc] sm:$0xf]
    %v6171 = vld [vmem:[%s5986 + $0x2e0] sm:$0xf]
    %v6172 = vld [vmem:[%s5986 + $0x2e4] sm:$0xf]
    %v6173 = vld [vmem:[%s5986 + $0x2e8] sm:$0xf]
    %v6174 = vld [vmem:[%s5986 + $0x2ec] sm:$0xf]
    %v6175 = vld [vmem:[%s5986 + $0x2f0] sm:$0xf]
    %v6176 = vld [vmem:[%s5986 + $0x2f4] sm:$0xf]
    %v6177 = vld [vmem:[%s5986 + $0x2f8] sm:$0xf]
    %v6178 = vld [vmem:[%s5986 + $0x2fc] sm:$0xf]
    %v6179 = vld [vmem:[%s5986 + $0x300] sm:$0xf]
    %v6180 = vld [vmem:[%s5986 + $0x304] sm:$0xf]
    %v6181 = vld [vmem:[%s5986 + $0x308] sm:$0xf]
    %v6182 = vld [vmem:[%s5986 + $0x30c] sm:$0xf]
    %v6183 = vld [vmem:[%s5986 + $0x310] sm:$0xf]
    %v6184 = vld [vmem:[%s5986 + $0x314] sm:$0xf]
    %v6185 = vld [vmem:[%s5986 + $0x318] sm:$0xf]
    %v6186 = vld [vmem:[%s5986 + $0x31c] sm:$0xf]
    %v6187 = vld [vmem:[%s5986 + $0x320] sm:$0xf]
    %v6188 = vld [vmem:[%s5986 + $0x324] sm:$0xf]
    %v6189 = vld [vmem:[%s5986 + $0x328] sm:$0xf]
    %v6190 = vld [vmem:[%s5986 + $0x32c] sm:$0xf]
    %v6191 = vld [vmem:[%s5986 + $0x330] sm:$0xf]
    %v6192 = vld [vmem:[%s5986 + $0x334] sm:$0xf]
    %v6193 = vld [vmem:[%s5986 + $0x338] sm:$0xf]
    %v6194 = vld [vmem:[%s5986 + $0x33c] sm:$0xf]
    %v6195 = vld [vmem:[%s5986 + $0x340] sm:$0xf]
    %v6196 = vld [vmem:[%s5986 + $0x344] sm:$0xf]
    %v6197 = vld [vmem:[%s5986 + $0x348] sm:$0xf]
    %v6198 = vld [vmem:[%s5986 + $0x34c] sm:$0xf]
    %v6199 = vld [vmem:[%s5986 + $0x350] sm:$0xf]
    %v6200 = vld [vmem:[%s5986 + $0x354] sm:$0xf]
    %v6201 = vld [vmem:[%s5986 + $0x358] sm:$0xf]
    %v6202 = vld [vmem:[%s5986 + $0x35c] sm:$0xf]
    %v6203 = vld [vmem:[%s5986 + $0x360] sm:$0xf]
    %v6204 = vld [vmem:[%s5986 + $0x364] sm:$0xf]
    %v6205 = vld [vmem:[%s5986 + $0x368] sm:$0xf]
    %v6206 = vld [vmem:[%s5986 + $0x36c] sm:$0xf]
    %v6207 = vld [vmem:[%s5986 + $0x370] sm:$0xf]
    %v6208 = vld [vmem:[%s5986 + $0x374] sm:$0xf]
    %v6209 = vld [vmem:[%s5986 + $0x378] sm:$0xf]
    %v6210 = vld [vmem:[%s5986 + $0x37c] sm:$0xf]
    %v6211 = vld [vmem:[%s5986 + $0x380] sm:$0xf]
    %v6212 = vld [vmem:[%s5986 + $0x384] sm:$0xf]
    %v6213 = vld [vmem:[%s5986 + $0x388] sm:$0xf]
    %v6214 = vld [vmem:[%s5986 + $0x38c] sm:$0xf]
    %v6215 = vld [vmem:[%s5986 + $0x390] sm:$0xf]
    %v6216 = vld [vmem:[%s5986 + $0x394] sm:$0xf]
    %v6217 = vld [vmem:[%s5986 + $0x398] sm:$0xf]
    %v6218 = vld [vmem:[%s5986 + $0x39c] sm:$0xf]
    %v6219 = vld [vmem:[%s5986 + $0x3a0] sm:$0xf]
    %v6220 = vld [vmem:[%s5986 + $0x3a4] sm:$0xf]
    %v6221 = vld [vmem:[%s5986 + $0x3a8] sm:$0xf]
    %v6222 = vld [vmem:[%s5986 + $0x3ac] sm:$0xf]
    %v6223 = vld [vmem:[%s5986 + $0x3b0] sm:$0xf]
    %v6224 = vld [vmem:[%s5986 + $0x3b4] sm:$0xf]
    %v6225 = vld [vmem:[%s5986 + $0x3b8] sm:$0xf]
    %v6226 = vld [vmem:[%s5986 + $0x3bc] sm:$0xf]
    %v6227 = vld [vmem:[%s5986 + $0x3c0] sm:$0xf]
    %v6228 = vld [vmem:[%s5986 + $0x3c4] sm:$0xf]
    %v6229 = vld [vmem:[%s5986 + $0x3c8] sm:$0xf]
    %v6230 = vld [vmem:[%s5986 + $0x3cc] sm:$0xf]
    %v6231 = vld [vmem:[%s5986 + $0x3d0] sm:$0xf]
    %v6232 = vld [vmem:[%s5986 + $0x3d4] sm:$0xf]
    %v6233 = vld [vmem:[%s5986 + $0x3d8] sm:$0xf]
    %v6234 = vld [vmem:[%s5986 + $0x3dc] sm:$0xf]
    %v6235 = vld [vmem:[%s5986 + $0x3e0] sm:$0xf]
    %v6236 = vld [vmem:[%s5986 + $0x3e4] sm:$0xf]
    %v6237 = vld [vmem:[%s5986 + $0x3e8] sm:$0xf]
    %v6238 = vld [vmem:[%s5986 + $0x3ec] sm:$0xf]
    %v6239 = vld [vmem:[%s5986 + $0x3f0] sm:$0xf]
    %v6240 = vld [vmem:[%s5986 + $0x3f4] sm:$0xf]
    %v6241 = vld [vmem:[%s5986 + $0x3f8] sm:$0xf]
    %v6242 = vld [vmem:[%s5986 + $0x3fc] sm:$0xf]
    %s6243 = scalar_lea.vmem %s12, 1
    %v6244 = vld [vmem:[%s6243] sm:$0x1]
    %v6246 = vlaneseq
    %v6247 = vshrl.u32 %v6246, 7
    %v6248 = vsub.s32 0, %v6247
    %v6249 = vrot.slane %v6244, %v6248
    %v6507 = vunpack.c.l.b16 %v5987
    %v6508 = vunpack.c.l.b16 %v5988
    %v6509 = vunpack.c.l.b16 %v5989
    %v6510 = vunpack.c.l.b16 %v5990
    %v6511 = vunpack.c.l.b16 %v5991
    %v6512 = vunpack.c.l.b16 %v5992
    %v6513 = vunpack.c.l.b16 %v5993
    %v6514 = vunpack.c.l.b16 %v5994
    %v6515 = vunpack.c.l.b16 %v5995
    %v6516 = vunpack.c.l.b16 %v5996
    %v6517 = vunpack.c.l.b16 %v5997
    %v6518 = vunpack.c.l.b16 %v5998
    %v6519 = vunpack.c.l.b16 %v5999
    %v6520 = vunpack.c.l.b16 %v6000
    %v6521 = vunpack.c.l.b16 %v6001
    %v6522 = vunpack.c.l.b16 %v6002
    %v6523 = vunpack.c.l.b16 %v6003
    %v6524 = vunpack.c.l.b16 %v6004
    %v6525 = vunpack.c.l.b16 %v6005
    %v6526 = vunpack.c.l.b16 %v6006
    %v6527 = vunpack.c.l.b16 %v6007
    %v6528 = vunpack.c.l.b16 %v6008
    %v6529 = vunpack.c.l.b16 %v6009
    %v6530 = vunpack.c.l.b16 %v6010
    %v6531 = vunpack.c.l.b16 %v6011
    %v6532 = vunpack.c.l.b16 %v6012
    %v6533 = vunpack.c.l.b16 %v6013
    %v6534 = vunpack.c.l.b16 %v6014
    %v6535 = vunpack.c.l.b16 %v6015
    %v6536 = vunpack.c.l.b16 %v6016
    %v6537 = vunpack.c.l.b16 %v6017
    %v6538 = vunpack.c.l.b16 %v6018
    %v6539 = vunpack.c.l.b16 %v6019
    %v6540 = vunpack.c.l.b16 %v6020
    %v6541 = vunpack.c.l.b16 %v6021
    %v6542 = vunpack.c.l.b16 %v6022
    %v6543 = vunpack.c.l.b16 %v6023
    %v6544 = vunpack.c.l.b16 %v6024
    %v6545 = vunpack.c.l.b16 %v6025
    %v6546 = vunpack.c.l.b16 %v6026
    %v6547 = vunpack.c.l.b16 %v6027
    %v6548 = vunpack.c.l.b16 %v6028
    %v6549 = vunpack.c.l.b16 %v6029
    %v6550 = vunpack.c.l.b16 %v6030
    %v6551 = vunpack.c.l.b16 %v6031
    %v6552 = vunpack.c.l.b16 %v6032
    %v6553 = vunpack.c.l.b16 %v6033
    %v6554 = vunpack.c.l.b16 %v6034
    %v6555 = vunpack.c.l.b16 %v6035
    %v6556 = vunpack.c.l.b16 %v6036
    %v6557 = vunpack.c.l.b16 %v6037
    %v6558 = vunpack.c.l.b16 %v6038
    %v6559 = vunpack.c.l.b16 %v6039
    %v6560 = vunpack.c.l.b16 %v6040
    %v6561 = vunpack.c.l.b16 %v6041
    %v6562 = vunpack.c.l.b16 %v6042
    %v6563 = vunpack.c.l.b16 %v6043
    %v6564 = vunpack.c.l.b16 %v6044
    %v6565 = vunpack.c.l.b16 %v6045
    %v6566 = vunpack.c.l.b16 %v6046
    %v6567 = vunpack.c.l.b16 %v6047
    %v6568 = vunpack.c.l.b16 %v6048
    %v6569 = vunpack.c.l.b16 %v6049
    %v6570 = vunpack.c.l.b16 %v6050
    %v6571 = vunpack.c.l.b16 %v6051
    %v6572 = vunpack.c.l.b16 %v6052
    %v6573 = vunpack.c.l.b16 %v6053
    %v6574 = vunpack.c.l.b16 %v6054
    %v6575 = vunpack.c.l.b16 %v6055
    %v6576 = vunpack.c.l.b16 %v6056
    %v6577 = vunpack.c.l.b16 %v6057
    %v6578 = vunpack.c.l.b16 %v6058
    %v6579 = vunpack.c.l.b16 %v6059
    %v6580 = vunpack.c.l.b16 %v6060
    %v6581 = vunpack.c.l.b16 %v6061
    %v6582 = vunpack.c.l.b16 %v6062
    %v6583 = vunpack.c.l.b16 %v6063
    %v6584 = vunpack.c.l.b16 %v6064
    %v6585 = vunpack.c.l.b16 %v6065
    %v6586 = vunpack.c.l.b16 %v6066
    %v6587 = vunpack.c.l.b16 %v6067
    %v6588 = vunpack.c.l.b16 %v6068
    %v6589 = vunpack.c.l.b16 %v6069
    %v6590 = vunpack.c.l.b16 %v6070
    %v6591 = vunpack.c.l.b16 %v6071
    %v6592 = vunpack.c.l.b16 %v6072
    %v6593 = vunpack.c.l.b16 %v6073
    %v6594 = vunpack.c.l.b16 %v6074
    %v6595 = vunpack.c.l.b16 %v6075
    %v6596 = vunpack.c.l.b16 %v6076
    %v6597 = vunpack.c.l.b16 %v6077
    %v6598 = vunpack.c.l.b16 %v6078
    %v6599 = vunpack.c.l.b16 %v6079
    %v6600 = vunpack.c.l.b16 %v6080
    %v6601 = vunpack.c.l.b16 %v6081
    %v6602 = vunpack.c.l.b16 %v6082
    %v6603 = vunpack.c.l.b16 %v6083
    %v6604 = vunpack.c.l.b16 %v6084
    %v6605 = vunpack.c.l.b16 %v6085
    %v6606 = vunpack.c.l.b16 %v6086
    %v6607 = vunpack.c.l.b16 %v6087
    %v6608 = vunpack.c.l.b16 %v6088
    %v6609 = vunpack.c.l.b16 %v6089
    %v6610 = vunpack.c.l.b16 %v6090
    %v6611 = vunpack.c.l.b16 %v6091
    %v6612 = vunpack.c.l.b16 %v6092
    %v6613 = vunpack.c.l.b16 %v6093
    %v6614 = vunpack.c.l.b16 %v6094
    %v6615 = vunpack.c.l.b16 %v6095
    %v6616 = vunpack.c.l.b16 %v6096
    %v6617 = vunpack.c.l.b16 %v6097
    %v6618 = vunpack.c.l.b16 %v6098
    %v6619 = vunpack.c.l.b16 %v6099
    %v6620 = vunpack.c.l.b16 %v6100
    %v6621 = vunpack.c.l.b16 %v6101
    %v6622 = vunpack.c.l.b16 %v6102
    %v6623 = vunpack.c.l.b16 %v6103
    %v6624 = vunpack.c.l.b16 %v6104
    %v6625 = vunpack.c.l.b16 %v6105
    %v6626 = vunpack.c.l.b16 %v6106
    %v6627 = vunpack.c.l.b16 %v6107
    %v6628 = vunpack.c.l.b16 %v6108
    %v6629 = vunpack.c.l.b16 %v6109
    %v6630 = vunpack.c.l.b16 %v6110
    %v6631 = vunpack.c.l.b16 %v6111
    %v6632 = vunpack.c.l.b16 %v6112
    %v6633 = vunpack.c.l.b16 %v6113
    %v6634 = vunpack.c.l.b16 %v6114
    %v6635 = vunpack.c.l.b16 %v6115
    %v6636 = vunpack.c.l.b16 %v6116
    %v6637 = vunpack.c.l.b16 %v6117
    %v6638 = vunpack.c.l.b16 %v6118
    %v6639 = vunpack.c.l.b16 %v6119
    %v6640 = vunpack.c.l.b16 %v6120
    %v6641 = vunpack.c.l.b16 %v6121
    %v6642 = vunpack.c.l.b16 %v6122
    %v6643 = vunpack.c.l.b16 %v6123
    %v6644 = vunpack.c.l.b16 %v6124
    %v6645 = vunpack.c.l.b16 %v6125
    %v6646 = vunpack.c.l.b16 %v6126
    %v6647 = vunpack.c.l.b16 %v6127
    %v6648 = vunpack.c.l.b16 %v6128
    %v6649 = vunpack.c.l.b16 %v6129
    %v6650 = vunpack.c.l.b16 %v6130
    %v6651 = vunpack.c.l.b16 %v6131
    %v6652 = vunpack.c.l.b16 %v6132
    %v6653 = vunpack.c.l.b16 %v6133
    %v6654 = vunpack.c.l.b16 %v6134
    %v6655 = vunpack.c.l.b16 %v6135
    %v6656 = vunpack.c.l.b16 %v6136
    %v6657 = vunpack.c.l.b16 %v6137
    %v6658 = vunpack.c.l.b16 %v6138
    %v6659 = vunpack.c.l.b16 %v6139
    %v6660 = vunpack.c.l.b16 %v6140
    %v6661 = vunpack.c.l.b16 %v6141
    %v6662 = vunpack.c.l.b16 %v6142
    %v6663 = vunpack.c.l.b16 %v6143
    %v6664 = vunpack.c.l.b16 %v6144
    %v6665 = vunpack.c.l.b16 %v6145
    %v6666 = vunpack.c.l.b16 %v6146
    %v6667 = vunpack.c.l.b16 %v6147
    %v6668 = vunpack.c.l.b16 %v6148
    %v6669 = vunpack.c.l.b16 %v6149
    %v6670 = vunpack.c.l.b16 %v6150
    %v6671 = vunpack.c.l.b16 %v6151
    %v6672 = vunpack.c.l.b16 %v6152
    %v6673 = vunpack.c.l.b16 %v6153
    %v6674 = vunpack.c.l.b16 %v6154
    %v6675 = vunpack.c.l.b16 %v6155
    %v6676 = vunpack.c.l.b16 %v6156
    %v6677 = vunpack.c.l.b16 %v6157
    %v6678 = vunpack.c.l.b16 %v6158
    %v6679 = vunpack.c.l.b16 %v6159
    %v6680 = vunpack.c.l.b16 %v6160
    %v6681 = vunpack.c.l.b16 %v6161
    %v6682 = vunpack.c.l.b16 %v6162
    %v6683 = vunpack.c.l.b16 %v6163
    %v6684 = vunpack.c.l.b16 %v6164
    %v6685 = vunpack.c.l.b16 %v6165
    %v6686 = vunpack.c.l.b16 %v6166
    %v6687 = vunpack.c.l.b16 %v6167
    %v6688 = vunpack.c.l.b16 %v6168
    %v6689 = vunpack.c.l.b16 %v6169
    %v6690 = vunpack.c.l.b16 %v6170
    %v6691 = vunpack.c.l.b16 %v6171
    %v6692 = vunpack.c.l.b16 %v6172
    %v6693 = vunpack.c.l.b16 %v6173
    %v6694 = vunpack.c.l.b16 %v6174
    %v6695 = vunpack.c.l.b16 %v6175
    %v6696 = vunpack.c.l.b16 %v6176
    %v6697 = vunpack.c.l.b16 %v6177
    %v6698 = vunpack.c.l.b16 %v6178
    %v6699 = vunpack.c.l.b16 %v6179
    %v6700 = vunpack.c.l.b16 %v6180
    %v6701 = vunpack.c.l.b16 %v6181
    %v6702 = vunpack.c.l.b16 %v6182
    %v6703 = vunpack.c.l.b16 %v6183
    %v6704 = vunpack.c.l.b16 %v6184
    %v6705 = vunpack.c.l.b16 %v6185
    %v6706 = vunpack.c.l.b16 %v6186
    %v6707 = vunpack.c.l.b16 %v6187
    %v6708 = vunpack.c.l.b16 %v6188
    %v6709 = vunpack.c.l.b16 %v6189
    %v6710 = vunpack.c.l.b16 %v6190
    %v6711 = vunpack.c.l.b16 %v6191
    %v6712 = vunpack.c.l.b16 %v6192
    %v6713 = vunpack.c.l.b16 %v6193
    %v6714 = vunpack.c.l.b16 %v6194
    %v6715 = vunpack.c.l.b16 %v6195
    %v6716 = vunpack.c.l.b16 %v6196
    %v6717 = vunpack.c.l.b16 %v6197
    %v6718 = vunpack.c.l.b16 %v6198
    %v6719 = vunpack.c.l.b16 %v6199
    %v6720 = vunpack.c.l.b16 %v6200
    %v6721 = vunpack.c.l.b16 %v6201
    %v6722 = vunpack.c.l.b16 %v6202
    %v6723 = vunpack.c.l.b16 %v6203
    %v6724 = vunpack.c.l.b16 %v6204
    %v6725 = vunpack.c.l.b16 %v6205
    %v6726 = vunpack.c.l.b16 %v6206
    %v6727 = vunpack.c.l.b16 %v6207
    %v6728 = vunpack.c.l.b16 %v6208
    %v6729 = vunpack.c.l.b16 %v6209
    %v6730 = vunpack.c.l.b16 %v6210
    %v6731 = vunpack.c.l.b16 %v6211
    %v6732 = vunpack.c.l.b16 %v6212
    %v6733 = vunpack.c.l.b16 %v6213
    %v6734 = vunpack.c.l.b16 %v6214
    %v6735 = vunpack.c.l.b16 %v6215
    %v6736 = vunpack.c.l.b16 %v6216
    %v6737 = vunpack.c.l.b16 %v6217
    %v6738 = vunpack.c.l.b16 %v6218
    %v6739 = vunpack.c.l.b16 %v6219
    %v6740 = vunpack.c.l.b16 %v6220
    %v6741 = vunpack.c.l.b16 %v6221
    %v6742 = vunpack.c.l.b16 %v6222
    %v6743 = vunpack.c.l.b16 %v6223
    %v6744 = vunpack.c.l.b16 %v6224
    %v6745 = vunpack.c.l.b16 %v6225
    %v6746 = vunpack.c.l.b16 %v6226
    %v6747 = vunpack.c.l.b16 %v6227
    %v6748 = vunpack.c.l.b16 %v6228
    %v6749 = vunpack.c.l.b16 %v6229
    %v6750 = vunpack.c.l.b16 %v6230
    %v6751 = vunpack.c.l.b16 %v6231
    %v6752 = vunpack.c.l.b16 %v6232
    %v6753 = vunpack.c.l.b16 %v6233
    %v6754 = vunpack.c.l.b16 %v6234
    %v6755 = vunpack.c.l.b16 %v6235
    %v6756 = vunpack.c.l.b16 %v6236
    %v6757 = vunpack.c.l.b16 %v6237
    %v6758 = vunpack.c.l.b16 %v6238
    %v6759 = vunpack.c.l.b16 %v6239
    %v6760 = vunpack.c.l.b16 %v6240
    %v6761 = vunpack.c.l.b16 %v6241
    %v6762 = vunpack.c.l.b16 %v6242
    %v6763 = vpack.c.b16 %v6508, %v6507
    %v6764 = vpack.c.b16 %v6510, %v6509
    %v6765 = vpack.c.b16 %v6512, %v6511
    %v6766 = vpack.c.b16 %v6514, %v6513
    %v6767 = vpack.c.b16 %v6516, %v6515
    %v6768 = vpack.c.b16 %v6518, %v6517
    %v6769 = vpack.c.b16 %v6520, %v6519
    %v6770 = vpack.c.b16 %v6522, %v6521
    %v6771 = vpack.c.b16 %v6524, %v6523
    %v6772 = vpack.c.b16 %v6526, %v6525
    %v6773 = vpack.c.b16 %v6528, %v6527
    %v6774 = vpack.c.b16 %v6530, %v6529
    %v6775 = vpack.c.b16 %v6532, %v6531
    %v6776 = vpack.c.b16 %v6534, %v6533
    %v6777 = vpack.c.b16 %v6536, %v6535
    %v6778 = vpack.c.b16 %v6538, %v6537
    %v6779 = vpack.c.b16 %v6540, %v6539
    %v6780 = vpack.c.b16 %v6542, %v6541
    %v6781 = vpack.c.b16 %v6544, %v6543
    %v6782 = vpack.c.b16 %v6546, %v6545
    %v6783 = vpack.c.b16 %v6548, %v6547
    %v6784 = vpack.c.b16 %v6550, %v6549
    %v6785 = vpack.c.b16 %v6552, %v6551
    %v6786 = vpack.c.b16 %v6554, %v6553
    %v6787 = vpack.c.b16 %v6556, %v6555
    %v6788 = vpack.c.b16 %v6558, %v6557
    %v6789 = vpack.c.b16 %v6560, %v6559
    %v6790 = vpack.c.b16 %v6562, %v6561
    %v6791 = vpack.c.b16 %v6564, %v6563
    %v6792 = vpack.c.b16 %v6566, %v6565
    %v6793 = vpack.c.b16 %v6568, %v6567
    %v6794 = vpack.c.b16 %v6570, %v6569
    %v6795 = vpack.c.b16 %v6572, %v6571
    %v6796 = vpack.c.b16 %v6574, %v6573
    %v6797 = vpack.c.b16 %v6576, %v6575
    %v6798 = vpack.c.b16 %v6578, %v6577
    %v6799 = vpack.c.b16 %v6580, %v6579
    %v6800 = vpack.c.b16 %v6582, %v6581
    %v6801 = vpack.c.b16 %v6584, %v6583
    %v6802 = vpack.c.b16 %v6586, %v6585
    %v6803 = vpack.c.b16 %v6588, %v6587
    %v6804 = vpack.c.b16 %v6590, %v6589
    %v6805 = vpack.c.b16 %v6592, %v6591
    %v6806 = vpack.c.b16 %v6594, %v6593
    %v6807 = vpack.c.b16 %v6596, %v6595
    %v6808 = vpack.c.b16 %v6598, %v6597
    %v6809 = vpack.c.b16 %v6600, %v6599
    %v6810 = vpack.c.b16 %v6602, %v6601
    %v6811 = vpack.c.b16 %v6604, %v6603
    %v6812 = vpack.c.b16 %v6606, %v6605
    %v6813 = vpack.c.b16 %v6608, %v6607
    %v6814 = vpack.c.b16 %v6610, %v6609
    %v6815 = vpack.c.b16 %v6612, %v6611
    %v6816 = vpack.c.b16 %v6614, %v6613
    %v6817 = vpack.c.b16 %v6616, %v6615
    %v6818 = vpack.c.b16 %v6618, %v6617
    %v6819 = vpack.c.b16 %v6620, %v6619
    %v6820 = vpack.c.b16 %v6622, %v6621
    %v6821 = vpack.c.b16 %v6624, %v6623
    %v6822 = vpack.c.b16 %v6626, %v6625
    %v6823 = vpack.c.b16 %v6628, %v6627
    %v6824 = vpack.c.b16 %v6630, %v6629
    %v6825 = vpack.c.b16 %v6632, %v6631
    %v6826 = vpack.c.b16 %v6634, %v6633
    %v6827 = vpack.c.b16 %v6636, %v6635
    %v6828 = vpack.c.b16 %v6638, %v6637
    %v6829 = vpack.c.b16 %v6640, %v6639
    %v6830 = vpack.c.b16 %v6642, %v6641
    %v6831 = vpack.c.b16 %v6644, %v6643
    %v6832 = vpack.c.b16 %v6646, %v6645
    %v6833 = vpack.c.b16 %v6648, %v6647
    %v6834 = vpack.c.b16 %v6650, %v6649
    %v6835 = vpack.c.b16 %v6652, %v6651
    %v6836 = vpack.c.b16 %v6654, %v6653
    %v6837 = vpack.c.b16 %v6656, %v6655
    %v6838 = vpack.c.b16 %v6658, %v6657
    %v6839 = vpack.c.b16 %v6660, %v6659
    %v6840 = vpack.c.b16 %v6662, %v6661
    %v6841 = vpack.c.b16 %v6664, %v6663
    %v6842 = vpack.c.b16 %v6666, %v6665
    %v6843 = vpack.c.b16 %v6668, %v6667
    %v6844 = vpack.c.b16 %v6670, %v6669
    %v6845 = vpack.c.b16 %v6672, %v6671
    %v6846 = vpack.c.b16 %v6674, %v6673
    %v6847 = vpack.c.b16 %v6676, %v6675
    %v6848 = vpack.c.b16 %v6678, %v6677
    %v6849 = vpack.c.b16 %v6680, %v6679
    %v6850 = vpack.c.b16 %v6682, %v6681
    %v6851 = vpack.c.b16 %v6684, %v6683
    %v6852 = vpack.c.b16 %v6686, %v6685
    %v6853 = vpack.c.b16 %v6688, %v6687
    %v6854 = vpack.c.b16 %v6690, %v6689
    %v6855 = vpack.c.b16 %v6692, %v6691
    %v6856 = vpack.c.b16 %v6694, %v6693
    %v6857 = vpack.c.b16 %v6696, %v6695
    %v6858 = vpack.c.b16 %v6698, %v6697
    %v6859 = vpack.c.b16 %v6700, %v6699
    %v6860 = vpack.c.b16 %v6702, %v6701
    %v6861 = vpack.c.b16 %v6704, %v6703
    %v6862 = vpack.c.b16 %v6706, %v6705
    %v6863 = vpack.c.b16 %v6708, %v6707
    %v6864 = vpack.c.b16 %v6710, %v6709
    %v6865 = vpack.c.b16 %v6712, %v6711
    %v6866 = vpack.c.b16 %v6714, %v6713
    %v6867 = vpack.c.b16 %v6716, %v6715
    %v6868 = vpack.c.b16 %v6718, %v6717
    %v6869 = vpack.c.b16 %v6720, %v6719
    %v6870 = vpack.c.b16 %v6722, %v6721
    %v6871 = vpack.c.b16 %v6724, %v6723
    %v6872 = vpack.c.b16 %v6726, %v6725
    %v6873 = vpack.c.b16 %v6728, %v6727
    %v6874 = vpack.c.b16 %v6730, %v6729
    %v6875 = vpack.c.b16 %v6732, %v6731
    %v6876 = vpack.c.b16 %v6734, %v6733
    %v6877 = vpack.c.b16 %v6736, %v6735
    %v6878 = vpack.c.b16 %v6738, %v6737
    %v6879 = vpack.c.b16 %v6740, %v6739
    %v6880 = vpack.c.b16 %v6742, %v6741
    %v6881 = vpack.c.b16 %v6744, %v6743
    %v6882 = vpack.c.b16 %v6746, %v6745
    %v6883 = vpack.c.b16 %v6748, %v6747
    %v6884 = vpack.c.b16 %v6750, %v6749
    %v6885 = vpack.c.b16 %v6752, %v6751
    %v6886 = vpack.c.b16 %v6754, %v6753
    %v6887 = vpack.c.b16 %v6756, %v6755
    %v6888 = vpack.c.b16 %v6758, %v6757
    %v6889 = vpack.c.b16 %v6760, %v6759
    %v6890 = vpack.c.b16 %v6762, %v6761
    %7019 = vmatprep.subr.bf16.mxu0 0
    %7020 = vmatpush1.bf16.msra.mxu0 %v6763
    %7021 = vmatprep.subr.bf16.mxu0 0
    %7022 = vmatpush1.bf16.msra.mxu0 %v6764
    %7023 = vmatprep.subr.bf16.mxu0 0
    %7024 = vmatpush1.bf16.msra.mxu0 %v6765
    %7025 = vmatprep.subr.bf16.mxu0 0
    %7026 = vmatpush1.bf16.msra.mxu0 %v6766
    %7027 = vmatprep.subr.bf16.mxu0 0
    %7028 = vmatpush1.bf16.msra.mxu0 %v6767
    %7029 = vmatprep.subr.bf16.mxu0 0
    %7030 = vmatpush1.bf16.msra.mxu0 %v6768
    %7031 = vmatprep.subr.bf16.mxu0 0
    %7032 = vmatpush1.bf16.msra.mxu0 %v6769
    %7033 = vmatprep.subr.bf16.mxu0 0
    %7034 = vmatpush1.bf16.msra.mxu0 %v6770
    %7035 = vmatprep.subr.bf16.mxu0 0
    %7036 = vmatpush1.bf16.msra.mxu0 %v6771
    %7037 = vmatprep.subr.bf16.mxu0 0
    %7038 = vmatpush1.bf16.msra.mxu0 %v6772
    %7039 = vmatprep.subr.bf16.mxu0 0
    %7040 = vmatpush1.bf16.msra.mxu0 %v6773
    %7041 = vmatprep.subr.bf16.mxu0 0
    %7042 = vmatpush1.bf16.msra.mxu0 %v6774
    %7043 = vmatprep.subr.bf16.mxu0 0
    %7044 = vmatpush1.bf16.msra.mxu0 %v6775
    %7045 = vmatprep.subr.bf16.mxu0 0
    %7046 = vmatpush1.bf16.msra.mxu0 %v6776
    %7047 = vmatprep.subr.bf16.mxu0 0
    %7048 = vmatpush1.bf16.msra.mxu0 %v6777
    %7049 = vmatprep.subr.bf16.mxu0 0
    %7050 = vmatpush1.bf16.msra.mxu0 %v6778
    %7051 = vmatprep.mubr.bf16.mxu0 %v5971
    %7052 = vmatmul.mubr.bf16.gmra.mrb[0].mxu0 %v5970
    %v7053 = vpop.f32.mrb[0].mxu0
    %v7054 = vadd.f32 %v6249, %v7053
    %v7055 = vpop.f32.mrb[0].mxu0
    %v7056 = vpop.f32.mrb[0].mxu0
    %v7057 = vadd.f32 %v6249, %v7056
    %v7058 = vpop.f32.mrb[0].mxu0
    %7059 = vdwg.mxu0
    %7060 = vmatprep.subr.bf16.mxu0 0
    %7061 = vmatpush1.bf16.msra.mxu0 %v6779
    %7062 = vmatprep.subr.bf16.mxu0 0
    %7063 = vmatpush1.bf16.msra.mxu0 %v6780
    %7064 = vmatprep.subr.bf16.mxu0 0
    %7065 = vmatpush1.bf16.msra.mxu0 %v6781
    %7066 = vmatprep.subr.bf16.mxu0 0
    %7067 = vmatpush1.bf16.msra.mxu0 %v6782
    %7068 = vmatprep.subr.bf16.mxu0 0
    %7069 = vmatpush1.bf16.msra.mxu0 %v6783
    %7070 = vmatprep.subr.bf16.mxu0 0
    %7071 = vmatpush1.bf16.msra.mxu0 %v6784
    %7072 = vmatprep.subr.bf16.mxu0 0
    %7073 = vmatpush1.bf16.msra.mxu0 %v6785
    %7074 = vmatprep.subr.bf16.mxu0 0
    %7075 = vmatpush1.bf16.msra.mxu0 %v6786
    %7076 = vmatprep.subr.bf16.mxu0 0
    %7077 = vmatpush1.bf16.msra.mxu0 %v6787
    %7078 = vmatprep.subr.bf16.mxu0 0
    %7079 = vmatpush1.bf16.msra.mxu0 %v6788
    %7080 = vmatprep.subr.bf16.mxu0 0
    %7081 = vmatpush1.bf16.msra.mxu0 %v6789
    %7082 = vmatprep.subr.bf16.mxu0 0
    %7083 = vmatpush1.bf16.msra.mxu0 %v6790
    %7084 = vmatprep.subr.bf16.mxu0 0
    %7085 = vmatpush1.bf16.msra.mxu0 %v6791
    %7086 = vmatprep.subr.bf16.mxu0 0
    %7087 = vmatpush1.bf16.msra.mxu0 %v6792
    %7088 = vmatprep.subr.bf16.mxu0 0
    %7089 = vmatpush1.bf16.msra.mxu0 %v6793
    %7090 = vmatprep.subr.bf16.mxu0 0
    %7091 = vmatpush1.bf16.msra.mxu0 %v6794
    %7092 = vmatprep.mubr.bf16.mxu0 %v5973
    %7093 = vmatmul.mubr.bf16.gmra.mrb[0].mxu0 %v5972
    %v7094 = vpop.f32.mrb[0].mxu0
    %v7095 = vadd.f32 %v7054, %v7094
    %v7096 = vpop.f32.mrb[0].mxu0
    %v7097 = vpop.f32.mrb[0].mxu0
    %v7098 = vadd.f32 %v7057, %v7097
    %v7099 = vpop.f32.mrb[0].mxu0
    %7100 = vdwg.mxu0
    %7101 = vmatprep.subr.bf16.mxu0 0
    %7102 = vmatpush1.bf16.msra.mxu0 %v6795
    %7103 = vmatprep.subr.bf16.mxu0 0
    %7104 = vmatpush1.bf16.msra.mxu0 %v6796
    %7105 = vmatprep.subr.bf16.mxu0 0
    %7106 = vmatpush1.bf16.msra.mxu0 %v6797
    %7107 = vmatprep.subr.bf16.mxu0 0
    %7108 = vmatpush1.bf16.msra.mxu0 %v6798
    %7109 = vmatprep.subr.bf16.mxu0 0
    %7110 = vmatpush1.bf16.msra.mxu0 %v6799
    %7111 = vmatprep.subr.bf16.mxu0 0
    %7112 = vmatpush1.bf16.msra.mxu0 %v6800
    %7113 = vmatprep.subr.bf16.mxu0 0
    %7114 = vmatpush1.bf16.msra.mxu0 %v6801
    %7115 = vmatprep.subr.bf16.mxu0 0
    %7116 = vmatpush1.bf16.msra.mxu0 %v6802
    %7117 = vmatprep.subr.bf16.mxu0 0
    %7118 = vmatpush1.bf16.msra.mxu0 %v6803
    %7119 = vmatprep.subr.bf16.mxu0 0
    %7120 = vmatpush1.bf16.msra.mxu0 %v6804
    %7121 = vmatprep.subr.bf16.mxu0 0
    %7122 = vmatpush1.bf16.msra.mxu0 %v6805
    %7123 = vmatprep.subr.bf16.mxu0 0
    %7124 = vmatpush1.bf16.msra.mxu0 %v6806
    %7125 = vmatprep.subr.bf16.mxu0 0
    %7126 = vmatpush1.bf16.msra.mxu0 %v6807
    %7127 = vmatprep.subr.bf16.mxu0 0
    %7128 = vmatpush1.bf16.msra.mxu0 %v6808
    %7129 = vmatprep.subr.bf16.mxu0 0
    %7130 = vmatpush1.bf16.msra.mxu0 %v6809
    %7131 = vmatprep.subr.bf16.mxu0 0
    %7132 = vmatpush1.bf16.msra.mxu0 %v6810
    %7133 = vmatprep.mubr.bf16.mxu0 %v5975
    %7134 = vmatmul.mubr.bf16.gmra.mrb[0].mxu0 %v5974
    %v7135 = vpop.f32.mrb[0].mxu0
    %v7136 = vadd.f32 %v7095, %v7135
    %v7137 = vpop.f32.mrb[0].mxu0
    %v7138 = vpop.f32.mrb[0].mxu0
    %v7139 = vadd.f32 %v7098, %v7138
    %v7140 = vpop.f32.mrb[0].mxu0
    %7141 = vdwg.mxu0
    %7142 = vmatprep.subr.bf16.mxu0 0
    %7143 = vmatpush1.bf16.msra.mxu0 %v6811
    %7144 = vmatprep.subr.bf16.mxu0 0
    %7145 = vmatpush1.bf16.msra.mxu0 %v6812
    %7146 = vmatprep.subr.bf16.mxu0 0
    %7147 = vmatpush1.bf16.msra.mxu0 %v6813
    %7148 = vmatprep.subr.bf16.mxu0 0
    %7149 = vmatpush1.bf16.msra.mxu0 %v6814
    %7150 = vmatprep.subr.bf16.mxu0 0
    %7151 = vmatpush1.bf16.msra.mxu0 %v6815
    %7152 = vmatprep.subr.bf16.mxu0 0
    %7153 = vmatpush1.bf16.msra.mxu0 %v6816
    %7154 = vmatprep.subr.bf16.mxu0 0
    %7155 = vmatpush1.bf16.msra.mxu0 %v6817
    %7156 = vmatprep.subr.bf16.mxu0 0
    %7157 = vmatpush1.bf16.msra.mxu0 %v6818
    %7158 = vmatprep.subr.bf16.mxu0 0
    %7159 = vmatpush1.bf16.msra.mxu0 %v6819
    %7160 = vmatprep.subr.bf16.mxu0 0
    %7161 = vmatpush1.bf16.msra.mxu0 %v6820
    %7162 = vmatprep.subr.bf16.mxu0 0
    %7163 = vmatpush1.bf16.msra.mxu0 %v6821
    %7164 = vmatprep.subr.bf16.mxu0 0
    %7165 = vmatpush1.bf16.msra.mxu0 %v6822
    %7166 = vmatprep.subr.bf16.mxu0 0
    %7167 = vmatpush1.bf16.msra.mxu0 %v6823
    %7168 = vmatprep.subr.bf16.mxu0 0
    %7169 = vmatpush1.bf16.msra.mxu0 %v6824
    %7170 = vmatprep.subr.bf16.mxu0 0
    %7171 = vmatpush1.bf16.msra.mxu0 %v6825
    %7172 = vmatprep.subr.bf16.mxu0 0
    %7173 = vmatpush1.bf16.msra.mxu0 %v6826
    %7174 = vmatprep.mubr.bf16.mxu0 %v5977
    %7175 = vmatmul.mubr.bf16.gmra.mrb[0].mxu0 %v5976
    %v7176 = vpop.f32.mrb[0].mxu0
    %v7177 = vadd.f32 %v7136, %v7176
    %v7178 = vpop.f32.mrb[0].mxu0
    %v7179 = vpop.f32.mrb[0].mxu0
    %v7180 = vadd.f32 %v7139, %v7179
    %v7181 = vpop.f32.mrb[0].mxu0
    %7182 = vdwg.mxu0
    %7183 = vmatprep.subr.bf16.mxu0 0
    %7184 = vmatpush1.bf16.msra.mxu0 %v6827
    %7185 = vmatprep.subr.bf16.mxu0 0
    %7186 = vmatpush1.bf16.msra.mxu0 %v6828
    %7187 = vmatprep.subr.bf16.mxu0 0
    %7188 = vmatpush1.bf16.msra.mxu0 %v6829
    %7189 = vmatprep.subr.bf16.mxu0 0
    %7190 = vmatpush1.bf16.msra.mxu0 %v6830
    %7191 = vmatprep.subr.bf16.mxu0 0
    %7192 = vmatpush1.bf16.msra.mxu0 %v6831
    %7193 = vmatprep.subr.bf16.mxu0 0
    %7194 = vmatpush1.bf16.msra.mxu0 %v6832
    %7195 = vmatprep.subr.bf16.mxu0 0
    %7196 = vmatpush1.bf16.msra.mxu0 %v6833
    %7197 = vmatprep.subr.bf16.mxu0 0
    %7198 = vmatpush1.bf16.msra.mxu0 %v6834
    %7199 = vmatprep.subr.bf16.mxu0 0
    %7200 = vmatpush1.bf16.msra.mxu0 %v6835
    %7201 = vmatprep.subr.bf16.mxu0 0
    %7202 = vmatpush1.bf16.msra.mxu0 %v6836
    %7203 = vmatprep.subr.bf16.mxu0 0
    %7204 = vmatpush1.bf16.msra.mxu0 %v6837
    %7205 = vmatprep.subr.bf16.mxu0 0
    %7206 = vmatpush1.bf16.msra.mxu0 %v6838
    %7207 = vmatprep.subr.bf16.mxu0 0
    %7208 = vmatpush1.bf16.msra.mxu0 %v6839
    %7209 = vmatprep.subr.bf16.mxu0 0
    %7210 = vmatpush1.bf16.msra.mxu0 %v6840
    %7211 = vmatprep.subr.bf16.mxu0 0
    %7212 = vmatpush1.bf16.msra.mxu0 %v6841
    %7213 = vmatprep.subr.bf16.mxu0 0
    %7214 = vmatpush1.bf16.msra.mxu0 %v6842
    %7215 = vmatprep.mubr.bf16.mxu0 %v5979
    %7216 = vmatmul.mubr.bf16.gmra.mrb[0].mxu0 %v5978
    %v7217 = vpop.f32.mrb[0].mxu0
    %v7218 = vadd.f32 %v7177, %v7217
    %v7219 = vpop.f32.mrb[0].mxu0
    %v7220 = vpop.f32.mrb[0].mxu0
    %v7221 = vadd.f32 %v7180, %v7220
    %v7222 = vpop.f32.mrb[0].mxu0
    %7223 = vdwg.mxu0
    %7224 = vmatprep.subr.bf16.mxu0 0
    %7225 = vmatpush1.bf16.msra.mxu0 %v6843
    %7226 = vmatprep.subr.bf16.mxu0 0
    %7227 = vmatpush1.bf16.msra.mxu0 %v6844
    %7228 = vmatprep.subr.bf16.mxu0 0
    %7229 = vmatpush1.bf16.msra.mxu0 %v6845
    %7230 = vmatprep.subr.bf16.mxu0 0
    %7231 = vmatpush1.bf16.msra.mxu0 %v6846
    %7232 = vmatprep.subr.bf16.mxu0 0
    %7233 = vmatpush1.bf16.msra.mxu0 %v6847
    %7234 = vmatprep.subr.bf16.mxu0 0
    %7235 = vmatpush1.bf16.msra.mxu0 %v6848
    %7236 = vmatprep.subr.bf16.mxu0 0
    %7237 = vmatpush1.bf16.msra.mxu0 %v6849
    %7238 = vmatprep.subr.bf16.mxu0 0
    %7239 = vmatpush1.bf16.msra.mxu0 %v6850
    %7240 = vmatprep.subr.bf16.mxu0 0
    %7241 = vmatpush1.bf16.msra.mxu0 %v6851
    %7242 = vmatprep.subr.bf16.mxu0 0
    %7243 = vmatpush1.bf16.msra.mxu0 %v6852
    %7244 = vmatprep.subr.bf16.mxu0 0
    %7245 = vmatpush1.bf16.msra.mxu0 %v6853
    %7246 = vmatprep.subr.bf16.mxu0 0
    %7247 = vmatpush1.bf16.msra.mxu0 %v6854
    %7248 = vmatprep.subr.bf16.mxu0 0
    %7249 = vmatpush1.bf16.msra.mxu0 %v6855
    %7250 = vmatprep.subr.bf16.mxu0 0
    %7251 = vmatpush1.bf16.msra.mxu0 %v6856
    %7252 = vmatprep.subr.bf16.mxu0 0
    %7253 = vmatpush1.bf16.msra.mxu0 %v6857
    %7254 = vmatprep.subr.bf16.mxu0 0
    %7255 = vmatpush1.bf16.msra.mxu0 %v6858
    %7256 = vmatprep.mubr.bf16.mxu0 %v5981
    %7257 = vmatmul.mubr.bf16.gmra.mrb[0].mxu0 %v5980
    %v7258 = vpop.f32.mrb[0].mxu0
    %v7259 = vadd.f32 %v7218, %v7258
    %v7260 = vpop.f32.mrb[0].mxu0
    %v7261 = vpop.f32.mrb[0].mxu0
    %v7262 = vadd.f32 %v7221, %v7261
    %v7263 = vpop.f32.mrb[0].mxu0
    %7264 = vdwg.mxu0
    %7265 = vmatprep.subr.bf16.mxu0 0
    %7266 = vmatpush1.bf16.msra.mxu0 %v6859
    %7267 = vmatprep.subr.bf16.mxu0 0
    %7268 = vmatpush1.bf16.msra.mxu0 %v6860
    %7269 = vmatprep.subr.bf16.mxu0 0
    %7270 = vmatpush1.bf16.msra.mxu0 %v6861
    %7271 = vmatprep.subr.bf16.mxu0 0
    %7272 = vmatpush1.bf16.msra.mxu0 %v6862
    %7273 = vmatprep.subr.bf16.mxu0 0
    %7274 = vmatpush1.bf16.msra.mxu0 %v6863
    %7275 = vmatprep.subr.bf16.mxu0 0
    %7276 = vmatpush1.bf16.msra.mxu0 %v6864
    %7277 = vmatprep.subr.bf16.mxu0 0
    %7278 = vmatpush1.bf16.msra.mxu0 %v6865
    %7279 = vmatprep.subr.bf16.mxu0 0
    %7280 = vmatpush1.bf16.msra.mxu0 %v6866
    %7281 = vmatprep.subr.bf16.mxu0 0
    %7282 = vmatpush1.bf16.msra.mxu0 %v6867
    %7283 = vmatprep.subr.bf16.mxu0 0
    %7284 = vmatpush1.bf16.msra.mxu0 %v6868
    %7285 = vmatprep.subr.bf16.mxu0 0
    %7286 = vmatpush1.bf16.msra.mxu0 %v6869
    %7287 = vmatprep.subr.bf16.mxu0 0
    %7288 = vmatpush1.bf16.msra.mxu0 %v6870
    %7289 = vmatprep.subr.bf16.mxu0 0
    %7290 = vmatpush1.bf16.msra.mxu0 %v6871
    %7291 = vmatprep.subr.bf16.mxu0 0
    %7292 = vmatpush1.bf16.msra.mxu0 %v6872
    %7293 = vmatprep.subr.bf16.mxu0 0
    %7294 = vmatpush1.bf16.msra.mxu0 %v6873
    %7295 = vmatprep.subr.bf16.mxu0 0
    %7296 = vmatpush1.bf16.msra.mxu0 %v6874
    %7297 = vmatprep.mubr.bf16.mxu0 %v5983
    %7298 = vmatmul.mubr.bf16.gmra.mrb[0].mxu0 %v5982
    %v7299 = vpop.f32.mrb[0].mxu0
    %v7300 = vadd.f32 %v7259, %v7299
    %v7301 = vpop.f32.mrb[0].mxu0
    %v7302 = vpop.f32.mrb[0].mxu0
    %v7303 = vadd.f32 %v7262, %v7302
    %v7304 = vpop.f32.mrb[0].mxu0
    %7305 = vdwg.mxu0
    %7306 = vmatprep.subr.bf16.mxu0 0
    %7307 = vmatpush1.bf16.msra.mxu0 %v6875
    %7308 = vmatprep.subr.bf16.mxu0 0
    %7309 = vmatpush1.bf16.msra.mxu0 %v6876
    %7310 = vmatprep.subr.bf16.mxu0 0
    %7311 = vmatpush1.bf16.msra.mxu0 %v6877
    %7312 = vmatprep.subr.bf16.mxu0 0
    %7313 = vmatpush1.bf16.msra.mxu0 %v6878
    %7314 = vmatprep.subr.bf16.mxu0 0
    %7315 = vmatpush1.bf16.msra.mxu0 %v6879
    %7316 = vmatprep.subr.bf16.mxu0 0
    %7317 = vmatpush1.bf16.msra.mxu0 %v6880
    %7318 = vmatprep.subr.bf16.mxu0 0
    %7319 = vmatpush1.bf16.msra.mxu0 %v6881
    %7320 = vmatprep.subr.bf16.mxu0 0
    %7321 = vmatpush1.bf16.msra.mxu0 %v6882
    %7322 = vmatprep.subr.bf16.mxu0 0
    %7323 = vmatpush1.bf16.msra.mxu0 %v6883
    %7324 = vmatprep.subr.bf16.mxu0 0
    %7325 = vmatpush1.bf16.msra.mxu0 %v6884
    %7326 = vmatprep.subr.bf16.mxu0 0
    %7327 = vmatpush1.bf16.msra.mxu0 %v6885
    %7328 = vmatprep.subr.bf16.mxu0 0
    %7329 = vmatpush1.bf16.msra.mxu0 %v6886
    %7330 = vmatprep.subr.bf16.mxu0 0
    %7331 = vmatpush1.bf16.msra.mxu0 %v6887
    %7332 = vmatprep.subr.bf16.mxu0 0
    %7333 = vmatpush1.bf16.msra.mxu0 %v6888
    %7334 = vmatprep.subr.bf16.mxu0 0
    %7335 = vmatpush1.bf16.msra.mxu0 %v6889
    %7336 = vmatprep.subr.bf16.mxu0 0
    %7337 = vmatpush1.bf16.msra.mxu0 %v6890
    %7338 = vmatprep.mubr.bf16.mxu0 %v5985
    %7339 = vmatmul.mubr.bf16.gmra.mrb[0].mxu0 %v5984
    %v7340 = vpop.f32.mrb[0].mxu0
    %v7341 = vadd.f32 %v7300, %v7340
    %v7342 = vpop.f32.mrb[0].mxu0
    %v7343 = vpop.f32.mrb[0].mxu0
    %v7344 = vadd.f32 %v7303, %v7343
    %v7345 = vpop.f32.mrb[0].mxu0
    %7346 = vdwg.mxu0
    %v7347 = vadd.f32 %v5310, %v7341
    %v7348 = vadd.f32 %v5311, %v7344
    %s7349 = scalar_lea.vmem %s13, 1
    %v7350 = vld [vmem:[%s7349] sm:$0x1]
    %s7351 = scalar_lea.vmem %s14, 1
    %v7352 = vld [vmem:[%s7351] sm:$0x1]
    %v7353 = vsel %vm172, %v7347, 0.0
    %7354 = vadd.xlane.f32.xlu0 %v7353
    %v7355 = vpop.xlane.xlu0 %7354
    %v7356 = vsel %vm172, %v7348, 0.0
    %7357 = vadd.xlane.f32.xlu0 %v7356
    %v7358 = vpop.xlane.xlu0 %7357
    %v7359 = vmul.f32 %v7355, %v1654
    %v7360 = vmul.f32 %v7358, %v1654
    %v7361 = vsub.f32 %v7347, %v7359
    %v7362 = vsub.f32 %v7348, %v7360
    %v7363 = vmul.f32 %v7361, %v7361
    %v7364 = vmul.f32 %v7362, %v7362
    %v7365 = vsel %vm172, %v7363, 0.0
    %7366 = vadd.xlane.f32.xlu0 %v7365
    %v7367 = vpop.xlane.xlu0 %7366
    %v7368 = vsel %vm172, %v7364, 0.0
    %7369 = vadd.xlane.f32.xlu0 %v7368
    %v7370 = vpop.xlane.xlu0 %7369
    %v7371 = vmul.f32 %v7367, %v1654
    %v7372 = vmul.f32 %v7370, %v1654
    %v7373 = vadd.f32 %v7371, 1e-05
    %v7374 = vadd.f32 %v7372, 1e-05
    %v7375 = vrsqrt.pop %v7373
    %v7376 = vrsqrt.pop %v7374
    %v7377 = vmul.f32 %v7361, %v7375
    %v7378 = vmul.f32 %v7362, %v7376
    %v7380 = vlaneseq
    %v7381 = vshrl.u32 %v7380, 7
    %v7382 = vsub.s32 0, %v7381
    %v7383 = vrot.slane %v7350, %v7382
    %v7385 = vmul.f32 %v7377, %v7383
    %v7386 = vmul.f32 %v7378, %v7383
    %v7388 = vlaneseq
    %v7389 = vshrl.u32 %v7388, 7
    %v7390 = vsub.s32 0, %v7389
    %v7391 = vrot.slane %v7352, %v7390
    %v7393 = vadd.f32 %v7385, %v7391
    %v7394 = vadd.f32 %v7386, %v7391
    %v7395 = vpack.c.bf16 %v7394, %v7393
    %s7396 = scalar_lea.vmem %s3, 32
    %v7397 = vld [vmem:[%s7396] sm:$0xf]
    %v7398 = vld [vmem:[%s7396 + $0x4] sm:$0xf]
    %v7399 = vld [vmem:[%s7396 + $0x8] sm:$0xf]
    %v7400 = vld [vmem:[%s7396 + $0xc] sm:$0xf]
    %s7401 = scalar_lea.vmem %s4, 2
    %v7402 = vld [vmem:[%s7401] sm:$0x1]
    %v7404 = vlaneseq
    %v7405 = vshrl.u32 %v7404, 7
    %v7406 = vsub.s32 0, %v7405
    %v7407 = vrot.slane %v7402, %v7406
    %v7413 = vunpack.c.l.b16 %v7397
    %v7414 = vunpack.c.l.b16 %v7398
    %v7415 = vunpack.c.l.b16 %v7399
    %v7416 = vunpack.c.l.b16 %v7400
    %v7417 = vpack.c.b16 %v7414, %v7413
    %v7418 = vpack.c.b16 %v7416, %v7415
    %v7422 = vsel %vm172, %v7395, 0
    %7424 = vmatprep.subr.bf16.mxu0 0
    %7425 = vmatpush1.bf16.msra.mxu0 %v7417
    %7426 = vmatprep.subr.bf16.mxu0 0
    %7427 = vmatpush1.bf16.msra.mxu0 %v7418
    %7428 = vmatprep.subr.bf16.mxu0 0
    %7429 = vmatpush1.bf16.msra.mxu0 0
    %7430 = vmatprep.subr.bf16.mxu0 0
    %7431 = vmatpush1.bf16.msra.mxu0 0
    %7432 = vmatprep.subr.bf16.mxu0 0
    %7433 = vmatpush1.bf16.msra.mxu0 0
    %7434 = vmatprep.subr.bf16.mxu0 0
    %7435 = vmatpush1.bf16.msra.mxu0 0
    %7436 = vmatprep.subr.bf16.mxu0 0
    %7437 = vmatpush1.bf16.msra.mxu0 0
    %7438 = vmatprep.subr.bf16.mxu0 0
    %7439 = vmatpush1.bf16.msra.mxu0 0
    %7440 = vmatprep.subr.bf16.mxu0 0
    %7441 = vmatpush1.bf16.msra.mxu0 0
    %7442 = vmatprep.subr.bf16.mxu0 0
    %7443 = vmatpush1.bf16.msra.mxu0 0
    %7444 = vmatprep.subr.bf16.mxu0 0
    %7445 = vmatpush1.bf16.msra.mxu0 0
    %7446 = vmatprep.subr.bf16.mxu0 0
    %7447 = vmatpush1.bf16.msra.mxu0 0
    %7448 = vmatprep.subr.bf16.mxu0 0
    %7449 = vmatpush1.bf16.msra.mxu0 0
    %7450 = vmatprep.subr.bf16.mxu0 0
    %7451 = vmatpush1.bf16.msra.mxu0 0
    %7452 = vmatprep.subr.bf16.mxu0 0
    %7453 = vmatpush1.bf16.msra.mxu0 0
    %7454 = vmatprep.subr.bf16.mxu0 0
    %7455 = vmatpush1.bf16.msra.mxu0 0
    %7456 = vmatprep.mubr.bf16.mxu0 0
    %7457 = vmatmul.mubr.bf16.gmra.mrb[0].mxu0 %v7422
    %v7458 = vpop.f32.mrb[0].mxu0
    %v7459 = vadd.f32 %v7407, %v7458
    %v7460 = vpop.f32.mrb[0].mxu0
    %v7461 = vpop.f32.mrb[0].mxu0
    %v7462 = vadd.f32 %v7407, %v7461
    %v7463 = vpop.f32.mrb[0].mxu0
    %7464 = vdwg.mxu0
    %7467 = vrot.lane.b32.xlu0 %v7459, 120
    %v7468 = vpop.permute.xlu0 %7467
    %7469 = vrot.lane.b32.xlu0 %v7462, 120
    %v7470 = vpop.permute.xlu0 %7469
    %7471 = vrot.lane.b32.xlu0 %v7459, 112
    %v7472 = vpop.permute.xlu0 %7471
    %7473 = vrot.lane.b32.xlu0 %v7462, 112
    %v7474 = vpop.permute.xlu0 %7473
    %7475 = vrot.lane.b32.xlu0 %v7459, 104
    %v7476 = vpop.permute.xlu0 %7475
    %7477 = vrot.lane.b32.xlu0 %v7462, 104
    %v7478 = vpop.permute.xlu0 %7477
    %7479 = vrot.lane.b32.xlu0 %v7459, 96
    %v7480 = vpop.permute.xlu0 %7479
    %v7481 = vsel %vm233, %v7459, 0
    %v7483 = vsel %vm233, %v7480, 0
    %7485 = vmatprep.subr.mxu0 0.0
    %7486 = vmatpush1.xpose.msra.mxu0 %v7483
    %7487 = vmatprep.subr.mxu0 0.0
    %7488 = vmatpush1.xpose.msra.mxu0 0.0
    %7489 = vmatprep.subr.mxu0 0.0
    %7490 = vmatpush1.xpose.msra.mxu0 0.0
    %7491 = vmatprep.subr.mxu0 0.0
    %7492 = vmatpush1.xpose.msra.mxu0 0.0
    %7493 = vmatprep.subr.mxu0 0.0
    %7494 = vmatpush1.xpose.msra.mxu0 0.0
    %7495 = vmatprep.subr.mxu0 0.0
    %7496 = vmatpush1.xpose.msra.mxu0 0.0
    %7497 = vmatprep.subr.mxu0 0.0
    %7498 = vmatpush1.xpose.msra.mxu0 0.0
    %7499 = vmatprep.subr.mxu0 0.0
    %7500 = vmatpush1.xpose.msra.mxu0 0.0
    %7501 = vmatprep.subr.mxu0 0.0
    %7502 = vmatpush1.xpose.msra.mxu0 0.0
    %7503 = vmatprep.subr.mxu0 0.0
    %7504 = vmatpush1.xpose.msra.mxu0 0.0
    %7505 = vmatprep.subr.mxu0 0.0
    %7506 = vmatpush1.xpose.msra.mxu0 0.0
    %7507 = vmatprep.subr.mxu0 0.0
    %7508 = vmatpush1.xpose.msra.mxu0 0.0
    %7509 = vmatprep.subr.mxu0 0.0
    %7510 = vmatpush1.xpose.msra.mxu0 0.0
    %7511 = vmatprep.subr.mxu0 0.0
    %7512 = vmatpush1.xpose.msra.mxu0 0.0
    %7513 = vmatprep.subr.mxu0 0.0
    %7514 = vmatpush1.xpose.msra.mxu0 0.0
    %7515 = vmatprep.subr.mxu0 0.0
    %7516 = vmatpush1.xpose.msra.mxu0 0.0
    %7517 = vmatprep.subr.mxu0 0.0
    %7518 = vmatpush1.xpose.msra.mxu0 0.0
    %7519 = vmatprep.subr.mxu0 0.0
    %7520 = vmatpush1.xpose.msra.mxu0 0.0
    %7521 = vmatprep.subr.mxu0 0.0
    %7522 = vmatpush1.xpose.msra.mxu0 0.0
    %7523 = vmatprep.subr.mxu0 0.0
    %7524 = vmatpush1.xpose.msra.mxu0 0.0
    %7525 = vmatprep.subr.mxu0 0.0
    %7526 = vmatpush1.xpose.msra.mxu0 0.0
    %7527 = vmatprep.subr.mxu0 0.0
    %7528 = vmatpush1.xpose.msra.mxu0 0.0
    %7529 = vmatprep.subr.mxu0 0.0
    %7530 = vmatpush1.xpose.msra.mxu0 0.0
    %7531 = vmatprep.subr.mxu0 0.0
    %7532 = vmatpush1.xpose.msra.mxu0 0.0
    %7533 = vmatprep.subr.mxu0 0.0
    %7534 = vmatpush1.xpose.msra.mxu0 0.0
    %7535 = vmatprep.subr.mxu0 0.0
    %7536 = vmatpush1.xpose.msra.mxu0 0.0
    %7537 = vmatprep.subr.mxu0 0.0
    %7538 = vmatpush1.xpose.msra.mxu0 0.0
    %7539 = vmatprep.subr.mxu0 0.0
    %7540 = vmatpush1.xpose.msra.mxu0 0.0
    %7541 = vmatprep.subr.mxu0 0.0
    %7542 = vmatpush1.xpose.msra.mxu0 0.0
    %7543 = vmatprep.subr.mxu0 0.0
    %7544 = vmatpush1.xpose.msra.mxu0 0.0
    %7545 = vmatprep.subr.mxu0 0.0
    %7546 = vmatpush1.xpose.msra.mxu0 0.0
    %7547 = vmatprep.subr.mxu0 0.0
    %7548 = vmatpush1.xpose.msra.mxu0 0.0
    %7549 = vmatprep.mubr.f32.mxu0 0.0
    %7550 = vmatmul.mubr.f32.gmra.mrb[0].mxu0 %v7481
    %v7551 = vpop.f32.mrb[0].mxu0
    %v7552 = vadd.f32 0.0, %v7551
    %v7553 = vpop.f32.mrb[0].mxu0
    %7554 = vdwg.mxu0
    %7555 = vrot.lane.b32.xlu0 %v7462, 96
    %v7556 = vpop.permute.xlu0 %7555
    %v7557 = vsel %vm233, %v7462, 0
    %v7559 = vsel %vm233, %v7556, 0
    %7561 = vmatprep.subr.mxu0 0.0
    %7562 = vmatpush1.xpose.msra.mxu0 %v7559
    %7563 = vmatprep.subr.mxu0 0.0
    %7564 = vmatpush1.xpose.msra.mxu0 0.0
    %7565 = vmatprep.subr.mxu0 0.0
    %7566 = vmatpush1.xpose.msra.mxu0 0.0
    %7567 = vmatprep.subr.mxu0 0.0
    %7568 = vmatpush1.xpose.msra.mxu0 0.0
    %7569 = vmatprep.subr.mxu0 0.0
    %7570 = vmatpush1.xpose.msra.mxu0 0.0
    %7571 = vmatprep.subr.mxu0 0.0
    %7572 = vmatpush1.xpose.msra.mxu0 0.0
    %7573 = vmatprep.subr.mxu0 0.0
    %7574 = vmatpush1.xpose.msra.mxu0 0.0
    %7575 = vmatprep.subr.mxu0 0.0
    %7576 = vmatpush1.xpose.msra.mxu0 0.0
    %7577 = vmatprep.subr.mxu0 0.0
    %7578 = vmatpush1.xpose.msra.mxu0 0.0
    %7579 = vmatprep.subr.mxu0 0.0
    %7580 = vmatpush1.xpose.msra.mxu0 0.0
    %7581 = vmatprep.subr.mxu0 0.0
    %7582 = vmatpush1.xpose.msra.mxu0 0.0
    %7583 = vmatprep.subr.mxu0 0.0
    %7584 = vmatpush1.xpose.msra.mxu0 0.0
    %7585 = vmatprep.subr.mxu0 0.0
    %7586 = vmatpush1.xpose.msra.mxu0 0.0
    %7587 = vmatprep.subr.mxu0 0.0
    %7588 = vmatpush1.xpose.msra.mxu0 0.0
    %7589 = vmatprep.subr.mxu0 0.0
    %7590 = vmatpush1.xpose.msra.mxu0 0.0
    %7591 = vmatprep.subr.mxu0 0.0
    %7592 = vmatpush1.xpose.msra.mxu0 0.0
    %7593 = vmatprep.subr.mxu0 0.0
    %7594 = vmatpush1.xpose.msra.mxu0 0.0
    %7595 = vmatprep.subr.mxu0 0.0
    %7596 = vmatpush1.xpose.msra.mxu0 0.0
    %7597 = vmatprep.subr.mxu0 0.0
    %7598 = vmatpush1.xpose.msra.mxu0 0.0
    %7599 = vmatprep.subr.mxu0 0.0
    %7600 = vmatpush1.xpose.msra.mxu0 0.0
    %7601 = vmatprep.subr.mxu0 0.0
    %7602 = vmatpush1.xpose.msra.mxu0 0.0
    %7603 = vmatprep.subr.mxu0 0.0
    %7604 = vmatpush1.xpose.msra.mxu0 0.0
    %7605 = vmatprep.subr.mxu0 0.0
    %7606 = vmatpush1.xpose.msra.mxu0 0.0
    %7607 = vmatprep.subr.mxu0 0.0
    %7608 = vmatpush1.xpose.msra.mxu0 0.0
    %7609 = vmatprep.subr.mxu0 0.0
    %7610 = vmatpush1.xpose.msra.mxu0 0.0
    %7611 = vmatprep.subr.mxu0 0.0
    %7612 = vmatpush1.xpose.msra.mxu0 0.0
    %7613 = vmatprep.subr.mxu0 0.0
    %7614 = vmatpush1.xpose.msra.mxu0 0.0
    %7615 = vmatprep.subr.mxu0 0.0
    %7616 = vmatpush1.xpose.msra.mxu0 0.0
    %7617 = vmatprep.subr.mxu0 0.0
    %7618 = vmatpush1.xpose.msra.mxu0 0.0
    %7619 = vmatprep.subr.mxu0 0.0
    %7620 = vmatpush1.xpose.msra.mxu0 0.0
    %7621 = vmatprep.subr.mxu0 0.0
    %7622 = vmatpush1.xpose.msra.mxu0 0.0
    %7623 = vmatprep.subr.mxu0 0.0
    %7624 = vmatpush1.xpose.msra.mxu0 0.0
    %7625 = vmatprep.mubr.f32.mxu0 0.0
    %7626 = vmatmul.mubr.f32.gmra.mrb[0].mxu0 %v7557
    %v7627 = vpop.f32.mrb[0].mxu0
    %v7628 = vadd.f32 0.0, %v7627
    %v7629 = vpop.f32.mrb[0].mxu0
    %7630 = vdwg.mxu0
    %7631 = vrot.lane.b32.xlu0 %v7468, 96
    %v7632 = vpop.permute.xlu0 %7631
    %v7633 = vsel %vm233, %v7468, 0
    %v7635 = vsel %vm233, %v7632, 0
    %7637 = vmatprep.subr.mxu0 0.0
    %7638 = vmatpush1.xpose.msra.mxu0 %v7635
    %7639 = vmatprep.subr.mxu0 0.0
    %7640 = vmatpush1.xpose.msra.mxu0 0.0
    %7641 = vmatprep.subr.mxu0 0.0
    %7642 = vmatpush1.xpose.msra.mxu0 0.0
    %7643 = vmatprep.subr.mxu0 0.0
    %7644 = vmatpush1.xpose.msra.mxu0 0.0
    %7645 = vmatprep.subr.mxu0 0.0
    %7646 = vmatpush1.xpose.msra.mxu0 0.0
    %7647 = vmatprep.subr.mxu0 0.0
    %7648 = vmatpush1.xpose.msra.mxu0 0.0
    %7649 = vmatprep.subr.mxu0 0.0
    %7650 = vmatpush1.xpose.msra.mxu0 0.0
    %7651 = vmatprep.subr.mxu0 0.0
    %7652 = vmatpush1.xpose.msra.mxu0 0.0
    %7653 = vmatprep.subr.mxu0 0.0
    %7654 = vmatpush1.xpose.msra.mxu0 0.0
    %7655 = vmatprep.subr.mxu0 0.0
    %7656 = vmatpush1.xpose.msra.mxu0 0.0
    %7657 = vmatprep.subr.mxu0 0.0
    %7658 = vmatpush1.xpose.msra.mxu0 0.0
    %7659 = vmatprep.subr.mxu0 0.0
    %7660 = vmatpush1.xpose.msra.mxu0 0.0
    %7661 = vmatprep.subr.mxu0 0.0
    %7662 = vmatpush1.xpose.msra.mxu0 0.0
    %7663 = vmatprep.subr.mxu0 0.0
    %7664 = vmatpush1.xpose.msra.mxu0 0.0
    %7665 = vmatprep.subr.mxu0 0.0
    %7666 = vmatpush1.xpose.msra.mxu0 0.0
    %7667 = vmatprep.subr.mxu0 0.0
    %7668 = vmatpush1.xpose.msra.mxu0 0.0
    %7669 = vmatprep.subr.mxu0 0.0
    %7670 = vmatpush1.xpose.msra.mxu0 0.0
    %7671 = vmatprep.subr.mxu0 0.0
    %7672 = vmatpush1.xpose.msra.mxu0 0.0
    %7673 = vmatprep.subr.mxu0 0.0
    %7674 = vmatpush1.xpose.msra.mxu0 0.0
    %7675 = vmatprep.subr.mxu0 0.0
    %7676 = vmatpush1.xpose.msra.mxu0 0.0
    %7677 = vmatprep.subr.mxu0 0.0
    %7678 = vmatpush1.xpose.msra.mxu0 0.0
    %7679 = vmatprep.subr.mxu0 0.0
    %7680 = vmatpush1.xpose.msra.mxu0 0.0
    %7681 = vmatprep.subr.mxu0 0.0
    %7682 = vmatpush1.xpose.msra.mxu0 0.0
    %7683 = vmatprep.subr.mxu0 0.0
    %7684 = vmatpush1.xpose.msra.mxu0 0.0
    %7685 = vmatprep.subr.mxu0 0.0
    %7686 = vmatpush1.xpose.msra.mxu0 0.0
    %7687 = vmatprep.subr.mxu0 0.0
    %7688 = vmatpush1.xpose.msra.mxu0 0.0
    %7689 = vmatprep.subr.mxu0 0.0
    %7690 = vmatpush1.xpose.msra.mxu0 0.0
    %7691 = vmatprep.subr.mxu0 0.0
    %7692 = vmatpush1.xpose.msra.mxu0 0.0
    %7693 = vmatprep.subr.mxu0 0.0
    %7694 = vmatpush1.xpose.msra.mxu0 0.0
    %7695 = vmatprep.subr.mxu0 0.0
    %7696 = vmatpush1.xpose.msra.mxu0 0.0
    %7697 = vmatprep.subr.mxu0 0.0
    %7698 = vmatpush1.xpose.msra.mxu0 0.0
    %7699 = vmatprep.subr.mxu0 0.0
    %7700 = vmatpush1.xpose.msra.mxu0 0.0
    %7701 = vmatprep.mubr.f32.mxu0 0.0
    %7702 = vmatmul.mubr.f32.gmra.mrb[0].mxu0 %v7633
    %v7703 = vpop.f32.mrb[0].mxu0
    %v7704 = vadd.f32 0.0, %v7703
    %v7705 = vpop.f32.mrb[0].mxu0
    %7706 = vdwg.mxu0
    %7707 = vrot.lane.b32.xlu0 %v7470, 96
    %v7708 = vpop.permute.xlu0 %7707
    %v7709 = vsel %vm233, %v7470, 0
    %v7711 = vsel %vm233, %v7708, 0
    %7713 = vmatprep.subr.mxu0 0.0
    %7714 = vmatpush1.xpose.msra.mxu0 %v7711
    %7715 = vmatprep.subr.mxu0 0.0
    %7716 = vmatpush1.xpose.msra.mxu0 0.0
    %7717 = vmatprep.subr.mxu0 0.0
    %7718 = vmatpush1.xpose.msra.mxu0 0.0
    %7719 = vmatprep.subr.mxu0 0.0
    %7720 = vmatpush1.xpose.msra.mxu0 0.0
    %7721 = vmatprep.subr.mxu0 0.0
    %7722 = vmatpush1.xpose.msra.mxu0 0.0
    %7723 = vmatprep.subr.mxu0 0.0
    %7724 = vmatpush1.xpose.msra.mxu0 0.0
    %7725 = vmatprep.subr.mxu0 0.0
    %7726 = vmatpush1.xpose.msra.mxu0 0.0
    %7727 = vmatprep.subr.mxu0 0.0
    %7728 = vmatpush1.xpose.msra.mxu0 0.0
    %7729 = vmatprep.subr.mxu0 0.0
    %7730 = vmatpush1.xpose.msra.mxu0 0.0
    %7731 = vmatprep.subr.mxu0 0.0
    %7732 = vmatpush1.xpose.msra.mxu0 0.0
    %7733 = vmatprep.subr.mxu0 0.0
    %7734 = vmatpush1.xpose.msra.mxu0 0.0
    %7735 = vmatprep.subr.mxu0 0.0
    %7736 = vmatpush1.xpose.msra.mxu0 0.0
    %7737 = vmatprep.subr.mxu0 0.0
    %7738 = vmatpush1.xpose.msra.mxu0 0.0
    %7739 = vmatprep.subr.mxu0 0.0
    %7740 = vmatpush1.xpose.msra.mxu0 0.0
    %7741 = vmatprep.subr.mxu0 0.0
    %7742 = vmatpush1.xpose.msra.mxu0 0.0
    %7743 = vmatprep.subr.mxu0 0.0
    %7744 = vmatpush1.xpose.msra.mxu0 0.0
    %7745 = vmatprep.subr.mxu0 0.0
    %7746 = vmatpush1.xpose.msra.mxu0 0.0
    %7747 = vmatprep.subr.mxu0 0.0
    %7748 = vmatpush1.xpose.msra.mxu0 0.0
    %7749 = vmatprep.subr.mxu0 0.0
    %7750 = vmatpush1.xpose.msra.mxu0 0.0
    %7751 = vmatprep.subr.mxu0 0.0
    %7752 = vmatpush1.xpose.msra.mxu0 0.0
    %7753 = vmatprep.subr.mxu0 0.0
    %7754 = vmatpush1.xpose.msra.mxu0 0.0
    %7755 = vmatprep.subr.mxu0 0.0
    %7756 = vmatpush1.xpose.msra.mxu0 0.0
    %7757 = vmatprep.subr.mxu0 0.0
    %7758 = vmatpush1.xpose.msra.mxu0 0.0
    %7759 = vmatprep.subr.mxu0 0.0
    %7760 = vmatpush1.xpose.msra.mxu0 0.0
    %7761 = vmatprep.subr.mxu0 0.0
    %7762 = vmatpush1.xpose.msra.mxu0 0.0
    %7763 = vmatprep.subr.mxu0 0.0
    %7764 = vmatpush1.xpose.msra.mxu0 0.0
    %7765 = vmatprep.subr.mxu0 0.0
    %7766 = vmatpush1.xpose.msra.mxu0 0.0
    %7767 = vmatprep.subr.mxu0 0.0
    %7768 = vmatpush1.xpose.msra.mxu0 0.0
    %7769 = vmatprep.subr.mxu0 0.0
    %7770 = vmatpush1.xpose.msra.mxu0 0.0
    %7771 = vmatprep.subr.mxu0 0.0
    %7772 = vmatpush1.xpose.msra.mxu0 0.0
    %7773 = vmatprep.subr.mxu0 0.0
    %7774 = vmatpush1.xpose.msra.mxu0 0.0
    %7775 = vmatprep.subr.mxu0 0.0
    %7776 = vmatpush1.xpose.msra.mxu0 0.0
    %7777 = vmatprep.mubr.f32.mxu0 0.0
    %7778 = vmatmul.mubr.f32.gmra.mrb[0].mxu0 %v7709
    %v7779 = vpop.f32.mrb[0].mxu0
    %v7780 = vadd.f32 0.0, %v7779
    %v7781 = vpop.f32.mrb[0].mxu0
    %7782 = vdwg.mxu0
    %7783 = vrot.lane.b32.xlu0 %v7472, 96
    %v7784 = vpop.permute.xlu0 %7783
    %v7785 = vsel %vm233, %v7472, 0
    %v7787 = vsel %vm233, %v7784, 0
    %7789 = vmatprep.subr.mxu0 0.0
    %7790 = vmatpush1.xpose.msra.mxu0 %v7787
    %7791 = vmatprep.subr.mxu0 0.0
    %7792 = vmatpush1.xpose.msra.mxu0 0.0
    %7793 = vmatprep.subr.mxu0 0.0
    %7794 = vmatpush1.xpose.msra.mxu0 0.0
    %7795 = vmatprep.subr.mxu0 0.0
    %7796 = vmatpush1.xpose.msra.mxu0 0.0
    %7797 = vmatprep.subr.mxu0 0.0
    %7798 = vmatpush1.xpose.msra.mxu0 0.0
    %7799 = vmatprep.subr.mxu0 0.0
    %7800 = vmatpush1.xpose.msra.mxu0 0.0
    %7801 = vmatprep.subr.mxu0 0.0
    %7802 = vmatpush1.xpose.msra.mxu0 0.0
    %7803 = vmatprep.subr.mxu0 0.0
    %7804 = vmatpush1.xpose.msra.mxu0 0.0
    %7805 = vmatprep.subr.mxu0 0.0
    %7806 = vmatpush1.xpose.msra.mxu0 0.0
    %7807 = vmatprep.subr.mxu0 0.0
    %7808 = vmatpush1.xpose.msra.mxu0 0.0
    %7809 = vmatprep.subr.mxu0 0.0
    %7810 = vmatpush1.xpose.msra.mxu0 0.0
    %7811 = vmatprep.subr.mxu0 0.0
    %7812 = vmatpush1.xpose.msra.mxu0 0.0
    %7813 = vmatprep.subr.mxu0 0.0
    %7814 = vmatpush1.xpose.msra.mxu0 0.0
    %7815 = vmatprep.subr.mxu0 0.0
    %7816 = vmatpush1.xpose.msra.mxu0 0.0
    %7817 = vmatprep.subr.mxu0 0.0
    %7818 = vmatpush1.xpose.msra.mxu0 0.0
    %7819 = vmatprep.subr.mxu0 0.0
    %7820 = vmatpush1.xpose.msra.mxu0 0.0
    %7821 = vmatprep.subr.mxu0 0.0
    %7822 = vmatpush1.xpose.msra.mxu0 0.0
    %7823 = vmatprep.subr.mxu0 0.0
    %7824 = vmatpush1.xpose.msra.mxu0 0.0
    %7825 = vmatprep.subr.mxu0 0.0
    %7826 = vmatpush1.xpose.msra.mxu0 0.0
    %7827 = vmatprep.subr.mxu0 0.0
    %7828 = vmatpush1.xpose.msra.mxu0 0.0
    %7829 = vmatprep.subr.mxu0 0.0
    %7830 = vmatpush1.xpose.msra.mxu0 0.0
    %7831 = vmatprep.subr.mxu0 0.0
    %7832 = vmatpush1.xpose.msra.mxu0 0.0
    %7833 = vmatprep.subr.mxu0 0.0
    %7834 = vmatpush1.xpose.msra.mxu0 0.0
    %7835 = vmatprep.subr.mxu0 0.0
    %7836 = vmatpush1.xpose.msra.mxu0 0.0
    %7837 = vmatprep.subr.mxu0 0.0
    %7838 = vmatpush1.xpose.msra.mxu0 0.0
    %7839 = vmatprep.subr.mxu0 0.0
    %7840 = vmatpush1.xpose.msra.mxu0 0.0
    %7841 = vmatprep.subr.mxu0 0.0
    %7842 = vmatpush1.xpose.msra.mxu0 0.0
    %7843 = vmatprep.subr.mxu0 0.0
    %7844 = vmatpush1.xpose.msra.mxu0 0.0
    %7845 = vmatprep.subr.mxu0 0.0
    %7846 = vmatpush1.xpose.msra.mxu0 0.0
    %7847 = vmatprep.subr.mxu0 0.0
    %7848 = vmatpush1.xpose.msra.mxu0 0.0
    %7849 = vmatprep.subr.mxu0 0.0
    %7850 = vmatpush1.xpose.msra.mxu0 0.0
    %7851 = vmatprep.subr.mxu0 0.0
    %7852 = vmatpush1.xpose.msra.mxu0 0.0
    %7853 = vmatprep.mubr.f32.mxu0 0.0
    %7854 = vmatmul.mubr.f32.gmra.mrb[0].mxu0 %v7785
    %v7855 = vpop.f32.mrb[0].mxu0
    %v7856 = vadd.f32 0.0, %v7855
    %v7857 = vpop.f32.mrb[0].mxu0
    %7858 = vdwg.mxu0
    %7859 = vrot.lane.b32.xlu0 %v7474, 96
    %v7860 = vpop.permute.xlu0 %7859
    %v7861 = vsel %vm233, %v7474, 0
    %v7863 = vsel %vm233, %v7860, 0
    %7865 = vmatprep.subr.mxu0 0.0
    %7866 = vmatpush1.xpose.msra.mxu0 %v7863
    %7867 = vmatprep.subr.mxu0 0.0
    %7868 = vmatpush1.xpose.msra.mxu0 0.0
    %7869 = vmatprep.subr.mxu0 0.0
    %7870 = vmatpush1.xpose.msra.mxu0 0.0
    %7871 = vmatprep.subr.mxu0 0.0
    %7872 = vmatpush1.xpose.msra.mxu0 0.0
    %7873 = vmatprep.subr.mxu0 0.0
    %7874 = vmatpush1.xpose.msra.mxu0 0.0
    %7875 = vmatprep.subr.mxu0 0.0
    %7876 = vmatpush1.xpose.msra.mxu0 0.0
    %7877 = vmatprep.subr.mxu0 0.0
    %7878 = vmatpush1.xpose.msra.mxu0 0.0
    %7879 = vmatprep.subr.mxu0 0.0
    %7880 = vmatpush1.xpose.msra.mxu0 0.0
    %7881 = vmatprep.subr.mxu0 0.0
    %7882 = vmatpush1.xpose.msra.mxu0 0.0
    %7883 = vmatprep.subr.mxu0 0.0
    %7884 = vmatpush1.xpose.msra.mxu0 0.0
    %7885 = vmatprep.subr.mxu0 0.0
    %7886 = vmatpush1.xpose.msra.mxu0 0.0
    %7887 = vmatprep.subr.mxu0 0.0
    %7888 = vmatpush1.xpose.msra.mxu0 0.0
    %7889 = vmatprep.subr.mxu0 0.0
    %7890 = vmatpush1.xpose.msra.mxu0 0.0
    %7891 = vmatprep.subr.mxu0 0.0
    %7892 = vmatpush1.xpose.msra.mxu0 0.0
    %7893 = vmatprep.subr.mxu0 0.0
    %7894 = vmatpush1.xpose.msra.mxu0 0.0
    %7895 = vmatprep.subr.mxu0 0.0
    %7896 = vmatpush1.xpose.msra.mxu0 0.0
    %7897 = vmatprep.subr.mxu0 0.0
    %7898 = vmatpush1.xpose.msra.mxu0 0.0
    %7899 = vmatprep.subr.mxu0 0.0
    %7900 = vmatpush1.xpose.msra.mxu0 0.0
    %7901 = vmatprep.subr.mxu0 0.0
    %7902 = vmatpush1.xpose.msra.mxu0 0.0
    %7903 = vmatprep.subr.mxu0 0.0
    %7904 = vmatpush1.xpose.msra.mxu0 0.0
    %7905 = vmatprep.subr.mxu0 0.0
    %7906 = vmatpush1.xpose.msra.mxu0 0.0
    %7907 = vmatprep.subr.mxu0 0.0
    %7908 = vmatpush1.xpose.msra.mxu0 0.0
    %7909 = vmatprep.subr.mxu0 0.0
    %7910 = vmatpush1.xpose.msra.mxu0 0.0
    %7911 = vmatprep.subr.mxu0 0.0
    %7912 = vmatpush1.xpose.msra.mxu0 0.0
    %7913 = vmatprep.subr.mxu0 0.0
    %7914 = vmatpush1.xpose.msra.mxu0 0.0
    %7915 = vmatprep.subr.mxu0 0.0
    %7916 = vmatpush1.xpose.msra.mxu0 0.0
    %7917 = vmatprep.subr.mxu0 0.0
    %7918 = vmatpush1.xpose.msra.mxu0 0.0
    %7919 = vmatprep.subr.mxu0 0.0
    %7920 = vmatpush1.xpose.msra.mxu0 0.0
    %7921 = vmatprep.subr.mxu0 0.0
    %7922 = vmatpush1.xpose.msra.mxu0 0.0
    %7923 = vmatprep.subr.mxu0 0.0
    %7924 = vmatpush1.xpose.msra.mxu0 0.0
    %7925 = vmatprep.subr.mxu0 0.0
    %7926 = vmatpush1.xpose.msra.mxu0 0.0
    %7927 = vmatprep.subr.mxu0 0.0
    %7928 = vmatpush1.xpose.msra.mxu0 0.0
    %7929 = vmatprep.mubr.f32.mxu0 0.0
    %7930 = vmatmul.mubr.f32.gmra.mrb[0].mxu0 %v7861
    %v7931 = vpop.f32.mrb[0].mxu0
    %v7932 = vadd.f32 0.0, %v7931
    %v7933 = vpop.f32.mrb[0].mxu0
    %7934 = vdwg.mxu0
    %7935 = vrot.lane.b32.xlu0 %v7476, 96
    %v7936 = vpop.permute.xlu0 %7935
    %v7937 = vsel %vm233, %v7476, 0
    %v7939 = vsel %vm233, %v7936, 0
    %7941 = vmatprep.subr.mxu0 0.0
    %7942 = vmatpush1.xpose.msra.mxu0 %v7939
    %7943 = vmatprep.subr.mxu0 0.0
    %7944 = vmatpush1.xpose.msra.mxu0 0.0
    %7945 = vmatprep.subr.mxu0 0.0
    %7946 = vmatpush1.xpose.msra.mxu0 0.0
    %7947 = vmatprep.subr.mxu0 0.0
    %7948 = vmatpush1.xpose.msra.mxu0 0.0
    %7949 = vmatprep.subr.mxu0 0.0
    %7950 = vmatpush1.xpose.msra.mxu0 0.0
    %7951 = vmatprep.subr.mxu0 0.0
    %7952 = vmatpush1.xpose.msra.mxu0 0.0
    %7953 = vmatprep.subr.mxu0 0.0
    %7954 = vmatpush1.xpose.msra.mxu0 0.0
    %7955 = vmatprep.subr.mxu0 0.0
    %7956 = vmatpush1.xpose.msra.mxu0 0.0
    %7957 = vmatprep.subr.mxu0 0.0
    %7958 = vmatpush1.xpose.msra.mxu0 0.0
    %7959 = vmatprep.subr.mxu0 0.0
    %7960 = vmatpush1.xpose.msra.mxu0 0.0
    %7961 = vmatprep.subr.mxu0 0.0
    %7962 = vmatpush1.xpose.msra.mxu0 0.0
    %7963 = vmatprep.subr.mxu0 0.0
    %7964 = vmatpush1.xpose.msra.mxu0 0.0
    %7965 = vmatprep.subr.mxu0 0.0
    %7966 = vmatpush1.xpose.msra.mxu0 0.0
    %7967 = vmatprep.subr.mxu0 0.0
    %7968 = vmatpush1.xpose.msra.mxu0 0.0
    %7969 = vmatprep.subr.mxu0 0.0
    %7970 = vmatpush1.xpose.msra.mxu0 0.0
    %7971 = vmatprep.subr.mxu0 0.0
    %7972 = vmatpush1.xpose.msra.mxu0 0.0
    %7973 = vmatprep.subr.mxu0 0.0
    %7974 = vmatpush1.xpose.msra.mxu0 0.0
    %7975 = vmatprep.subr.mxu0 0.0
    %7976 = vmatpush1.xpose.msra.mxu0 0.0
    %7977 = vmatprep.subr.mxu0 0.0
    %7978 = vmatpush1.xpose.msra.mxu0 0.0
    %7979 = vmatprep.subr.mxu0 0.0
    %7980 = vmatpush1.xpose.msra.mxu0 0.0
    %7981 = vmatprep.subr.mxu0 0.0
    %7982 = vmatpush1.xpose.msra.mxu0 0.0
    %7983 = vmatprep.subr.mxu0 0.0
    %7984 = vmatpush1.xpose.msra.mxu0 0.0
    %7985 = vmatprep.subr.mxu0 0.0
    %7986 = vmatpush1.xpose.msra.mxu0 0.0
    %7987 = vmatprep.subr.mxu0 0.0
    %7988 = vmatpush1.xpose.msra.mxu0 0.0
    %7989 = vmatprep.subr.mxu0 0.0
    %7990 = vmatpush1.xpose.msra.mxu0 0.0
    %7991 = vmatprep.subr.mxu0 0.0
    %7992 = vmatpush1.xpose.msra.mxu0 0.0
    %7993 = vmatprep.subr.mxu0 0.0
    %7994 = vmatpush1.xpose.msra.mxu0 0.0
    %7995 = vmatprep.subr.mxu0 0.0
    %7996 = vmatpush1.xpose.msra.mxu0 0.0
    %7997 = vmatprep.subr.mxu0 0.0
    %7998 = vmatpush1.xpose.msra.mxu0 0.0
    %7999 = vmatprep.subr.mxu0 0.0
    %8000 = vmatpush1.xpose.msra.mxu0 0.0
    %8001 = vmatprep.subr.mxu0 0.0
    %8002 = vmatpush1.xpose.msra.mxu0 0.0
    %8003 = vmatprep.subr.mxu0 0.0
    %8004 = vmatpush1.xpose.msra.mxu0 0.0
    %8005 = vmatprep.mubr.f32.mxu0 0.0
    %8006 = vmatmul.mubr.f32.gmra.mrb[0].mxu0 %v7937
    %v8007 = vpop.f32.mrb[0].mxu0
    %v8008 = vadd.f32 0.0, %v8007
    %v8009 = vpop.f32.mrb[0].mxu0
    %8010 = vdwg.mxu0
    %8011 = vrot.lane.b32.xlu0 %v7478, 96
    %v8012 = vpop.permute.xlu0 %8011
    %v8013 = vsel %vm233, %v7478, 0
    %v8015 = vsel %vm233, %v8012, 0
    %8017 = vmatprep.subr.mxu0 0.0
    %8018 = vmatpush1.xpose.msra.mxu0 %v8015
    %8019 = vmatprep.subr.mxu0 0.0
    %8020 = vmatpush1.xpose.msra.mxu0 0.0
    %8021 = vmatprep.subr.mxu0 0.0
    %8022 = vmatpush1.xpose.msra.mxu0 0.0
    %8023 = vmatprep.subr.mxu0 0.0
    %8024 = vmatpush1.xpose.msra.mxu0 0.0
    %8025 = vmatprep.subr.mxu0 0.0
    %8026 = vmatpush1.xpose.msra.mxu0 0.0
    %8027 = vmatprep.subr.mxu0 0.0
    %8028 = vmatpush1.xpose.msra.mxu0 0.0
    %8029 = vmatprep.subr.mxu0 0.0
    %8030 = vmatpush1.xpose.msra.mxu0 0.0
    %8031 = vmatprep.subr.mxu0 0.0
    %8032 = vmatpush1.xpose.msra.mxu0 0.0
    %8033 = vmatprep.subr.mxu0 0.0
    %8034 = vmatpush1.xpose.msra.mxu0 0.0
    %8035 = vmatprep.subr.mxu0 0.0
    %8036 = vmatpush1.xpose.msra.mxu0 0.0
    %8037 = vmatprep.subr.mxu0 0.0
    %8038 = vmatpush1.xpose.msra.mxu0 0.0
    %8039 = vmatprep.subr.mxu0 0.0
    %8040 = vmatpush1.xpose.msra.mxu0 0.0
    %8041 = vmatprep.subr.mxu0 0.0
    %8042 = vmatpush1.xpose.msra.mxu0 0.0
    %8043 = vmatprep.subr.mxu0 0.0
    %8044 = vmatpush1.xpose.msra.mxu0 0.0
    %8045 = vmatprep.subr.mxu0 0.0
    %8046 = vmatpush1.xpose.msra.mxu0 0.0
    %8047 = vmatprep.subr.mxu0 0.0
    %8048 = vmatpush1.xpose.msra.mxu0 0.0
    %8049 = vmatprep.subr.mxu0 0.0
    %8050 = vmatpush1.xpose.msra.mxu0 0.0
    %8051 = vmatprep.subr.mxu0 0.0
    %8052 = vmatpush1.xpose.msra.mxu0 0.0
    %8053 = vmatprep.subr.mxu0 0.0
    %8054 = vmatpush1.xpose.msra.mxu0 0.0
    %8055 = vmatprep.subr.mxu0 0.0
    %8056 = vmatpush1.xpose.msra.mxu0 0.0
    %8057 = vmatprep.subr.mxu0 0.0
    %8058 = vmatpush1.xpose.msra.mxu0 0.0
    %8059 = vmatprep.subr.mxu0 0.0
    %8060 = vmatpush1.xpose.msra.mxu0 0.0
    %8061 = vmatprep.subr.mxu0 0.0
    %8062 = vmatpush1.xpose.msra.mxu0 0.0
    %8063 = vmatprep.subr.mxu0 0.0
    %8064 = vmatpush1.xpose.msra.mxu0 0.0
    %8065 = vmatprep.subr.mxu0 0.0
    %8066 = vmatpush1.xpose.msra.mxu0 0.0
    %8067 = vmatprep.subr.mxu0 0.0
    %8068 = vmatpush1.xpose.msra.mxu0 0.0
    %8069 = vmatprep.subr.mxu0 0.0
    %8070 = vmatpush1.xpose.msra.mxu0 0.0
    %8071 = vmatprep.subr.mxu0 0.0
    %8072 = vmatpush1.xpose.msra.mxu0 0.0
    %8073 = vmatprep.subr.mxu0 0.0
    %8074 = vmatpush1.xpose.msra.mxu0 0.0
    %8075 = vmatprep.subr.mxu0 0.0
    %8076 = vmatpush1.xpose.msra.mxu0 0.0
    %8077 = vmatprep.subr.mxu0 0.0
    %8078 = vmatpush1.xpose.msra.mxu0 0.0
    %8079 = vmatprep.subr.mxu0 0.0
    %8080 = vmatpush1.xpose.msra.mxu0 0.0
    %8081 = vmatprep.mubr.f32.mxu0 0.0
    %8082 = vmatmul.mubr.f32.gmra.mrb[0].mxu0 %v8013
    %v8083 = vpop.f32.mrb[0].mxu0
    %v8084 = vadd.f32 0.0, %v8083
    %v8085 = vpop.f32.mrb[0].mxu0
    %8086 = vdwg.mxu0
    %v8087 = vmul.f32 %v7552, 0.35355338
    %v8088 = vmul.f32 %v7628, 0.35355338
    %v8089 = vmul.f32 %v7704, 0.35355338
    %v8090 = vmul.f32 %v7780, 0.35355338
    %v8091 = vmul.f32 %v7856, 0.35355338
    %v8092 = vmul.f32 %v7932, 0.35355338
    %v8093 = vmul.f32 %v8008, 0.35355338
    %v8094 = vmul.f32 %v8084, 0.35355338
    %v8095 = vsel %vm233, %v8087, -inf
    %8096 = vmax.xlane.f32.xlu0 %v8095
    %v8097 = vpop.xlane.xlu0 %8096
    %v8098 = vsel %vm233, %v8088, -inf
    %8099 = vmax.xlane.f32.xlu0 %v8098
    %v8100 = vpop.xlane.xlu0 %8099
    %v8101 = vsel %vm233, %v8089, -inf
    %8102 = vmax.xlane.f32.xlu0 %v8101
    %v8103 = vpop.xlane.xlu0 %8102
    %v8104 = vsel %vm233, %v8090, -inf
    %8105 = vmax.xlane.f32.xlu0 %v8104
    %v8106 = vpop.xlane.xlu0 %8105
    %v8107 = vsel %vm233, %v8091, -inf
    %8108 = vmax.xlane.f32.xlu0 %v8107
    %v8109 = vpop.xlane.xlu0 %8108
    %v8110 = vsel %vm233, %v8092, -inf
    %8111 = vmax.xlane.f32.xlu0 %v8110
    %v8112 = vpop.xlane.xlu0 %8111
    %v8113 = vsel %vm233, %v8093, -inf
    %8114 = vmax.xlane.f32.xlu0 %v8113
    %v8115 = vpop.xlane.xlu0 %8114
    %v8116 = vsel %vm233, %v8094, -inf
    %8117 = vmax.xlane.f32.xlu0 %v8116
    %v8118 = vpop.xlane.xlu0 %8117
    %v8119 = vsub.f32 %v8087, %v8097
    %v8120 = vsub.f32 %v8088, %v8100
    %v8121 = vsub.f32 %v8089, %v8103
    %v8122 = vsub.f32 %v8090, %v8106
    %v8123 = vsub.f32 %v8091, %v8109
    %v8124 = vsub.f32 %v8092, %v8112
    %v8125 = vsub.f32 %v8093, %v8115
    %v8126 = vsub.f32 %v8094, %v8118
    %v8127 = vmul.f32 %v8119, 1.442695
    %v8128 = vpow.pop %v8127
    %v8129 = vmul.f32 %v8120, 1.442695
    %v8130 = vpow.pop %v8129
    %v8131 = vmul.f32 %v8121, 1.442695
    %v8132 = vpow.pop %v8131
    %v8133 = vmul.f32 %v8122, 1.442695
    %v8134 = vpow.pop %v8133
    %v8135 = vmul.f32 %v8123, 1.442695
    %v8136 = vpow.pop %v8135
    %v8137 = vmul.f32 %v8124, 1.442695
    %v8138 = vpow.pop %v8137
    %v8139 = vmul.f32 %v8125, 1.442695
    %v8140 = vpow.pop %v8139
    %v8141 = vmul.f32 %v8126, 1.442695
    %v8142 = vpow.pop %v8141
    %v8143 = vsel %vm233, %v8128, 0.0
    %8144 = vadd.xlane.f32.xlu0 %v8143
    %v8145 = vpop.xlane.xlu0 %8144
    %v8146 = vsel %vm233, %v8130, 0.0
    %8147 = vadd.xlane.f32.xlu0 %v8146
    %v8148 = vpop.xlane.xlu0 %8147
    %v8149 = vsel %vm233, %v8132, 0.0
    %8150 = vadd.xlane.f32.xlu0 %v8149
    %v8151 = vpop.xlane.xlu0 %8150
    %v8152 = vsel %vm233, %v8134, 0.0
    %8153 = vadd.xlane.f32.xlu0 %v8152
    %v8154 = vpop.xlane.xlu0 %8153
    %v8155 = vsel %vm233, %v8136, 0.0
    %8156 = vadd.xlane.f32.xlu0 %v8155
    %v8157 = vpop.xlane.xlu0 %8156
    %v8158 = vsel %vm233, %v8138, 0.0
    %8159 = vadd.xlane.f32.xlu0 %v8158
    %v8160 = vpop.xlane.xlu0 %8159
    %v8161 = vsel %vm233, %v8140, 0.0
    %8162 = vadd.xlane.f32.xlu0 %v8161
    %v8163 = vpop.xlane.xlu0 %8162
    %v8164 = vsel %vm233, %v8142, 0.0
    %8165 = vadd.xlane.f32.xlu0 %v8164
    %v8166 = vpop.xlane.xlu0 %8165
    %v8167 = vrcp.pop %v8145
    %v8168 = vrcp.pop %v8148
    %v8169 = vrcp.pop %v8151
    %v8170 = vrcp.pop %v8154
    %v8171 = vrcp.pop %v8157
    %v8172 = vrcp.pop %v8160
    %v8173 = vrcp.pop %v8163
    %v8174 = vrcp.pop %v8166
    %v8175 = vmul.f32 %v8128, %v8167
    %v8176 = vmul.f32 %v8130, %v8168
    %v8177 = vmul.f32 %v8132, %v8169
    %v8178 = vmul.f32 %v8134, %v8170
    %v8179 = vmul.f32 %v8136, %v8171
    %v8180 = vmul.f32 %v8138, %v8172
    %v8181 = vmul.f32 %v8140, %v8173
    %v8182 = vmul.f32 %v8142, %v8174
    %8183 = vrot.lane.b32.xlu0 %v7459, 64
    %v8184 = vpop.permute.xlu0 %8183
    %v8187 = vsel %vm233, %v8175, 0
    %8189 = vmatprep.subr.mxu0 0.0
    %8190 = vmatpush1.msra.mxu0 %v8184
    %8191 = vmatprep.subr.mxu0 0.0
    %8192 = vmatpush1.msra.mxu0 0.0
    %8193 = vmatprep.subr.mxu0 0.0
    %8194 = vmatpush1.msra.mxu0 0.0
    %8195 = vmatprep.subr.mxu0 0.0
    %8196 = vmatpush1.msra.mxu0 0.0
    %8197 = vmatprep.subr.mxu0 0.0
    %8198 = vmatpush1.msra.mxu0 0.0
    %8199 = vmatprep.subr.mxu0 0.0
    %8200 = vmatpush1.msra.mxu0 0.0
    %8201 = vmatprep.subr.mxu0 0.0
    %8202 = vmatpush1.msra.mxu0 0.0
    %8203 = vmatprep.subr.mxu0 0.0
    %8204 = vmatpush1.msra.mxu0 0.0
    %8205 = vmatprep.subr.mxu0 0.0
    %8206 = vmatpush1.msra.mxu0 0.0
    %8207 = vmatprep.subr.mxu0 0.0
    %8208 = vmatpush1.msra.mxu0 0.0
    %8209 = vmatprep.subr.mxu0 0.0
    %8210 = vmatpush1.msra.mxu0 0.0
    %8211 = vmatprep.subr.mxu0 0.0
    %8212 = vmatpush1.msra.mxu0 0.0
    %8213 = vmatprep.subr.mxu0 0.0
    %8214 = vmatpush1.msra.mxu0 0.0
    %8215 = vmatprep.subr.mxu0 0.0
    %8216 = vmatpush1.msra.mxu0 0.0
    %8217 = vmatprep.subr.mxu0 0.0
    %8218 = vmatpush1.msra.mxu0 0.0
    %8219 = vmatprep.subr.mxu0 0.0
    %8220 = vmatpush1.msra.mxu0 0.0
    %8221 = vmatprep.subr.mxu0 0.0
    %8222 = vmatpush1.msra.mxu0 0.0
    %8223 = vmatprep.subr.mxu0 0.0
    %8224 = vmatpush1.msra.mxu0 0.0
    %8225 = vmatprep.subr.mxu0 0.0
    %8226 = vmatpush1.msra.mxu0 0.0
    %8227 = vmatprep.subr.mxu0 0.0
    %8228 = vmatpush1.msra.mxu0 0.0
    %8229 = vmatprep.subr.mxu0 0.0
    %8230 = vmatpush1.msra.mxu0 0.0
    %8231 = vmatprep.subr.mxu0 0.0
    %8232 = vmatpush1.msra.mxu0 0.0
    %8233 = vmatprep.subr.mxu0 0.0
    %8234 = vmatpush1.msra.mxu0 0.0
    %8235 = vmatprep.subr.mxu0 0.0
    %8236 = vmatpush1.msra.mxu0 0.0
    %8237 = vmatprep.subr.mxu0 0.0
    %8238 = vmatpush1.msra.mxu0 0.0
    %8239 = vmatprep.subr.mxu0 0.0
    %8240 = vmatpush1.msra.mxu0 0.0
    %8241 = vmatprep.subr.mxu0 0.0
    %8242 = vmatpush1.msra.mxu0 0.0
    %8243 = vmatprep.subr.mxu0 0.0
    %8244 = vmatpush1.msra.mxu0 0.0
    %8245 = vmatprep.subr.mxu0 0.0
    %8246 = vmatpush1.msra.mxu0 0.0
    %8247 = vmatprep.subr.mxu0 0.0
    %8248 = vmatpush1.msra.mxu0 0.0
    %8249 = vmatprep.subr.mxu0 0.0
    %8250 = vmatpush1.msra.mxu0 0.0
    %8251 = vmatprep.subr.mxu0 0.0
    %8252 = vmatpush1.msra.mxu0 0.0
    %8253 = vmatprep.mubr.f32.mxu0 0.0
    %8254 = vmatmul.mubr.f32.gmra.mrb[0].mxu0 %v8187
    %v8255 = vpop.f32.mrb[0].mxu0
    %v8256 = vadd.f32 0.0, %v8255
    %v8257 = vpop.f32.mrb[0].mxu0
    %8258 = vdwg.mxu0
    %8259 = vrot.lane.b32.xlu0 %v7462, 64
    %v8260 = vpop.permute.xlu0 %8259
    %v8263 = vsel %vm233, %v8176, 0
    %8265 = vmatprep.subr.mxu0 0.0
    %8266 = vmatpush1.msra.mxu0 %v8260
    %8267 = vmatprep.subr.mxu0 0.0
    %8268 = vmatpush1.msra.mxu0 0.0
    %8269 = vmatprep.subr.mxu0 0.0
    %8270 = vmatpush1.msra.mxu0 0.0
    %8271 = vmatprep.subr.mxu0 0.0
    %8272 = vmatpush1.msra.mxu0 0.0
    %8273 = vmatprep.subr.mxu0 0.0
    %8274 = vmatpush1.msra.mxu0 0.0
    %8275 = vmatprep.subr.mxu0 0.0
    %8276 = vmatpush1.msra.mxu0 0.0
    %8277 = vmatprep.subr.mxu0 0.0
    %8278 = vmatpush1.msra.mxu0 0.0
    %8279 = vmatprep.subr.mxu0 0.0
    %8280 = vmatpush1.msra.mxu0 0.0
    %8281 = vmatprep.subr.mxu0 0.0
    %8282 = vmatpush1.msra.mxu0 0.0
    %8283 = vmatprep.subr.mxu0 0.0
    %8284 = vmatpush1.msra.mxu0 0.0
    %8285 = vmatprep.subr.mxu0 0.0
    %8286 = vmatpush1.msra.mxu0 0.0
    %8287 = vmatprep.subr.mxu0 0.0
    %8288 = vmatpush1.msra.mxu0 0.0
    %8289 = vmatprep.subr.mxu0 0.0
    %8290 = vmatpush1.msra.mxu0 0.0
    %8291 = vmatprep.subr.mxu0 0.0
    %8292 = vmatpush1.msra.mxu0 0.0
    %8293 = vmatprep.subr.mxu0 0.0
    %8294 = vmatpush1.msra.mxu0 0.0
    %8295 = vmatprep.subr.mxu0 0.0
    %8296 = vmatpush1.msra.mxu0 0.0
    %8297 = vmatprep.subr.mxu0 0.0
    %8298 = vmatpush1.msra.mxu0 0.0
    %8299 = vmatprep.subr.mxu0 0.0
    %8300 = vmatpush1.msra.mxu0 0.0
    %8301 = vmatprep.subr.mxu0 0.0
    %8302 = vmatpush1.msra.mxu0 0.0
    %8303 = vmatprep.subr.mxu0 0.0
    %8304 = vmatpush1.msra.mxu0 0.0
    %8305 = vmatprep.subr.mxu0 0.0
    %8306 = vmatpush1.msra.mxu0 0.0
    %8307 = vmatprep.subr.mxu0 0.0
    %8308 = vmatpush1.msra.mxu0 0.0
    %8309 = vmatprep.subr.mxu0 0.0
    %8310 = vmatpush1.msra.mxu0 0.0
    %8311 = vmatprep.subr.mxu0 0.0
    %8312 = vmatpush1.msra.mxu0 0.0
    %8313 = vmatprep.subr.mxu0 0.0
    %8314 = vmatpush1.msra.mxu0 0.0
    %8315 = vmatprep.subr.mxu0 0.0
    %8316 = vmatpush1.msra.mxu0 0.0
    %8317 = vmatprep.subr.mxu0 0.0
    %8318 = vmatpush1.msra.mxu0 0.0
    %8319 = vmatprep.subr.mxu0 0.0
    %8320 = vmatpush1.msra.mxu0 0.0
    %8321 = vmatprep.subr.mxu0 0.0
    %8322 = vmatpush1.msra.mxu0 0.0
    %8323 = vmatprep.subr.mxu0 0.0
    %8324 = vmatpush1.msra.mxu0 0.0
    %8325 = vmatprep.subr.mxu0 0.0
    %8326 = vmatpush1.msra.mxu0 0.0
    %8327 = vmatprep.subr.mxu0 0.0
    %8328 = vmatpush1.msra.mxu0 0.0
    %8329 = vmatprep.mubr.f32.mxu0 0.0
    %8330 = vmatmul.mubr.f32.gmra.mrb[0].mxu0 %v8263
    %v8331 = vpop.f32.mrb[0].mxu0
    %v8332 = vadd.f32 0.0, %v8331
    %v8333 = vpop.f32.mrb[0].mxu0
    %8334 = vdwg.mxu0
    %8335 = vrot.lane.b32.xlu0 %v7468, 64
    %v8336 = vpop.permute.xlu0 %8335
    %v8339 = vsel %vm233, %v8177, 0
    %8341 = vmatprep.subr.mxu0 0.0
    %8342 = vmatpush1.msra.mxu0 %v8336
    %8343 = vmatprep.subr.mxu0 0.0
    %8344 = vmatpush1.msra.mxu0 0.0
    %8345 = vmatprep.subr.mxu0 0.0
    %8346 = vmatpush1.msra.mxu0 0.0
    %8347 = vmatprep.subr.mxu0 0.0
    %8348 = vmatpush1.msra.mxu0 0.0
    %8349 = vmatprep.subr.mxu0 0.0
    %8350 = vmatpush1.msra.mxu0 0.0
    %8351 = vmatprep.subr.mxu0 0.0
    %8352 = vmatpush1.msra.mxu0 0.0
    %8353 = vmatprep.subr.mxu0 0.0
    %8354 = vmatpush1.msra.mxu0 0.0
    %8355 = vmatprep.subr.mxu0 0.0
    %8356 = vmatpush1.msra.mxu0 0.0
    %8357 = vmatprep.subr.mxu0 0.0
    %8358 = vmatpush1.msra.mxu0 0.0
    %8359 = vmatprep.subr.mxu0 0.0
    %8360 = vmatpush1.msra.mxu0 0.0
    %8361 = vmatprep.subr.mxu0 0.0
    %8362 = vmatpush1.msra.mxu0 0.0
    %8363 = vmatprep.subr.mxu0 0.0
    %8364 = vmatpush1.msra.mxu0 0.0
    %8365 = vmatprep.subr.mxu0 0.0
    %8366 = vmatpush1.msra.mxu0 0.0
    %8367 = vmatprep.subr.mxu0 0.0
    %8368 = vmatpush1.msra.mxu0 0.0
    %8369 = vmatprep.subr.mxu0 0.0
    %8370 = vmatpush1.msra.mxu0 0.0
    %8371 = vmatprep.subr.mxu0 0.0
    %8372 = vmatpush1.msra.mxu0 0.0
    %8373 = vmatprep.subr.mxu0 0.0
    %8374 = vmatpush1.msra.mxu0 0.0
    %8375 = vmatprep.subr.mxu0 0.0
    %8376 = vmatpush1.msra.mxu0 0.0
    %8377 = vmatprep.subr.mxu0 0.0
    %8378 = vmatpush1.msra.mxu0 0.0
    %8379 = vmatprep.subr.mxu0 0.0
    %8380 = vmatpush1.msra.mxu0 0.0
    %8381 = vmatprep.subr.mxu0 0.0
    %8382 = vmatpush1.msra.mxu0 0.0
    %8383 = vmatprep.subr.mxu0 0.0
    %8384 = vmatpush1.msra.mxu0 0.0
    %8385 = vmatprep.subr.mxu0 0.0
    %8386 = vmatpush1.msra.mxu0 0.0
    %8387 = vmatprep.subr.mxu0 0.0
    %8388 = vmatpush1.msra.mxu0 0.0
    %8389 = vmatprep.subr.mxu0 0.0
    %8390 = vmatpush1.msra.mxu0 0.0
    %8391 = vmatprep.subr.mxu0 0.0
    %8392 = vmatpush1.msra.mxu0 0.0
    %8393 = vmatprep.subr.mxu0 0.0
    %8394 = vmatpush1.msra.mxu0 0.0
    %8395 = vmatprep.subr.mxu0 0.0
    %8396 = vmatpush1.msra.mxu0 0.0
    %8397 = vmatprep.subr.mxu0 0.0
    %8398 = vmatpush1.msra.mxu0 0.0
    %8399 = vmatprep.subr.mxu0 0.0
    %8400 = vmatpush1.msra.mxu0 0.0
    %8401 = vmatprep.subr.mxu0 0.0
    %8402 = vmatpush1.msra.mxu0 0.0
    %8403 = vmatprep.subr.mxu0 0.0
    %8404 = vmatpush1.msra.mxu0 0.0
    %8405 = vmatprep.mubr.f32.mxu0 0.0
    %8406 = vmatmul.mubr.f32.gmra.mrb[0].mxu0 %v8339
    %v8407 = vpop.f32.mrb[0].mxu0
    %v8408 = vadd.f32 0.0, %v8407
    %v8409 = vpop.f32.mrb[0].mxu0
    %8410 = vdwg.mxu0
    %8411 = vrot.lane.b32.xlu0 %v7470, 64
    %v8412 = vpop.permute.xlu0 %8411
    %v8415 = vsel %vm233, %v8178, 0
    %8417 = vmatprep.subr.mxu0 0.0
    %8418 = vmatpush1.msra.mxu0 %v8412
    %8419 = vmatprep.subr.mxu0 0.0
    %8420 = vmatpush1.msra.mxu0 0.0
    %8421 = vmatprep.subr.mxu0 0.0
    %8422 = vmatpush1.msra.mxu0 0.0
    %8423 = vmatprep.subr.mxu0 0.0
    %8424 = vmatpush1.msra.mxu0 0.0
    %8425 = vmatprep.subr.mxu0 0.0
    %8426 = vmatpush1.msra.mxu0 0.0
    %8427 = vmatprep.subr.mxu0 0.0
    %8428 = vmatpush1.msra.mxu0 0.0
    %8429 = vmatprep.subr.mxu0 0.0
    %8430 = vmatpush1.msra.mxu0 0.0
    %8431 = vmatprep.subr.mxu0 0.0
    %8432 = vmatpush1.msra.mxu0 0.0
    %8433 = vmatprep.subr.mxu0 0.0
    %8434 = vmatpush1.msra.mxu0 0.0
    %8435 = vmatprep.subr.mxu0 0.0
    %8436 = vmatpush1.msra.mxu0 0.0
    %8437 = vmatprep.subr.mxu0 0.0
    %8438 = vmatpush1.msra.mxu0 0.0
    %8439 = vmatprep.subr.mxu0 0.0
    %8440 = vmatpush1.msra.mxu0 0.0
    %8441 = vmatprep.subr.mxu0 0.0
    %8442 = vmatpush1.msra.mxu0 0.0
    %8443 = vmatprep.subr.mxu0 0.0
    %8444 = vmatpush1.msra.mxu0 0.0
    %8445 = vmatprep.subr.mxu0 0.0
    %8446 = vmatpush1.msra.mxu0 0.0
    %8447 = vmatprep.subr.mxu0 0.0
    %8448 = vmatpush1.msra.mxu0 0.0
    %8449 = vmatprep.subr.mxu0 0.0
    %8450 = vmatpush1.msra.mxu0 0.0
    %8451 = vmatprep.subr.mxu0 0.0
    %8452 = vmatpush1.msra.mxu0 0.0
    %8453 = vmatprep.subr.mxu0 0.0
    %8454 = vmatpush1.msra.mxu0 0.0
    %8455 = vmatprep.subr.mxu0 0.0
    %8456 = vmatpush1.msra.mxu0 0.0
    %8457 = vmatprep.subr.mxu0 0.0
    %8458 = vmatpush1.msra.mxu0 0.0
    %8459 = vmatprep.subr.mxu0 0.0
    %8460 = vmatpush1.msra.mxu0 0.0
    %8461 = vmatprep.subr.mxu0 0.0
    %8462 = vmatpush1.msra.mxu0 0.0
    %8463 = vmatprep.subr.mxu0 0.0
    %8464 = vmatpush1.msra.mxu0 0.0
    %8465 = vmatprep.subr.mxu0 0.0
    %8466 = vmatpush1.msra.mxu0 0.0
    %8467 = vmatprep.subr.mxu0 0.0
    %8468 = vmatpush1.msra.mxu0 0.0
    %8469 = vmatprep.subr.mxu0 0.0
    %8470 = vmatpush1.msra.mxu0 0.0
    %8471 = vmatprep.subr.mxu0 0.0
    %8472 = vmatpush1.msra.mxu0 0.0
    %8473 = vmatprep.subr.mxu0 0.0
    %8474 = vmatpush1.msra.mxu0 0.0
    %8475 = vmatprep.subr.mxu0 0.0
    %8476 = vmatpush1.msra.mxu0 0.0
    %8477 = vmatprep.subr.mxu0 0.0
    %8478 = vmatpush1.msra.mxu0 0.0
    %8479 = vmatprep.subr.mxu0 0.0
    %8480 = vmatpush1.msra.mxu0 0.0
    %8481 = vmatprep.mubr.f32.mxu0 0.0
    %8482 = vmatmul.mubr.f32.gmra.mrb[0].mxu0 %v8415
    %v8483 = vpop.f32.mrb[0].mxu0
    %v8484 = vadd.f32 0.0, %v8483
    %v8485 = vpop.f32.mrb[0].mxu0
    %8486 = vdwg.mxu0
    %8487 = vrot.lane.b32.xlu0 %v7472, 64
    %v8488 = vpop.permute.xlu0 %8487
    %v8491 = vsel %vm233, %v8179, 0
    %8493 = vmatprep.subr.mxu0 0.0
    %8494 = vmatpush1.msra.mxu0 %v8488
    %8495 = vmatprep.subr.mxu0 0.0
    %8496 = vmatpush1.msra.mxu0 0.0
    %8497 = vmatprep.subr.mxu0 0.0
    %8498 = vmatpush1.msra.mxu0 0.0
    %8499 = vmatprep.subr.mxu0 0.0
    %8500 = vmatpush1.msra.mxu0 0.0
    %8501 = vmatprep.subr.mxu0 0.0
    %8502 = vmatpush1.msra.mxu0 0.0
    %8503 = vmatprep.subr.mxu0 0.0
    %8504 = vmatpush1.msra.mxu0 0.0
    %8505 = vmatprep.subr.mxu0 0.0
    %8506 = vmatpush1.msra.mxu0 0.0
    %8507 = vmatprep.subr.mxu0 0.0
    %8508 = vmatpush1.msra.mxu0 0.0
    %8509 = vmatprep.subr.mxu0 0.0
    %8510 = vmatpush1.msra.mxu0 0.0
    %8511 = vmatprep.subr.mxu0 0.0
    %8512 = vmatpush1.msra.mxu0 0.0
    %8513 = vmatprep.subr.mxu0 0.0
    %8514 = vmatpush1.msra.mxu0 0.0
    %8515 = vmatprep.subr.mxu0 0.0
    %8516 = vmatpush1.msra.mxu0 0.0
    %8517 = vmatprep.subr.mxu0 0.0
    %8518 = vmatpush1.msra.mxu0 0.0
    %8519 = vmatprep.subr.mxu0 0.0
    %8520 = vmatpush1.msra.mxu0 0.0
    %8521 = vmatprep.subr.mxu0 0.0
    %8522 = vmatpush1.msra.mxu0 0.0
    %8523 = vmatprep.subr.mxu0 0.0
    %8524 = vmatpush1.msra.mxu0 0.0
    %8525 = vmatprep.subr.mxu0 0.0
    %8526 = vmatpush1.msra.mxu0 0.0
    %8527 = vmatprep.subr.mxu0 0.0
    %8528 = vmatpush1.msra.mxu0 0.0
    %8529 = vmatprep.subr.mxu0 0.0
    %8530 = vmatpush1.msra.mxu0 0.0
    %8531 = vmatprep.subr.mxu0 0.0
    %8532 = vmatpush1.msra.mxu0 0.0
    %8533 = vmatprep.subr.mxu0 0.0
    %8534 = vmatpush1.msra.mxu0 0.0
    %8535 = vmatprep.subr.mxu0 0.0
    %8536 = vmatpush1.msra.mxu0 0.0
    %8537 = vmatprep.subr.mxu0 0.0
    %8538 = vmatpush1.msra.mxu0 0.0
    %8539 = vmatprep.subr.mxu0 0.0
    %8540 = vmatpush1.msra.mxu0 0.0
    %8541 = vmatprep.subr.mxu0 0.0
    %8542 = vmatpush1.msra.mxu0 0.0
    %8543 = vmatprep.subr.mxu0 0.0
    %8544 = vmatpush1.msra.mxu0 0.0
    %8545 = vmatprep.subr.mxu0 0.0
    %8546 = vmatpush1.msra.mxu0 0.0
    %8547 = vmatprep.subr.mxu0 0.0
    %8548 = vmatpush1.msra.mxu0 0.0
    %8549 = vmatprep.subr.mxu0 0.0
    %8550 = vmatpush1.msra.mxu0 0.0
    %8551 = vmatprep.subr.mxu0 0.0
    %8552 = vmatpush1.msra.mxu0 0.0
    %8553 = vmatprep.subr.mxu0 0.0
    %8554 = vmatpush1.msra.mxu0 0.0
    %8555 = vmatprep.subr.mxu0 0.0
    %8556 = vmatpush1.msra.mxu0 0.0
    %8557 = vmatprep.mubr.f32.mxu0 0.0
    %8558 = vmatmul.mubr.f32.gmra.mrb[0].mxu0 %v8491
    %v8559 = vpop.f32.mrb[0].mxu0
    %v8560 = vadd.f32 0.0, %v8559
    %v8561 = vpop.f32.mrb[0].mxu0
    %8562 = vdwg.mxu0
    %8563 = vrot.lane.b32.xlu0 %v7474, 64
    %v8564 = vpop.permute.xlu0 %8563
    %v8567 = vsel %vm233, %v8180, 0
    %8569 = vmatprep.subr.mxu0 0.0
    %8570 = vmatpush1.msra.mxu0 %v8564
    %8571 = vmatprep.subr.mxu0 0.0
    %8572 = vmatpush1.msra.mxu0 0.0
    %8573 = vmatprep.subr.mxu0 0.0
    %8574 = vmatpush1.msra.mxu0 0.0
    %8575 = vmatprep.subr.mxu0 0.0
    %8576 = vmatpush1.msra.mxu0 0.0
    %8577 = vmatprep.subr.mxu0 0.0
    %8578 = vmatpush1.msra.mxu0 0.0
    %8579 = vmatprep.subr.mxu0 0.0
    %8580 = vmatpush1.msra.mxu0 0.0
    %8581 = vmatprep.subr.mxu0 0.0
    %8582 = vmatpush1.msra.mxu0 0.0
    %8583 = vmatprep.subr.mxu0 0.0
    %8584 = vmatpush1.msra.mxu0 0.0
    %8585 = vmatprep.subr.mxu0 0.0
    %8586 = vmatpush1.msra.mxu0 0.0
    %8587 = vmatprep.subr.mxu0 0.0
    %8588 = vmatpush1.msra.mxu0 0.0
    %8589 = vmatprep.subr.mxu0 0.0
    %8590 = vmatpush1.msra.mxu0 0.0
    %8591 = vmatprep.subr.mxu0 0.0
    %8592 = vmatpush1.msra.mxu0 0.0
    %8593 = vmatprep.subr.mxu0 0.0
    %8594 = vmatpush1.msra.mxu0 0.0
    %8595 = vmatprep.subr.mxu0 0.0
    %8596 = vmatpush1.msra.mxu0 0.0
    %8597 = vmatprep.subr.mxu0 0.0
    %8598 = vmatpush1.msra.mxu0 0.0
    %8599 = vmatprep.subr.mxu0 0.0
    %8600 = vmatpush1.msra.mxu0 0.0
    %8601 = vmatprep.subr.mxu0 0.0
    %8602 = vmatpush1.msra.mxu0 0.0
    %8603 = vmatprep.subr.mxu0 0.0
    %8604 = vmatpush1.msra.mxu0 0.0
    %8605 = vmatprep.subr.mxu0 0.0
    %8606 = vmatpush1.msra.mxu0 0.0
    %8607 = vmatprep.subr.mxu0 0.0
    %8608 = vmatpush1.msra.mxu0 0.0
    %8609 = vmatprep.subr.mxu0 0.0
    %8610 = vmatpush1.msra.mxu0 0.0
    %8611 = vmatprep.subr.mxu0 0.0
    %8612 = vmatpush1.msra.mxu0 0.0
    %8613 = vmatprep.subr.mxu0 0.0
    %8614 = vmatpush1.msra.mxu0 0.0
    %8615 = vmatprep.subr.mxu0 0.0
    %8616 = vmatpush1.msra.mxu0 0.0
    %8617 = vmatprep.subr.mxu0 0.0
    %8618 = vmatpush1.msra.mxu0 0.0
    %8619 = vmatprep.subr.mxu0 0.0
    %8620 = vmatpush1.msra.mxu0 0.0
    %8621 = vmatprep.subr.mxu0 0.0
    %8622 = vmatpush1.msra.mxu0 0.0
    %8623 = vmatprep.subr.mxu0 0.0
    %8624 = vmatpush1.msra.mxu0 0.0
    %8625 = vmatprep.subr.mxu0 0.0
    %8626 = vmatpush1.msra.mxu0 0.0
    %8627 = vmatprep.subr.mxu0 0.0
    %8628 = vmatpush1.msra.mxu0 0.0
    %8629 = vmatprep.subr.mxu0 0.0
    %8630 = vmatpush1.msra.mxu0 0.0
    %8631 = vmatprep.subr.mxu0 0.0
    %8632 = vmatpush1.msra.mxu0 0.0
    %8633 = vmatprep.mubr.f32.mxu0 0.0
    %8634 = vmatmul.mubr.f32.gmra.mrb[0].mxu0 %v8567
    %v8635 = vpop.f32.mrb[0].mxu0
    %v8636 = vadd.f32 0.0, %v8635
    %v8637 = vpop.f32.mrb[0].mxu0
    %8638 = vdwg.mxu0
    %8639 = vrot.lane.b32.xlu0 %v7476, 64
    %v8640 = vpop.permute.xlu0 %8639
    %v8643 = vsel %vm233, %v8181, 0
    %8645 = vmatprep.subr.mxu0 0.0
    %8646 = vmatpush1.msra.mxu0 %v8640
    %8647 = vmatprep.subr.mxu0 0.0
    %8648 = vmatpush1.msra.mxu0 0.0
    %8649 = vmatprep.subr.mxu0 0.0
    %8650 = vmatpush1.msra.mxu0 0.0
    %8651 = vmatprep.subr.mxu0 0.0
    %8652 = vmatpush1.msra.mxu0 0.0
    %8653 = vmatprep.subr.mxu0 0.0
    %8654 = vmatpush1.msra.mxu0 0.0
    %8655 = vmatprep.subr.mxu0 0.0
    %8656 = vmatpush1.msra.mxu0 0.0
    %8657 = vmatprep.subr.mxu0 0.0
    %8658 = vmatpush1.msra.mxu0 0.0
    %8659 = vmatprep.subr.mxu0 0.0
    %8660 = vmatpush1.msra.mxu0 0.0
    %8661 = vmatprep.subr.mxu0 0.0
    %8662 = vmatpush1.msra.mxu0 0.0
    %8663 = vmatprep.subr.mxu0 0.0
    %8664 = vmatpush1.msra.mxu0 0.0
    %8665 = vmatprep.subr.mxu0 0.0
    %8666 = vmatpush1.msra.mxu0 0.0
    %8667 = vmatprep.subr.mxu0 0.0
    %8668 = vmatpush1.msra.mxu0 0.0
    %8669 = vmatprep.subr.mxu0 0.0
    %8670 = vmatpush1.msra.mxu0 0.0
    %8671 = vmatprep.subr.mxu0 0.0
    %8672 = vmatpush1.msra.mxu0 0.0
    %8673 = vmatprep.subr.mxu0 0.0
    %8674 = vmatpush1.msra.mxu0 0.0
    %8675 = vmatprep.subr.mxu0 0.0
    %8676 = vmatpush1.msra.mxu0 0.0
    %8677 = vmatprep.subr.mxu0 0.0
    %8678 = vmatpush1.msra.mxu0 0.0
    %8679 = vmatprep.subr.mxu0 0.0
    %8680 = vmatpush1.msra.mxu0 0.0
    %8681 = vmatprep.subr.mxu0 0.0
    %8682 = vmatpush1.msra.mxu0 0.0
    %8683 = vmatprep.subr.mxu0 0.0
    %8684 = vmatpush1.msra.mxu0 0.0
    %8685 = vmatprep.subr.mxu0 0.0
    %8686 = vmatpush1.msra.mxu0 0.0
    %8687 = vmatprep.subr.mxu0 0.0
    %8688 = vmatpush1.msra.mxu0 0.0
    %8689 = vmatprep.subr.mxu0 0.0
    %8690 = vmatpush1.msra.mxu0 0.0
    %8691 = vmatprep.subr.mxu0 0.0
    %8692 = vmatpush1.msra.mxu0 0.0
    %8693 = vmatprep.subr.mxu0 0.0
    %8694 = vmatpush1.msra.mxu0 0.0
    %8695 = vmatprep.subr.mxu0 0.0
    %8696 = vmatpush1.msra.mxu0 0.0
    %8697 = vmatprep.subr.mxu0 0.0
    %8698 = vmatpush1.msra.mxu0 0.0
    %8699 = vmatprep.subr.mxu0 0.0
    %8700 = vmatpush1.msra.mxu0 0.0
    %8701 = vmatprep.subr.mxu0 0.0
    %8702 = vmatpush1.msra.mxu0 0.0
    %8703 = vmatprep.subr.mxu0 0.0
    %8704 = vmatpush1.msra.mxu0 0.0
    %8705 = vmatprep.subr.mxu0 0.0
    %8706 = vmatpush1.msra.mxu0 0.0
    %8707 = vmatprep.subr.mxu0 0.0
    %8708 = vmatpush1.msra.mxu0 0.0
    %8709 = vmatprep.mubr.f32.mxu0 0.0
    %8710 = vmatmul.mubr.f32.gmra.mrb[0].mxu0 %v8643
    %v8711 = vpop.f32.mrb[0].mxu0
    %v8712 = vadd.f32 0.0, %v8711
    %v8713 = vpop.f32.mrb[0].mxu0
    %8714 = vdwg.mxu0
    %8715 = vrot.lane.b32.xlu0 %v7478, 64
    %v8716 = vpop.permute.xlu0 %8715
    %v8719 = vsel %vm233, %v8182, 0
    %8721 = vmatprep.subr.mxu0 0.0
    %8722 = vmatpush1.msra.mxu0 %v8716
    %8723 = vmatprep.subr.mxu0 0.0
    %8724 = vmatpush1.msra.mxu0 0.0
    %8725 = vmatprep.subr.mxu0 0.0
    %8726 = vmatpush1.msra.mxu0 0.0
    %8727 = vmatprep.subr.mxu0 0.0
    %8728 = vmatpush1.msra.mxu0 0.0
    %8729 = vmatprep.subr.mxu0 0.0
    %8730 = vmatpush1.msra.mxu0 0.0
    %8731 = vmatprep.subr.mxu0 0.0
    %8732 = vmatpush1.msra.mxu0 0.0
    %8733 = vmatprep.subr.mxu0 0.0
    %8734 = vmatpush1.msra.mxu0 0.0
    %8735 = vmatprep.subr.mxu0 0.0
    %8736 = vmatpush1.msra.mxu0 0.0
    %8737 = vmatprep.subr.mxu0 0.0
    %8738 = vmatpush1.msra.mxu0 0.0
    %8739 = vmatprep.subr.mxu0 0.0
    %8740 = vmatpush1.msra.mxu0 0.0
    %8741 = vmatprep.subr.mxu0 0.0
    %8742 = vmatpush1.msra.mxu0 0.0
    %8743 = vmatprep.subr.mxu0 0.0
    %8744 = vmatpush1.msra.mxu0 0.0
    %8745 = vmatprep.subr.mxu0 0.0
    %8746 = vmatpush1.msra.mxu0 0.0
    %8747 = vmatprep.subr.mxu0 0.0
    %8748 = vmatpush1.msra.mxu0 0.0
    %8749 = vmatprep.subr.mxu0 0.0
    %8750 = vmatpush1.msra.mxu0 0.0
    %8751 = vmatprep.subr.mxu0 0.0
    %8752 = vmatpush1.msra.mxu0 0.0
    %8753 = vmatprep.subr.mxu0 0.0
    %8754 = vmatpush1.msra.mxu0 0.0
    %8755 = vmatprep.subr.mxu0 0.0
    %8756 = vmatpush1.msra.mxu0 0.0
    %8757 = vmatprep.subr.mxu0 0.0
    %8758 = vmatpush1.msra.mxu0 0.0
    %8759 = vmatprep.subr.mxu0 0.0
    %8760 = vmatpush1.msra.mxu0 0.0
    %8761 = vmatprep.subr.mxu0 0.0
    %8762 = vmatpush1.msra.mxu0 0.0
    %8763 = vmatprep.subr.mxu0 0.0
    %8764 = vmatpush1.msra.mxu0 0.0
    %8765 = vmatprep.subr.mxu0 0.0
    %8766 = vmatpush1.msra.mxu0 0.0
    %8767 = vmatprep.subr.mxu0 0.0
    %8768 = vmatpush1.msra.mxu0 0.0
    %8769 = vmatprep.subr.mxu0 0.0
    %8770 = vmatpush1.msra.mxu0 0.0
    %8771 = vmatprep.subr.mxu0 0.0
    %8772 = vmatpush1.msra.mxu0 0.0
    %8773 = vmatprep.subr.mxu0 0.0
    %8774 = vmatpush1.msra.mxu0 0.0
    %8775 = vmatprep.subr.mxu0 0.0
    %8776 = vmatpush1.msra.mxu0 0.0
    %8777 = vmatprep.subr.mxu0 0.0
    %8778 = vmatpush1.msra.mxu0 0.0
    %8779 = vmatprep.subr.mxu0 0.0
    %8780 = vmatpush1.msra.mxu0 0.0
    %8781 = vmatprep.subr.mxu0 0.0
    %8782 = vmatpush1.msra.mxu0 0.0
    %8783 = vmatprep.subr.mxu0 0.0
    %8784 = vmatpush1.msra.mxu0 0.0
    %8785 = vmatprep.mubr.f32.mxu0 0.0
    %8786 = vmatmul.mubr.f32.gmra.mrb[0].mxu0 %v8719
    %v8787 = vpop.f32.mrb[0].mxu0
    %v8788 = vadd.f32 0.0, %v8787
    %v8789 = vpop.f32.mrb[0].mxu0
    %8790 = vdwg.mxu0
    %8793 = vrot.lane.b32.xlu0 %v8408, 8
    %v8794 = vpop.permute.xlu0 %8793
    %8795 = vrot.lane.b32.xlu0 %v8484, 8
    %v8796 = vpop.permute.xlu0 %8795
    %8801 = vrot.lane.b32.xlu0 %v8560, 16
    %v8802 = vpop.permute.xlu0 %8801
    %8803 = vrot.lane.b32.xlu0 %v8636, 16
    %v8804 = vpop.permute.xlu0 %8803
    %8809 = vrot.lane.b32.xlu0 %v8712, 24
    %v8810 = vpop.permute.xlu0 %8809
    %8811 = vrot.lane.b32.xlu0 %v8788, 24
    %v8812 = vpop.permute.xlu0 %8811
    %v8815 = vsel %vm233, %v8256, %v8794
    %v8816 = vsel %vm233, %v8332, %v8796
    %v8817 = vsel %vm1570, %v8815, %v8802
    %v8818 = vsel %vm1570, %v8816, %v8804
    %v8819 = vsel %vm1573, %v8817, %v8810
    %v8820 = vsel %vm1573, %v8818, %v8812
    %v8821 = vpack.c.bf16 %v8820, %v8819
    %s8822 = scalar_lea.vmem %s5, 32
    %v8823 = vld [vmem:[%s8822] sm:$0xf]
    %v8824 = vld [vmem:[%s8822 + $0x4] sm:$0xf]
    %v8825 = vld [vmem:[%s8822 + $0x8] sm:$0xf]
    %v8826 = vld [vmem:[%s8822 + $0xc] sm:$0xf]
    %s8827 = scalar_lea.vmem %s6, 2
    %v8828 = vld [vmem:[%s8827] sm:$0x1]
    %v8830 = vlaneseq
    %v8831 = vshrl.u32 %v8830, 7
    %v8832 = vsub.s32 0, %v8831
    %v8833 = vrot.slane %v8828, %v8832
    %v8839 = vunpack.c.l.b16 %v8823
    %v8840 = vunpack.c.l.b16 %v8824
    %v8841 = vunpack.c.l.b16 %v8825
    %v8842 = vunpack.c.l.b16 %v8826
    %v8843 = vpack.c.b16 %v8840, %v8839
    %v8844 = vpack.c.b16 %v8842, %v8841
    %v8848 = vsel %vm172, %v8821, 0
    %8850 = vmatprep.subr.bf16.mxu0 0
    %8851 = vmatpush1.bf16.msra.mxu0 %v8843
    %8852 = vmatprep.subr.bf16.mxu0 0
    %8853 = vmatpush1.bf16.msra.mxu0 %v8844
    %8854 = vmatprep.subr.bf16.mxu0 0
    %8855 = vmatpush1.bf16.msra.mxu0 0
    %8856 = vmatprep.subr.bf16.mxu0 0
    %8857 = vmatpush1.bf16.msra.mxu0 0
    %8858 = vmatprep.subr.bf16.mxu0 0
    %8859 = vmatpush1.bf16.msra.mxu0 0
    %8860 = vmatprep.subr.bf16.mxu0 0
    %8861 = vmatpush1.bf16.msra.mxu0 0
    %8862 = vmatprep.subr.bf16.mxu0 0
    %8863 = vmatpush1.bf16.msra.mxu0 0
    %8864 = vmatprep.subr.bf16.mxu0 0
    %8865 = vmatpush1.bf16.msra.mxu0 0
    %8866 = vmatprep.subr.bf16.mxu0 0
    %8867 = vmatpush1.bf16.msra.mxu0 0
    %8868 = vmatprep.subr.bf16.mxu0 0
    %8869 = vmatpush1.bf16.msra.mxu0 0
    %8870 = vmatprep.subr.bf16.mxu0 0
    %8871 = vmatpush1.bf16.msra.mxu0 0
    %8872 = vmatprep.subr.bf16.mxu0 0
    %8873 = vmatpush1.bf16.msra.mxu0 0
    %8874 = vmatprep.subr.bf16.mxu0 0
    %8875 = vmatpush1.bf16.msra.mxu0 0
    %8876 = vmatprep.subr.bf16.mxu0 0
    %8877 = vmatpush1.bf16.msra.mxu0 0
    %8878 = vmatprep.subr.bf16.mxu0 0
    %8879 = vmatpush1.bf16.msra.mxu0 0
    %8880 = vmatprep.subr.bf16.mxu0 0
    %8881 = vmatpush1.bf16.msra.mxu0 0
    %8882 = vmatprep.mubr.bf16.mxu0 0
    %8883 = vmatmul.mubr.bf16.gmra.mrb[0].mxu0 %v8848
    %v8884 = vpop.f32.mrb[0].mxu0
    %v8885 = vadd.f32 %v8833, %v8884
    %v8886 = vpop.f32.mrb[0].mxu0
    %v8887 = vpop.f32.mrb[0].mxu0
    %v8888 = vadd.f32 %v8833, %v8887
    %v8889 = vpop.f32.mrb[0].mxu0
    %8890 = vdwg.mxu0
    %v8891 = vadd.f32 %v7393, %v8885
    %v8892 = vadd.f32 %v7394, %v8888
    %s8893 = scalar_lea.vmem %s7, 2
    %v8894 = vld [vmem:[%s8893] sm:$0x1]
    %s8895 = scalar_lea.vmem %s8, 2
    %v8896 = vld [vmem:[%s8895] sm:$0x1]
    %v8897 = vsel %vm172, %v8891, 0.0
    %8898 = vadd.xlane.f32.xlu0 %v8897
    %v8899 = vpop.xlane.xlu0 %8898
    %v8900 = vsel %vm172, %v8892, 0.0
    %8901 = vadd.xlane.f32.xlu0 %v8900
    %v8902 = vpop.xlane.xlu0 %8901
    %v8903 = vmul.f32 %v8899, %v1654
    %v8904 = vmul.f32 %v8902, %v1654
    %v8905 = vsub.f32 %v8891, %v8903
    %v8906 = vsub.f32 %v8892, %v8904
    %v8907 = vmul.f32 %v8905, %v8905
    %v8908 = vmul.f32 %v8906, %v8906
    %v8909 = vsel %vm172, %v8907, 0.0
    %8910 = vadd.xlane.f32.xlu0 %v8909
    %v8911 = vpop.xlane.xlu0 %8910
    %v8912 = vsel %vm172, %v8908, 0.0
    %8913 = vadd.xlane.f32.xlu0 %v8912
    %v8914 = vpop.xlane.xlu0 %8913
    %v8915 = vmul.f32 %v8911, %v1654
    %v8916 = vmul.f32 %v8914, %v1654
    %v8917 = vadd.f32 %v8915, 1e-05
    %v8918 = vadd.f32 %v8916, 1e-05
    %v8919 = vrsqrt.pop %v8917
    %v8920 = vrsqrt.pop %v8918
    %v8921 = vmul.f32 %v8905, %v8919
    %v8922 = vmul.f32 %v8906, %v8920
    %v8924 = vlaneseq
    %v8925 = vshrl.u32 %v8924, 7
    %v8926 = vsub.s32 0, %v8925
    %v8927 = vrot.slane %v8894, %v8926
    %v8929 = vmul.f32 %v8921, %v8927
    %v8930 = vmul.f32 %v8922, %v8927
    %v8932 = vlaneseq
    %v8933 = vshrl.u32 %v8932, 7
    %v8934 = vsub.s32 0, %v8933
    %v8935 = vrot.slane %v8896, %v8934
    %v8937 = vadd.f32 %v8929, %v8935
    %v8938 = vadd.f32 %v8930, %v8935
    %v8939 = vpack.c.bf16 %v8938, %v8937
    %s8940 = scalar_lea.vmem %s9, 512
    %v8941 = vld [vmem:[%s8940] sm:$0xff]
    %v8942 = vld [vmem:[%s8940 + $0x8] sm:$0xff]
    %v8943 = vld [vmem:[%s8940 + $0x10] sm:$0xff]
    %v8944 = vld [vmem:[%s8940 + $0x18] sm:$0xff]
    %v8945 = vld [vmem:[%s8940 + $0x20] sm:$0xff]
    %v8946 = vld [vmem:[%s8940 + $0x28] sm:$0xff]
    %v8947 = vld [vmem:[%s8940 + $0x30] sm:$0xff]
    %v8948 = vld [vmem:[%s8940 + $0x38] sm:$0xff]
    %v8949 = vld [vmem:[%s8940 + $0x40] sm:$0xff]
    %v8950 = vld [vmem:[%s8940 + $0x48] sm:$0xff]
    %v8951 = vld [vmem:[%s8940 + $0x50] sm:$0xff]
    %v8952 = vld [vmem:[%s8940 + $0x58] sm:$0xff]
    %v8953 = vld [vmem:[%s8940 + $0x60] sm:$0xff]
    %v8954 = vld [vmem:[%s8940 + $0x68] sm:$0xff]
    %v8955 = vld [vmem:[%s8940 + $0x70] sm:$0xff]
    %v8956 = vld [vmem:[%s8940 + $0x78] sm:$0xff]
    %v8957 = vld [vmem:[%s8940 + $0x80] sm:$0xff]
    %v8958 = vld [vmem:[%s8940 + $0x88] sm:$0xff]
    %v8959 = vld [vmem:[%s8940 + $0x90] sm:$0xff]
    %v8960 = vld [vmem:[%s8940 + $0x98] sm:$0xff]
    %v8961 = vld [vmem:[%s8940 + $0xa0] sm:$0xff]
    %v8962 = vld [vmem:[%s8940 + $0xa8] sm:$0xff]
    %v8963 = vld [vmem:[%s8940 + $0xb0] sm:$0xff]
    %v8964 = vld [vmem:[%s8940 + $0xb8] sm:$0xff]
    %v8965 = vld [vmem:[%s8940 + $0xc0] sm:$0xff]
    %v8966 = vld [vmem:[%s8940 + $0xc8] sm:$0xff]
    %v8967 = vld [vmem:[%s8940 + $0xd0] sm:$0xff]
    %v8968 = vld [vmem:[%s8940 + $0xd8] sm:$0xff]
    %v8969 = vld [vmem:[%s8940 + $0xe0] sm:$0xff]
    %v8970 = vld [vmem:[%s8940 + $0xe8] sm:$0xff]
    %v8971 = vld [vmem:[%s8940 + $0xf0] sm:$0xff]
    %v8972 = vld [vmem:[%s8940 + $0xf8] sm:$0xff]
    %s8973 = scalar_lea.vmem %s10, 32
    %v8974 = vld [vmem:[%s8973] sm:$0xff]
    %v8975 = vld [vmem:[%s8973 + $0x8] sm:$0xff]
    %v8978 = vlaneseq
    %v8979 = vshrl.u32 %v8978, 7
    %v8980 = vsub.s32 0, %v8979
    %v8981 = vrot.slane %v8974, %v8980
    %v8982 = vlaneseq
    %v8983 = vshrl.u32 %v8982, 7
    %v8984 = vsub.s32 1, %v8983
    %v8985 = vrot.slane %v8974, %v8984
    %v8986 = vlaneseq
    %v8987 = vshrl.u32 %v8986, 7
    %v8988 = vsub.s32 2, %v8987
    %v8989 = vrot.slane %v8974, %v8988
    %v8990 = vlaneseq
    %v8991 = vshrl.u32 %v8990, 7
    %v8992 = vsub.s32 3, %v8991
    %v8993 = vrot.slane %v8974, %v8992
    %v8994 = vlaneseq
    %v8995 = vshrl.u32 %v8994, 7
    %v8996 = vsub.s32 4, %v8995
    %v8997 = vrot.slane %v8974, %v8996
    %v8998 = vlaneseq
    %v8999 = vshrl.u32 %v8998, 7
    %v9000 = vsub.s32 5, %v8999
    %v9001 = vrot.slane %v8974, %v9000
    %v9002 = vlaneseq
    %v9003 = vshrl.u32 %v9002, 7
    %v9004 = vsub.s32 6, %v9003
    %v9005 = vrot.slane %v8974, %v9004
    %v9006 = vlaneseq
    %v9007 = vshrl.u32 %v9006, 7
    %v9008 = vsub.s32 7, %v9007
    %v9009 = vrot.slane %v8974, %v9008
    %v9010 = vlaneseq
    %v9011 = vshrl.u32 %v9010, 7
    %v9012 = vsub.s32 0, %v9011
    %v9013 = vrot.slane %v8975, %v9012
    %v9014 = vlaneseq
    %v9015 = vshrl.u32 %v9014, 7
    %v9016 = vsub.s32 1, %v9015
    %v9017 = vrot.slane %v8975, %v9016
    %v9018 = vlaneseq
    %v9019 = vshrl.u32 %v9018, 7
    %v9020 = vsub.s32 2, %v9019
    %v9021 = vrot.slane %v8975, %v9020
    %v9022 = vlaneseq
    %v9023 = vshrl.u32 %v9022, 7
    %v9024 = vsub.s32 3, %v9023
    %v9025 = vrot.slane %v8975, %v9024
    %v9026 = vlaneseq
    %v9027 = vshrl.u32 %v9026, 7
    %v9028 = vsub.s32 4, %v9027
    %v9029 = vrot.slane %v8975, %v9028
    %v9030 = vlaneseq
    %v9031 = vshrl.u32 %v9030, 7
    %v9032 = vsub.s32 5, %v9031
    %v9033 = vrot.slane %v8975, %v9032
    %v9034 = vlaneseq
    %v9035 = vshrl.u32 %v9034, 7
    %v9036 = vsub.s32 6, %v9035
    %v9037 = vrot.slane %v8975, %v9036
    %v9038 = vlaneseq
    %v9039 = vshrl.u32 %v9038, 7
    %v9040 = vsub.s32 7, %v9039
    %v9041 = vrot.slane %v8975, %v9040
    %v9090 = vunpack.c.l.b16 %v8941
    %v9091 = vunpack.c.h.b16 %v8941
    %v9092 = vunpack.c.l.b16 %v8942
    %v9093 = vunpack.c.h.b16 %v8942
    %v9094 = vunpack.c.l.b16 %v8943
    %v9095 = vunpack.c.h.b16 %v8943
    %v9096 = vunpack.c.l.b16 %v8944
    %v9097 = vunpack.c.h.b16 %v8944
    %v9098 = vunpack.c.l.b16 %v8945
    %v9099 = vunpack.c.h.b16 %v8945
    %v9100 = vunpack.c.l.b16 %v8946
    %v9101 = vunpack.c.h.b16 %v8946
    %v9102 = vunpack.c.l.b16 %v8947
    %v9103 = vunpack.c.h.b16 %v8947
    %v9104 = vunpack.c.l.b16 %v8948
    %v9105 = vunpack.c.h.b16 %v8948
    %v9106 = vunpack.c.l.b16 %v8949
    %v9107 = vunpack.c.h.b16 %v8949
    %v9108 = vunpack.c.l.b16 %v8950
    %v9109 = vunpack.c.h.b16 %v8950
    %v9110 = vunpack.c.l.b16 %v8951
    %v9111 = vunpack.c.h.b16 %v8951
    %v9112 = vunpack.c.l.b16 %v8952
    %v9113 = vunpack.c.h.b16 %v8952
    %v9114 = vunpack.c.l.b16 %v8953
    %v9115 = vunpack.c.h.b16 %v8953
    %v9116 = vunpack.c.l.b16 %v8954
    %v9117 = vunpack.c.h.b16 %v8954
    %v9118 = vunpack.c.l.b16 %v8955
    %v9119 = vunpack.c.h.b16 %v8955
    %v9120 = vunpack.c.l.b16 %v8956
    %v9121 = vunpack.c.h.b16 %v8956
    %v9122 = vunpack.c.l.b16 %v8957
    %v9123 = vunpack.c.h.b16 %v8957
    %v9124 = vunpack.c.l.b16 %v8958
    %v9125 = vunpack.c.h.b16 %v8958
    %v9126 = vunpack.c.l.b16 %v8959
    %v9127 = vunpack.c.h.b16 %v8959
    %v9128 = vunpack.c.l.b16 %v8960
    %v9129 = vunpack.c.h.b16 %v8960
    %v9130 = vunpack.c.l.b16 %v8961
    %v9131 = vunpack.c.h.b16 %v8961
    %v9132 = vunpack.c.l.b16 %v8962
    %v9133 = vunpack.c.h.b16 %v8962
    %v9134 = vunpack.c.l.b16 %v8963
    %v9135 = vunpack.c.h.b16 %v8963
    %v9136 = vunpack.c.l.b16 %v8964
    %v9137 = vunpack.c.h.b16 %v8964
    %v9138 = vunpack.c.l.b16 %v8965
    %v9139 = vunpack.c.h.b16 %v8965
    %v9140 = vunpack.c.l.b16 %v8966
    %v9141 = vunpack.c.h.b16 %v8966
    %v9142 = vunpack.c.l.b16 %v8967
    %v9143 = vunpack.c.h.b16 %v8967
    %v9144 = vunpack.c.l.b16 %v8968
    %v9145 = vunpack.c.h.b16 %v8968
    %v9146 = vunpack.c.l.b16 %v8969
    %v9147 = vunpack.c.h.b16 %v8969
    %v9148 = vunpack.c.l.b16 %v8970
    %v9149 = vunpack.c.h.b16 %v8970
    %v9150 = vunpack.c.l.b16 %v8971
    %v9151 = vunpack.c.h.b16 %v8971
    %v9152 = vunpack.c.l.b16 %v8972
    %v9153 = vunpack.c.h.b16 %v8972
    %v9154 = vpack.c.b16 %v9106, %v9090
    %v9155 = vpack.c.b16 %v9107, %v9091
    %v9156 = vpack.c.b16 %v9108, %v9092
    %v9157 = vpack.c.b16 %v9109, %v9093
    %v9158 = vpack.c.b16 %v9110, %v9094
    %v9159 = vpack.c.b16 %v9111, %v9095
    %v9160 = vpack.c.b16 %v9112, %v9096
    %v9161 = vpack.c.b16 %v9113, %v9097
    %v9162 = vpack.c.b16 %v9114, %v9098
    %v9163 = vpack.c.b16 %v9115, %v9099
    %v9164 = vpack.c.b16 %v9116, %v9100
    %v9165 = vpack.c.b16 %v9117, %v9101
    %v9166 = vpack.c.b16 %v9118, %v9102
    %v9167 = vpack.c.b16 %v9119, %v9103
    %v9168 = vpack.c.b16 %v9120, %v9104
    %v9169 = vpack.c.b16 %v9121, %v9105
    %v9170 = vpack.c.b16 %v9138, %v9122
    %v9171 = vpack.c.b16 %v9139, %v9123
    %v9172 = vpack.c.b16 %v9140, %v9124
    %v9173 = vpack.c.b16 %v9141, %v9125
    %v9174 = vpack.c.b16 %v9142, %v9126
    %v9175 = vpack.c.b16 %v9143, %v9127
    %v9176 = vpack.c.b16 %v9144, %v9128
    %v9177 = vpack.c.b16 %v9145, %v9129
    %v9178 = vpack.c.b16 %v9146, %v9130
    %v9179 = vpack.c.b16 %v9147, %v9131
    %v9180 = vpack.c.b16 %v9148, %v9132
    %v9181 = vpack.c.b16 %v9149, %v9133
    %v9182 = vpack.c.b16 %v9150, %v9134
    %v9183 = vpack.c.b16 %v9151, %v9135
    %v9184 = vpack.c.b16 %v9152, %v9136
    %v9185 = vpack.c.b16 %v9153, %v9137
    %v9219 = vsel %vm172, %v8939, 0
    %9221 = vmatprep.subr.bf16.mxu0 %v9155
    %9222 = vmatpush1.bf16.msra.mxu0 %v9154
    %9223 = vmatprep.subr.bf16.mxu0 %v9171
    %9224 = vmatpush1.bf16.msra.mxu0 %v9170
    %9225 = vmatprep.subr.bf16.mxu0 0
    %9226 = vmatpush1.bf16.msra.mxu0 0
    %9227 = vmatprep.subr.bf16.mxu0 0
    %9228 = vmatpush1.bf16.msra.mxu0 0
    %9229 = vmatprep.subr.bf16.mxu0 0
    %9230 = vmatpush1.bf16.msra.mxu0 0
    %9231 = vmatprep.subr.bf16.mxu0 0
    %9232 = vmatpush1.bf16.msra.mxu0 0
    %9233 = vmatprep.subr.bf16.mxu0 0
    %9234 = vmatpush1.bf16.msra.mxu0 0
    %9235 = vmatprep.subr.bf16.mxu0 0
    %9236 = vmatpush1.bf16.msra.mxu0 0
    %9237 = vmatprep.subr.bf16.mxu0 0
    %9238 = vmatpush1.bf16.msra.mxu0 0
    %9239 = vmatprep.subr.bf16.mxu0 0
    %9240 = vmatpush1.bf16.msra.mxu0 0
    %9241 = vmatprep.subr.bf16.mxu0 0
    %9242 = vmatpush1.bf16.msra.mxu0 0
    %9243 = vmatprep.subr.bf16.mxu0 0
    %9244 = vmatpush1.bf16.msra.mxu0 0
    %9245 = vmatprep.subr.bf16.mxu0 0
    %9246 = vmatpush1.bf16.msra.mxu0 0
    %9247 = vmatprep.subr.bf16.mxu0 0
    %9248 = vmatpush1.bf16.msra.mxu0 0
    %9249 = vmatprep.subr.bf16.mxu0 0
    %9250 = vmatpush1.bf16.msra.mxu0 0
    %9251 = vmatprep.subr.bf16.mxu0 0
    %9252 = vmatpush1.bf16.msra.mxu0 0
    %9253 = vmatprep.mubr.bf16.mxu0 0
    %9254 = vmatmul.mubr.bf16.gmra.mrb[0].mxu0 %v9219
    %v9255 = vpop.f32.mrb[0].mxu0
    %v9256 = vadd.f32 %v8981, %v9255
    %v9257 = vpop.f32.mrb[0].mxu0
    %v9258 = vadd.f32 %v8985, %v9257
    %v9259 = vpop.f32.mrb[0].mxu0
    %v9260 = vadd.f32 %v8981, %v9259
    %v9261 = vpop.f32.mrb[0].mxu0
    %v9262 = vadd.f32 %v8985, %v9261
    %9263 = vdwg.mxu0
    %9264 = vmatprep.subr.bf16.mxu0 %v9157
    %9265 = vmatpush1.bf16.msra.mxu0 %v9156
    %9266 = vmatprep.subr.bf16.mxu0 %v9173
    %9267 = vmatpush1.bf16.msra.mxu0 %v9172
    %9268 = vmatprep.subr.bf16.mxu0 0
    %9269 = vmatpush1.bf16.msra.mxu0 0
    %9270 = vmatprep.subr.bf16.mxu0 0
    %9271 = vmatpush1.bf16.msra.mxu0 0
    %9272 = vmatprep.subr.bf16.mxu0 0
    %9273 = vmatpush1.bf16.msra.mxu0 0
    %9274 = vmatprep.subr.bf16.mxu0 0
    %9275 = vmatpush1.bf16.msra.mxu0 0
    %9276 = vmatprep.subr.bf16.mxu0 0
    %9277 = vmatpush1.bf16.msra.mxu0 0
    %9278 = vmatprep.subr.bf16.mxu0 0
    %9279 = vmatpush1.bf16.msra.mxu0 0
    %9280 = vmatprep.subr.bf16.mxu0 0
    %9281 = vmatpush1.bf16.msra.mxu0 0
    %9282 = vmatprep.subr.bf16.mxu0 0
    %9283 = vmatpush1.bf16.msra.mxu0 0
    %9284 = vmatprep.subr.bf16.mxu0 0
    %9285 = vmatpush1.bf16.msra.mxu0 0
    %9286 = vmatprep.subr.bf16.mxu0 0
    %9287 = vmatpush1.bf16.msra.mxu0 0
    %9288 = vmatprep.subr.bf16.mxu0 0
    %9289 = vmatpush1.bf16.msra.mxu0 0
    %9290 = vmatprep.subr.bf16.mxu0 0
    %9291 = vmatpush1.bf16.msra.mxu0 0
    %9292 = vmatprep.subr.bf16.mxu0 0
    %9293 = vmatpush1.bf16.msra.mxu0 0
    %9294 = vmatprep.subr.bf16.mxu0 0
    %9295 = vmatpush1.bf16.msra.mxu0 0
    %9296 = vmatprep.mubr.bf16.mxu0 0
    %9297 = vmatmul.mubr.bf16.gmra.mrb[0].mxu0 %v9219
    %v9298 = vpop.f32.mrb[0].mxu0
    %v9299 = vadd.f32 %v8989, %v9298
    %v9300 = vpop.f32.mrb[0].mxu0
    %v9301 = vadd.f32 %v8993, %v9300
    %v9302 = vpop.f32.mrb[0].mxu0
    %v9303 = vadd.f32 %v8989, %v9302
    %v9304 = vpop.f32.mrb[0].mxu0
    %v9305 = vadd.f32 %v8993, %v9304
    %9306 = vdwg.mxu0
    %9307 = vmatprep.subr.bf16.mxu0 %v9159
    %9308 = vmatpush1.bf16.msra.mxu0 %v9158
    %9309 = vmatprep.subr.bf16.mxu0 %v9175
    %9310 = vmatpush1.bf16.msra.mxu0 %v9174
    %9311 = vmatprep.subr.bf16.mxu0 0
    %9312 = vmatpush1.bf16.msra.mxu0 0
    %9313 = vmatprep.subr.bf16.mxu0 0
    %9314 = vmatpush1.bf16.msra.mxu0 0
    %9315 = vmatprep.subr.bf16.mxu0 0
    %9316 = vmatpush1.bf16.msra.mxu0 0
    %9317 = vmatprep.subr.bf16.mxu0 0
    %9318 = vmatpush1.bf16.msra.mxu0 0
    %9319 = vmatprep.subr.bf16.mxu0 0
    %9320 = vmatpush1.bf16.msra.mxu0 0
    %9321 = vmatprep.subr.bf16.mxu0 0
    %9322 = vmatpush1.bf16.msra.mxu0 0
    %9323 = vmatprep.subr.bf16.mxu0 0
    %9324 = vmatpush1.bf16.msra.mxu0 0
    %9325 = vmatprep.subr.bf16.mxu0 0
    %9326 = vmatpush1.bf16.msra.mxu0 0
    %9327 = vmatprep.subr.bf16.mxu0 0
    %9328 = vmatpush1.bf16.msra.mxu0 0
    %9329 = vmatprep.subr.bf16.mxu0 0
    %9330 = vmatpush1.bf16.msra.mxu0 0
    %9331 = vmatprep.subr.bf16.mxu0 0
    %9332 = vmatpush1.bf16.msra.mxu0 0
    %9333 = vmatprep.subr.bf16.mxu0 0
    %9334 = vmatpush1.bf16.msra.mxu0 0
    %9335 = vmatprep.subr.bf16.mxu0 0
    %9336 = vmatpush1.bf16.msra.mxu0 0
    %9337 = vmatprep.subr.bf16.mxu0 0
    %9338 = vmatpush1.bf16.msra.mxu0 0
    %9339 = vmatprep.mubr.bf16.mxu0 0
    %9340 = vmatmul.mubr.bf16.gmra.mrb[0].mxu0 %v9219
    %v9341 = vpop.f32.mrb[0].mxu0
    %v9342 = vadd.f32 %v8997, %v9341
    %v9343 = vpop.f32.mrb[0].mxu0
    %v9344 = vadd.f32 %v9001, %v9343
    %v9345 = vpop.f32.mrb[0].mxu0
    %v9346 = vadd.f32 %v8997, %v9345
    %v9347 = vpop.f32.mrb[0].mxu0
    %v9348 = vadd.f32 %v9001, %v9347
    %9349 = vdwg.mxu0
    %9350 = vmatprep.subr.bf16.mxu0 %v9161
    %9351 = vmatpush1.bf16.msra.mxu0 %v9160
    %9352 = vmatprep.subr.bf16.mxu0 %v9177
    %9353 = vmatpush1.bf16.msra.mxu0 %v9176
    %9354 = vmatprep.subr.bf16.mxu0 0
    %9355 = vmatpush1.bf16.msra.mxu0 0
    %9356 = vmatprep.subr.bf16.mxu0 0
    %9357 = vmatpush1.bf16.msra.mxu0 0
    %9358 = vmatprep.subr.bf16.mxu0 0
    %9359 = vmatpush1.bf16.msra.mxu0 0
    %9360 = vmatprep.subr.bf16.mxu0 0
    %9361 = vmatpush1.bf16.msra.mxu0 0
    %9362 = vmatprep.subr.bf16.mxu0 0
    %9363 = vmatpush1.bf16.msra.mxu0 0
    %9364 = vmatprep.subr.bf16.mxu0 0
    %9365 = vmatpush1.bf16.msra.mxu0 0
    %9366 = vmatprep.subr.bf16.mxu0 0
    %9367 = vmatpush1.bf16.msra.mxu0 0
    %9368 = vmatprep.subr.bf16.mxu0 0
    %9369 = vmatpush1.bf16.msra.mxu0 0
    %9370 = vmatprep.subr.bf16.mxu0 0
    %9371 = vmatpush1.bf16.msra.mxu0 0
    %9372 = vmatprep.subr.bf16.mxu0 0
    %9373 = vmatpush1.bf16.msra.mxu0 0
    %9374 = vmatprep.subr.bf16.mxu0 0
    %9375 = vmatpush1.bf16.msra.mxu0 0
    %9376 = vmatprep.subr.bf16.mxu0 0
    %9377 = vmatpush1.bf16.msra.mxu0 0
    %9378 = vmatprep.subr.bf16.mxu0 0
    %9379 = vmatpush1.bf16.msra.mxu0 0
    %9380 = vmatprep.subr.bf16.mxu0 0
    %9381 = vmatpush1.bf16.msra.mxu0 0
    %9382 = vmatprep.mubr.bf16.mxu0 0
    %9383 = vmatmul.mubr.bf16.gmra.mrb[0].mxu0 %v9219
    %v9384 = vpop.f32.mrb[0].mxu0
    %v9385 = vadd.f32 %v9005, %v9384
    %v9386 = vpop.f32.mrb[0].mxu0
    %v9387 = vadd.f32 %v9009, %v9386
    %v9388 = vpop.f32.mrb[0].mxu0
    %v9389 = vadd.f32 %v9005, %v9388
    %v9390 = vpop.f32.mrb[0].mxu0
    %v9391 = vadd.f32 %v9009, %v9390
    %9392 = vdwg.mxu0
    %9393 = vmatprep.subr.bf16.mxu0 %v9163
    %9394 = vmatpush1.bf16.msra.mxu0 %v9162
    %9395 = vmatprep.subr.bf16.mxu0 %v9179
    %9396 = vmatpush1.bf16.msra.mxu0 %v9178
    %9397 = vmatprep.subr.bf16.mxu0 0
    %9398 = vmatpush1.bf16.msra.mxu0 0
    %9399 = vmatprep.subr.bf16.mxu0 0
    %9400 = vmatpush1.bf16.msra.mxu0 0
    %9401 = vmatprep.subr.bf16.mxu0 0
    %9402 = vmatpush1.bf16.msra.mxu0 0
    %9403 = vmatprep.subr.bf16.mxu0 0
    %9404 = vmatpush1.bf16.msra.mxu0 0
    %9405 = vmatprep.subr.bf16.mxu0 0
    %9406 = vmatpush1.bf16.msra.mxu0 0
    %9407 = vmatprep.subr.bf16.mxu0 0
    %9408 = vmatpush1.bf16.msra.mxu0 0
    %9409 = vmatprep.subr.bf16.mxu0 0
    %9410 = vmatpush1.bf16.msra.mxu0 0
    %9411 = vmatprep.subr.bf16.mxu0 0
    %9412 = vmatpush1.bf16.msra.mxu0 0
    %9413 = vmatprep.subr.bf16.mxu0 0
    %9414 = vmatpush1.bf16.msra.mxu0 0
    %9415 = vmatprep.subr.bf16.mxu0 0
    %9416 = vmatpush1.bf16.msra.mxu0 0
    %9417 = vmatprep.subr.bf16.mxu0 0
    %9418 = vmatpush1.bf16.msra.mxu0 0
    %9419 = vmatprep.subr.bf16.mxu0 0
    %9420 = vmatpush1.bf16.msra.mxu0 0
    %9421 = vmatprep.subr.bf16.mxu0 0
    %9422 = vmatpush1.bf16.msra.mxu0 0
    %9423 = vmatprep.subr.bf16.mxu0 0
    %9424 = vmatpush1.bf16.msra.mxu0 0
    %9425 = vmatprep.mubr.bf16.mxu0 0
    %9426 = vmatmul.mubr.bf16.gmra.mrb[0].mxu0 %v9219
    %v9427 = vpop.f32.mrb[0].mxu0
    %v9428 = vadd.f32 %v9013, %v9427
    %v9429 = vpop.f32.mrb[0].mxu0
    %v9430 = vadd.f32 %v9017, %v9429
    %v9431 = vpop.f32.mrb[0].mxu0
    %v9432 = vadd.f32 %v9013, %v9431
    %v9433 = vpop.f32.mrb[0].mxu0
    %v9434 = vadd.f32 %v9017, %v9433
    %9435 = vdwg.mxu0
    %9436 = vmatprep.subr.bf16.mxu0 %v9165
    %9437 = vmatpush1.bf16.msra.mxu0 %v9164
    %9438 = vmatprep.subr.bf16.mxu0 %v9181
    %9439 = vmatpush1.bf16.msra.mxu0 %v9180
    %9440 = vmatprep.subr.bf16.mxu0 0
    %9441 = vmatpush1.bf16.msra.mxu0 0
    %9442 = vmatprep.subr.bf16.mxu0 0
    %9443 = vmatpush1.bf16.msra.mxu0 0
    %9444 = vmatprep.subr.bf16.mxu0 0
    %9445 = vmatpush1.bf16.msra.mxu0 0
    %9446 = vmatprep.subr.bf16.mxu0 0
    %9447 = vmatpush1.bf16.msra.mxu0 0
    %9448 = vmatprep.subr.bf16.mxu0 0
    %9449 = vmatpush1.bf16.msra.mxu0 0
    %9450 = vmatprep.subr.bf16.mxu0 0
    %9451 = vmatpush1.bf16.msra.mxu0 0
    %9452 = vmatprep.subr.bf16.mxu0 0
    %9453 = vmatpush1.bf16.msra.mxu0 0
    %9454 = vmatprep.subr.bf16.mxu0 0
    %9455 = vmatpush1.bf16.msra.mxu0 0
    %9456 = vmatprep.subr.bf16.mxu0 0
    %9457 = vmatpush1.bf16.msra.mxu0 0
    %9458 = vmatprep.subr.bf16.mxu0 0
    %9459 = vmatpush1.bf16.msra.mxu0 0
    %9460 = vmatprep.subr.bf16.mxu0 0
    %9461 = vmatpush1.bf16.msra.mxu0 0
    %9462 = vmatprep.subr.bf16.mxu0 0
    %9463 = vmatpush1.bf16.msra.mxu0 0
    %9464 = vmatprep.subr.bf16.mxu0 0
    %9465 = vmatpush1.bf16.msra.mxu0 0
    %9466 = vmatprep.subr.bf16.mxu0 0
    %9467 = vmatpush1.bf16.msra.mxu0 0
    %9468 = vmatprep.mubr.bf16.mxu0 0
    %9469 = vmatmul.mubr.bf16.gmra.mrb[0].mxu0 %v9219
    %v9470 = vpop.f32.mrb[0].mxu0
    %v9471 = vadd.f32 %v9021, %v9470
    %v9472 = vpop.f32.mrb[0].mxu0
    %v9473 = vadd.f32 %v9025, %v9472
    %v9474 = vpop.f32.mrb[0].mxu0
    %v9475 = vadd.f32 %v9021, %v9474
    %v9476 = vpop.f32.mrb[0].mxu0
    %v9477 = vadd.f32 %v9025, %v9476
    %9478 = vdwg.mxu0
    %9479 = vmatprep.subr.bf16.mxu0 %v9167
    %9480 = vmatpush1.bf16.msra.mxu0 %v9166
    %9481 = vmatprep.subr.bf16.mxu0 %v9183
    %9482 = vmatpush1.bf16.msra.mxu0 %v9182
    %9483 = vmatprep.subr.bf16.mxu0 0
    %9484 = vmatpush1.bf16.msra.mxu0 0
    %9485 = vmatprep.subr.bf16.mxu0 0
    %9486 = vmatpush1.bf16.msra.mxu0 0
    %9487 = vmatprep.subr.bf16.mxu0 0
    %9488 = vmatpush1.bf16.msra.mxu0 0
    %9489 = vmatprep.subr.bf16.mxu0 0
    %9490 = vmatpush1.bf16.msra.mxu0 0
    %9491 = vmatprep.subr.bf16.mxu0 0
    %9492 = vmatpush1.bf16.msra.mxu0 0
    %9493 = vmatprep.subr.bf16.mxu0 0
    %9494 = vmatpush1.bf16.msra.mxu0 0
    %9495 = vmatprep.subr.bf16.mxu0 0
    %9496 = vmatpush1.bf16.msra.mxu0 0
    %9497 = vmatprep.subr.bf16.mxu0 0
    %9498 = vmatpush1.bf16.msra.mxu0 0
    %9499 = vmatprep.subr.bf16.mxu0 0
    %9500 = vmatpush1.bf16.msra.mxu0 0
    %9501 = vmatprep.subr.bf16.mxu0 0
    %9502 = vmatpush1.bf16.msra.mxu0 0
    %9503 = vmatprep.subr.bf16.mxu0 0
    %9504 = vmatpush1.bf16.msra.mxu0 0
    %9505 = vmatprep.subr.bf16.mxu0 0
    %9506 = vmatpush1.bf16.msra.mxu0 0
    %9507 = vmatprep.subr.bf16.mxu0 0
    %9508 = vmatpush1.bf16.msra.mxu0 0
    %9509 = vmatprep.subr.bf16.mxu0 0
    %9510 = vmatpush1.bf16.msra.mxu0 0
    %9511 = vmatprep.mubr.bf16.mxu0 0
    %9512 = vmatmul.mubr.bf16.gmra.mrb[0].mxu0 %v9219
    %v9513 = vpop.f32.mrb[0].mxu0
    %v9514 = vadd.f32 %v9029, %v9513
    %v9515 = vpop.f32.mrb[0].mxu0
    %v9516 = vadd.f32 %v9033, %v9515
    %v9517 = vpop.f32.mrb[0].mxu0
    %v9518 = vadd.f32 %v9029, %v9517
    %v9519 = vpop.f32.mrb[0].mxu0
    %v9520 = vadd.f32 %v9033, %v9519
    %9521 = vdwg.mxu0
    %9522 = vmatprep.subr.bf16.mxu0 %v9169
    %9523 = vmatpush1.bf16.msra.mxu0 %v9168
    %9524 = vmatprep.subr.bf16.mxu0 %v9185
    %9525 = vmatpush1.bf16.msra.mxu0 %v9184
    %9526 = vmatprep.subr.bf16.mxu0 0
    %9527 = vmatpush1.bf16.msra.mxu0 0
    %9528 = vmatprep.subr.bf16.mxu0 0
    %9529 = vmatpush1.bf16.msra.mxu0 0
    %9530 = vmatprep.subr.bf16.mxu0 0
    %9531 = vmatpush1.bf16.msra.mxu0 0
    %9532 = vmatprep.subr.bf16.mxu0 0
    %9533 = vmatpush1.bf16.msra.mxu0 0
    %9534 = vmatprep.subr.bf16.mxu0 0
    %9535 = vmatpush1.bf16.msra.mxu0 0
    %9536 = vmatprep.subr.bf16.mxu0 0
    %9537 = vmatpush1.bf16.msra.mxu0 0
    %9538 = vmatprep.subr.bf16.mxu0 0
    %9539 = vmatpush1.bf16.msra.mxu0 0
    %9540 = vmatprep.subr.bf16.mxu0 0
    %9541 = vmatpush1.bf16.msra.mxu0 0
    %9542 = vmatprep.subr.bf16.mxu0 0
    %9543 = vmatpush1.bf16.msra.mxu0 0
    %9544 = vmatprep.subr.bf16.mxu0 0
    %9545 = vmatpush1.bf16.msra.mxu0 0
    %9546 = vmatprep.subr.bf16.mxu0 0
    %9547 = vmatpush1.bf16.msra.mxu0 0
    %9548 = vmatprep.subr.bf16.mxu0 0
    %9549 = vmatpush1.bf16.msra.mxu0 0
    %9550 = vmatprep.subr.bf16.mxu0 0
    %9551 = vmatpush1.bf16.msra.mxu0 0
    %9552 = vmatprep.subr.bf16.mxu0 0
    %9553 = vmatpush1.bf16.msra.mxu0 0
    %9554 = vmatprep.mubr.bf16.mxu0 0
    %9555 = vmatmul.mubr.bf16.gmra.mrb[0].mxu0 %v9219
    %v9556 = vpop.f32.mrb[0].mxu0
    %v9557 = vadd.f32 %v9037, %v9556
    %v9558 = vpop.f32.mrb[0].mxu0
    %v9559 = vadd.f32 %v9041, %v9558
    %v9560 = vpop.f32.mrb[0].mxu0
    %v9561 = vadd.f32 %v9037, %v9560
    %v9562 = vpop.f32.mrb[0].mxu0
    %v9563 = vadd.f32 %v9041, %v9562
    %9564 = vdwg.mxu0
    %v9565 = vmax.f32 %v9256, 0.0
    %v9566 = vmax.f32 %v9258, 0.0
    %v9567 = vmax.f32 %v9299, 0.0
    %v9568 = vmax.f32 %v9301, 0.0
    %v9569 = vmax.f32 %v9342, 0.0
    %v9570 = vmax.f32 %v9344, 0.0
    %v9571 = vmax.f32 %v9385, 0.0
    %v9572 = vmax.f32 %v9387, 0.0
    %v9573 = vmax.f32 %v9428, 0.0
    %v9574 = vmax.f32 %v9430, 0.0
    %v9575 = vmax.f32 %v9471, 0.0
    %v9576 = vmax.f32 %v9473, 0.0
    %v9577 = vmax.f32 %v9514, 0.0
    %v9578 = vmax.f32 %v9516, 0.0
    %v9579 = vmax.f32 %v9557, 0.0
    %v9580 = vmax.f32 %v9559, 0.0
    %v9581 = vmax.f32 %v9260, 0.0
    %v9582 = vmax.f32 %v9262, 0.0
    %v9583 = vmax.f32 %v9303, 0.0
    %v9584 = vmax.f32 %v9305, 0.0
    %v9585 = vmax.f32 %v9346, 0.0
    %v9586 = vmax.f32 %v9348, 0.0
    %v9587 = vmax.f32 %v9389, 0.0
    %v9588 = vmax.f32 %v9391, 0.0
    %v9589 = vmax.f32 %v9432, 0.0
    %v9590 = vmax.f32 %v9434, 0.0
    %v9591 = vmax.f32 %v9475, 0.0
    %v9592 = vmax.f32 %v9477, 0.0
    %v9593 = vmax.f32 %v9518, 0.0
    %v9594 = vmax.f32 %v9520, 0.0
    %v9595 = vmax.f32 %v9561, 0.0
    %v9596 = vmax.f32 %v9563, 0.0
    %v9597 = vpack.c.bf16 %v9581, %v9565
    %v9598 = vpack.c.bf16 %v9582, %v9566
    %v9599 = vpack.c.bf16 %v9583, %v9567
    %v9600 = vpack.c.bf16 %v9584, %v9568
    %v9601 = vpack.c.bf16 %v9585, %v9569
    %v9602 = vpack.c.bf16 %v9586, %v9570
    %v9603 = vpack.c.bf16 %v9587, %v9571
    %v9604 = vpack.c.bf16 %v9588, %v9572
    %v9605 = vpack.c.bf16 %v9589, %v9573
    %v9606 = vpack.c.bf16 %v9590, %v9574
    %v9607 = vpack.c.bf16 %v9591, %v9575
    %v9608 = vpack.c.bf16 %v9592, %v9576
    %v9609 = vpack.c.bf16 %v9593, %v9577
    %v9610 = vpack.c.bf16 %v9594, %v9578
    %v9611 = vpack.c.bf16 %v9595, %v9579
    %v9612 = vpack.c.bf16 %v9596, %v9580
    %s9613 = scalar_lea.vmem %s11, 2048
    %v9614 = vld [vmem:[%s9613] sm:$0xf]
    %v9615 = vld [vmem:[%s9613 + $0x4] sm:$0xf]
    %v9616 = vld [vmem:[%s9613 + $0x8] sm:$0xf]
    %v9617 = vld [vmem:[%s9613 + $0xc] sm:$0xf]
    %v9618 = vld [vmem:[%s9613 + $0x10] sm:$0xf]
    %v9619 = vld [vmem:[%s9613 + $0x14] sm:$0xf]
    %v9620 = vld [vmem:[%s9613 + $0x18] sm:$0xf]
    %v9621 = vld [vmem:[%s9613 + $0x1c] sm:$0xf]
    %v9622 = vld [vmem:[%s9613 + $0x20] sm:$0xf]
    %v9623 = vld [vmem:[%s9613 + $0x24] sm:$0xf]
    %v9624 = vld [vmem:[%s9613 + $0x28] sm:$0xf]
    %v9625 = vld [vmem:[%s9613 + $0x2c] sm:$0xf]
    %v9626 = vld [vmem:[%s9613 + $0x30] sm:$0xf]
    %v9627 = vld [vmem:[%s9613 + $0x34] sm:$0xf]
    %v9628 = vld [vmem:[%s9613 + $0x38] sm:$0xf]
    %v9629 = vld [vmem:[%s9613 + $0x3c] sm:$0xf]
    %v9630 = vld [vmem:[%s9613 + $0x40] sm:$0xf]
    %v9631 = vld [vmem:[%s9613 + $0x44] sm:$0xf]
    %v9632 = vld [vmem:[%s9613 + $0x48] sm:$0xf]
    %v9633 = vld [vmem:[%s9613 + $0x4c] sm:$0xf]
    %v9634 = vld [vmem:[%s9613 + $0x50] sm:$0xf]
    %v9635 = vld [vmem:[%s9613 + $0x54] sm:$0xf]
    %v9636 = vld [vmem:[%s9613 + $0x58] sm:$0xf]
    %v9637 = vld [vmem:[%s9613 + $0x5c] sm:$0xf]
    %v9638 = vld [vmem:[%s9613 + $0x60] sm:$0xf]
    %v9639 = vld [vmem:[%s9613 + $0x64] sm:$0xf]
    %v9640 = vld [vmem:[%s9613 + $0x68] sm:$0xf]
    %v9641 = vld [vmem:[%s9613 + $0x6c] sm:$0xf]
    %v9642 = vld [vmem:[%s9613 + $0x70] sm:$0xf]
    %v9643 = vld [vmem:[%s9613 + $0x74] sm:$0xf]
    %v9644 = vld [vmem:[%s9613 + $0x78] sm:$0xf]
    %v9645 = vld [vmem:[%s9613 + $0x7c] sm:$0xf]
    %v9646 = vld [vmem:[%s9613 + $0x80] sm:$0xf]
    %v9647 = vld [vmem:[%s9613 + $0x84] sm:$0xf]
    %v9648 = vld [vmem:[%s9613 + $0x88] sm:$0xf]
    %v9649 = vld [vmem:[%s9613 + $0x8c] sm:$0xf]
    %v9650 = vld [vmem:[%s9613 + $0x90] sm:$0xf]
    %v9651 = vld [vmem:[%s9613 + $0x94] sm:$0xf]
    %v9652 = vld [vmem:[%s9613 + $0x98] sm:$0xf]
    %v9653 = vld [vmem:[%s9613 + $0x9c] sm:$0xf]
    %v9654 = vld [vmem:[%s9613 + $0xa0] sm:$0xf]
    %v9655 = vld [vmem:[%s9613 + $0xa4] sm:$0xf]
    %v9656 = vld [vmem:[%s9613 + $0xa8] sm:$0xf]
    %v9657 = vld [vmem:[%s9613 + $0xac] sm:$0xf]
    %v9658 = vld [vmem:[%s9613 + $0xb0] sm:$0xf]
    %v9659 = vld [vmem:[%s9613 + $0xb4] sm:$0xf]
    %v9660 = vld [vmem:[%s9613 + $0xb8] sm:$0xf]
    %v9661 = vld [vmem:[%s9613 + $0xbc] sm:$0xf]
    %v9662 = vld [vmem:[%s9613 + $0xc0] sm:$0xf]
    %v9663 = vld [vmem:[%s9613 + $0xc4] sm:$0xf]
    %v9664 = vld [vmem:[%s9613 + $0xc8] sm:$0xf]
    %v9665 = vld [vmem:[%s9613 + $0xcc] sm:$0xf]
    %v9666 = vld [vmem:[%s9613 + $0xd0] sm:$0xf]
    %v9667 = vld [vmem:[%s9613 + $0xd4] sm:$0xf]
    %v9668 = vld [vmem:[%s9613 + $0xd8] sm:$0xf]
    %v9669 = vld [vmem:[%s9613 + $0xdc] sm:$0xf]
    %v9670 = vld [vmem:[%s9613 + $0xe0] sm:$0xf]
    %v9671 = vld [vmem:[%s9613 + $0xe4] sm:$0xf]
    %v9672 = vld [vmem:[%s9613 + $0xe8] sm:$0xf]
    %v9673 = vld [vmem:[%s9613 + $0xec] sm:$0xf]
    %v9674 = vld [vmem:[%s9613 + $0xf0] sm:$0xf]
    %v9675 = vld [vmem:[%s9613 + $0xf4] sm:$0xf]
    %v9676 = vld [vmem:[%s9613 + $0xf8] sm:$0xf]
    %v9677 = vld [vmem:[%s9613 + $0xfc] sm:$0xf]
    %v9678 = vld [vmem:[%s9613 + $0x100] sm:$0xf]
    %v9679 = vld [vmem:[%s9613 + $0x104] sm:$0xf]
    %v9680 = vld [vmem:[%s9613 + $0x108] sm:$0xf]
    %v9681 = vld [vmem:[%s9613 + $0x10c] sm:$0xf]
    %v9682 = vld [vmem:[%s9613 + $0x110] sm:$0xf]
    %v9683 = vld [vmem:[%s9613 + $0x114] sm:$0xf]
    %v9684 = vld [vmem:[%s9613 + $0x118] sm:$0xf]
    %v9685 = vld [vmem:[%s9613 + $0x11c] sm:$0xf]
    %v9686 = vld [vmem:[%s9613 + $0x120] sm:$0xf]
    %v9687 = vld [vmem:[%s9613 + $0x124] sm:$0xf]
    %v9688 = vld [vmem:[%s9613 + $0x128] sm:$0xf]
    %v9689 = vld [vmem:[%s9613 + $0x12c] sm:$0xf]
    %v9690 = vld [vmem:[%s9613 + $0x130] sm:$0xf]
    %v9691 = vld [vmem:[%s9613 + $0x134] sm:$0xf]
    %v9692 = vld [vmem:[%s9613 + $0x138] sm:$0xf]
    %v9693 = vld [vmem:[%s9613 + $0x13c] sm:$0xf]
    %v9694 = vld [vmem:[%s9613 + $0x140] sm:$0xf]
    %v9695 = vld [vmem:[%s9613 + $0x144] sm:$0xf]
    %v9696 = vld [vmem:[%s9613 + $0x148] sm:$0xf]
    %v9697 = vld [vmem:[%s9613 + $0x14c] sm:$0xf]
    %v9698 = vld [vmem:[%s9613 + $0x150] sm:$0xf]
    %v9699 = vld [vmem:[%s9613 + $0x154] sm:$0xf]
    %v9700 = vld [vmem:[%s9613 + $0x158] sm:$0xf]
    %v9701 = vld [vmem:[%s9613 + $0x15c] sm:$0xf]
    %v9702 = vld [vmem:[%s9613 + $0x160] sm:$0xf]
    %v9703 = vld [vmem:[%s9613 + $0x164] sm:$0xf]
    %v9704 = vld [vmem:[%s9613 + $0x168] sm:$0xf]
    %v9705 = vld [vmem:[%s9613 + $0x16c] sm:$0xf]
    %v9706 = vld [vmem:[%s9613 + $0x170] sm:$0xf]
    %v9707 = vld [vmem:[%s9613 + $0x174] sm:$0xf]
    %v9708 = vld [vmem:[%s9613 + $0x178] sm:$0xf]
    %v9709 = vld [vmem:[%s9613 + $0x17c] sm:$0xf]
    %v9710 = vld [vmem:[%s9613 + $0x180] sm:$0xf]
    %v9711 = vld [vmem:[%s9613 + $0x184] sm:$0xf]
    %v9712 = vld [vmem:[%s9613 + $0x188] sm:$0xf]
    %v9713 = vld [vmem:[%s9613 + $0x18c] sm:$0xf]
    %v9714 = vld [vmem:[%s9613 + $0x190] sm:$0xf]
    %v9715 = vld [vmem:[%s9613 + $0x194] sm:$0xf]
    %v9716 = vld [vmem:[%s9613 + $0x198] sm:$0xf]
    %v9717 = vld [vmem:[%s9613 + $0x19c] sm:$0xf]
    %v9718 = vld [vmem:[%s9613 + $0x1a0] sm:$0xf]
    %v9719 = vld [vmem:[%s9613 + $0x1a4] sm:$0xf]
    %v9720 = vld [vmem:[%s9613 + $0x1a8] sm:$0xf]
    %v9721 = vld [vmem:[%s9613 + $0x1ac] sm:$0xf]
    %v9722 = vld [vmem:[%s9613 + $0x1b0] sm:$0xf]
    %v9723 = vld [vmem:[%s9613 + $0x1b4] sm:$0xf]
    %v9724 = vld [vmem:[%s9613 + $0x1b8] sm:$0xf]
    %v9725 = vld [vmem:[%s9613 + $0x1bc] sm:$0xf]
    %v9726 = vld [vmem:[%s9613 + $0x1c0] sm:$0xf]
    %v9727 = vld [vmem:[%s9613 + $0x1c4] sm:$0xf]
    %v9728 = vld [vmem:[%s9613 + $0x1c8] sm:$0xf]
    %v9729 = vld [vmem:[%s9613 + $0x1cc] sm:$0xf]
    %v9730 = vld [vmem:[%s9613 + $0x1d0] sm:$0xf]
    %v9731 = vld [vmem:[%s9613 + $0x1d4] sm:$0xf]
    %v9732 = vld [vmem:[%s9613 + $0x1d8] sm:$0xf]
    %v9733 = vld [vmem:[%s9613 + $0x1dc] sm:$0xf]
    %v9734 = vld [vmem:[%s9613 + $0x1e0] sm:$0xf]
    %v9735 = vld [vmem:[%s9613 + $0x1e4] sm:$0xf]
    %v9736 = vld [vmem:[%s9613 + $0x1e8] sm:$0xf]
    %v9737 = vld [vmem:[%s9613 + $0x1ec] sm:$0xf]
    %v9738 = vld [vmem:[%s9613 + $0x1f0] sm:$0xf]
    %v9739 = vld [vmem:[%s9613 + $0x1f4] sm:$0xf]
    %v9740 = vld [vmem:[%s9613 + $0x1f8] sm:$0xf]
    %v9741 = vld [vmem:[%s9613 + $0x1fc] sm:$0xf]
    %v9742 = vld [vmem:[%s9613 + $0x200] sm:$0xf]
    %v9743 = vld [vmem:[%s9613 + $0x204] sm:$0xf]
    %v9744 = vld [vmem:[%s9613 + $0x208] sm:$0xf]
    %v9745 = vld [vmem:[%s9613 + $0x20c] sm:$0xf]
    %v9746 = vld [vmem:[%s9613 + $0x210] sm:$0xf]
    %v9747 = vld [vmem:[%s9613 + $0x214] sm:$0xf]
    %v9748 = vld [vmem:[%s9613 + $0x218] sm:$0xf]
    %v9749 = vld [vmem:[%s9613 + $0x21c] sm:$0xf]
    %v9750 = vld [vmem:[%s9613 + $0x220] sm:$0xf]
    %v9751 = vld [vmem:[%s9613 + $0x224] sm:$0xf]
    %v9752 = vld [vmem:[%s9613 + $0x228] sm:$0xf]
    %v9753 = vld [vmem:[%s9613 + $0x22c] sm:$0xf]
    %v9754 = vld [vmem:[%s9613 + $0x230] sm:$0xf]
    %v9755 = vld [vmem:[%s9613 + $0x234] sm:$0xf]
    %v9756 = vld [vmem:[%s9613 + $0x238] sm:$0xf]
    %v9757 = vld [vmem:[%s9613 + $0x23c] sm:$0xf]
    %v9758 = vld [vmem:[%s9613 + $0x240] sm:$0xf]
    %v9759 = vld [vmem:[%s9613 + $0x244] sm:$0xf]
    %v9760 = vld [vmem:[%s9613 + $0x248] sm:$0xf]
    %v9761 = vld [vmem:[%s9613 + $0x24c] sm:$0xf]
    %v9762 = vld [vmem:[%s9613 + $0x250] sm:$0xf]
    %v9763 = vld [vmem:[%s9613 + $0x254] sm:$0xf]
    %v9764 = vld [vmem:[%s9613 + $0x258] sm:$0xf]
    %v9765 = vld [vmem:[%s9613 + $0x25c] sm:$0xf]
    %v9766 = vld [vmem:[%s9613 + $0x260] sm:$0xf]
    %v9767 = vld [vmem:[%s9613 + $0x264] sm:$0xf]
    %v9768 = vld [vmem:[%s9613 + $0x268] sm:$0xf]
    %v9769 = vld [vmem:[%s9613 + $0x26c] sm:$0xf]
    %v9770 = vld [vmem:[%s9613 + $0x270] sm:$0xf]
    %v9771 = vld [vmem:[%s9613 + $0x274] sm:$0xf]
    %v9772 = vld [vmem:[%s9613 + $0x278] sm:$0xf]
    %v9773 = vld [vmem:[%s9613 + $0x27c] sm:$0xf]
    %v9774 = vld [vmem:[%s9613 + $0x280] sm:$0xf]
    %v9775 = vld [vmem:[%s9613 + $0x284] sm:$0xf]
    %v9776 = vld [vmem:[%s9613 + $0x288] sm:$0xf]
    %v9777 = vld [vmem:[%s9613 + $0x28c] sm:$0xf]
    %v9778 = vld [vmem:[%s9613 + $0x290] sm:$0xf]
    %v9779 = vld [vmem:[%s9613 + $0x294] sm:$0xf]
    %v9780 = vld [vmem:[%s9613 + $0x298] sm:$0xf]
    %v9781 = vld [vmem:[%s9613 + $0x29c] sm:$0xf]
    %v9782 = vld [vmem:[%s9613 + $0x2a0] sm:$0xf]
    %v9783 = vld [vmem:[%s9613 + $0x2a4] sm:$0xf]
    %v9784 = vld [vmem:[%s9613 + $0x2a8] sm:$0xf]
    %v9785 = vld [vmem:[%s9613 + $0x2ac] sm:$0xf]
    %v9786 = vld [vmem:[%s9613 + $0x2b0] sm:$0xf]
    %v9787 = vld [vmem:[%s9613 + $0x2b4] sm:$0xf]
    %v9788 = vld [vmem:[%s9613 + $0x2b8] sm:$0xf]
    %v9789 = vld [vmem:[%s9613 + $0x2bc] sm:$0xf]
    %v9790 = vld [vmem:[%s9613 + $0x2c0] sm:$0xf]
    %v9791 = vld [vmem:[%s9613 + $0x2c4] sm:$0xf]
    %v9792 = vld [vmem:[%s9613 + $0x2c8] sm:$0xf]
    %v9793 = vld [vmem:[%s9613 + $0x2cc] sm:$0xf]
    %v9794 = vld [vmem:[%s9613 + $0x2d0] sm:$0xf]
    %v9795 = vld [vmem:[%s9613 + $0x2d4] sm:$0xf]
    %v9796 = vld [vmem:[%s9613 + $0x2d8] sm:$0xf]
    %v9797 = vld [vmem:[%s9613 + $0x2dc] sm:$0xf]
    %v9798 = vld [vmem:[%s9613 + $0x2e0] sm:$0xf]
    %v9799 = vld [vmem:[%s9613 + $0x2e4] sm:$0xf]
    %v9800 = vld [vmem:[%s9613 + $0x2e8] sm:$0xf]
    %v9801 = vld [vmem:[%s9613 + $0x2ec] sm:$0xf]
    %v9802 = vld [vmem:[%s9613 + $0x2f0] sm:$0xf]
    %v9803 = vld [vmem:[%s9613 + $0x2f4] sm:$0xf]
    %v9804 = vld [vmem:[%s9613 + $0x2f8] sm:$0xf]
    %v9805 = vld [vmem:[%s9613 + $0x2fc] sm:$0xf]
    %v9806 = vld [vmem:[%s9613 + $0x300] sm:$0xf]
    %v9807 = vld [vmem:[%s9613 + $0x304] sm:$0xf]
    %v9808 = vld [vmem:[%s9613 + $0x308] sm:$0xf]
    %v9809 = vld [vmem:[%s9613 + $0x30c] sm:$0xf]
    %v9810 = vld [vmem:[%s9613 + $0x310] sm:$0xf]
    %v9811 = vld [vmem:[%s9613 + $0x314] sm:$0xf]
    %v9812 = vld [vmem:[%s9613 + $0x318] sm:$0xf]
    %v9813 = vld [vmem:[%s9613 + $0x31c] sm:$0xf]
    %v9814 = vld [vmem:[%s9613 + $0x320] sm:$0xf]
    %v9815 = vld [vmem:[%s9613 + $0x324] sm:$0xf]
    %v9816 = vld [vmem:[%s9613 + $0x328] sm:$0xf]
    %v9817 = vld [vmem:[%s9613 + $0x32c] sm:$0xf]
    %v9818 = vld [vmem:[%s9613 + $0x330] sm:$0xf]
    %v9819 = vld [vmem:[%s9613 + $0x334] sm:$0xf]
    %v9820 = vld [vmem:[%s9613 + $0x338] sm:$0xf]
    %v9821 = vld [vmem:[%s9613 + $0x33c] sm:$0xf]
    %v9822 = vld [vmem:[%s9613 + $0x340] sm:$0xf]
    %v9823 = vld [vmem:[%s9613 + $0x344] sm:$0xf]
    %v9824 = vld [vmem:[%s9613 + $0x348] sm:$0xf]
    %v9825 = vld [vmem:[%s9613 + $0x34c] sm:$0xf]
    %v9826 = vld [vmem:[%s9613 + $0x350] sm:$0xf]
    %v9827 = vld [vmem:[%s9613 + $0x354] sm:$0xf]
    %v9828 = vld [vmem:[%s9613 + $0x358] sm:$0xf]
    %v9829 = vld [vmem:[%s9613 + $0x35c] sm:$0xf]
    %v9830 = vld [vmem:[%s9613 + $0x360] sm:$0xf]
    %v9831 = vld [vmem:[%s9613 + $0x364] sm:$0xf]
    %v9832 = vld [vmem:[%s9613 + $0x368] sm:$0xf]
    %v9833 = vld [vmem:[%s9613 + $0x36c] sm:$0xf]
    %v9834 = vld [vmem:[%s9613 + $0x370] sm:$0xf]
    %v9835 = vld [vmem:[%s9613 + $0x374] sm:$0xf]
    %v9836 = vld [vmem:[%s9613 + $0x378] sm:$0xf]
    %v9837 = vld [vmem:[%s9613 + $0x37c] sm:$0xf]
    %v9838 = vld [vmem:[%s9613 + $0x380] sm:$0xf]
    %v9839 = vld [vmem:[%s9613 + $0x384] sm:$0xf]
    %v9840 = vld [vmem:[%s9613 + $0x388] sm:$0xf]
    %v9841 = vld [vmem:[%s9613 + $0x38c] sm:$0xf]
    %v9842 = vld [vmem:[%s9613 + $0x390] sm:$0xf]
    %v9843 = vld [vmem:[%s9613 + $0x394] sm:$0xf]
    %v9844 = vld [vmem:[%s9613 + $0x398] sm:$0xf]
    %v9845 = vld [vmem:[%s9613 + $0x39c] sm:$0xf]
    %v9846 = vld [vmem:[%s9613 + $0x3a0] sm:$0xf]
    %v9847 = vld [vmem:[%s9613 + $0x3a4] sm:$0xf]
    %v9848 = vld [vmem:[%s9613 + $0x3a8] sm:$0xf]
    %v9849 = vld [vmem:[%s9613 + $0x3ac] sm:$0xf]
    %v9850 = vld [vmem:[%s9613 + $0x3b0] sm:$0xf]
    %v9851 = vld [vmem:[%s9613 + $0x3b4] sm:$0xf]
    %v9852 = vld [vmem:[%s9613 + $0x3b8] sm:$0xf]
    %v9853 = vld [vmem:[%s9613 + $0x3bc] sm:$0xf]
    %v9854 = vld [vmem:[%s9613 + $0x3c0] sm:$0xf]
    %v9855 = vld [vmem:[%s9613 + $0x3c4] sm:$0xf]
    %v9856 = vld [vmem:[%s9613 + $0x3c8] sm:$0xf]
    %v9857 = vld [vmem:[%s9613 + $0x3cc] sm:$0xf]
    %v9858 = vld [vmem:[%s9613 + $0x3d0] sm:$0xf]
    %v9859 = vld [vmem:[%s9613 + $0x3d4] sm:$0xf]
    %v9860 = vld [vmem:[%s9613 + $0x3d8] sm:$0xf]
    %v9861 = vld [vmem:[%s9613 + $0x3dc] sm:$0xf]
    %v9862 = vld [vmem:[%s9613 + $0x3e0] sm:$0xf]
    %v9863 = vld [vmem:[%s9613 + $0x3e4] sm:$0xf]
    %v9864 = vld [vmem:[%s9613 + $0x3e8] sm:$0xf]
    %v9865 = vld [vmem:[%s9613 + $0x3ec] sm:$0xf]
    %v9866 = vld [vmem:[%s9613 + $0x3f0] sm:$0xf]
    %v9867 = vld [vmem:[%s9613 + $0x3f4] sm:$0xf]
    %v9868 = vld [vmem:[%s9613 + $0x3f8] sm:$0xf]
    %v9869 = vld [vmem:[%s9613 + $0x3fc] sm:$0xf]
    %s9870 = scalar_lea.vmem %s12, 2
    %v9871 = vld [vmem:[%s9870] sm:$0x1]
    %v9873 = vlaneseq
    %v9874 = vshrl.u32 %v9873, 7
    %v9875 = vsub.s32 0, %v9874
    %v9876 = vrot.slane %v9871, %v9875
    %v10134 = vunpack.c.l.b16 %v9614
    %v10135 = vunpack.c.l.b16 %v9615
    %v10136 = vunpack.c.l.b16 %v9616
    %v10137 = vunpack.c.l.b16 %v9617
    %v10138 = vunpack.c.l.b16 %v9618
    %v10139 = vunpack.c.l.b16 %v9619
    %v10140 = vunpack.c.l.b16 %v9620
    %v10141 = vunpack.c.l.b16 %v9621
    %v10142 = vunpack.c.l.b16 %v9622
    %v10143 = vunpack.c.l.b16 %v9623
    %v10144 = vunpack.c.l.b16 %v9624
    %v10145 = vunpack.c.l.b16 %v9625
    %v10146 = vunpack.c.l.b16 %v9626
    %v10147 = vunpack.c.l.b16 %v9627
    %v10148 = vunpack.c.l.b16 %v9628
    %v10149 = vunpack.c.l.b16 %v9629
    %v10150 = vunpack.c.l.b16 %v9630
    %v10151 = vunpack.c.l.b16 %v9631
    %v10152 = vunpack.c.l.b16 %v9632
    %v10153 = vunpack.c.l.b16 %v9633
    %v10154 = vunpack.c.l.b16 %v9634
    %v10155 = vunpack.c.l.b16 %v9635
    %v10156 = vunpack.c.l.b16 %v9636
    %v10157 = vunpack.c.l.b16 %v9637
    %v10158 = vunpack.c.l.b16 %v9638
    %v10159 = vunpack.c.l.b16 %v9639
    %v10160 = vunpack.c.l.b16 %v9640
    %v10161 = vunpack.c.l.b16 %v9641
    %v10162 = vunpack.c.l.b16 %v9642
    %v10163 = vunpack.c.l.b16 %v9643
    %v10164 = vunpack.c.l.b16 %v9644
    %v10165 = vunpack.c.l.b16 %v9645
    %v10166 = vunpack.c.l.b16 %v9646
    %v10167 = vunpack.c.l.b16 %v9647
    %v10168 = vunpack.c.l.b16 %v9648
    %v10169 = vunpack.c.l.b16 %v9649
    %v10170 = vunpack.c.l.b16 %v9650
    %v10171 = vunpack.c.l.b16 %v9651
    %v10172 = vunpack.c.l.b16 %v9652
    %v10173 = vunpack.c.l.b16 %v9653
    %v10174 = vunpack.c.l.b16 %v9654
    %v10175 = vunpack.c.l.b16 %v9655
    %v10176 = vunpack.c.l.b16 %v9656
    %v10177 = vunpack.c.l.b16 %v9657
    %v10178 = vunpack.c.l.b16 %v9658
    %v10179 = vunpack.c.l.b16 %v9659
    %v10180 = vunpack.c.l.b16 %v9660
    %v10181 = vunpack.c.l.b16 %v9661
    %v10182 = vunpack.c.l.b16 %v9662
    %v10183 = vunpack.c.l.b16 %v9663
    %v10184 = vunpack.c.l.b16 %v9664
    %v10185 = vunpack.c.l.b16 %v9665
    %v10186 = vunpack.c.l.b16 %v9666
    %v10187 = vunpack.c.l.b16 %v9667
    %v10188 = vunpack.c.l.b16 %v9668
    %v10189 = vunpack.c.l.b16 %v9669
    %v10190 = vunpack.c.l.b16 %v9670
    %v10191 = vunpack.c.l.b16 %v9671
    %v10192 = vunpack.c.l.b16 %v9672
    %v10193 = vunpack.c.l.b16 %v9673
    %v10194 = vunpack.c.l.b16 %v9674
    %v10195 = vunpack.c.l.b16 %v9675
    %v10196 = vunpack.c.l.b16 %v9676
    %v10197 = vunpack.c.l.b16 %v9677
    %v10198 = vunpack.c.l.b16 %v9678
    %v10199 = vunpack.c.l.b16 %v9679
    %v10200 = vunpack.c.l.b16 %v9680
    %v10201 = vunpack.c.l.b16 %v9681
    %v10202 = vunpack.c.l.b16 %v9682
    %v10203 = vunpack.c.l.b16 %v9683
    %v10204 = vunpack.c.l.b16 %v9684
    %v10205 = vunpack.c.l.b16 %v9685
    %v10206 = vunpack.c.l.b16 %v9686
    %v10207 = vunpack.c.l.b16 %v9687
    %v10208 = vunpack.c.l.b16 %v9688
    %v10209 = vunpack.c.l.b16 %v9689
    %v10210 = vunpack.c.l.b16 %v9690
    %v10211 = vunpack.c.l.b16 %v9691
    %v10212 = vunpack.c.l.b16 %v9692
    %v10213 = vunpack.c.l.b16 %v9693
    %v10214 = vunpack.c.l.b16 %v9694
    %v10215 = vunpack.c.l.b16 %v9695
    %v10216 = vunpack.c.l.b16 %v9696
    %v10217 = vunpack.c.l.b16 %v9697
    %v10218 = vunpack.c.l.b16 %v9698
    %v10219 = vunpack.c.l.b16 %v9699
    %v10220 = vunpack.c.l.b16 %v9700
    %v10221 = vunpack.c.l.b16 %v9701
    %v10222 = vunpack.c.l.b16 %v9702
    %v10223 = vunpack.c.l.b16 %v9703
    %v10224 = vunpack.c.l.b16 %v9704
    %v10225 = vunpack.c.l.b16 %v9705
    %v10226 = vunpack.c.l.b16 %v9706
    %v10227 = vunpack.c.l.b16 %v9707
    %v10228 = vunpack.c.l.b16 %v9708
    %v10229 = vunpack.c.l.b16 %v9709
    %v10230 = vunpack.c.l.b16 %v9710
    %v10231 = vunpack.c.l.b16 %v9711
    %v10232 = vunpack.c.l.b16 %v9712
    %v10233 = vunpack.c.l.b16 %v9713
    %v10234 = vunpack.c.l.b16 %v9714
    %v10235 = vunpack.c.l.b16 %v9715
    %v10236 = vunpack.c.l.b16 %v9716
    %v10237 = vunpack.c.l.b16 %v9717
    %v10238 = vunpack.c.l.b16 %v9718
    %v10239 = vunpack.c.l.b16 %v9719
    %v10240 = vunpack.c.l.b16 %v9720
    %v10241 = vunpack.c.l.b16 %v9721
    %v10242 = vunpack.c.l.b16 %v9722
    %v10243 = vunpack.c.l.b16 %v9723
    %v10244 = vunpack.c.l.b16 %v9724
    %v10245 = vunpack.c.l.b16 %v9725
    %v10246 = vunpack.c.l.b16 %v9726
    %v10247 = vunpack.c.l.b16 %v9727
    %v10248 = vunpack.c.l.b16 %v9728
    %v10249 = vunpack.c.l.b16 %v9729
    %v10250 = vunpack.c.l.b16 %v9730
    %v10251 = vunpack.c.l.b16 %v9731
    %v10252 = vunpack.c.l.b16 %v9732
    %v10253 = vunpack.c.l.b16 %v9733
    %v10254 = vunpack.c.l.b16 %v9734
    %v10255 = vunpack.c.l.b16 %v9735
    %v10256 = vunpack.c.l.b16 %v9736
    %v10257 = vunpack.c.l.b16 %v9737
    %v10258 = vunpack.c.l.b16 %v9738
    %v10259 = vunpack.c.l.b16 %v9739
    %v10260 = vunpack.c.l.b16 %v9740
    %v10261 = vunpack.c.l.b16 %v9741
    %v10262 = vunpack.c.l.b16 %v9742
    %v10263 = vunpack.c.l.b16 %v9743
    %v10264 = vunpack.c.l.b16 %v9744
    %v10265 = vunpack.c.l.b16 %v9745
    %v10266 = vunpack.c.l.b16 %v9746
    %v10267 = vunpack.c.l.b16 %v9747
    %v10268 = vunpack.c.l.b16 %v9748
    %v10269 = vunpack.c.l.b16 %v9749
    %v10270 = vunpack.c.l.b16 %v9750
    %v10271 = vunpack.c.l.b16 %v9751
    %v10272 = vunpack.c.l.b16 %v9752
    %v10273 = vunpack.c.l.b16 %v9753
    %v10274 = vunpack.c.l.b16 %v9754
    %v10275 = vunpack.c.l.b16 %v9755
    %v10276 = vunpack.c.l.b16 %v9756
    %v10277 = vunpack.c.l.b16 %v9757
    %v10278 = vunpack.c.l.b16 %v9758
    %v10279 = vunpack.c.l.b16 %v9759
    %v10280 = vunpack.c.l.b16 %v9760
    %v10281 = vunpack.c.l.b16 %v9761
    %v10282 = vunpack.c.l.b16 %v9762
    %v10283 = vunpack.c.l.b16 %v9763
    %v10284 = vunpack.c.l.b16 %v9764
    %v10285 = vunpack.c.l.b16 %v9765
    %v10286 = vunpack.c.l.b16 %v9766
    %v10287 = vunpack.c.l.b16 %v9767
    %v10288 = vunpack.c.l.b16 %v9768
    %v10289 = vunpack.c.l.b16 %v9769
    %v10290 = vunpack.c.l.b16 %v9770
    %v10291 = vunpack.c.l.b16 %v9771
    %v10292 = vunpack.c.l.b16 %v9772
    %v10293 = vunpack.c.l.b16 %v9773
    %v10294 = vunpack.c.l.b16 %v9774
    %v10295 = vunpack.c.l.b16 %v9775
    %v10296 = vunpack.c.l.b16 %v9776
    %v10297 = vunpack.c.l.b16 %v9777
    %v10298 = vunpack.c.l.b16 %v9778
    %v10299 = vunpack.c.l.b16 %v9779
    %v10300 = vunpack.c.l.b16 %v9780
    %v10301 = vunpack.c.l.b16 %v9781
    %v10302 = vunpack.c.l.b16 %v9782
    %v10303 = vunpack.c.l.b16 %v9783
    %v10304 = vunpack.c.l.b16 %v9784
    %v10305 = vunpack.c.l.b16 %v9785
    %v10306 = vunpack.c.l.b16 %v9786
    %v10307 = vunpack.c.l.b16 %v9787
    %v10308 = vunpack.c.l.b16 %v9788
    %v10309 = vunpack.c.l.b16 %v9789
    %v10310 = vunpack.c.l.b16 %v9790
    %v10311 = vunpack.c.l.b16 %v9791
    %v10312 = vunpack.c.l.b16 %v9792
    %v10313 = vunpack.c.l.b16 %v9793
    %v10314 = vunpack.c.l.b16 %v9794
    %v10315 = vunpack.c.l.b16 %v9795
    %v10316 = vunpack.c.l.b16 %v9796
    %v10317 = vunpack.c.l.b16 %v9797
    %v10318 = vunpack.c.l.b16 %v9798
    %v10319 = vunpack.c.l.b16 %v9799
    %v10320 = vunpack.c.l.b16 %v9800
    %v10321 = vunpack.c.l.b16 %v9801
    %v10322 = vunpack.c.l.b16 %v9802
    %v10323 = vunpack.c.l.b16 %v9803
    %v10324 = vunpack.c.l.b16 %v9804
    %v10325 = vunpack.c.l.b16 %v9805
    %v10326 = vunpack.c.l.b16 %v9806
    %v10327 = vunpack.c.l.b16 %v9807
    %v10328 = vunpack.c.l.b16 %v9808
    %v10329 = vunpack.c.l.b16 %v9809
    %v10330 = vunpack.c.l.b16 %v9810
    %v10331 = vunpack.c.l.b16 %v9811
    %v10332 = vunpack.c.l.b16 %v9812
    %v10333 = vunpack.c.l.b16 %v9813
    %v10334 = vunpack.c.l.b16 %v9814
    %v10335 = vunpack.c.l.b16 %v9815
    %v10336 = vunpack.c.l.b16 %v9816
    %v10337 = vunpack.c.l.b16 %v9817
    %v10338 = vunpack.c.l.b16 %v9818
    %v10339 = vunpack.c.l.b16 %v9819
    %v10340 = vunpack.c.l.b16 %v9820
    %v10341 = vunpack.c.l.b16 %v9821
    %v10342 = vunpack.c.l.b16 %v9822
    %v10343 = vunpack.c.l.b16 %v9823
    %v10344 = vunpack.c.l.b16 %v9824
    %v10345 = vunpack.c.l.b16 %v9825
    %v10346 = vunpack.c.l.b16 %v9826
    %v10347 = vunpack.c.l.b16 %v9827
    %v10348 = vunpack.c.l.b16 %v9828
    %v10349 = vunpack.c.l.b16 %v9829
    %v10350 = vunpack.c.l.b16 %v9830
    %v10351 = vunpack.c.l.b16 %v9831
    %v10352 = vunpack.c.l.b16 %v9832
    %v10353 = vunpack.c.l.b16 %v9833
    %v10354 = vunpack.c.l.b16 %v9834
    %v10355 = vunpack.c.l.b16 %v9835
    %v10356 = vunpack.c.l.b16 %v9836
    %v10357 = vunpack.c.l.b16 %v9837
    %v10358 = vunpack.c.l.b16 %v9838
    %v10359 = vunpack.c.l.b16 %v9839
    %v10360 = vunpack.c.l.b16 %v9840
    %v10361 = vunpack.c.l.b16 %v9841
    %v10362 = vunpack.c.l.b16 %v9842
    %v10363 = vunpack.c.l.b16 %v9843
    %v10364 = vunpack.c.l.b16 %v9844
    %v10365 = vunpack.c.l.b16 %v9845
    %v10366 = vunpack.c.l.b16 %v9846
    %v10367 = vunpack.c.l.b16 %v9847
    %v10368 = vunpack.c.l.b16 %v9848
    %v10369 = vunpack.c.l.b16 %v9849
    %v10370 = vunpack.c.l.b16 %v9850
    %v10371 = vunpack.c.l.b16 %v9851
    %v10372 = vunpack.c.l.b16 %v9852
    %v10373 = vunpack.c.l.b16 %v9853
    %v10374 = vunpack.c.l.b16 %v9854
    %v10375 = vunpack.c.l.b16 %v9855
    %v10376 = vunpack.c.l.b16 %v9856
    %v10377 = vunpack.c.l.b16 %v9857
    %v10378 = vunpack.c.l.b16 %v9858
    %v10379 = vunpack.c.l.b16 %v9859
    %v10380 = vunpack.c.l.b16 %v9860
    %v10381 = vunpack.c.l.b16 %v9861
    %v10382 = vunpack.c.l.b16 %v9862
    %v10383 = vunpack.c.l.b16 %v9863
    %v10384 = vunpack.c.l.b16 %v9864
    %v10385 = vunpack.c.l.b16 %v9865
    %v10386 = vunpack.c.l.b16 %v9866
    %v10387 = vunpack.c.l.b16 %v9867
    %v10388 = vunpack.c.l.b16 %v9868
    %v10389 = vunpack.c.l.b16 %v9869
    %v10390 = vpack.c.b16 %v10135, %v10134
    %v10391 = vpack.c.b16 %v10137, %v10136
    %v10392 = vpack.c.b16 %v10139, %v10138
    %v10393 = vpack.c.b16 %v10141, %v10140
    %v10394 = vpack.c.b16 %v10143, %v10142
    %v10395 = vpack.c.b16 %v10145, %v10144
    %v10396 = vpack.c.b16 %v10147, %v10146
    %v10397 = vpack.c.b16 %v10149, %v10148
    %v10398 = vpack.c.b16 %v10151, %v10150
    %v10399 = vpack.c.b16 %v10153, %v10152
    %v10400 = vpack.c.b16 %v10155, %v10154
    %v10401 = vpack.c.b16 %v10157, %v10156
    %v10402 = vpack.c.b16 %v10159, %v10158
    %v10403 = vpack.c.b16 %v10161, %v10160
    %v10404 = vpack.c.b16 %v10163, %v10162
    %v10405 = vpack.c.b16 %v10165, %v10164
    %v10406 = vpack.c.b16 %v10167, %v10166
    %v10407 = vpack.c.b16 %v10169, %v10168
    %v10408 = vpack.c.b16 %v10171, %v10170
    %v10409 = vpack.c.b16 %v10173, %v10172
    %v10410 = vpack.c.b16 %v10175, %v10174
    %v10411 = vpack.c.b16 %v10177, %v10176
    %v10412 = vpack.c.b16 %v10179, %v10178
    %v10413 = vpack.c.b16 %v10181, %v10180
    %v10414 = vpack.c.b16 %v10183, %v10182
    %v10415 = vpack.c.b16 %v10185, %v10184
    %v10416 = vpack.c.b16 %v10187, %v10186
    %v10417 = vpack.c.b16 %v10189, %v10188
    %v10418 = vpack.c.b16 %v10191, %v10190
    %v10419 = vpack.c.b16 %v10193, %v10192
    %v10420 = vpack.c.b16 %v10195, %v10194
    %v10421 = vpack.c.b16 %v10197, %v10196
    %v10422 = vpack.c.b16 %v10199, %v10198
    %v10423 = vpack.c.b16 %v10201, %v10200
    %v10424 = vpack.c.b16 %v10203, %v10202
    %v10425 = vpack.c.b16 %v10205, %v10204
    %v10426 = vpack.c.b16 %v10207, %v10206
    %v10427 = vpack.c.b16 %v10209, %v10208
    %v10428 = vpack.c.b16 %v10211, %v10210
    %v10429 = vpack.c.b16 %v10213, %v10212
    %v10430 = vpack.c.b16 %v10215, %v10214
    %v10431 = vpack.c.b16 %v10217, %v10216
    %v10432 = vpack.c.b16 %v10219, %v10218
    %v10433 = vpack.c.b16 %v10221, %v10220
    %v10434 = vpack.c.b16 %v10223, %v10222
    %v10435 = vpack.c.b16 %v10225, %v10224
    %v10436 = vpack.c.b16 %v10227, %v10226
    %v10437 = vpack.c.b16 %v10229, %v10228
    %v10438 = vpack.c.b16 %v10231, %v10230
    %v10439 = vpack.c.b16 %v10233, %v10232
    %v10440 = vpack.c.b16 %v10235, %v10234
    %v10441 = vpack.c.b16 %v10237, %v10236
    %v10442 = vpack.c.b16 %v10239, %v10238
    %v10443 = vpack.c.b16 %v10241, %v10240
    %v10444 = vpack.c.b16 %v10243, %v10242
    %v10445 = vpack.c.b16 %v10245, %v10244
    %v10446 = vpack.c.b16 %v10247, %v10246
    %v10447 = vpack.c.b16 %v10249, %v10248
    %v10448 = vpack.c.b16 %v10251, %v10250
    %v10449 = vpack.c.b16 %v10253, %v10252
    %v10450 = vpack.c.b16 %v10255, %v10254
    %v10451 = vpack.c.b16 %v10257, %v10256
    %v10452 = vpack.c.b16 %v10259, %v10258
    %v10453 = vpack.c.b16 %v10261, %v10260
    %v10454 = vpack.c.b16 %v10263, %v10262
    %v10455 = vpack.c.b16 %v10265, %v10264
    %v10456 = vpack.c.b16 %v10267, %v10266
    %v10457 = vpack.c.b16 %v10269, %v10268
    %v10458 = vpack.c.b16 %v10271, %v10270
    %v10459 = vpack.c.b16 %v10273, %v10272
    %v10460 = vpack.c.b16 %v10275, %v10274
    %v10461 = vpack.c.b16 %v10277, %v10276
    %v10462 = vpack.c.b16 %v10279, %v10278
    %v10463 = vpack.c.b16 %v10281, %v10280
    %v10464 = vpack.c.b16 %v10283, %v10282
    %v10465 = vpack.c.b16 %v10285, %v10284
    %v10466 = vpack.c.b16 %v10287, %v10286
    %v10467 = vpack.c.b16 %v10289, %v10288
    %v10468 = vpack.c.b16 %v10291, %v10290
    %v10469 = vpack.c.b16 %v10293, %v10292
    %v10470 = vpack.c.b16 %v10295, %v10294
    %v10471 = vpack.c.b16 %v10297, %v10296
    %v10472 = vpack.c.b16 %v10299, %v10298
    %v10473 = vpack.c.b16 %v10301, %v10300
    %v10474 = vpack.c.b16 %v10303, %v10302
    %v10475 = vpack.c.b16 %v10305, %v10304
    %v10476 = vpack.c.b16 %v10307, %v10306
    %v10477 = vpack.c.b16 %v10309, %v10308
    %v10478 = vpack.c.b16 %v10311, %v10310
    %v10479 = vpack.c.b16 %v10313, %v10312
    %v10480 = vpack.c.b16 %v10315, %v10314
    %v10481 = vpack.c.b16 %v10317, %v10316
    %v10482 = vpack.c.b16 %v10319, %v10318
    %v10483 = vpack.c.b16 %v10321, %v10320
    %v10484 = vpack.c.b16 %v10323, %v10322
    %v10485 = vpack.c.b16 %v10325, %v10324
    %v10486 = vpack.c.b16 %v10327, %v10326
    %v10487 = vpack.c.b16 %v10329, %v10328
    %v10488 = vpack.c.b16 %v10331, %v10330
    %v10489 = vpack.c.b16 %v10333, %v10332
    %v10490 = vpack.c.b16 %v10335, %v10334
    %v10491 = vpack.c.b16 %v10337, %v10336
    %v10492 = vpack.c.b16 %v10339, %v10338
    %v10493 = vpack.c.b16 %v10341, %v10340
    %v10494 = vpack.c.b16 %v10343, %v10342
    %v10495 = vpack.c.b16 %v10345, %v10344
    %v10496 = vpack.c.b16 %v10347, %v10346
    %v10497 = vpack.c.b16 %v10349, %v10348
    %v10498 = vpack.c.b16 %v10351, %v10350
    %v10499 = vpack.c.b16 %v10353, %v10352
    %v10500 = vpack.c.b16 %v10355, %v10354
    %v10501 = vpack.c.b16 %v10357, %v10356
    %v10502 = vpack.c.b16 %v10359, %v10358
    %v10503 = vpack.c.b16 %v10361, %v10360
    %v10504 = vpack.c.b16 %v10363, %v10362
    %v10505 = vpack.c.b16 %v10365, %v10364
    %v10506 = vpack.c.b16 %v10367, %v10366
    %v10507 = vpack.c.b16 %v10369, %v10368
    %v10508 = vpack.c.b16 %v10371, %v10370
    %v10509 = vpack.c.b16 %v10373, %v10372
    %v10510 = vpack.c.b16 %v10375, %v10374
    %v10511 = vpack.c.b16 %v10377, %v10376
    %v10512 = vpack.c.b16 %v10379, %v10378
    %v10513 = vpack.c.b16 %v10381, %v10380
    %v10514 = vpack.c.b16 %v10383, %v10382
    %v10515 = vpack.c.b16 %v10385, %v10384
    %v10516 = vpack.c.b16 %v10387, %v10386
    %v10517 = vpack.c.b16 %v10389, %v10388
    %10646 = vmatprep.subr.bf16.mxu0 0
    %10647 = vmatpush1.bf16.msra.mxu0 %v10390
    %10648 = vmatprep.subr.bf16.mxu0 0
    %10649 = vmatpush1.bf16.msra.mxu0 %v10391
    %10650 = vmatprep.subr.bf16.mxu0 0
    %10651 = vmatpush1.bf16.msra.mxu0 %v10392
    %10652 = vmatprep.subr.bf16.mxu0 0
    %10653 = vmatpush1.bf16.msra.mxu0 %v10393
    %10654 = vmatprep.subr.bf16.mxu0 0
    %10655 = vmatpush1.bf16.msra.mxu0 %v10394
    %10656 = vmatprep.subr.bf16.mxu0 0
    %10657 = vmatpush1.bf16.msra.mxu0 %v10395
    %10658 = vmatprep.subr.bf16.mxu0 0
    %10659 = vmatpush1.bf16.msra.mxu0 %v10396
    %10660 = vmatprep.subr.bf16.mxu0 0
    %10661 = vmatpush1.bf16.msra.mxu0 %v10397
    %10662 = vmatprep.subr.bf16.mxu0 0
    %10663 = vmatpush1.bf16.msra.mxu0 %v10398
    %10664 = vmatprep.subr.bf16.mxu0 0
    %10665 = vmatpush1.bf16.msra.mxu0 %v10399
    %10666 = vmatprep.subr.bf16.mxu0 0
    %10667 = vmatpush1.bf16.msra.mxu0 %v10400
    %10668 = vmatprep.subr.bf16.mxu0 0
    %10669 = vmatpush1.bf16.msra.mxu0 %v10401
    %10670 = vmatprep.subr.bf16.mxu0 0
    %10671 = vmatpush1.bf16.msra.mxu0 %v10402
    %10672 = vmatprep.subr.bf16.mxu0 0
    %10673 = vmatpush1.bf16.msra.mxu0 %v10403
    %10674 = vmatprep.subr.bf16.mxu0 0
    %10675 = vmatpush1.bf16.msra.mxu0 %v10404
    %10676 = vmatprep.subr.bf16.mxu0 0
    %10677 = vmatpush1.bf16.msra.mxu0 %v10405
    %10678 = vmatprep.mubr.bf16.mxu0 %v9598
    %10679 = vmatmul.mubr.bf16.gmra.mrb[0].mxu0 %v9597
    %v10680 = vpop.f32.mrb[0].mxu0
    %v10681 = vadd.f32 %v9876, %v10680
    %v10682 = vpop.f32.mrb[0].mxu0
    %v10683 = vpop.f32.mrb[0].mxu0
    %v10684 = vadd.f32 %v9876, %v10683
    %v10685 = vpop.f32.mrb[0].mxu0
    %10686 = vdwg.mxu0
    %10687 = vmatprep.subr.bf16.mxu0 0
    %10688 = vmatpush1.bf16.msra.mxu0 %v10406
    %10689 = vmatprep.subr.bf16.mxu0 0
    %10690 = vmatpush1.bf16.msra.mxu0 %v10407
    %10691 = vmatprep.subr.bf16.mxu0 0
    %10692 = vmatpush1.bf16.msra.mxu0 %v10408
    %10693 = vmatprep.subr.bf16.mxu0 0
    %10694 = vmatpush1.bf16.msra.mxu0 %v10409
    %10695 = vmatprep.subr.bf16.mxu0 0
    %10696 = vmatpush1.bf16.msra.mxu0 %v10410
    %10697 = vmatprep.subr.bf16.mxu0 0
    %10698 = vmatpush1.bf16.msra.mxu0 %v10411
    %10699 = vmatprep.subr.bf16.mxu0 0
    %10700 = vmatpush1.bf16.msra.mxu0 %v10412
    %10701 = vmatprep.subr.bf16.mxu0 0
    %10702 = vmatpush1.bf16.msra.mxu0 %v10413
    %10703 = vmatprep.subr.bf16.mxu0 0
    %10704 = vmatpush1.bf16.msra.mxu0 %v10414
    %10705 = vmatprep.subr.bf16.mxu0 0
    %10706 = vmatpush1.bf16.msra.mxu0 %v10415
    %10707 = vmatprep.subr.bf16.mxu0 0
    %10708 = vmatpush1.bf16.msra.mxu0 %v10416
    %10709 = vmatprep.subr.bf16.mxu0 0
    %10710 = vmatpush1.bf16.msra.mxu0 %v10417
    %10711 = vmatprep.subr.bf16.mxu0 0
    %10712 = vmatpush1.bf16.msra.mxu0 %v10418
    %10713 = vmatprep.subr.bf16.mxu0 0
    %10714 = vmatpush1.bf16.msra.mxu0 %v10419
    %10715 = vmatprep.subr.bf16.mxu0 0
    %10716 = vmatpush1.bf16.msra.mxu0 %v10420
    %10717 = vmatprep.subr.bf16.mxu0 0
    %10718 = vmatpush1.bf16.msra.mxu0 %v10421
    %10719 = vmatprep.mubr.bf16.mxu0 %v9600
    %10720 = vmatmul.mubr.bf16.gmra.mrb[0].mxu0 %v9599
    %v10721 = vpop.f32.mrb[0].mxu0
    %v10722 = vadd.f32 %v10681, %v10721
    %v10723 = vpop.f32.mrb[0].mxu0
    %v10724 = vpop.f32.mrb[0].mxu0
    %v10725 = vadd.f32 %v10684, %v10724
    %v10726 = vpop.f32.mrb[0].mxu0
    %10727 = vdwg.mxu0
    %10728 = vmatprep.subr.bf16.mxu0 0
    %10729 = vmatpush1.bf16.msra.mxu0 %v10422
    %10730 = vmatprep.subr.bf16.mxu0 0
    %10731 = vmatpush1.bf16.msra.mxu0 %v10423
    %10732 = vmatprep.subr.bf16.mxu0 0
    %10733 = vmatpush1.bf16.msra.mxu0 %v10424
    %10734 = vmatprep.subr.bf16.mxu0 0
    %10735 = vmatpush1.bf16.msra.mxu0 %v10425
    %10736 = vmatprep.subr.bf16.mxu0 0
    %10737 = vmatpush1.bf16.msra.mxu0 %v10426
    %10738 = vmatprep.subr.bf16.mxu0 0
    %10739 = vmatpush1.bf16.msra.mxu0 %v10427
    %10740 = vmatprep.subr.bf16.mxu0 0
    %10741 = vmatpush1.bf16.msra.mxu0 %v10428
    %10742 = vmatprep.subr.bf16.mxu0 0
    %10743 = vmatpush1.bf16.msra.mxu0 %v10429
    %10744 = vmatprep.subr.bf16.mxu0 0
    %10745 = vmatpush1.bf16.msra.mxu0 %v10430
    %10746 = vmatprep.subr.bf16.mxu0 0
    %10747 = vmatpush1.bf16.msra.mxu0 %v10431
    %10748 = vmatprep.subr.bf16.mxu0 0
    %10749 = vmatpush1.bf16.msra.mxu0 %v10432
    %10750 = vmatprep.subr.bf16.mxu0 0
    %10751 = vmatpush1.bf16.msra.mxu0 %v10433
    %10752 = vmatprep.subr.bf16.mxu0 0
    %10753 = vmatpush1.bf16.msra.mxu0 %v10434
    %10754 = vmatprep.subr.bf16.mxu0 0
    %10755 = vmatpush1.bf16.msra.mxu0 %v10435
    %10756 = vmatprep.subr.bf16.mxu0 0
    %10757 = vmatpush1.bf16.msra.mxu0 %v10436
    %10758 = vmatprep.subr.bf16.mxu0 0
    %10759 = vmatpush1.bf16.msra.mxu0 %v10437
    %10760 = vmatprep.mubr.bf16.mxu0 %v9602
    %10761 = vmatmul.mubr.bf16.gmra.mrb[0].mxu0 %v9601
    %v10762 = vpop.f32.mrb[0].mxu0
    %v10763 = vadd.f32 %v10722, %v10762
    %v10764 = vpop.f32.mrb[0].mxu0
    %v10765 = vpop.f32.mrb[0].mxu0
    %v10766 = vadd.f32 %v10725, %v10765
    %v10767 = vpop.f32.mrb[0].mxu0
    %10768 = vdwg.mxu0
    %10769 = vmatprep.subr.bf16.mxu0 0
    %10770 = vmatpush1.bf16.msra.mxu0 %v10438
    %10771 = vmatprep.subr.bf16.mxu0 0
    %10772 = vmatpush1.bf16.msra.mxu0 %v10439
    %10773 = vmatprep.subr.bf16.mxu0 0
    %10774 = vmatpush1.bf16.msra.mxu0 %v10440
    %10775 = vmatprep.subr.bf16.mxu0 0
    %10776 = vmatpush1.bf16.msra.mxu0 %v10441
    %10777 = vmatprep.subr.bf16.mxu0 0
    %10778 = vmatpush1.bf16.msra.mxu0 %v10442
    %10779 = vmatprep.subr.bf16.mxu0 0
    %10780 = vmatpush1.bf16.msra.mxu0 %v10443
    %10781 = vmatprep.subr.bf16.mxu0 0
    %10782 = vmatpush1.bf16.msra.mxu0 %v10444
    %10783 = vmatprep.subr.bf16.mxu0 0
    %10784 = vmatpush1.bf16.msra.mxu0 %v10445
    %10785 = vmatprep.subr.bf16.mxu0 0
    %10786 = vmatpush1.bf16.msra.mxu0 %v10446
    %10787 = vmatprep.subr.bf16.mxu0 0
    %10788 = vmatpush1.bf16.msra.mxu0 %v10447
    %10789 = vmatprep.subr.bf16.mxu0 0
    %10790 = vmatpush1.bf16.msra.mxu0 %v10448
    %10791 = vmatprep.subr.bf16.mxu0 0
    %10792 = vmatpush1.bf16.msra.mxu0 %v10449
    %10793 = vmatprep.subr.bf16.mxu0 0
    %10794 = vmatpush1.bf16.msra.mxu0 %v10450
    %10795 = vmatprep.subr.bf16.mxu0 0
    %10796 = vmatpush1.bf16.msra.mxu0 %v10451
    %10797 = vmatprep.subr.bf16.mxu0 0
    %10798 = vmatpush1.bf16.msra.mxu0 %v10452
    %10799 = vmatprep.subr.bf16.mxu0 0
    %10800 = vmatpush1.bf16.msra.mxu0 %v10453
    %10801 = vmatprep.mubr.bf16.mxu0 %v9604
    %10802 = vmatmul.mubr.bf16.gmra.mrb[0].mxu0 %v9603
    %v10803 = vpop.f32.mrb[0].mxu0
    %v10804 = vadd.f32 %v10763, %v10803
    %v10805 = vpop.f32.mrb[0].mxu0
    %v10806 = vpop.f32.mrb[0].mxu0
    %v10807 = vadd.f32 %v10766, %v10806
    %v10808 = vpop.f32.mrb[0].mxu0
    %10809 = vdwg.mxu0
    %10810 = vmatprep.subr.bf16.mxu0 0
    %10811 = vmatpush1.bf16.msra.mxu0 %v10454
    %10812 = vmatprep.subr.bf16.mxu0 0
    %10813 = vmatpush1.bf16.msra.mxu0 %v10455
    %10814 = vmatprep.subr.bf16.mxu0 0
    %10815 = vmatpush1.bf16.msra.mxu0 %v10456
    %10816 = vmatprep.subr.bf16.mxu0 0
    %10817 = vmatpush1.bf16.msra.mxu0 %v10457
    %10818 = vmatprep.subr.bf16.mxu0 0
    %10819 = vmatpush1.bf16.msra.mxu0 %v10458
    %10820 = vmatprep.subr.bf16.mxu0 0
    %10821 = vmatpush1.bf16.msra.mxu0 %v10459
    %10822 = vmatprep.subr.bf16.mxu0 0
    %10823 = vmatpush1.bf16.msra.mxu0 %v10460
    %10824 = vmatprep.subr.bf16.mxu0 0
    %10825 = vmatpush1.bf16.msra.mxu0 %v10461
    %10826 = vmatprep.subr.bf16.mxu0 0
    %10827 = vmatpush1.bf16.msra.mxu0 %v10462
    %10828 = vmatprep.subr.bf16.mxu0 0
    %10829 = vmatpush1.bf16.msra.mxu0 %v10463
    %10830 = vmatprep.subr.bf16.mxu0 0
    %10831 = vmatpush1.bf16.msra.mxu0 %v10464
    %10832 = vmatprep.subr.bf16.mxu0 0
    %10833 = vmatpush1.bf16.msra.mxu0 %v10465
    %10834 = vmatprep.subr.bf16.mxu0 0
    %10835 = vmatpush1.bf16.msra.mxu0 %v10466
    %10836 = vmatprep.subr.bf16.mxu0 0
    %10837 = vmatpush1.bf16.msra.mxu0 %v10467
    %10838 = vmatprep.subr.bf16.mxu0 0
    %10839 = vmatpush1.bf16.msra.mxu0 %v10468
    %10840 = vmatprep.subr.bf16.mxu0 0
    %10841 = vmatpush1.bf16.msra.mxu0 %v10469
    %10842 = vmatprep.mubr.bf16.mxu0 %v9606
    %10843 = vmatmul.mubr.bf16.gmra.mrb[0].mxu0 %v9605
    %v10844 = vpop.f32.mrb[0].mxu0
    %v10845 = vadd.f32 %v10804, %v10844
    %v10846 = vpop.f32.mrb[0].mxu0
    %v10847 = vpop.f32.mrb[0].mxu0
    %v10848 = vadd.f32 %v10807, %v10847
    %v10849 = vpop.f32.mrb[0].mxu0
    %10850 = vdwg.mxu0
    %10851 = vmatprep.subr.bf16.mxu0 0
    %10852 = vmatpush1.bf16.msra.mxu0 %v10470
    %10853 = vmatprep.subr.bf16.mxu0 0
    %10854 = vmatpush1.bf16.msra.mxu0 %v10471
    %10855 = vmatprep.subr.bf16.mxu0 0
    %10856 = vmatpush1.bf16.msra.mxu0 %v10472
    %10857 = vmatprep.subr.bf16.mxu0 0
    %10858 = vmatpush1.bf16.msra.mxu0 %v10473
    %10859 = vmatprep.subr.bf16.mxu0 0
    %10860 = vmatpush1.bf16.msra.mxu0 %v10474
    %10861 = vmatprep.subr.bf16.mxu0 0
    %10862 = vmatpush1.bf16.msra.mxu0 %v10475
    %10863 = vmatprep.subr.bf16.mxu0 0
    %10864 = vmatpush1.bf16.msra.mxu0 %v10476
    %10865 = vmatprep.subr.bf16.mxu0 0
    %10866 = vmatpush1.bf16.msra.mxu0 %v10477
    %10867 = vmatprep.subr.bf16.mxu0 0
    %10868 = vmatpush1.bf16.msra.mxu0 %v10478
    %10869 = vmatprep.subr.bf16.mxu0 0
    %10870 = vmatpush1.bf16.msra.mxu0 %v10479
    %10871 = vmatprep.subr.bf16.mxu0 0
    %10872 = vmatpush1.bf16.msra.mxu0 %v10480
    %10873 = vmatprep.subr.bf16.mxu0 0
    %10874 = vmatpush1.bf16.msra.mxu0 %v10481
    %10875 = vmatprep.subr.bf16.mxu0 0
    %10876 = vmatpush1.bf16.msra.mxu0 %v10482
    %10877 = vmatprep.subr.bf16.mxu0 0
    %10878 = vmatpush1.bf16.msra.mxu0 %v10483
    %10879 = vmatprep.subr.bf16.mxu0 0
    %10880 = vmatpush1.bf16.msra.mxu0 %v10484
    %10881 = vmatprep.subr.bf16.mxu0 0
    %10882 = vmatpush1.bf16.msra.mxu0 %v10485
    %10883 = vmatprep.mubr.bf16.mxu0 %v9608
    %10884 = vmatmul.mubr.bf16.gmra.mrb[0].mxu0 %v9607
    %v10885 = vpop.f32.mrb[0].mxu0
    %v10886 = vadd.f32 %v10845, %v10885
    %v10887 = vpop.f32.mrb[0].mxu0
    %v10888 = vpop.f32.mrb[0].mxu0
    %v10889 = vadd.f32 %v10848, %v10888
    %v10890 = vpop.f32.mrb[0].mxu0
    %10891 = vdwg.mxu0
    %10892 = vmatprep.subr.bf16.mxu0 0
    %10893 = vmatpush1.bf16.msra.mxu0 %v10486
    %10894 = vmatprep.subr.bf16.mxu0 0
    %10895 = vmatpush1.bf16.msra.mxu0 %v10487
    %10896 = vmatprep.subr.bf16.mxu0 0
    %10897 = vmatpush1.bf16.msra.mxu0 %v10488
    %10898 = vmatprep.subr.bf16.mxu0 0
    %10899 = vmatpush1.bf16.msra.mxu0 %v10489
    %10900 = vmatprep.subr.bf16.mxu0 0
    %10901 = vmatpush1.bf16.msra.mxu0 %v10490
    %10902 = vmatprep.subr.bf16.mxu0 0
    %10903 = vmatpush1.bf16.msra.mxu0 %v10491
    %10904 = vmatprep.subr.bf16.mxu0 0
    %10905 = vmatpush1.bf16.msra.mxu0 %v10492
    %10906 = vmatprep.subr.bf16.mxu0 0
    %10907 = vmatpush1.bf16.msra.mxu0 %v10493
    %10908 = vmatprep.subr.bf16.mxu0 0
    %10909 = vmatpush1.bf16.msra.mxu0 %v10494
    %10910 = vmatprep.subr.bf16.mxu0 0
    %10911 = vmatpush1.bf16.msra.mxu0 %v10495
    %10912 = vmatprep.subr.bf16.mxu0 0
    %10913 = vmatpush1.bf16.msra.mxu0 %v10496
    %10914 = vmatprep.subr.bf16.mxu0 0
    %10915 = vmatpush1.bf16.msra.mxu0 %v10497
    %10916 = vmatprep.subr.bf16.mxu0 0
    %10917 = vmatpush1.bf16.msra.mxu0 %v10498
    %10918 = vmatprep.subr.bf16.mxu0 0
    %10919 = vmatpush1.bf16.msra.mxu0 %v10499
    %10920 = vmatprep.subr.bf16.mxu0 0
    %10921 = vmatpush1.bf16.msra.mxu0 %v10500
    %10922 = vmatprep.subr.bf16.mxu0 0
    %10923 = vmatpush1.bf16.msra.mxu0 %v10501
    %10924 = vmatprep.mubr.bf16.mxu0 %v9610
    %10925 = vmatmul.mubr.bf16.gmra.mrb[0].mxu0 %v9609
    %v10926 = vpop.f32.mrb[0].mxu0
    %v10927 = vadd.f32 %v10886, %v10926
    %v10928 = vpop.f32.mrb[0].mxu0
    %v10929 = vpop.f32.mrb[0].mxu0
    %v10930 = vadd.f32 %v10889, %v10929
    %v10931 = vpop.f32.mrb[0].mxu0
    %10932 = vdwg.mxu0
    %10933 = vmatprep.subr.bf16.mxu0 0
    %10934 = vmatpush1.bf16.msra.mxu0 %v10502
    %10935 = vmatprep.subr.bf16.mxu0 0
    %10936 = vmatpush1.bf16.msra.mxu0 %v10503
    %10937 = vmatprep.subr.bf16.mxu0 0
    %10938 = vmatpush1.bf16.msra.mxu0 %v10504
    %10939 = vmatprep.subr.bf16.mxu0 0
    %10940 = vmatpush1.bf16.msra.mxu0 %v10505
    %10941 = vmatprep.subr.bf16.mxu0 0
    %10942 = vmatpush1.bf16.msra.mxu0 %v10506
    %10943 = vmatprep.subr.bf16.mxu0 0
    %10944 = vmatpush1.bf16.msra.mxu0 %v10507
    %10945 = vmatprep.subr.bf16.mxu0 0
    %10946 = vmatpush1.bf16.msra.mxu0 %v10508
    %10947 = vmatprep.subr.bf16.mxu0 0
    %10948 = vmatpush1.bf16.msra.mxu0 %v10509
    %10949 = vmatprep.subr.bf16.mxu0 0
    %10950 = vmatpush1.bf16.msra.mxu0 %v10510
    %10951 = vmatprep.subr.bf16.mxu0 0
    %10952 = vmatpush1.bf16.msra.mxu0 %v10511
    %10953 = vmatprep.subr.bf16.mxu0 0
    %10954 = vmatpush1.bf16.msra.mxu0 %v10512
    %10955 = vmatprep.subr.bf16.mxu0 0
    %10956 = vmatpush1.bf16.msra.mxu0 %v10513
    %10957 = vmatprep.subr.bf16.mxu0 0
    %10958 = vmatpush1.bf16.msra.mxu0 %v10514
    %10959 = vmatprep.subr.bf16.mxu0 0
    %10960 = vmatpush1.bf16.msra.mxu0 %v10515
    %10961 = vmatprep.subr.bf16.mxu0 0
    %10962 = vmatpush1.bf16.msra.mxu0 %v10516
    %10963 = vmatprep.subr.bf16.mxu0 0
    %10964 = vmatpush1.bf16.msra.mxu0 %v10517
    %10965 = vmatprep.mubr.bf16.mxu0 %v9612
    %10966 = vmatmul.mubr.bf16.gmra.mrb[0].mxu0 %v9611
    %v10967 = vpop.f32.mrb[0].mxu0
    %v10968 = vadd.f32 %v10927, %v10967
    %v10969 = vpop.f32.mrb[0].mxu0
    %v10970 = vpop.f32.mrb[0].mxu0
    %v10971 = vadd.f32 %v10930, %v10970
    %v10972 = vpop.f32.mrb[0].mxu0
    %10973 = vdwg.mxu0
    %v10974 = vadd.f32 %v8937, %v10968
    %v10975 = vadd.f32 %v8938, %v10971
    %s10976 = scalar_lea.vmem %s13, 2
    %v10977 = vld [vmem:[%s10976] sm:$0x1]
    %s10978 = scalar_lea.vmem %s14, 2
    %v10979 = vld [vmem:[%s10978] sm:$0x1]
    %v10980 = vsel %vm172, %v10974, 0.0
    %10981 = vadd.xlane.f32.xlu0 %v10980
    %v10982 = vpop.xlane.xlu0 %10981
    %v10983 = vsel %vm172, %v10975, 0.0
    %10984 = vadd.xlane.f32.xlu0 %v10983
    %v10985 = vpop.xlane.xlu0 %10984
    %v10986 = vmul.f32 %v10982, %v1654
    %v10987 = vmul.f32 %v10985, %v1654
    %v10988 = vsub.f32 %v10974, %v10986
    %v10989 = vsub.f32 %v10975, %v10987
    %v10990 = vmul.f32 %v10988, %v10988
    %v10991 = vmul.f32 %v10989, %v10989
    %v10992 = vsel %vm172, %v10990, 0.0
    %10993 = vadd.xlane.f32.xlu0 %v10992
    %v10994 = vpop.xlane.xlu0 %10993
    %v10995 = vsel %vm172, %v10991, 0.0
    %10996 = vadd.xlane.f32.xlu0 %v10995
    %v10997 = vpop.xlane.xlu0 %10996
    %v10998 = vmul.f32 %v10994, %v1654
    %v10999 = vmul.f32 %v10997, %v1654
    %v11000 = vadd.f32 %v10998, 1e-05
    %v11001 = vadd.f32 %v10999, 1e-05
    %v11002 = vrsqrt.pop %v11000
    %v11003 = vrsqrt.pop %v11001
    %v11004 = vmul.f32 %v10988, %v11002
    %v11005 = vmul.f32 %v10989, %v11003
    %v11007 = vlaneseq
    %v11008 = vshrl.u32 %v11007, 7
    %v11009 = vsub.s32 0, %v11008
    %v11010 = vrot.slane %v10977, %v11009
    %v11012 = vmul.f32 %v11004, %v11010
    %v11013 = vmul.f32 %v11005, %v11010
    %v11015 = vlaneseq
    %v11016 = vshrl.u32 %v11015, 7
    %v11017 = vsub.s32 0, %v11016
    %v11018 = vrot.slane %v10979, %v11017
    %v11020 = vadd.f32 %v11012, %v11018
    %v11021 = vadd.f32 %v11013, %v11018
    %v11024 = vrot.slane %v11021, 7
    %vm11025 = vcmask 1041409
    %v11026 = vsel %vm11025, %v11024, %v11020
    %v11028 = vrot.slane %v11020, 1
    %v11029 = vsel %vm11025, %v11021, %v11028
    %11030 = vrot.lane.b32.xlu0 %v11029, 32
    %v11031 = vpop.permute.xlu0 %11030
    %v11033 = vrot.slane %v11020, 2
    %v11034 = vrot.slane %v11021, 1
    %v11035 = vsel %vm11025, %v11034, %v11033
    %11036 = vrot.lane.b32.xlu0 %v11035, 64
    %v11037 = vpop.permute.xlu0 %11036
    %v11039 = vrot.slane %v11020, 3
    %v11040 = vrot.slane %v11021, 2
    %v11041 = vsel %vm11025, %v11040, %v11039
    %11042 = vrot.lane.b32.xlu0 %v11041, 96
    %v11043 = vpop.permute.xlu0 %11042
    %v11045 = vrot.slane %v11020, 4
    %v11046 = vrot.slane %v11021, 3
    %v11047 = vsel %vm11025, %v11046, %v11045
    %v11049 = vrot.slane %v11020, 5
    %v11050 = vrot.slane %v11021, 4
    %v11051 = vsel %vm11025, %v11050, %v11049
    %11052 = vrot.lane.b32.xlu0 %v11051, 32
    %v11053 = vpop.permute.xlu0 %11052
    %v11055 = vrot.slane %v11020, 6
    %v11056 = vrot.slane %v11021, 5
    %v11057 = vsel %vm11025, %v11056, %v11055
    %11058 = vrot.lane.b32.xlu0 %v11057, 64
    %v11059 = vpop.permute.xlu0 %11058
    %v11061 = vrot.slane %v11020, 7
    %v11062 = vrot.slane %v11021, 6
    %v11063 = vsel %vm11025, %v11062, %v11061
    %11064 = vrot.lane.b32.xlu0 %v11063, 96
    %v11065 = vpop.permute.xlu0 %11064
    %v11067 = vsel %vm172, %v11026, %v11031
    %vm11068 = vcmask 523264
    %v11069 = vsel %vm11068, %v11067, %v11037
    %vm11070 = vcmask 785408
    %v11071 = vsel %vm11070, %v11069, %v11043
    %v11072 = vsel %vm172, %v11047, %v11053
    %v11073 = vsel %vm11068, %v11072, %v11059
    %v11074 = vsel %vm11070, %v11073, %v11065
    %v11075 = vpack.c.bf16 %v11071, %v11071
    %v11076 = vpack.c.bf16 %v11074, %v11074
    %v11077 = vld [vmem:[%s15] sm:$0xff]
    %v11078 = vld [vmem:[%s15 + $0x8] sm:$0xff]
    %v11079 = vld [vmem:[%s15 + $0x10] sm:$0xff]
    %v11080 = vld [vmem:[%s15 + $0x18] sm:$0xff]
    %v11081 = vld [vmem:[%s15 + $0x20] sm:$0xff]
    %v11082 = vld [vmem:[%s15 + $0x28] sm:$0xff]
    %v11083 = vld [vmem:[%s15 + $0x30] sm:$0xff]
    %v11084 = vld [vmem:[%s15 + $0x38] sm:$0xff]
    %v11085 = vld [vmem:[%s15 + $0x40] sm:$0xff]
    %v11086 = vld [vmem:[%s15 + $0x48] sm:$0xff]
    %v11087 = vld [vmem:[%s15 + $0x50] sm:$0xff]
    %v11088 = vld [vmem:[%s15 + $0x58] sm:$0xff]
    %v11089 = vld [vmem:[%s15 + $0x60] sm:$0xff]
    %v11090 = vld [vmem:[%s15 + $0x68] sm:$0xff]
    %v11091 = vld [vmem:[%s15 + $0x70] sm:$0xff]
    %v11092 = vld [vmem:[%s15 + $0x78] sm:$0xff]
    %v11093 = vld [vmem:[%s15 + $0x80] sm:$0xff]
    %v11094 = vld [vmem:[%s15 + $0x88] sm:$0xff]
    %v11095 = vld [vmem:[%s15 + $0x90] sm:$0xff]
    %v11096 = vld [vmem:[%s15 + $0x98] sm:$0xff]
    %v11097 = vld [vmem:[%s15 + $0xa0] sm:$0xff]
    %v11098 = vld [vmem:[%s15 + $0xa8] sm:$0xff]
    %v11099 = vld [vmem:[%s15 + $0xb0] sm:$0xff]
    %v11100 = vld [vmem:[%s15 + $0xb8] sm:$0xff]
    %v11101 = vld [vmem:[%s15 + $0xc0] sm:$0xff]
    %v11102 = vld [vmem:[%s15 + $0xc8] sm:$0xff]
    %v11103 = vld [vmem:[%s15 + $0xd0] sm:$0xff]
    %v11104 = vld [vmem:[%s15 + $0xd8] sm:$0xff]
    %v11105 = vld [vmem:[%s15 + $0xe0] sm:$0xff]
    %v11106 = vld [vmem:[%s15 + $0xe8] sm:$0xff]
    %v11107 = vld [vmem:[%s15 + $0xf0] sm:$0xff]
    %v11108 = vld [vmem:[%s15 + $0xf8] sm:$0xff]
    %v11109 = vld [vmem:[%s15 + $0x100] sm:$0xff]
    %v11110 = vld [vmem:[%s15 + $0x108] sm:$0xff]
    %v11111 = vld [vmem:[%s15 + $0x110] sm:$0xff]
    %v11112 = vld [vmem:[%s15 + $0x118] sm:$0xff]
    %v11113 = vld [vmem:[%s15 + $0x120] sm:$0xff]
    %v11114 = vld [vmem:[%s15 + $0x128] sm:$0xff]
    %v11115 = vld [vmem:[%s15 + $0x130] sm:$0xff]
    %v11116 = vld [vmem:[%s15 + $0x138] sm:$0xff]
    %v11117 = vld [vmem:[%s15 + $0x140] sm:$0xff]
    %v11118 = vld [vmem:[%s15 + $0x148] sm:$0xff]
    %v11119 = vld [vmem:[%s15 + $0x150] sm:$0xff]
    %v11120 = vld [vmem:[%s15 + $0x158] sm:$0xff]
    %v11121 = vld [vmem:[%s15 + $0x160] sm:$0xff]
    %v11122 = vld [vmem:[%s15 + $0x168] sm:$0xff]
    %v11123 = vld [vmem:[%s15 + $0x170] sm:$0xff]
    %v11124 = vld [vmem:[%s15 + $0x178] sm:$0xff]
    %v11125 = vld [vmem:[%s15 + $0x180] sm:$0xff]
    %v11126 = vld [vmem:[%s15 + $0x188] sm:$0xff]
    %v11127 = vld [vmem:[%s15 + $0x190] sm:$0xff]
    %v11128 = vld [vmem:[%s15 + $0x198] sm:$0xff]
    %v11129 = vld [vmem:[%s15 + $0x1a0] sm:$0xff]
    %v11130 = vld [vmem:[%s15 + $0x1a8] sm:$0xff]
    %v11131 = vld [vmem:[%s15 + $0x1b0] sm:$0xff]
    %v11132 = vld [vmem:[%s15 + $0x1b8] sm:$0xff]
    %v11133 = vld [vmem:[%s15 + $0x1c0] sm:$0xff]
    %v11134 = vld [vmem:[%s15 + $0x1c8] sm:$0xff]
    %v11135 = vld [vmem:[%s15 + $0x1d0] sm:$0xff]
    %v11136 = vld [vmem:[%s15 + $0x1d8] sm:$0xff]
    %v11137 = vld [vmem:[%s15 + $0x1e0] sm:$0xff]
    %v11138 = vld [vmem:[%s15 + $0x1e8] sm:$0xff]
    %v11139 = vld [vmem:[%s15 + $0x1f0] sm:$0xff]
    %v11140 = vld [vmem:[%s15 + $0x1f8] sm:$0xff]
    %v11141 = vld [vmem:[%s16] sm:$0xf]
    %v11143 = vlaneseq
    %v11144 = vshrl.u32 %v11143, 7
    %v11145 = vsub.s32 0, %v11144
    %v11146 = vrot.slane %v11141, %v11145
    %v11147 = vlaneseq
    %v11148 = vshrl.u32 %v11147, 7
    %v11149 = vsub.s32 1, %v11148
    %v11150 = vrot.slane %v11141, %v11149
    %v11151 = vlaneseq
    %v11152 = vshrl.u32 %v11151, 7
    %v11153 = vsub.s32 2, %v11152
    %v11154 = vrot.slane %v11141, %v11153
    %v11155 = vlaneseq
    %v11156 = vshrl.u32 %v11155, 7
    %v11157 = vsub.s32 3, %v11156
    %v11158 = vrot.slane %v11141, %v11157
    %v11227 = vunpack.c.l.b16 %v11077
    %v11228 = vunpack.c.h.b16 %v11077
    %v11229 = vunpack.c.l.b16 %v11078
    %v11230 = vunpack.c.h.b16 %v11078
    %v11231 = vunpack.c.l.b16 %v11079
    %v11232 = vunpack.c.h.b16 %v11079
    %v11233 = vunpack.c.l.b16 %v11080
    %v11234 = vunpack.c.h.b16 %v11080
    %v11235 = vunpack.c.l.b16 %v11081
    %v11236 = vunpack.c.h.b16 %v11081
    %v11237 = vunpack.c.l.b16 %v11082
    %v11238 = vunpack.c.h.b16 %v11082
    %v11239 = vunpack.c.l.b16 %v11083
    %v11240 = vunpack.c.h.b16 %v11083
    %v11241 = vunpack.c.l.b16 %v11084
    %v11242 = vunpack.c.h.b16 %v11084
    %v11243 = vunpack.c.l.b16 %v11085
    %v11244 = vunpack.c.h.b16 %v11085
    %v11245 = vunpack.c.l.b16 %v11086
    %v11246 = vunpack.c.h.b16 %v11086
    %v11247 = vunpack.c.l.b16 %v11087
    %v11248 = vunpack.c.h.b16 %v11087
    %v11249 = vunpack.c.l.b16 %v11088
    %v11250 = vunpack.c.h.b16 %v11088
    %v11251 = vunpack.c.l.b16 %v11089
    %v11252 = vunpack.c.h.b16 %v11089
    %v11253 = vunpack.c.l.b16 %v11090
    %v11254 = vunpack.c.h.b16 %v11090
    %v11255 = vunpack.c.l.b16 %v11091
    %v11256 = vunpack.c.h.b16 %v11091
    %v11257 = vunpack.c.l.b16 %v11092
    %v11258 = vunpack.c.h.b16 %v11092
    %v11259 = vunpack.c.l.b16 %v11093
    %v11260 = vunpack.c.h.b16 %v11093
    %v11261 = vunpack.c.l.b16 %v11094
    %v11262 = vunpack.c.h.b16 %v11094
    %v11263 = vunpack.c.l.b16 %v11095
    %v11264 = vunpack.c.h.b16 %v11095
    %v11265 = vunpack.c.l.b16 %v11096
    %v11266 = vunpack.c.h.b16 %v11096
    %v11267 = vunpack.c.l.b16 %v11097
    %v11268 = vunpack.c.h.b16 %v11097
    %v11269 = vunpack.c.l.b16 %v11098
    %v11270 = vunpack.c.h.b16 %v11098
    %v11271 = vunpack.c.l.b16 %v11099
    %v11272 = vunpack.c.h.b16 %v11099
    %v11273 = vunpack.c.l.b16 %v11100
    %v11274 = vunpack.c.h.b16 %v11100
    %v11275 = vunpack.c.l.b16 %v11101
    %v11276 = vunpack.c.h.b16 %v11101
    %v11277 = vunpack.c.l.b16 %v11102
    %v11278 = vunpack.c.h.b16 %v11102
    %v11279 = vunpack.c.l.b16 %v11103
    %v11280 = vunpack.c.h.b16 %v11103
    %v11281 = vunpack.c.l.b16 %v11104
    %v11282 = vunpack.c.h.b16 %v11104
    %v11283 = vunpack.c.l.b16 %v11105
    %v11284 = vunpack.c.h.b16 %v11105
    %v11285 = vunpack.c.l.b16 %v11106
    %v11286 = vunpack.c.h.b16 %v11106
    %v11287 = vunpack.c.l.b16 %v11107
    %v11288 = vunpack.c.h.b16 %v11107
    %v11289 = vunpack.c.l.b16 %v11108
    %v11290 = vunpack.c.h.b16 %v11108
    %v11291 = vunpack.c.l.b16 %v11109
    %v11292 = vunpack.c.h.b16 %v11109
    %v11293 = vunpack.c.l.b16 %v11110
    %v11294 = vunpack.c.h.b16 %v11110
    %v11295 = vunpack.c.l.b16 %v11111
    %v11296 = vunpack.c.h.b16 %v11111
    %v11297 = vunpack.c.l.b16 %v11112
    %v11298 = vunpack.c.h.b16 %v11112
    %v11299 = vunpack.c.l.b16 %v11113
    %v11300 = vunpack.c.h.b16 %v11113
    %v11301 = vunpack.c.l.b16 %v11114
    %v11302 = vunpack.c.h.b16 %v11114
    %v11303 = vunpack.c.l.b16 %v11115
    %v11304 = vunpack.c.h.b16 %v11115
    %v11305 = vunpack.c.l.b16 %v11116
    %v11306 = vunpack.c.h.b16 %v11116
    %v11307 = vunpack.c.l.b16 %v11117
    %v11308 = vunpack.c.h.b16 %v11117
    %v11309 = vunpack.c.l.b16 %v11118
    %v11310 = vunpack.c.h.b16 %v11118
    %v11311 = vunpack.c.l.b16 %v11119
    %v11312 = vunpack.c.h.b16 %v11119
    %v11313 = vunpack.c.l.b16 %v11120
    %v11314 = vunpack.c.h.b16 %v11120
    %v11315 = vunpack.c.l.b16 %v11121
    %v11316 = vunpack.c.h.b16 %v11121
    %v11317 = vunpack.c.l.b16 %v11122
    %v11318 = vunpack.c.h.b16 %v11122
    %v11319 = vunpack.c.l.b16 %v11123
    %v11320 = vunpack.c.h.b16 %v11123
    %v11321 = vunpack.c.l.b16 %v11124
    %v11322 = vunpack.c.h.b16 %v11124
    %v11323 = vunpack.c.l.b16 %v11125
    %v11324 = vunpack.c.h.b16 %v11125
    %v11325 = vunpack.c.l.b16 %v11126
    %v11326 = vunpack.c.h.b16 %v11126
    %v11327 = vunpack.c.l.b16 %v11127
    %v11328 = vunpack.c.h.b16 %v11127
    %v11329 = vunpack.c.l.b16 %v11128
    %v11330 = vunpack.c.h.b16 %v11128
    %v11331 = vunpack.c.l.b16 %v11129
    %v11332 = vunpack.c.h.b16 %v11129
    %v11333 = vunpack.c.l.b16 %v11130
    %v11334 = vunpack.c.h.b16 %v11130
    %v11335 = vunpack.c.l.b16 %v11131
    %v11336 = vunpack.c.h.b16 %v11131
    %v11337 = vunpack.c.l.b16 %v11132
    %v11338 = vunpack.c.h.b16 %v11132
    %v11339 = vunpack.c.l.b16 %v11133
    %v11340 = vunpack.c.h.b16 %v11133
    %v11341 = vunpack.c.l.b16 %v11134
    %v11342 = vunpack.c.h.b16 %v11134
    %v11343 = vunpack.c.l.b16 %v11135
    %v11344 = vunpack.c.h.b16 %v11135
    %v11345 = vunpack.c.l.b16 %v11136
    %v11346 = vunpack.c.h.b16 %v11136
    %v11347 = vunpack.c.l.b16 %v11137
    %v11348 = vunpack.c.h.b16 %v11137
    %v11349 = vunpack.c.l.b16 %v11138
    %v11350 = vunpack.c.h.b16 %v11138
    %v11351 = vunpack.c.l.b16 %v11139
    %v11352 = vunpack.c.h.b16 %v11139
    %v11353 = vunpack.c.l.b16 %v11140
    %v11354 = vunpack.c.h.b16 %v11140
    %v11355 = vpack.c.b16 %v11231, %v11227
    %v11356 = vpack.c.b16 %v11232, %v11228
    %v11357 = vpack.c.b16 %v11233, %v11229
    %v11358 = vpack.c.b16 %v11234, %v11230
    %v11359 = vpack.c.b16 %v11239, %v11235
    %v11360 = vpack.c.b16 %v11240, %v11236
    %v11361 = vpack.c.b16 %v11241, %v11237
    %v11362 = vpack.c.b16 %v11242, %v11238
    %v11363 = vpack.c.b16 %v11247, %v11243
    %v11364 = vpack.c.b16 %v11248, %v11244
    %v11365 = vpack.c.b16 %v11249, %v11245
    %v11366 = vpack.c.b16 %v11250, %v11246
    %v11367 = vpack.c.b16 %v11255, %v11251
    %v11368 = vpack.c.b16 %v11256, %v11252
    %v11369 = vpack.c.b16 %v11257, %v11253
    %v11370 = vpack.c.b16 %v11258, %v11254
    %v11371 = vpack.c.b16 %v11263, %v11259
    %v11372 = vpack.c.b16 %v11264, %v11260
    %v11373 = vpack.c.b16 %v11265, %v11261
    %v11374 = vpack.c.b16 %v11266, %v11262
    %v11375 = vpack.c.b16 %v11271, %v11267
    %v11376 = vpack.c.b16 %v11272, %v11268
    %v11377 = vpack.c.b16 %v11273, %v11269
    %v11378 = vpack.c.b16 %v11274, %v11270
    %v11379 = vpack.c.b16 %v11279, %v11275
    %v11380 = vpack.c.b16 %v11280, %v11276
    %v11381 = vpack.c.b16 %v11281, %v11277
    %v11382 = vpack.c.b16 %v11282, %v11278
    %v11383 = vpack.c.b16 %v11287, %v11283
    %v11384 = vpack.c.b16 %v11288, %v11284
    %v11385 = vpack.c.b16 %v11289, %v11285
    %v11386 = vpack.c.b16 %v11290, %v11286
    %v11387 = vpack.c.b16 %v11295, %v11291
    %v11388 = vpack.c.b16 %v11296, %v11292
    %v11389 = vpack.c.b16 %v11297, %v11293
    %v11390 = vpack.c.b16 %v11298, %v11294
    %v11391 = vpack.c.b16 %v11303, %v11299
    %v11392 = vpack.c.b16 %v11304, %v11300
    %v11393 = vpack.c.b16 %v11305, %v11301
    %v11394 = vpack.c.b16 %v11306, %v11302
    %v11395 = vpack.c.b16 %v11311, %v11307
    %v11396 = vpack.c.b16 %v11312, %v11308
    %v11397 = vpack.c.b16 %v11313, %v11309
    %v11398 = vpack.c.b16 %v11314, %v11310
    %v11399 = vpack.c.b16 %v11319, %v11315
    %v11400 = vpack.c.b16 %v11320, %v11316
    %v11401 = vpack.c.b16 %v11321, %v11317
    %v11402 = vpack.c.b16 %v11322, %v11318
    %v11403 = vpack.c.b16 %v11327, %v11323
    %v11404 = vpack.c.b16 %v11328, %v11324
    %v11405 = vpack.c.b16 %v11329, %v11325
    %v11406 = vpack.c.b16 %v11330, %v11326
    %v11407 = vpack.c.b16 %v11335, %v11331
    %v11408 = vpack.c.b16 %v11336, %v11332
    %v11409 = vpack.c.b16 %v11337, %v11333
    %v11410 = vpack.c.b16 %v11338, %v11334
    %v11411 = vpack.c.b16 %v11343, %v11339
    %v11412 = vpack.c.b16 %v11344, %v11340
    %v11413 = vpack.c.b16 %v11345, %v11341
    %v11414 = vpack.c.b16 %v11346, %v11342
    %v11415 = vpack.c.b16 %v11351, %v11347
    %v11416 = vpack.c.b16 %v11352, %v11348
    %v11417 = vpack.c.b16 %v11353, %v11349
    %v11418 = vpack.c.b16 %v11354, %v11350
    %11483 = vmatprep.subr.bf16.mxu0 %v11356
    %11484 = vmatpush1.bf16.msra.mxu0 %v11355
    %11485 = vmatprep.subr.bf16.mxu0 %v11360
    %11486 = vmatpush1.bf16.msra.mxu0 %v11359
    %11487 = vmatprep.subr.bf16.mxu0 %v11364
    %11488 = vmatpush1.bf16.msra.mxu0 %v11363
    %11489 = vmatprep.subr.bf16.mxu0 %v11368
    %11490 = vmatpush1.bf16.msra.mxu0 %v11367
    %11491 = vmatprep.subr.bf16.mxu0 %v11372
    %11492 = vmatpush1.bf16.msra.mxu0 %v11371
    %11493 = vmatprep.subr.bf16.mxu0 %v11376
    %11494 = vmatpush1.bf16.msra.mxu0 %v11375
    %11495 = vmatprep.subr.bf16.mxu0 %v11380
    %11496 = vmatpush1.bf16.msra.mxu0 %v11379
    %11497 = vmatprep.subr.bf16.mxu0 %v11384
    %11498 = vmatpush1.bf16.msra.mxu0 %v11383
    %11499 = vmatprep.subr.bf16.mxu0 %v11388
    %11500 = vmatpush1.bf16.msra.mxu0 %v11387
    %11501 = vmatprep.subr.bf16.mxu0 %v11392
    %11502 = vmatpush1.bf16.msra.mxu0 %v11391
    %11503 = vmatprep.subr.bf16.mxu0 %v11396
    %11504 = vmatpush1.bf16.msra.mxu0 %v11395
    %11505 = vmatprep.subr.bf16.mxu0 %v11400
    %11506 = vmatpush1.bf16.msra.mxu0 %v11399
    %11507 = vmatprep.subr.bf16.mxu0 %v11404
    %11508 = vmatpush1.bf16.msra.mxu0 %v11403
    %11509 = vmatprep.subr.bf16.mxu0 %v11408
    %11510 = vmatpush1.bf16.msra.mxu0 %v11407
    %11511 = vmatprep.subr.bf16.mxu0 %v11412
    %11512 = vmatpush1.bf16.msra.mxu0 %v11411
    %11513 = vmatprep.subr.bf16.mxu0 %v11416
    %11514 = vmatpush1.bf16.msra.mxu0 %v11415
    %11515 = vmatprep.mubr.bf16.mxu0 %v11076
    %11516 = vmatmul.mubr.bf16.gmra.mrb[0].mxu0 %v11075
    %v11517 = vpop.f32.mrb[0].mxu0
    %v11518 = vadd.f32 %v11146, %v11517
    %v11519 = vpop.f32.mrb[0].mxu0
    %v11520 = vadd.f32 %v11150, %v11519
    %v11521 = vpop.f32.mrb[0].mxu0
    %v11522 = vpop.f32.mrb[0].mxu0
    %11523 = vdwg.mxu0
    %11524 = vmatprep.subr.bf16.mxu0 %v11358
    %11525 = vmatpush1.bf16.msra.mxu0 %v11357
    %11526 = vmatprep.subr.bf16.mxu0 %v11362
    %11527 = vmatpush1.bf16.msra.mxu0 %v11361
    %11528 = vmatprep.subr.bf16.mxu0 %v11366
    %11529 = vmatpush1.bf16.msra.mxu0 %v11365
    %11530 = vmatprep.subr.bf16.mxu0 %v11370
    %11531 = vmatpush1.bf16.msra.mxu0 %v11369
    %11532 = vmatprep.subr.bf16.mxu0 %v11374
    %11533 = vmatpush1.bf16.msra.mxu0 %v11373
    %11534 = vmatprep.subr.bf16.mxu0 %v11378
    %11535 = vmatpush1.bf16.msra.mxu0 %v11377
    %11536 = vmatprep.subr.bf16.mxu0 %v11382
    %11537 = vmatpush1.bf16.msra.mxu0 %v11381
    %11538 = vmatprep.subr.bf16.mxu0 %v11386
    %11539 = vmatpush1.bf16.msra.mxu0 %v11385
    %11540 = vmatprep.subr.bf16.mxu0 %v11390
    %11541 = vmatpush1.bf16.msra.mxu0 %v11389
    %11542 = vmatprep.subr.bf16.mxu0 %v11394
    %11543 = vmatpush1.bf16.msra.mxu0 %v11393
    %11544 = vmatprep.subr.bf16.mxu0 %v11398
    %11545 = vmatpush1.bf16.msra.mxu0 %v11397
    %11546 = vmatprep.subr.bf16.mxu0 %v11402
    %11547 = vmatpush1.bf16.msra.mxu0 %v11401
    %11548 = vmatprep.subr.bf16.mxu0 %v11406
    %11549 = vmatpush1.bf16.msra.mxu0 %v11405
    %11550 = vmatprep.subr.bf16.mxu0 %v11410
    %11551 = vmatpush1.bf16.msra.mxu0 %v11409
    %11552 = vmatprep.subr.bf16.mxu0 %v11414
    %11553 = vmatpush1.bf16.msra.mxu0 %v11413
    %11554 = vmatprep.subr.bf16.mxu0 %v11418
    %11555 = vmatpush1.bf16.msra.mxu0 %v11417
    %11556 = vmatprep.mubr.bf16.mxu0 %v11076
    %11557 = vmatmul.mubr.bf16.gmra.mrb[0].mxu0 %v11075
    %v11558 = vpop.f32.mrb[0].mxu0
    %v11559 = vadd.f32 %v11154, %v11558
    %v11560 = vpop.f32.mrb[0].mxu0
    %v11561 = vadd.f32 %v11158, %v11560
    %v11562 = vpop.f32.mrb[0].mxu0
    %v11563 = vpop.f32.mrb[0].mxu0
    %11564 = vdwg.mxu0
    %vm11565 = vcmp.ge.f32.partialorder %v11518, 0.0
    %vm11566 = vcmp.ge.f32.partialorder %v11520, 0.0
    %vm11567 = vcmp.ge.f32.partialorder %v11559, 0.0
    %vm11568 = vcmp.ge.f32.partialorder %v11561, 0.0
    %v11569 = vmul.f32 %v11518, 0.01
    %v11570 = vmul.f32 %v11520, 0.01
    %v11571 = vmul.f32 %v11559, 0.01
    %v11572 = vmul.f32 %v11561, 0.01
    %v11573 = vsel %vm11565, %v11518, %v11569
    %v11574 = vsel %vm11566, %v11520, %v11570
    %v11575 = vsel %vm11567, %v11559, %v11571
    %v11576 = vsel %vm11568, %v11561, %v11572
    %v11577 = vpack.c.bf16 %v11573, %v11573
    %v11578 = vpack.c.bf16 %v11574, %v11574
    %v11579 = vpack.c.bf16 %v11575, %v11575
    %v11580 = vpack.c.bf16 %v11576, %v11576
    %v11581 = vld [vmem:[%s17] sm:$0xf]
    %v11582 = vld [vmem:[%s17 + $0x4] sm:$0xf]
    %v11583 = vld [vmem:[%s17 + $0x8] sm:$0xf]
    %v11584 = vld [vmem:[%s17 + $0xc] sm:$0xf]
    %v11585 = vld [vmem:[%s17 + $0x10] sm:$0xf]
    %v11586 = vld [vmem:[%s17 + $0x14] sm:$0xf]
    %v11587 = vld [vmem:[%s17 + $0x18] sm:$0xf]
    %v11588 = vld [vmem:[%s17 + $0x1c] sm:$0xf]
    %v11589 = vld [vmem:[%s17 + $0x20] sm:$0xf]
    %v11590 = vld [vmem:[%s17 + $0x24] sm:$0xf]
    %v11591 = vld [vmem:[%s17 + $0x28] sm:$0xf]
    %v11592 = vld [vmem:[%s17 + $0x2c] sm:$0xf]
    %v11593 = vld [vmem:[%s17 + $0x30] sm:$0xf]
    %v11594 = vld [vmem:[%s17 + $0x34] sm:$0xf]
    %v11595 = vld [vmem:[%s17 + $0x38] sm:$0xf]
    %v11596 = vld [vmem:[%s17 + $0x3c] sm:$0xf]
    %v11597 = vld [vmem:[%s17 + $0x40] sm:$0xf]
    %v11598 = vld [vmem:[%s17 + $0x44] sm:$0xf]
    %v11599 = vld [vmem:[%s17 + $0x48] sm:$0xf]
    %v11600 = vld [vmem:[%s17 + $0x4c] sm:$0xf]
    %v11601 = vld [vmem:[%s17 + $0x50] sm:$0xf]
    %v11602 = vld [vmem:[%s17 + $0x54] sm:$0xf]
    %v11603 = vld [vmem:[%s17 + $0x58] sm:$0xf]
    %v11604 = vld [vmem:[%s17 + $0x5c] sm:$0xf]
    %v11605 = vld [vmem:[%s17 + $0x60] sm:$0xf]
    %v11606 = vld [vmem:[%s17 + $0x64] sm:$0xf]
    %v11607 = vld [vmem:[%s17 + $0x68] sm:$0xf]
    %v11608 = vld [vmem:[%s17 + $0x6c] sm:$0xf]
    %v11609 = vld [vmem:[%s17 + $0x70] sm:$0xf]
    %v11610 = vld [vmem:[%s17 + $0x74] sm:$0xf]
    %v11611 = vld [vmem:[%s17 + $0x78] sm:$0xf]
    %v11612 = vld [vmem:[%s17 + $0x7c] sm:$0xf]
    %v11613 = vld [vmem:[%s17 + $0x80] sm:$0xf]
    %v11614 = vld [vmem:[%s17 + $0x84] sm:$0xf]
    %v11615 = vld [vmem:[%s17 + $0x88] sm:$0xf]
    %v11616 = vld [vmem:[%s17 + $0x8c] sm:$0xf]
    %v11617 = vld [vmem:[%s17 + $0x90] sm:$0xf]
    %v11618 = vld [vmem:[%s17 + $0x94] sm:$0xf]
    %v11619 = vld [vmem:[%s17 + $0x98] sm:$0xf]
    %v11620 = vld [vmem:[%s17 + $0x9c] sm:$0xf]
    %v11621 = vld [vmem:[%s17 + $0xa0] sm:$0xf]
    %v11622 = vld [vmem:[%s17 + $0xa4] sm:$0xf]
    %v11623 = vld [vmem:[%s17 + $0xa8] sm:$0xf]
    %v11624 = vld [vmem:[%s17 + $0xac] sm:$0xf]
    %v11625 = vld [vmem:[%s17 + $0xb0] sm:$0xf]
    %v11626 = vld [vmem:[%s17 + $0xb4] sm:$0xf]
    %v11627 = vld [vmem:[%s17 + $0xb8] sm:$0xf]
    %v11628 = vld [vmem:[%s17 + $0xbc] sm:$0xf]
    %v11629 = vld [vmem:[%s17 + $0xc0] sm:$0xf]
    %v11630 = vld [vmem:[%s17 + $0xc4] sm:$0xf]
    %v11631 = vld [vmem:[%s17 + $0xc8] sm:$0xf]
    %v11632 = vld [vmem:[%s17 + $0xcc] sm:$0xf]
    %v11633 = vld [vmem:[%s17 + $0xd0] sm:$0xf]
    %v11634 = vld [vmem:[%s17 + $0xd4] sm:$0xf]
    %v11635 = vld [vmem:[%s17 + $0xd8] sm:$0xf]
    %v11636 = vld [vmem:[%s17 + $0xdc] sm:$0xf]
    %v11637 = vld [vmem:[%s17 + $0xe0] sm:$0xf]
    %v11638 = vld [vmem:[%s17 + $0xe4] sm:$0xf]
    %v11639 = vld [vmem:[%s17 + $0xe8] sm:$0xf]
    %v11640 = vld [vmem:[%s17 + $0xec] sm:$0xf]
    %v11641 = vld [vmem:[%s17 + $0xf0] sm:$0xf]
    %v11642 = vld [vmem:[%s17 + $0xf4] sm:$0xf]
    %v11643 = vld [vmem:[%s17 + $0xf8] sm:$0xf]
    %v11644 = vld [vmem:[%s17 + $0xfc] sm:$0xf]
    %v11645 = vld [vmem:[%s18] sm:$0x1]
    %v11647 = vlaneseq
    %v11648 = vshrl.u32 %v11647, 7
    %v11649 = vsub.s32 0, %v11648
    %v11650 = vrot.slane %v11645, %v11649
    %v11716 = vunpack.c.l.b16 %v11581
    %v11717 = vunpack.c.l.b16 %v11582
    %v11718 = vunpack.c.l.b16 %v11583
    %v11719 = vunpack.c.l.b16 %v11584
    %v11720 = vunpack.c.l.b16 %v11585
    %v11721 = vunpack.c.l.b16 %v11586
    %v11722 = vunpack.c.l.b16 %v11587
    %v11723 = vunpack.c.l.b16 %v11588
    %v11724 = vunpack.c.l.b16 %v11589
    %v11725 = vunpack.c.l.b16 %v11590
    %v11726 = vunpack.c.l.b16 %v11591
    %v11727 = vunpack.c.l.b16 %v11592
    %v11728 = vunpack.c.l.b16 %v11593
    %v11729 = vunpack.c.l.b16 %v11594
    %v11730 = vunpack.c.l.b16 %v11595
    %v11731 = vunpack.c.l.b16 %v11596
    %v11732 = vunpack.c.l.b16 %v11597
    %v11733 = vunpack.c.l.b16 %v11598
    %v11734 = vunpack.c.l.b16 %v11599
    %v11735 = vunpack.c.l.b16 %v11600
    %v11736 = vunpack.c.l.b16 %v11601
    %v11737 = vunpack.c.l.b16 %v11602
    %v11738 = vunpack.c.l.b16 %v11603
    %v11739 = vunpack.c.l.b16 %v11604
    %v11740 = vunpack.c.l.b16 %v11605
    %v11741 = vunpack.c.l.b16 %v11606
    %v11742 = vunpack.c.l.b16 %v11607
    %v11743 = vunpack.c.l.b16 %v11608
    %v11744 = vunpack.c.l.b16 %v11609
    %v11745 = vunpack.c.l.b16 %v11610
    %v11746 = vunpack.c.l.b16 %v11611
    %v11747 = vunpack.c.l.b16 %v11612
    %v11748 = vunpack.c.l.b16 %v11613
    %v11749 = vunpack.c.l.b16 %v11614
    %v11750 = vunpack.c.l.b16 %v11615
    %v11751 = vunpack.c.l.b16 %v11616
    %v11752 = vunpack.c.l.b16 %v11617
    %v11753 = vunpack.c.l.b16 %v11618
    %v11754 = vunpack.c.l.b16 %v11619
    %v11755 = vunpack.c.l.b16 %v11620
    %v11756 = vunpack.c.l.b16 %v11621
    %v11757 = vunpack.c.l.b16 %v11622
    %v11758 = vunpack.c.l.b16 %v11623
    %v11759 = vunpack.c.l.b16 %v11624
    %v11760 = vunpack.c.l.b16 %v11625
    %v11761 = vunpack.c.l.b16 %v11626
    %v11762 = vunpack.c.l.b16 %v11627
    %v11763 = vunpack.c.l.b16 %v11628
    %v11764 = vunpack.c.l.b16 %v11629
    %v11765 = vunpack.c.l.b16 %v11630
    %v11766 = vunpack.c.l.b16 %v11631
    %v11767 = vunpack.c.l.b16 %v11632
    %v11768 = vunpack.c.l.b16 %v11633
    %v11769 = vunpack.c.l.b16 %v11634
    %v11770 = vunpack.c.l.b16 %v11635
    %v11771 = vunpack.c.l.b16 %v11636
    %v11772 = vunpack.c.l.b16 %v11637
    %v11773 = vunpack.c.l.b16 %v11638
    %v11774 = vunpack.c.l.b16 %v11639
    %v11775 = vunpack.c.l.b16 %v11640
    %v11776 = vunpack.c.l.b16 %v11641
    %v11777 = vunpack.c.l.b16 %v11642
    %v11778 = vunpack.c.l.b16 %v11643
    %v11779 = vunpack.c.l.b16 %v11644
    %v11780 = vpack.c.b16 %v11717, %v11716
    %v11781 = vpack.c.b16 %v11719, %v11718
    %v11782 = vpack.c.b16 %v11721, %v11720
    %v11783 = vpack.c.b16 %v11723, %v11722
    %v11784 = vpack.c.b16 %v11725, %v11724
    %v11785 = vpack.c.b16 %v11727, %v11726
    %v11786 = vpack.c.b16 %v11729, %v11728
    %v11787 = vpack.c.b16 %v11731, %v11730
    %v11788 = vpack.c.b16 %v11733, %v11732
    %v11789 = vpack.c.b16 %v11735, %v11734
    %v11790 = vpack.c.b16 %v11737, %v11736
    %v11791 = vpack.c.b16 %v11739, %v11738
    %v11792 = vpack.c.b16 %v11741, %v11740
    %v11793 = vpack.c.b16 %v11743, %v11742
    %v11794 = vpack.c.b16 %v11745, %v11744
    %v11795 = vpack.c.b16 %v11747, %v11746
    %v11796 = vpack.c.b16 %v11749, %v11748
    %v11797 = vpack.c.b16 %v11751, %v11750
    %v11798 = vpack.c.b16 %v11753, %v11752
    %v11799 = vpack.c.b16 %v11755, %v11754
    %v11800 = vpack.c.b16 %v11757, %v11756
    %v11801 = vpack.c.b16 %v11759, %v11758
    %v11802 = vpack.c.b16 %v11761, %v11760
    %v11803 = vpack.c.b16 %v11763, %v11762
    %v11804 = vpack.c.b16 %v11765, %v11764
    %v11805 = vpack.c.b16 %v11767, %v11766
    %v11806 = vpack.c.b16 %v11769, %v11768
    %v11807 = vpack.c.b16 %v11771, %v11770
    %v11808 = vpack.c.b16 %v11773, %v11772
    %v11809 = vpack.c.b16 %v11775, %v11774
    %v11810 = vpack.c.b16 %v11777, %v11776
    %v11811 = vpack.c.b16 %v11779, %v11778
    %11844 = vmatprep.subr.bf16.mxu0 0
    %11845 = vmatpush1.bf16.msra.mxu0 %v11780
    %11846 = vmatprep.subr.bf16.mxu0 0
    %11847 = vmatpush1.bf16.msra.mxu0 %v11781
    %11848 = vmatprep.subr.bf16.mxu0 0
    %11849 = vmatpush1.bf16.msra.mxu0 %v11782
    %11850 = vmatprep.subr.bf16.mxu0 0
    %11851 = vmatpush1.bf16.msra.mxu0 %v11783
    %11852 = vmatprep.subr.bf16.mxu0 0
    %11853 = vmatpush1.bf16.msra.mxu0 %v11784
    %11854 = vmatprep.subr.bf16.mxu0 0
    %11855 = vmatpush1.bf16.msra.mxu0 %v11785
    %11856 = vmatprep.subr.bf16.mxu0 0
    %11857 = vmatpush1.bf16.msra.mxu0 %v11786
    %11858 = vmatprep.subr.bf16.mxu0 0
    %11859 = vmatpush1.bf16.msra.mxu0 %v11787
    %11860 = vmatprep.subr.bf16.mxu0 0
    %11861 = vmatpush1.bf16.msra.mxu0 %v11788
    %11862 = vmatprep.subr.bf16.mxu0 0
    %11863 = vmatpush1.bf16.msra.mxu0 %v11789
    %11864 = vmatprep.subr.bf16.mxu0 0
    %11865 = vmatpush1.bf16.msra.mxu0 %v11790
    %11866 = vmatprep.subr.bf16.mxu0 0
    %11867 = vmatpush1.bf16.msra.mxu0 %v11791
    %11868 = vmatprep.subr.bf16.mxu0 0
    %11869 = vmatpush1.bf16.msra.mxu0 %v11792
    %11870 = vmatprep.subr.bf16.mxu0 0
    %11871 = vmatpush1.bf16.msra.mxu0 %v11793
    %11872 = vmatprep.subr.bf16.mxu0 0
    %11873 = vmatpush1.bf16.msra.mxu0 %v11794
    %11874 = vmatprep.subr.bf16.mxu0 0
    %11875 = vmatpush1.bf16.msra.mxu0 %v11795
    %11876 = vmatprep.mubr.bf16.mxu0 %v11578
    %11877 = vmatmul.mubr.bf16.gmra.mrb[0].mxu0 %v11577
    %v11878 = vpop.f32.mrb[0].mxu0
    %v11879 = vadd.f32 %v11650, %v11878
    %v11880 = vpop.f32.mrb[0].mxu0
    %v11881 = vpop.f32.mrb[0].mxu0
    %v11882 = vpop.f32.mrb[0].mxu0
    %11883 = vdwg.mxu0
    %11884 = vmatprep.subr.bf16.mxu0 0
    %11885 = vmatpush1.bf16.msra.mxu0 %v11796
    %11886 = vmatprep.subr.bf16.mxu0 0
    %11887 = vmatpush1.bf16.msra.mxu0 %v11797
    %11888 = vmatprep.subr.bf16.mxu0 0
    %11889 = vmatpush1.bf16.msra.mxu0 %v11798
    %11890 = vmatprep.subr.bf16.mxu0 0
    %11891 = vmatpush1.bf16.msra.mxu0 %v11799
    %11892 = vmatprep.subr.bf16.mxu0 0
    %11893 = vmatpush1.bf16.msra.mxu0 %v11800
    %11894 = vmatprep.subr.bf16.mxu0 0
    %11895 = vmatpush1.bf16.msra.mxu0 %v11801
    %11896 = vmatprep.subr.bf16.mxu0 0
    %11897 = vmatpush1.bf16.msra.mxu0 %v11802
    %11898 = vmatprep.subr.bf16.mxu0 0
    %11899 = vmatpush1.bf16.msra.mxu0 %v11803
    %11900 = vmatprep.subr.bf16.mxu0 0
    %11901 = vmatpush1.bf16.msra.mxu0 %v11804
    %11902 = vmatprep.subr.bf16.mxu0 0
    %11903 = vmatpush1.bf16.msra.mxu0 %v11805
    %11904 = vmatprep.subr.bf16.mxu0 0
    %11905 = vmatpush1.bf16.msra.mxu0 %v11806
    %11906 = vmatprep.subr.bf16.mxu0 0
    %11907 = vmatpush1.bf16.msra.mxu0 %v11807
    %11908 = vmatprep.subr.bf16.mxu0 0
    %11909 = vmatpush1.bf16.msra.mxu0 %v11808
    %11910 = vmatprep.subr.bf16.mxu0 0
    %11911 = vmatpush1.bf16.msra.mxu0 %v11809
    %11912 = vmatprep.subr.bf16.mxu0 0
    %11913 = vmatpush1.bf16.msra.mxu0 %v11810
    %11914 = vmatprep.subr.bf16.mxu0 0
    %11915 = vmatpush1.bf16.msra.mxu0 %v11811
    %11916 = vmatprep.mubr.bf16.mxu0 %v11580
    %11917 = vmatmul.mubr.bf16.gmra.mrb[0].mxu0 %v11579
    %v11918 = vpop.f32.mrb[0].mxu0
    %v11919 = vadd.f32 %v11879, %v11918
    %v11920 = vpop.f32.mrb[0].mxu0
    %v11921 = vpop.f32.mrb[0].mxu0
    %v11922 = vpop.f32.mrb[0].mxu0
    %11923 = vdwg.mxu0
    %v11924 = vmul.f32 %v11919, %v11919
    %vm11925 = vcmask 254976
    %v11926 = vsel %vm11925, %v11924, 0.0
    %11927 = vadd.xlane.f32.xlu0 %v11926
    %v11928 = vpop.xlane.xlu0 %11927
    %v11929 = vrsqrt.pop %v11928
    %v11930 = vmul.f32 %v11919, %v11929
    %11931 = vst.msk [vmem:[#allocation6] sm:$0x3] %vm11925, %v11930
    // Predicated region
    $region82: #{tpu_custom_call.1} parent=1 // pred_check
      _
    $region83: #{tpu_custom_call.1} parent=1 // pred_check_branch
      %11933 = sbr.rel (0) target = $region85
    $region84: #{tpu_custom_call.1} parent=1 // pred_region
      %s11935 = ssub.s32 32, 32
      %11936 = vsyncadd [#allocation4], %s11935
      %s11938 = sshll.u32 [#allocation6], 4
      %s11939 = int_to_ptr.vmem [resolvable:$true] %s11938
      %11941 = dma.vmem_to_hbm [thread:$0]  %s11939, 32, %s19, [#allocation4]
    $region85: #{tpu_custom_call.1} parent=1 // pred_fallthru
      _
    // Predicated region
    $region86: #{tpu_custom_call.1} parent=1 // pred_check
      _
    $region87: #{tpu_custom_call.1} parent=1 // pred_check_branch
      %11943 = sbr.rel (0) target = $region89
    $region88: #{tpu_custom_call.1} parent=1 // pred_region
      %11944 = dma.done [#allocation4], 32
    $region89: #{tpu_custom_call.1} parent=1 // pred_fallthru
      _
    %11945 = vsyncpa [#allocation4], 1
    %11946 = vsyncpa [#allocation5], 1

</llo_original>
